<compile_context>
chip_gen: v7x
topology: tpu7x:2x2x1
jax: 0.10.0
libtpu: 0.0.40
codegen_flags: <defaults>
</compile_context>

<pallas_src>
import math

import jax
import jax.numpy as jnp
from jax import lax
from jax.experimental import pallas as pl
from jax.experimental.pallas import tpu as pltpu

# ---------------- config (scaled-down, see note above) ----------------
N_FINE = 8
N_VARS = 1
INPUT_DIM = N_FINE * N_FINE * N_VARS + 1       # 65  (features + time channel)
F_DIM = INPUT_DIM - 1                          # 64
IPAD = 128                                     # lane-dense padded feature dim
D_MODEL = 32
NHEAD = 4
HEAD_DIM = D_MODEL // NHEAD                    # 8
NUM_LAYERS = 2
DFF = 64            # nn.TransformerEncoderLayer default is 2048; scaled down
EPS = 1e-5          # LayerNorm default eps
MAX_LEN = 100       # PositionalEncoding max_len
T_STEPS = 5
S_MAX = max(8, ((T_STEPS + 7) // 8) * 8)       # static padded sequence length
assert T_STEPS <= S_MAX
NEG_INF = -1e30

# packed bias / LayerNorm vector buffer layout: one 128-wide row per vector
_ROW_EMB_B = 0
_ROW_DEC_B = 1
_VPL = 8                                        # vector rows per encoder layer
N_VEC_ROWS = 2 + NUM_LAYERS * _VPL              # 18


# ---------------- parameter / buffer construction (glue) ----------------
def make_pe(max_len, d_model):
    position = jnp.arange(max_len, dtype=jnp.float32)[:, None]
    div_term = jnp.exp(
        jnp.arange(0, d_model, 2, dtype=jnp.float32)
        * (-math.log(10000.0) / d_model)
    )
    pe = jnp.zeros((max_len, d_model), jnp.float32)
    pe = pe.at[:, 0::2].set(jnp.sin(position * div_term))
    pe = pe.at[:, 1::2].set(jnp.cos(position * div_term))
    return pe                                                  # (max_len, D)


def init_params(key):
    keys = iter(jax.random.split(key, 128))

    def lin(in_f, out_f):
        # weight stored pre-transposed: (in_features, out_features)
        w = jax.random.normal(next(keys), (in_f, out_f), jnp.float32) * (
            1.0 / math.sqrt(in_f)
        )
        b = jax.random.normal(next(keys), (1, out_f), jnp.float32) * 0.02
        return w, b

    params = {}
    params["emb_w"], params["emb_b"] = lin(INPUT_DIM, D_MODEL)   # nn.Linear(input_dim, d_model)
    params["dec_w"], params["dec_b"] = lin(D_MODEL, INPUT_DIM)   # nn.Linear(d_model, input_dim)
    layers = []
    for _ in range(NUM_LAYERS):
        ipw, ipb = lin(D_MODEL, 3 * D_MODEL)                     # in_proj (q,k,v fused)
        opw, opb = lin(D_MODEL, D_MODEL)                         # out_proj
        n1w = jnp.ones((1, D_MODEL), jnp.float32)
        n1b = jnp.zeros((1, D_MODEL), jnp.float32)
        w1, b1 = lin(D_MODEL, DFF)                               # linear1
        w2, b2 = lin(DFF, D_MODEL)                               # linear2
        n2w = jnp.ones((1, D_MODEL), jnp.float32)
        n2b = jnp.zeros((1, D_MODEL), jnp.float32)
        layers.append((ipw, ipb, opw, opb, n1w, n1b, w1, b1, w2, b2, n2w, n2b))
    params["layers"] = layers
    return params


def pack_params(params):
    """Repack weights into a few contiguous, kernel-friendly buffers."""
    scale = 1.0 / math.sqrt(HEAD_DIM)

    emb_w = jnp.zeros((IPAD, D_MODEL), jnp.float32).at[:INPUT_DIM].set(
        params["emb_w"])
    dec_w = jnp.zeros((D_MODEL, IPAD), jnp.float32).at[:, :INPUT_DIM].set(
        params["dec_w"])

    vec = jnp.zeros((N_VEC_ROWS, IPAD), jnp.float32)
    vec = vec.at[_ROW_EMB_B, :D_MODEL].set(params["emb_b"][0])
    vec = vec.at[_ROW_DEC_B, :INPUT_DIM].set(params["dec_b"][0])

    wqkv_all, opw_all, w1_all, w2_all = [], [], [], []
    for l, (ipw, ipb, opw, opb, n1w, n1b, w1, b1, w2, b2, n2w, n2b) in enumerate(
            params["layers"]):
        # fold 1/sqrt(head_dim) into the query columns of the fused in_proj
        wqkv = ipw.at[:, :D_MODEL].multiply(scale)               # (32, 96)
        qkv_b = ipb.at[:, :D_MODEL].multiply(scale)              # (1, 96)
        wqkv_all.append(wqkv)
        opw_all.append(opw)                                      # (32, 32)
        w1_all.append(w1)                                        # (32, 64)
        w2_all.append(w2)                                        # (64, 32)
        r = 2 + l * _VPL
        vec = vec.at[r + 0, :3 * D_MODEL].set(qkv_b[0])
        vec = vec.at[r + 1, :D_MODEL].set(opb[0])
        vec = vec.at[r + 2, :D_MODEL].set(n1w[0])
        vec = vec.at[r + 3, :D_MODEL].set(n1b[0])
        vec = vec.at[r + 4, :DFF].set(b1[0])
        vec = vec.at[r + 5, :D_MODEL].set(b2[0])
        vec = vec.at[r + 6, :D_MODEL].set(n2w[0])
        vec = vec.at[r + 7, :D_MODEL].set(n2b[0])

    return dict(
        emb_w=emb_w,                                  # (128, 32)
        dec_w=dec_w,                                  # (32, 128)
        wqkv=jnp.stack(wqkv_all),                     # (L, 32, 96)
        opw=jnp.stack(opw_all),                       # (L, 32, 32)
        w1=jnp.stack(w1_all),                         # (L, 32, 64)
        w2=jnp.stack(w2_all),                         # (L, 64, 32)
        vec=vec,                                      # (18, 128)
    )


# ---------------- Pallas kernel: fused autoregressive rollout ----------------
def _layernorm(x, w, b):
    # independent cross-lane reductions: var = E[x^2] - mu^2
    mu = jnp.mean(x, axis=-1, keepdims=True)
    ex2 = jnp.mean(x * x, axis=-1, keepdims=True)
    var = ex2 - mu * mu
    return (x - mu) * lax.rsqrt(var + EPS) * w + b


def rollout_kernel(t_ref, seq_init_ref, pe_ref, emb_w_ref, dec_w_ref,
                   wqkv_ref, opw_ref, w1_ref, w2_ref, vec_ref, o_ref):
    """Whole autoregressive rollout in one invocation; o_ref is the resident
    (S_MAX, 128) sequence slab (row 0 = initial state, row step+1 written at
    loop step `step`)."""
    # sequence slab starts as the initial state (output block fully written)
    o_ref[...] = seq_init_ref[...]

    # hoist all weight/bias loads and iota constants out of the rollout loop
    pe = pe_ref[...]
    emb_w = emb_w_ref[...]
    dec_w = dec_w_ref[...]
    emb_b = vec_ref[_ROW_EMB_B:_ROW_EMB_B + 1, 0:D_MODEL]        # (1, 32)
    dec_b = vec_ref[_ROW_DEC_B:_ROW_DEC_B + 1, :]                # (1, 128)

    layers = []
    for l in range(NUM_LAYERS):
        r = 2 + l * _VPL
        layers.append(dict(
            wqkv=wqkv_ref[l], opw=opw_ref[l], w1=w1_ref[l], w2=w2_ref[l],
            qkv_b=vec_ref[r + 0:r + 1, 0:3 * D_MODEL],
            opb=vec_ref[r + 1:r + 2, 0:D_MODEL],
            n1w=vec_ref[r + 2:r + 3, 0:D_MODEL],
            n1b=vec_ref[r + 3:r + 4, 0:D_MODEL],
            b1=vec_ref[r + 4:r + 5, 0:DFF],
            b2=vec_ref[r + 5:r + 6, 0:D_MODEL],
            n2w=vec_ref[r + 6:r + 7, 0:D_MODEL],
            n2b=vec_ref[r + 7:r + 8, 0:D_MODEL]))

    key_ids = lax.broadcasted_iota(jnp.int32, (1, S_MAX), 1)
    row_ids = lax.broadcasted_iota(jnp.int32, (S_MAX, D_MODEL), 0)
    lane_ids = lax.broadcasted_iota(jnp.int32, (1, IPAD), 1)

    def step_body(step, carry):
        seq = o_ref[...]                                         # (S_MAX, 128)

        # embedding + positional encoding
        h = jnp.dot(seq, emb_w, preferred_element_type=jnp.float32) + emb_b + pe

        # additive mask: only key positions <= step are valid at this step
        mask = jnp.where(key_ids <= step, 0.0, NEG_INF)          # (1, S_MAX)

        for lyr in layers:                       # post-norm encoder layers
            # fused qkv projection: one lane-dense (S,32)@(32,96) matmul
            qkv = jnp.dot(h, lyr["wqkv"],
                          preferred_element_type=jnp.float32) + lyr["qkv_b"]
            parts = []
            for hd in range(NHEAD):              # per-head static lane slices
                c = hd * HEAD_DIM
                qh = qkv[:, c:c + HEAD_DIM]                      # (S, 8)
                kh = qkv[:, D_MODEL + c:D_MODEL + c + HEAD_DIM]
                vh = qkv[:, 2 * D_MODEL + c:2 * D_MODEL + c + HEAD_DIM]
                # scores: contract last dims (no explicit transpose op)
                s = lax.dot_general(qh, kh, (((1,), (1,)), ((), ())),
                                    preferred_element_type=jnp.float32) + mask
                s = s - jnp.max(s, axis=-1, keepdims=True)
                e = jnp.exp(s)
                p = e * pl.reciprocal(jnp.sum(e, axis=-1, keepdims=True),
                                      approx=True)
                parts.append(jnp.dot(p, vh,
                                     preferred_element_type=jnp.float32))
            ctx = jnp.concatenate(parts, axis=-1)                # (S, 32)
            # single fused output projection (S,32)@(32,32)
            attn = jnp.dot(ctx, lyr["opw"],
                           preferred_element_type=jnp.float32) + lyr["opb"]
            h = _layernorm(h + attn, lyr["n1w"], lyr["n1b"])

            # feed-forward (ReLU)
            ff = jnp.maximum(
                jnp.dot(h, lyr["w1"],
                        preferred_element_type=jnp.float32) + lyr["b1"], 0.0)
            ff = jnp.dot(ff, lyr["w2"],
                         preferred_element_type=jnp.float32) + lyr["b2"]
            h = _layernorm(h + ff, lyr["n2w"], lyr["n2b"])

        # decode ONLY the active row (row `step`): (1,32)@(32,128)
        h_row = jnp.sum(jnp.where(row_ids == step, h, 0.0),
                        axis=0, keepdims=True)                   # (1, 32)
        dec_row = jnp.dot(h_row, dec_w,
                          preferred_element_type=jnp.float32) + dec_b  # (1,128)

        # drop decoder time channel, append t[step] (matches the reference:
        # the row appended at index step+1 carries next_t[-1] == t[step])
        t_val = t_ref[step]
        new_row = jnp.where(lane_ids < F_DIM, dec_row, 0.0)
        new_row = jnp.where(lane_ids == F_DIM, t_val, new_row)

        # dynamic single-row store (128 lanes wide -> unmasked vst)
        o_ref[pl.ds(step + 1, 1), :] = new_row
        return carry

    lax.fori_loop(0, T_STEPS - 1, step_body, 0, unroll=True)


def _rollout_cost(operands):
    per_step = 2 * S_MAX * IPAD * D_MODEL                        # embedding
    per_step += NUM_LAYERS * (
        2 * S_MAX * D_MODEL * 3 * D_MODEL                        # fused qkv
        + NHEAD * 2 * (2 * S_MAX * S_MAX * HEAD_DIM)             # scores + ctx
        + 2 * S_MAX * D_MODEL * D_MODEL                          # out proj
        + 2 * 2 * S_MAX * D_MODEL * DFF)                         # feed-forward
    per_step += 2 * D_MODEL * IPAD                               # decoder row
    steps = T_STEPS - 1
    return pl.CostEstimate(
        flops=int(steps * per_step),
        transcendentals=int(
            steps * NUM_LAYERS * (NHEAD * S_MAX * S_MAX + 2 * S_MAX)),
        bytes_accessed=int(sum(x.size for x in operands) * 4 + S_MAX * IPAD * 4),
    )


# ---------------- outer forward (single fused pallas_call, jitted once) ------
@jax.jit
def transformer_forward(packed, pe, y0, t):
    """y0: (1, F_DIM), t: (T_STEPS,) -> (1, T_STEPS, F_DIM)."""
    seq_init = jnp.zeros((S_MAX, IPAD), jnp.float32)
    seq_init = seq_init.at[0, :F_DIM].set(y0[0])
    seq_init = seq_init.at[0, F_DIM].set(t[0])

    operands = (t, seq_init, pe[:S_MAX],
                packed["emb_w"], packed["dec_w"],
                packed["wqkv"], packed["opw"],
                packed["w1"], packed["w2"], packed["vec"])

    in_specs = (
        [pl.BlockSpec(memory_space=pltpu.MemorySpace.SMEM)]      # t (scalars)
        + [pl.BlockSpec(memory_space=pltpu.MemorySpace.VMEM)]
        * (len(operands) - 1))

    seq_out = pl.pallas_call(
        rollout_kernel,
        in_specs=in_specs,
        out_specs=pl.BlockSpec(memory_space=pltpu.MemorySpace.VMEM),
        out_shape=jax.ShapeDtypeStruct((S_MAX, IPAD), jnp.float32),
        input_output_aliases={1: 0},            # seq_init slab -> output slab
        cost_estimate=_rollout_cost(operands),
    )(*operands)

    pred = seq_out[:T_STEPS, :F_DIM]                             # (T, F)
    return pred.reshape(1, T_STEPS, F_DIM)


# ---------------- main ----------------
if __name__ == "__main__":
    key = jax.random.PRNGKey(0)
    kp, ky = jax.random.split(key, 2)
    params = init_params(kp)
    packed = pack_params(params)
    pe = make_pe(MAX_LEN, D_MODEL)

    y0 = jax.random.normal(ky, (1, F_DIM), jnp.float32)          # initial state (batch 1)
    t = jnp.linspace(0.0, 1.0, T_STEPS, dtype=jnp.float32)       # time stamps

    out = transformer_forward(packed, pe, y0, t)
    out = jax.block_until_ready(out)
    assert out.shape == (1, T_STEPS, F_DIM), out.shape
    assert bool(jnp.all(jnp.isfinite(out)))
    print("KERNEL_OK")
</pallas_src>

<mosaic_0001>
module attributes {stable_mosaic.version = 11 : i64} {
  func.func @rollout_kernel(%arg0: memref<5xf32, #tpu.memory_space<smem>>, %arg1: memref<8x128xf32, #tpu.memory_space<vmem>>, %arg2: memref<8x32xf32, #tpu.memory_space<vmem>>, %arg3: memref<128x32xf32, #tpu.memory_space<vmem>>, %arg4: memref<32x128xf32, #tpu.memory_space<vmem>>, %arg5: memref<2x32x96xf32, #tpu.memory_space<vmem>>, %arg6: memref<2x32x32xf32, #tpu.memory_space<vmem>>, %arg7: memref<2x32x64xf32, #tpu.memory_space<vmem>>, %arg8: memref<2x64x32xf32, #tpu.memory_space<vmem>>, %arg9: memref<18x128xf32, #tpu.memory_space<vmem>>, %arg10: memref<8x128xf32, #tpu.memory_space<vmem>>) attributes {dimension_semantics = [], scalar_prefetch = 0 : i64, scratch_operands = 0 : i64, tpu.core_type = #tpu.core_type<tc>} {
    %c0 = arith.constant 0 : index
    %c0_0 = arith.constant 0 : index
    %0 = vector.load %arg1[%c0, %c0_0] : memref<8x128xf32, #tpu.memory_space<vmem>>, vector<8x128xf32>
    %c0_1 = arith.constant 0 : index
    %c0_2 = arith.constant 0 : index
    %1 = vector.load %arg10[%c0_1, %c0_2] : memref<8x128xf32, #tpu.memory_space<vmem>>, vector<8x128xf32>
    tpu.vector_store %arg10[%c0_1, %c0_2], %0 {strides = array<i32>} : memref<8x128xf32, #tpu.memory_space<vmem>>, vector<8x128xf32>,
    %c0_3 = arith.constant 0 : index
    %c0_4 = arith.constant 0 : index
    %2 = vector.load %arg2[%c0_3, %c0_4] : memref<8x32xf32, #tpu.memory_space<vmem>>, vector<8x32xf32>
    %c0_5 = arith.constant 0 : index
    %c0_6 = arith.constant 0 : index
    %3 = vector.load %arg3[%c0_5, %c0_6] : memref<128x32xf32, #tpu.memory_space<vmem>>, vector<128x32xf32>
    %c0_7 = arith.constant 0 : index
    %c0_8 = arith.constant 0 : index
    %4 = vector.load %arg4[%c0_7, %c0_8] : memref<32x128xf32, #tpu.memory_space<vmem>>, vector<32x128xf32>
    %c0_9 = arith.constant 0 : index
    %c0_10 = arith.constant 0 : index
    %5 = vector.load %arg9[%c0_9, %c0_10] : memref<18x128xf32, #tpu.memory_space<vmem>>, vector<1x32xf32>
    %c1 = arith.constant 1 : index
    %c0_11 = arith.constant 0 : index
    %6 = vector.load %arg9[%c1, %c0_11] : memref<18x128xf32, #tpu.memory_space<vmem>>, vector<1x128xf32>
    %c0_12 = arith.constant 0 : index
    %c0_13 = arith.constant 0 : index
    %c0_14 = arith.constant 0 : index
    %7 = vector.load %arg5[%c0_12, %c0_13, %c0_14] : memref<2x32x96xf32, #tpu.memory_space<vmem>>, vector<1x32x96xf32>
    %8 = vector.shape_cast %7 : vector<1x32x96xf32> to vector<32x96xf32>
    %c0_15 = arith.constant 0 : index
    %c0_16 = arith.constant 0 : index
    %c0_17 = arith.constant 0 : index
    %9 = vector.load %arg6[%c0_15, %c0_16, %c0_17] : memref<2x32x32xf32, #tpu.memory_space<vmem>>, vector<1x32x32xf32>
    %10 = vector.shape_cast %9 : vector<1x32x32xf32> to vector<32x32xf32>
    %c0_18 = arith.constant 0 : index
    %c0_19 = arith.constant 0 : index
    %c0_20 = arith.constant 0 : index
    %11 = vector.load %arg7[%c0_18, %c0_19, %c0_20] : memref<2x32x64xf32, #tpu.memory_space<vmem>>, vector<1x32x64xf32>
    %12 = vector.shape_cast %11 : vector<1x32x64xf32> to vector<32x64xf32>
    %c0_21 = arith.constant 0 : index
    %c0_22 = arith.constant 0 : index
    %c0_23 = arith.constant 0 : index
    %13 = vector.load %arg8[%c0_21, %c0_22, %c0_23] : memref<2x64x32xf32, #tpu.memory_space<vmem>>, vector<1x64x32xf32>
    %14 = vector.shape_cast %13 : vector<1x64x32xf32> to vector<64x32xf32>
    %c2 = arith.constant 2 : index
    %c0_24 = arith.constant 0 : index
    %15 = vector.load %arg9[%c2, %c0_24] : memref<18x128xf32, #tpu.memory_space<vmem>>, vector<1x96xf32>
    %c3 = arith.constant 3 : index
    %c0_25 = arith.constant 0 : index
    %16 = vector.load %arg9[%c3, %c0_25] : memref<18x128xf32, #tpu.memory_space<vmem>>, vector<1x32xf32>
    %c4 = arith.constant 4 : index
    %c0_26 = arith.constant 0 : index
    %17 = vector.load %arg9[%c4, %c0_26] : memref<18x128xf32, #tpu.memory_space<vmem>>, vector<1x32xf32>
    %c5 = arith.constant 5 : index
    %c0_27 = arith.constant 0 : index
    %18 = vector.load %arg9[%c5, %c0_27] : memref<18x128xf32, #tpu.memory_space<vmem>>, vector<1x32xf32>
    %c6 = arith.constant 6 : index
    %c0_28 = arith.constant 0 : index
    %19 = vector.load %arg9[%c6, %c0_28] : memref<18x128xf32, #tpu.memory_space<vmem>>, vector<1x64xf32>
    %c7 = arith.constant 7 : index
    %c0_29 = arith.constant 0 : index
    %20 = vector.load %arg9[%c7, %c0_29] : memref<18x128xf32, #tpu.memory_space<vmem>>, vector<1x32xf32>
    %c8 = arith.constant 8 : index
    %c0_30 = arith.constant 0 : index
    %21 = vector.load %arg9[%c8, %c0_30] : memref<18x128xf32, #tpu.memory_space<vmem>>, vector<1x32xf32>
    %c9 = arith.constant 9 : index
    %c0_31 = arith.constant 0 : index
    %22 = vector.load %arg9[%c9, %c0_31] : memref<18x128xf32, #tpu.memory_space<vmem>>, vector<1x32xf32>
    %c1_32 = arith.constant 1 : index
    %c0_33 = arith.constant 0 : index
    %c0_34 = arith.constant 0 : index
    %23 = vector.load %arg5[%c1_32, %c0_33, %c0_34] : memref<2x32x96xf32, #tpu.memory_space<vmem>>, vector<1x32x96xf32>
    %24 = vector.shape_cast %23 : vector<1x32x96xf32> to vector<32x96xf32>
    %c1_35 = arith.constant 1 : index
    %c0_36 = arith.constant 0 : index
    %c0_37 = arith.constant 0 : index
    %25 = vector.load %arg6[%c1_35, %c0_36, %c0_37] : memref<2x32x32xf32, #tpu.memory_space<vmem>>, vector<1x32x32xf32>
    %26 = vector.shape_cast %25 : vector<1x32x32xf32> to vector<32x32xf32>
    %c1_38 = arith.constant 1 : index
    %c0_39 = arith.constant 0 : index
    %c0_40 = arith.constant 0 : index
    %27 = vector.load %arg7[%c1_38, %c0_39, %c0_40] : memref<2x32x64xf32, #tpu.memory_space<vmem>>, vector<1x32x64xf32>
    %28 = vector.shape_cast %27 : vector<1x32x64xf32> to vector<32x64xf32>
    %c1_41 = arith.constant 1 : index
    %c0_42 = arith.constant 0 : index
    %c0_43 = arith.constant 0 : index
    %29 = vector.load %arg8[%c1_41, %c0_42, %c0_43] : memref<2x64x32xf32, #tpu.memory_space<vmem>>, vector<1x64x32xf32>
    %30 = vector.shape_cast %29 : vector<1x64x32xf32> to vector<64x32xf32>
    %c10 = arith.constant 10 : index
    %c0_44 = arith.constant 0 : index
    %31 = vector.load %arg9[%c10, %c0_44] : memref<18x128xf32, #tpu.memory_space<vmem>>, vector<1x96xf32>
    %c11 = arith.constant 11 : index
    %c0_45 = arith.constant 0 : index
    %32 = vector.load %arg9[%c11, %c0_45] : memref<18x128xf32, #tpu.memory_space<vmem>>, vector<1x32xf32>
    %c12 = arith.constant 12 : index
    %c0_46 = arith.constant 0 : index
    %33 = vector.load %arg9[%c12, %c0_46] : memref<18x128xf32, #tpu.memory_space<vmem>>, vector<1x32xf32>
    %c13 = arith.constant 13 : index
    %c0_47 = arith.constant 0 : index
    %34 = vector.load %arg9[%c13, %c0_47] : memref<18x128xf32, #tpu.memory_space<vmem>>, vector<1x32xf32>
    %c14 = arith.constant 14 : index
    %c0_48 = arith.constant 0 : index
    %35 = vector.load %arg9[%c14, %c0_48] : memref<18x128xf32, #tpu.memory_space<vmem>>, vector<1x64xf32>
    %c15 = arith.constant 15 : index
    %c0_49 = arith.constant 0 : index
    %36 = vector.load %arg9[%c15, %c0_49] : memref<18x128xf32, #tpu.memory_space<vmem>>, vector<1x32xf32>
    %c16 = arith.constant 16 : index
    %c0_50 = arith.constant 0 : index
    %37 = vector.load %arg9[%c16, %c0_50] : memref<18x128xf32, #tpu.memory_space<vmem>>, vector<1x32xf32>
    %c17 = arith.constant 17 : index
    %c0_51 = arith.constant 0 : index
    %38 = vector.load %arg9[%c17, %c0_51] : memref<18x128xf32, #tpu.memory_space<vmem>>, vector<1x32xf32>
    %39 = tpu.iota {dimensions = array<i32: 1>} : vector<1x8xi32>
    %40 = tpu.iota {dimensions = array<i32: 0>} : vector<8x32xi32>
    %41 = tpu.iota {dimensions = array<i32: 1>} : vector<1x128xi32>
    %c0_i32 = arith.constant 0 : i32
    %c0_52 = arith.constant 0 : index
    %c0_53 = arith.constant 0 : index
    %42 = vector.load %arg10[%c0_52, %c0_53] : memref<8x128xf32, #tpu.memory_space<vmem>>, vector<8x128xf32>
    %cst = arith.constant dense<0.000000e+00> : vector<8x32xf32>
    %43 = tpu.matmul %42, %3, %cst {dimension_numbers = #tpu.dot_dimension_numbers<[1], [0], [0], [1], [0, 0, 1, 1], [], []>} : vector<8x128xf32>, vector<128x32xf32>, vector<8x32xf32> -> vector<8x32xf32>
    %44 = vector.broadcast %5 : vector<1x32xf32> to vector<8x32xf32>
    %45 = arith.addf %43, %44 : vector<8x32xf32>
    %46 = arith.addf %45, %2 : vector<8x32xf32>
    %47 = vector.broadcast %c0_i32 : i32 to vector<1x8xi32>
    %48 = arith.cmpi sle, %39, %47 : vector<1x8xi32>
    %cst_54 = arith.constant 0.000000e+00 : f32
    %cst_55 = arith.constant -1.000000e+30 : f32
    %49 = vector.broadcast %cst_54 : f32 to vector<1x8xf32>
    %50 = vector.broadcast %cst_55 : f32 to vector<1x8xf32>
    %51 = arith.select %48, %49, %50 : vector<1x8xi1>, vector<1x8xf32>
    %cst_56 = arith.constant dense<0.000000e+00> : vector<8x96xf32>
    %52 = tpu.matmul %46, %8, %cst_56 {dimension_numbers = #tpu.dot_dimension_numbers<[1], [0], [0], [1], [0, 0, 1, 1], [], []>} : vector<8x32xf32>, vector<32x96xf32>, vector<8x96xf32> -> vector<8x96xf32>
    %53 = vector.broadcast %15 : vector<1x96xf32> to vector<8x96xf32>
    %54 = arith.addf %52, %53 : vector<8x96xf32>
    %55 = vector.extract_strided_slice %54 {offsets = [0, 0], sizes = [8, 8], strides = [1, 1]} : vector<8x96xf32> to vector<8x8xf32>
    %56 = vector.extract_strided_slice %54 {offsets = [0, 32], sizes = [8, 8], strides = [1, 1]} : vector<8x96xf32> to vector<8x8xf32>
    %57 = vector.extract_strided_slice %54 {offsets = [0, 64], sizes = [8, 8], strides = [1, 1]} : vector<8x96xf32> to vector<8x8xf32>
    %cst_57 = arith.constant dense<0.000000e+00> : vector<8x8xf32>
    %58 = tpu.matmul %55, %56, %cst_57 {dimension_numbers = #tpu.dot_dimension_numbers<[1], [1], [0], [0], [0, 0, 1, 0], [], []>} : vector<8x8xf32>, vector<8x8xf32>, vector<8x8xf32> -> vector<8x8xf32>
    %59 = vector.broadcast %51 : vector<1x8xf32> to vector<8x8xf32>
    %60 = arith.addf %58, %59 : vector<8x8xf32>
    %cst_58 = arith.constant dense<0xFF800000> : vector<8xf32>
    %61 = vector.multi_reduction <maximumf>, %60, %cst_58 [1] : vector<8x8xf32> to vector<8xf32>
    %62 = vector.shape_cast %61 : vector<8xf32> to vector<8x1xf32>
    %63 = vector.broadcast %62 : vector<8x1xf32> to vector<8x8xf32>
    %64 = arith.subf %60, %63 : vector<8x8xf32>
    %65 = math.exp %64 : vector<8x8xf32>
    %cst_59 = arith.constant dense<0.000000e+00> : vector<8xf32>
    %66 = vector.multi_reduction <add>, %65, %cst_59 [1] : vector<8x8xf32> to vector<8xf32>
    %67 = vector.shape_cast %66 : vector<8xf32> to vector<8x1xf32>
    %68 = tpu.reciprocal %67 {approx = true} : vector<8x1xf32> -> vector<8x1xf32>
    %69 = vector.broadcast %68 : vector<8x1xf32> to vector<8x8xf32>
    %70 = arith.mulf %65, %69 : vector<8x8xf32>
    %cst_60 = arith.constant dense<0.000000e+00> : vector<8x8xf32>
    %71 = tpu.matmul %70, %57, %cst_60 {dimension_numbers = #tpu.dot_dimension_numbers<[1], [0], [0], [1], [0, 0, 1, 1], [], []>} : vector<8x8xf32>, vector<8x8xf32>, vector<8x8xf32> -> vector<8x8xf32>
    %72 = vector.extract_strided_slice %54 {offsets = [0, 8], sizes = [8, 8], strides = [1, 1]} : vector<8x96xf32> to vector<8x8xf32>
    %73 = vector.extract_strided_slice %54 {offsets = [0, 40], sizes = [8, 8], strides = [1, 1]} : vector<8x96xf32> to vector<8x8xf32>
    %74 = vector.extract_strided_slice %54 {offsets = [0, 72], sizes = [8, 8], strides = [1, 1]} : vector<8x96xf32> to vector<8x8xf32>
    %cst_61 = arith.constant dense<0.000000e+00> : vector<8x8xf32>
    %75 = tpu.matmul %72, %73, %cst_61 {dimension_numbers = #tpu.dot_dimension_numbers<[1], [1], [0], [0], [0, 0, 1, 0], [], []>} : vector<8x8xf32>, vector<8x8xf32>, vector<8x8xf32> -> vector<8x8xf32>
    %76 = vector.broadcast %51 : vector<1x8xf32> to vector<8x8xf32>
    %77 = arith.addf %75, %76 : vector<8x8xf32>
    %cst_62 = arith.constant dense<0xFF800000> : vector<8xf32>
    %78 = vector.multi_reduction <maximumf>, %77, %cst_62 [1] : vector<8x8xf32> to vector<8xf32>
    %79 = vector.shape_cast %78 : vector<8xf32> to vector<8x1xf32>
    %80 = vector.broadcast %79 : vector<8x1xf32> to vector<8x8xf32>
    %81 = arith.subf %77, %80 : vector<8x8xf32>
    %82 = math.exp %81 : vector<8x8xf32>
    %cst_63 = arith.constant dense<0.000000e+00> : vector<8xf32>
    %83 = vector.multi_reduction <add>, %82, %cst_63 [1] : vector<8x8xf32> to vector<8xf32>
    %84 = vector.shape_cast %83 : vector<8xf32> to vector<8x1xf32>
    %85 = tpu.reciprocal %84 {approx = true} : vector<8x1xf32> -> vector<8x1xf32>
    %86 = vector.broadcast %85 : vector<8x1xf32> to vector<8x8xf32>
    %87 = arith.mulf %82, %86 : vector<8x8xf32>
    %cst_64 = arith.constant dense<0.000000e+00> : vector<8x8xf32>
    %88 = tpu.matmul %87, %74, %cst_64 {dimension_numbers = #tpu.dot_dimension_numbers<[1], [0], [0], [1], [0, 0, 1, 1], [], []>} : vector<8x8xf32>, vector<8x8xf32>, vector<8x8xf32> -> vector<8x8xf32>
    %89 = vector.extract_strided_slice %54 {offsets = [0, 16], sizes = [8, 8], strides = [1, 1]} : vector<8x96xf32> to vector<8x8xf32>
    %90 = vector.extract_strided_slice %54 {offsets = [0, 48], sizes = [8, 8], strides = [1, 1]} : vector<8x96xf32> to vector<8x8xf32>
    %91 = vector.extract_strided_slice %54 {offsets = [0, 80], sizes = [8, 8], strides = [1, 1]} : vector<8x96xf32> to vector<8x8xf32>
    %cst_65 = arith.constant dense<0.000000e+00> : vector<8x8xf32>
    %92 = tpu.matmul %89, %90, %cst_65 {dimension_numbers = #tpu.dot_dimension_numbers<[1], [1], [0], [0], [0, 0, 1, 0], [], []>} : vector<8x8xf32>, vector<8x8xf32>, vector<8x8xf32> -> vector<8x8xf32>
    %93 = vector.broadcast %51 : vector<1x8xf32> to vector<8x8xf32>
    %94 = arith.addf %92, %93 : vector<8x8xf32>
    %cst_66 = arith.constant dense<0xFF800000> : vector<8xf32>
    %95 = vector.multi_reduction <maximumf>, %94, %cst_66 [1] : vector<8x8xf32> to vector<8xf32>
    %96 = vector.shape_cast %95 : vector<8xf32> to vector<8x1xf32>
    %97 = vector.broadcast %96 : vector<8x1xf32> to vector<8x8xf32>
    %98 = arith.subf %94, %97 : vector<8x8xf32>
    %99 = math.exp %98 : vector<8x8xf32>
    %cst_67 = arith.constant dense<0.000000e+00> : vector<8xf32>
    %100 = vector.multi_reduction <add>, %99, %cst_67 [1] : vector<8x8xf32> to vector<8xf32>
    %101 = vector.shape_cast %100 : vector<8xf32> to vector<8x1xf32>
    %102 = tpu.reciprocal %101 {approx = true} : vector<8x1xf32> -> vector<8x1xf32>
    %103 = vector.broadcast %102 : vector<8x1xf32> to vector<8x8xf32>
    %104 = arith.mulf %99, %103 : vector<8x8xf32>
    %cst_68 = arith.constant dense<0.000000e+00> : vector<8x8xf32>
    %105 = tpu.matmul %104, %91, %cst_68 {dimension_numbers = #tpu.dot_dimension_numbers<[1], [0], [0], [1], [0, 0, 1, 1], [], []>} : vector<8x8xf32>, vector<8x8xf32>, vector<8x8xf32> -> vector<8x8xf32>
    %106 = vector.extract_strided_slice %54 {offsets = [0, 24], sizes = [8, 8], strides = [1, 1]} : vector<8x96xf32> to vector<8x8xf32>
    %107 = vector.extract_strided_slice %54 {offsets = [0, 56], sizes = [8, 8], strides = [1, 1]} : vector<8x96xf32> to vector<8x8xf32>
    %108 = vector.extract_strided_slice %54 {offsets = [0, 88], sizes = [8, 8], strides = [1, 1]} : vector<8x96xf32> to vector<8x8xf32>
    %cst_69 = arith.constant dense<0.000000e+00> : vector<8x8xf32>
    %109 = tpu.matmul %106, %107, %cst_69 {dimension_numbers = #tpu.dot_dimension_numbers<[1], [1], [0], [0], [0, 0, 1, 0], [], []>} : vector<8x8xf32>, vector<8x8xf32>, vector<8x8xf32> -> vector<8x8xf32>
    %110 = vector.broadcast %51 : vector<1x8xf32> to vector<8x8xf32>
    %111 = arith.addf %109, %110 : vector<8x8xf32>
    %cst_70 = arith.constant dense<0xFF800000> : vector<8xf32>
    %112 = vector.multi_reduction <maximumf>, %111, %cst_70 [1] : vector<8x8xf32> to vector<8xf32>
    %113 = vector.shape_cast %112 : vector<8xf32> to vector<8x1xf32>
    %114 = vector.broadcast %113 : vector<8x1xf32> to vector<8x8xf32>
    %115 = arith.subf %111, %114 : vector<8x8xf32>
    %116 = math.exp %115 : vector<8x8xf32>
    %cst_71 = arith.constant dense<0.000000e+00> : vector<8xf32>
    %117 = vector.multi_reduction <add>, %116, %cst_71 [1] : vector<8x8xf32> to vector<8xf32>
    %118 = vector.shape_cast %117 : vector<8xf32> to vector<8x1xf32>
    %119 = tpu.reciprocal %118 {approx = true} : vector<8x1xf32> -> vector<8x1xf32>
    %120 = vector.broadcast %119 : vector<8x1xf32> to vector<8x8xf32>
    %121 = arith.mulf %116, %120 : vector<8x8xf32>
    %cst_72 = arith.constant dense<0.000000e+00> : vector<8x8xf32>
    %122 = tpu.matmul %121, %108, %cst_72 {dimension_numbers = #tpu.dot_dimension_numbers<[1], [0], [0], [1], [0, 0, 1, 1], [], []>} : vector<8x8xf32>, vector<8x8xf32>, vector<8x8xf32> -> vector<8x8xf32>
    %123 = tpu.concatenate %71, %88, %105, %122 in 1 : vector<8x8xf32>, vector<8x8xf32>, vector<8x8xf32>, vector<8x8xf32> -> vector<8x32xf32>
    %cst_73 = arith.constant dense<0.000000e+00> : vector<8x32xf32>
    %124 = tpu.matmul %123, %10, %cst_73 {dimension_numbers = #tpu.dot_dimension_numbers<[1], [0], [0], [1], [0, 0, 1, 1], [], []>} : vector<8x32xf32>, vector<32x32xf32>, vector<8x32xf32> -> vector<8x32xf32>
    %125 = vector.broadcast %16 : vector<1x32xf32> to vector<8x32xf32>
    %126 = arith.addf %124, %125 : vector<8x32xf32>
    %127 = arith.addf %46, %126 : vector<8x32xf32>
    %cst_74 = arith.constant dense<0.000000e+00> : vector<8xf32>
    %128 = vector.multi_reduction <add>, %127, %cst_74 [1] : vector<8x32xf32> to vector<8xf32>
    %129 = vector.shape_cast %128 : vector<8xf32> to vector<8x1xf32>
    %cst_75 = arith.constant 3.200000e+01 : f32
    %130 = vector.broadcast %cst_75 : f32 to vector<8x1xf32>
    %131 = arith.divf %129, %130 : vector<8x1xf32>
    %132 = arith.mulf %127, %127 : vector<8x32xf32>
    %cst_76 = arith.constant dense<0.000000e+00> : vector<8xf32>
    %133 = vector.multi_reduction <add>, %132, %cst_76 [1] : vector<8x32xf32> to vector<8xf32>
    %134 = vector.shape_cast %133 : vector<8xf32> to vector<8x1xf32>
    %cst_77 = arith.constant 3.200000e+01 : f32
    %135 = vector.broadcast %cst_77 : f32 to vector<8x1xf32>
    %136 = arith.divf %134, %135 : vector<8x1xf32>
    %137 = arith.mulf %131, %131 : vector<8x1xf32>
    %138 = arith.subf %136, %137 : vector<8x1xf32>
    %139 = vector.broadcast %131 : vector<8x1xf32> to vector<8x32xf32>
    %140 = arith.subf %127, %139 : vector<8x32xf32>
    %cst_78 = arith.constant 9.99999974E-6 : f32
    %141 = vector.broadcast %cst_78 : f32 to vector<8x1xf32>
    %142 = arith.addf %138, %141 : vector<8x1xf32>
    %143 = math.rsqrt %142 : vector<8x1xf32>
    %144 = vector.broadcast %143 : vector<8x1xf32> to vector<8x32xf32>
    %145 = arith.mulf %140, %144 : vector<8x32xf32>
    %146 = vector.broadcast %17 : vector<1x32xf32> to vector<8x32xf32>
    %147 = arith.mulf %145, %146 : vector<8x32xf32>
    %148 = vector.broadcast %18 : vector<1x32xf32> to vector<8x32xf32>
    %149 = arith.addf %147, %148 : vector<8x32xf32>
    %cst_79 = arith.constant dense<0.000000e+00> : vector<8x64xf32>
    %150 = tpu.matmul %149, %12, %cst_79 {dimension_numbers = #tpu.dot_dimension_numbers<[1], [0], [0], [1], [0, 0, 1, 1], [], []>} : vector<8x32xf32>, vector<32x64xf32>, vector<8x64xf32> -> vector<8x64xf32>
    %151 = vector.broadcast %19 : vector<1x64xf32> to vector<8x64xf32>
    %152 = arith.addf %150, %151 : vector<8x64xf32>
    %cst_80 = arith.constant 0.000000e+00 : f32
    %153 = vector.broadcast %cst_80 : f32 to vector<8x64xf32>
    %154 = arith.maximumf %152, %153 : vector<8x64xf32>
    %cst_81 = arith.constant dense<0.000000e+00> : vector<8x32xf32>
    %155 = tpu.matmul %154, %14, %cst_81 {dimension_numbers = #tpu.dot_dimension_numbers<[1], [0], [0], [1], [0, 0, 1, 1], [], []>} : vector<8x64xf32>, vector<64x32xf32>, vector<8x32xf32> -> vector<8x32xf32>
    %156 = vector.broadcast %20 : vector<1x32xf32> to vector<8x32xf32>
    %157 = arith.addf %155, %156 : vector<8x32xf32>
    %158 = arith.addf %149, %157 : vector<8x32xf32>
    %cst_82 = arith.constant dense<0.000000e+00> : vector<8xf32>
    %159 = vector.multi_reduction <add>, %158, %cst_82 [1] : vector<8x32xf32> to vector<8xf32>
    %160 = vector.shape_cast %159 : vector<8xf32> to vector<8x1xf32>
    %cst_83 = arith.constant 3.200000e+01 : f32
    %161 = vector.broadcast %cst_83 : f32 to vector<8x1xf32>
    %162 = arith.divf %160, %161 : vector<8x1xf32>
    %163 = arith.mulf %158, %158 : vector<8x32xf32>
    %cst_84 = arith.constant dense<0.000000e+00> : vector<8xf32>
    %164 = vector.multi_reduction <add>, %163, %cst_84 [1] : vector<8x32xf32> to vector<8xf32>
    %165 = vector.shape_cast %164 : vector<8xf32> to vector<8x1xf32>
    %cst_85 = arith.constant 3.200000e+01 : f32
    %166 = vector.broadcast %cst_85 : f32 to vector<8x1xf32>
    %167 = arith.divf %165, %166 : vector<8x1xf32>
    %168 = arith.mulf %162, %162 : vector<8x1xf32>
    %169 = arith.subf %167, %168 : vector<8x1xf32>
    %170 = vector.broadcast %162 : vector<8x1xf32> to vector<8x32xf32>
    %171 = arith.subf %158, %170 : vector<8x32xf32>
    %cst_86 = arith.constant 9.99999974E-6 : f32
    %172 = vector.broadcast %cst_86 : f32 to vector<8x1xf32>
    %173 = arith.addf %169, %172 : vector<8x1xf32>
    %174 = math.rsqrt %173 : vector<8x1xf32>
    %175 = vector.broadcast %174 : vector<8x1xf32> to vector<8x32xf32>
    %176 = arith.mulf %171, %175 : vector<8x32xf32>
    %177 = vector.broadcast %21 : vector<1x32xf32> to vector<8x32xf32>
    %178 = arith.mulf %176, %177 : vector<8x32xf32>
    %179 = vector.broadcast %22 : vector<1x32xf32> to vector<8x32xf32>
    %180 = arith.addf %178, %179 : vector<8x32xf32>
    %cst_87 = arith.constant dense<0.000000e+00> : vector<8x96xf32>
    %181 = tpu.matmul %180, %24, %cst_87 {dimension_numbers = #tpu.dot_dimension_numbers<[1], [0], [0], [1], [0, 0, 1, 1], [], []>} : vector<8x32xf32>, vector<32x96xf32>, vector<8x96xf32> -> vector<8x96xf32>
    %182 = vector.broadcast %31 : vector<1x96xf32> to vector<8x96xf32>
    %183 = arith.addf %181, %182 : vector<8x96xf32>
    %184 = vector.extract_strided_slice %183 {offsets = [0, 0], sizes = [8, 8], strides = [1, 1]} : vector<8x96xf32> to vector<8x8xf32>
    %185 = vector.extract_strided_slice %183 {offsets = [0, 32], sizes = [8, 8], strides = [1, 1]} : vector<8x96xf32> to vector<8x8xf32>
    %186 = vector.extract_strided_slice %183 {offsets = [0, 64], sizes = [8, 8], strides = [1, 1]} : vector<8x96xf32> to vector<8x8xf32>
    %cst_88 = arith.constant dense<0.000000e+00> : vector<8x8xf32>
    %187 = tpu.matmul %184, %185, %cst_88 {dimension_numbers = #tpu.dot_dimension_numbers<[1], [1], [0], [0], [0, 0, 1, 0], [], []>} : vector<8x8xf32>, vector<8x8xf32>, vector<8x8xf32> -> vector<8x8xf32>
    %188 = vector.broadcast %51 : vector<1x8xf32> to vector<8x8xf32>
    %189 = arith.addf %187, %188 : vector<8x8xf32>
    %cst_89 = arith.constant dense<0xFF800000> : vector<8xf32>
    %190 = vector.multi_reduction <maximumf>, %189, %cst_89 [1] : vector<8x8xf32> to vector<8xf32>
    %191 = vector.shape_cast %190 : vector<8xf32> to vector<8x1xf32>
    %192 = vector.broadcast %191 : vector<8x1xf32> to vector<8x8xf32>
    %193 = arith.subf %189, %192 : vector<8x8xf32>
    %194 = math.exp %193 : vector<8x8xf32>
    %cst_90 = arith.constant dense<0.000000e+00> : vector<8xf32>
    %195 = vector.multi_reduction <add>, %194, %cst_90 [1] : vector<8x8xf32> to vector<8xf32>
    %196 = vector.shape_cast %195 : vector<8xf32> to vector<8x1xf32>
    %197 = tpu.reciprocal %196 {approx = true} : vector<8x1xf32> -> vector<8x1xf32>
    %198 = vector.broadcast %197 : vector<8x1xf32> to vector<8x8xf32>
    %199 = arith.mulf %194, %198 : vector<8x8xf32>
    %cst_91 = arith.constant dense<0.000000e+00> : vector<8x8xf32>
    %200 = tpu.matmul %199, %186, %cst_91 {dimension_numbers = #tpu.dot_dimension_numbers<[1], [0], [0], [1], [0, 0, 1, 1], [], []>} : vector<8x8xf32>, vector<8x8xf32>, vector<8x8xf32> -> vector<8x8xf32>
    %201 = vector.extract_strided_slice %183 {offsets = [0, 8], sizes = [8, 8], strides = [1, 1]} : vector<8x96xf32> to vector<8x8xf32>
    %202 = vector.extract_strided_slice %183 {offsets = [0, 40], sizes = [8, 8], strides = [1, 1]} : vector<8x96xf32> to vector<8x8xf32>
    %203 = vector.extract_strided_slice %183 {offsets = [0, 72], sizes = [8, 8], strides = [1, 1]} : vector<8x96xf32> to vector<8x8xf32>
    %cst_92 = arith.constant dense<0.000000e+00> : vector<8x8xf32>
    %204 = tpu.matmul %201, %202, %cst_92 {dimension_numbers = #tpu.dot_dimension_numbers<[1], [1], [0], [0], [0, 0, 1, 0], [], []>} : vector<8x8xf32>, vector<8x8xf32>, vector<8x8xf32> -> vector<8x8xf32>
    %205 = vector.broadcast %51 : vector<1x8xf32> to vector<8x8xf32>
    %206 = arith.addf %204, %205 : vector<8x8xf32>
    %cst_93 = arith.constant dense<0xFF800000> : vector<8xf32>
    %207 = vector.multi_reduction <maximumf>, %206, %cst_93 [1] : vector<8x8xf32> to vector<8xf32>
    %208 = vector.shape_cast %207 : vector<8xf32> to vector<8x1xf32>
    %209 = vector.broadcast %208 : vector<8x1xf32> to vector<8x8xf32>
    %210 = arith.subf %206, %209 : vector<8x8xf32>
    %211 = math.exp %210 : vector<8x8xf32>
    %cst_94 = arith.constant dense<0.000000e+00> : vector<8xf32>
    %212 = vector.multi_reduction <add>, %211, %cst_94 [1] : vector<8x8xf32> to vector<8xf32>
    %213 = vector.shape_cast %212 : vector<8xf32> to vector<8x1xf32>
    %214 = tpu.reciprocal %213 {approx = true} : vector<8x1xf32> -> vector<8x1xf32>
    %215 = vector.broadcast %214 : vector<8x1xf32> to vector<8x8xf32>
    %216 = arith.mulf %211, %215 : vector<8x8xf32>
    %cst_95 = arith.constant dense<0.000000e+00> : vector<8x8xf32>
    %217 = tpu.matmul %216, %203, %cst_95 {dimension_numbers = #tpu.dot_dimension_numbers<[1], [0], [0], [1], [0, 0, 1, 1], [], []>} : vector<8x8xf32>, vector<8x8xf32>, vector<8x8xf32> -> vector<8x8xf32>
    %218 = vector.extract_strided_slice %183 {offsets = [0, 16], sizes = [8, 8], strides = [1, 1]} : vector<8x96xf32> to vector<8x8xf32>
    %219 = vector.extract_strided_slice %183 {offsets = [0, 48], sizes = [8, 8], strides = [1, 1]} : vector<8x96xf32> to vector<8x8xf32>
    %220 = vector.extract_strided_slice %183 {offsets = [0, 80], sizes = [8, 8], strides = [1, 1]} : vector<8x96xf32> to vector<8x8xf32>
    %cst_96 = arith.constant dense<0.000000e+00> : vector<8x8xf32>
    %221 = tpu.matmul %218, %219, %cst_96 {dimension_numbers = #tpu.dot_dimension_numbers<[1], [1], [0], [0], [0, 0, 1, 0], [], []>} : vector<8x8xf32>, vector<8x8xf32>, vector<8x8xf32> -> vector<8x8xf32>
    %222 = vector.broadcast %51 : vector<1x8xf32> to vector<8x8xf32>
    %223 = arith.addf %221, %222 : vector<8x8xf32>
    %cst_97 = arith.constant dense<0xFF800000> : vector<8xf32>
    %224 = vector.multi_reduction <maximumf>, %223, %cst_97 [1] : vector<8x8xf32> to vector<8xf32>
    %225 = vector.shape_cast %224 : vector<8xf32> to vector<8x1xf32>
    %226 = vector.broadcast %225 : vector<8x1xf32> to vector<8x8xf32>
    %227 = arith.subf %223, %226 : vector<8x8xf32>
    %228 = math.exp %227 : vector<8x8xf32>
    %cst_98 = arith.constant dense<0.000000e+00> : vector<8xf32>
    %229 = vector.multi_reduction <add>, %228, %cst_98 [1] : vector<8x8xf32> to vector<8xf32>
    %230 = vector.shape_cast %229 : vector<8xf32> to vector<8x1xf32>
    %231 = tpu.reciprocal %230 {approx = true} : vector<8x1xf32> -> vector<8x1xf32>
    %232 = vector.broadcast %231 : vector<8x1xf32> to vector<8x8xf32>
    %233 = arith.mulf %228, %232 : vector<8x8xf32>
    %cst_99 = arith.constant dense<0.000000e+00> : vector<8x8xf32>
    %234 = tpu.matmul %233, %220, %cst_99 {dimension_numbers = #tpu.dot_dimension_numbers<[1], [0], [0], [1], [0, 0, 1, 1], [], []>} : vector<8x8xf32>, vector<8x8xf32>, vector<8x8xf32> -> vector<8x8xf32>
    %235 = vector.extract_strided_slice %183 {offsets = [0, 24], sizes = [8, 8], strides = [1, 1]} : vector<8x96xf32> to vector<8x8xf32>
    %236 = vector.extract_strided_slice %183 {offsets = [0, 56], sizes = [8, 8], strides = [1, 1]} : vector<8x96xf32> to vector<8x8xf32>
    %237 = vector.extract_strided_slice %183 {offsets = [0, 88], sizes = [8, 8], strides = [1, 1]} : vector<8x96xf32> to vector<8x8xf32>
    %cst_100 = arith.constant dense<0.000000e+00> : vector<8x8xf32>
    %238 = tpu.matmul %235, %236, %cst_100 {dimension_numbers = #tpu.dot_dimension_numbers<[1], [1], [0], [0], [0, 0, 1, 0], [], []>} : vector<8x8xf32>, vector<8x8xf32>, vector<8x8xf32> -> vector<8x8xf32>
    %239 = vector.broadcast %51 : vector<1x8xf32> to vector<8x8xf32>
    %240 = arith.addf %238, %239 : vector<8x8xf32>
    %cst_101 = arith.constant dense<0xFF800000> : vector<8xf32>
    %241 = vector.multi_reduction <maximumf>, %240, %cst_101 [1] : vector<8x8xf32> to vector<8xf32>
    %242 = vector.shape_cast %241 : vector<8xf32> to vector<8x1xf32>
    %243 = vector.broadcast %242 : vector<8x1xf32> to vector<8x8xf32>
    %244 = arith.subf %240, %243 : vector<8x8xf32>
    %245 = math.exp %244 : vector<8x8xf32>
    %cst_102 = arith.constant dense<0.000000e+00> : vector<8xf32>
    %246 = vector.multi_reduction <add>, %245, %cst_102 [1] : vector<8x8xf32> to vector<8xf32>
    %247 = vector.shape_cast %246 : vector<8xf32> to vector<8x1xf32>
    %248 = tpu.reciprocal %247 {approx = true} : vector<8x1xf32> -> vector<8x1xf32>
    %249 = vector.broadcast %248 : vector<8x1xf32> to vector<8x8xf32>
    %250 = arith.mulf %245, %249 : vector<8x8xf32>
    %cst_103 = arith.constant dense<0.000000e+00> : vector<8x8xf32>
    %251 = tpu.matmul %250, %237, %cst_103 {dimension_numbers = #tpu.dot_dimension_numbers<[1], [0], [0], [1], [0, 0, 1, 1], [], []>} : vector<8x8xf32>, vector<8x8xf32>, vector<8x8xf32> -> vector<8x8xf32>
    %252 = tpu.concatenate %200, %217, %234, %251 in 1 : vector<8x8xf32>, vector<8x8xf32>, vector<8x8xf32>, vector<8x8xf32> -> vector<8x32xf32>
    %cst_104 = arith.constant dense<0.000000e+00> : vector<8x32xf32>
    %253 = tpu.matmul %252, %26, %cst_104 {dimension_numbers = #tpu.dot_dimension_numbers<[1], [0], [0], [1], [0, 0, 1, 1], [], []>} : vector<8x32xf32>, vector<32x32xf32>, vector<8x32xf32> -> vector<8x32xf32>
    %254 = vector.broadcast %32 : vector<1x32xf32> to vector<8x32xf32>
    %255 = arith.addf %253, %254 : vector<8x32xf32>
    %256 = arith.addf %180, %255 : vector<8x32xf32>
    %cst_105 = arith.constant dense<0.000000e+00> : vector<8xf32>
    %257 = vector.multi_reduction <add>, %256, %cst_105 [1] : vector<8x32xf32> to vector<8xf32>
    %258 = vector.shape_cast %257 : vector<8xf32> to vector<8x1xf32>
    %cst_106 = arith.constant 3.200000e+01 : f32
    %259 = vector.broadcast %cst_106 : f32 to vector<8x1xf32>
    %260 = arith.divf %258, %259 : vector<8x1xf32>
    %261 = arith.mulf %256, %256 : vector<8x32xf32>
    %cst_107 = arith.constant dense<0.000000e+00> : vector<8xf32>
    %262 = vector.multi_reduction <add>, %261, %cst_107 [1] : vector<8x32xf32> to vector<8xf32>
    %263 = vector.shape_cast %262 : vector<8xf32> to vector<8x1xf32>
    %cst_108 = arith.constant 3.200000e+01 : f32
    %264 = vector.broadcast %cst_108 : f32 to vector<8x1xf32>
    %265 = arith.divf %263, %264 : vector<8x1xf32>
    %266 = arith.mulf %260, %260 : vector<8x1xf32>
    %267 = arith.subf %265, %266 : vector<8x1xf32>
    %268 = vector.broadcast %260 : vector<8x1xf32> to vector<8x32xf32>
    %269 = arith.subf %256, %268 : vector<8x32xf32>
    %cst_109 = arith.constant 9.99999974E-6 : f32
    %270 = vector.broadcast %cst_109 : f32 to vector<8x1xf32>
    %271 = arith.addf %267, %270 : vector<8x1xf32>
    %272 = math.rsqrt %271 : vector<8x1xf32>
    %273 = vector.broadcast %272 : vector<8x1xf32> to vector<8x32xf32>
    %274 = arith.mulf %269, %273 : vector<8x32xf32>
    %275 = vector.broadcast %33 : vector<1x32xf32> to vector<8x32xf32>
    %276 = arith.mulf %274, %275 : vector<8x32xf32>
    %277 = vector.broadcast %34 : vector<1x32xf32> to vector<8x32xf32>
    %278 = arith.addf %276, %277 : vector<8x32xf32>
    %cst_110 = arith.constant dense<0.000000e+00> : vector<8x64xf32>
    %279 = tpu.matmul %278, %28, %cst_110 {dimension_numbers = #tpu.dot_dimension_numbers<[1], [0], [0], [1], [0, 0, 1, 1], [], []>} : vector<8x32xf32>, vector<32x64xf32>, vector<8x64xf32> -> vector<8x64xf32>
    %280 = vector.broadcast %35 : vector<1x64xf32> to vector<8x64xf32>
    %281 = arith.addf %279, %280 : vector<8x64xf32>
    %cst_111 = arith.constant 0.000000e+00 : f32
    %282 = vector.broadcast %cst_111 : f32 to vector<8x64xf32>
    %283 = arith.maximumf %281, %282 : vector<8x64xf32>
    %cst_112 = arith.constant dense<0.000000e+00> : vector<8x32xf32>
    %284 = tpu.matmul %283, %30, %cst_112 {dimension_numbers = #tpu.dot_dimension_numbers<[1], [0], [0], [1], [0, 0, 1, 1], [], []>} : vector<8x64xf32>, vector<64x32xf32>, vector<8x32xf32> -> vector<8x32xf32>
    %285 = vector.broadcast %36 : vector<1x32xf32> to vector<8x32xf32>
    %286 = arith.addf %284, %285 : vector<8x32xf32>
    %287 = arith.addf %278, %286 : vector<8x32xf32>
    %cst_113 = arith.constant dense<0.000000e+00> : vector<8xf32>
    %288 = vector.multi_reduction <add>, %287, %cst_113 [1] : vector<8x32xf32> to vector<8xf32>
    %289 = vector.shape_cast %288 : vector<8xf32> to vector<8x1xf32>
    %cst_114 = arith.constant 3.200000e+01 : f32
    %290 = vector.broadcast %cst_114 : f32 to vector<8x1xf32>
    %291 = arith.divf %289, %290 : vector<8x1xf32>
    %292 = arith.mulf %287, %287 : vector<8x32xf32>
    %cst_115 = arith.constant dense<0.000000e+00> : vector<8xf32>
    %293 = vector.multi_reduction <add>, %292, %cst_115 [1] : vector<8x32xf32> to vector<8xf32>
    %294 = vector.shape_cast %293 : vector<8xf32> to vector<8x1xf32>
    %cst_116 = arith.constant 3.200000e+01 : f32
    %295 = vector.broadcast %cst_116 : f32 to vector<8x1xf32>
    %296 = arith.divf %294, %295 : vector<8x1xf32>
    %297 = arith.mulf %291, %291 : vector<8x1xf32>
    %298 = arith.subf %296, %297 : vector<8x1xf32>
    %299 = vector.broadcast %291 : vector<8x1xf32> to vector<8x32xf32>
    %300 = arith.subf %287, %299 : vector<8x32xf32>
    %cst_117 = arith.constant 9.99999974E-6 : f32
    %301 = vector.broadcast %cst_117 : f32 to vector<8x1xf32>
    %302 = arith.addf %298, %301 : vector<8x1xf32>
    %303 = math.rsqrt %302 : vector<8x1xf32>
    %304 = vector.broadcast %303 : vector<8x1xf32> to vector<8x32xf32>
    %305 = arith.mulf %300, %304 : vector<8x32xf32>
    %306 = vector.broadcast %37 : vector<1x32xf32> to vector<8x32xf32>
    %307 = arith.mulf %305, %306 : vector<8x32xf32>
    %308 = vector.broadcast %38 : vector<1x32xf32> to vector<8x32xf32>
    %309 = arith.addf %307, %308 : vector<8x32xf32>
    %310 = vector.broadcast %c0_i32 : i32 to vector<8x32xi32>
    %311 = arith.cmpi eq, %40, %310 : vector<8x32xi32>
    %cst_118 = arith.constant 0.000000e+00 : f32
    %312 = vector.broadcast %cst_118 : f32 to vector<8x32xf32>
    %313 = arith.select %311, %309, %312 : vector<8x32xi1>, vector<8x32xf32>
    %cst_119 = arith.constant dense<0.000000e+00> : vector<32xf32>
    %314 = vector.multi_reduction <add>, %313, %cst_119 [0] : vector<8x32xf32> to vector<32xf32>
    %315 = vector.shape_cast %314 : vector<32xf32> to vector<1x32xf32>
    %cst_120 = arith.constant dense<0.000000e+00> : vector<1x128xf32>
    %316 = tpu.matmul %315, %4, %cst_120 {dimension_numbers = #tpu.dot_dimension_numbers<[1], [0], [0], [1], [0, 0, 1, 1], [], []>} : vector<1x32xf32>, vector<32x128xf32>, vector<1x128xf32> -> vector<1x128xf32>
    %317 = arith.addf %316, %6 : vector<1x128xf32>
    %318 = arith.index_cast %c0_i32 : i32 to index
    %319 = memref.load %arg0[%318] : memref<5xf32, #tpu.memory_space<smem>>
    %c64_i32 = arith.constant 64 : i32
    %320 = vector.broadcast %c64_i32 : i32 to vector<1x128xi32>
    %321 = arith.cmpi slt, %41, %320 : vector<1x128xi32>
    %cst_121 = arith.constant 0.000000e+00 : f32
    %322 = vector.broadcast %cst_121 : f32 to vector<1x128xf32>
    %323 = arith.select %321, %317, %322 : vector<1x128xi1>, vector<1x128xf32>
    %c64_i32_122 = arith.constant 64 : i32
    %324 = vector.broadcast %c64_i32_122 : i32 to vector<1x128xi32>
    %325 = arith.cmpi eq, %41, %324 : vector<1x128xi32>
    %326 = vector.broadcast %319 : f32 to vector<1x128xf32>
    %327 = arith.select %325, %326, %323 : vector<1x128xi1>, vector<1x128xf32>
    %c1_i32 = arith.constant 1 : i32
    %328 = arith.addi %c0_i32, %c1_i32 : i32
    %329 = arith.index_cast %328 : i32 to index
    %c0_123 = arith.constant 0 : index
    %330 = vector.load %arg10[%329, %c0_123] : memref<8x128xf32, #tpu.memory_space<vmem>>, vector<1x128xf32>
    tpu.vector_store %arg10[%329, %c0_123], %327 {strides = array<i32>} : memref<8x128xf32, #tpu.memory_space<vmem>>, vector<1x128xf32>,
    %c1_i32_124 = arith.constant 1 : i32
    %c0_125 = arith.constant 0 : index
    %c0_126 = arith.constant 0 : index
    %331 = vector.load %arg10[%c0_125, %c0_126] : memref<8x128xf32, #tpu.memory_space<vmem>>, vector<8x128xf32>
    %cst_127 = arith.constant dense<0.000000e+00> : vector<8x32xf32>
    %332 = tpu.matmul %331, %3, %cst_127 {dimension_numbers = #tpu.dot_dimension_numbers<[1], [0], [0], [1], [0, 0, 1, 1], [], []>} : vector<8x128xf32>, vector<128x32xf32>, vector<8x32xf32> -> vector<8x32xf32>
    %333 = vector.broadcast %5 : vector<1x32xf32> to vector<8x32xf32>
    %334 = arith.addf %332, %333 : vector<8x32xf32>
    %335 = arith.addf %334, %2 : vector<8x32xf32>
    %336 = vector.broadcast %c1_i32_124 : i32 to vector<1x8xi32>
    %337 = arith.cmpi sle, %39, %336 : vector<1x8xi32>
    %cst_128 = arith.constant 0.000000e+00 : f32
    %cst_129 = arith.constant -1.000000e+30 : f32
    %338 = vector.broadcast %cst_128 : f32 to vector<1x8xf32>
    %339 = vector.broadcast %cst_129 : f32 to vector<1x8xf32>
    %340 = arith.select %337, %338, %339 : vector<1x8xi1>, vector<1x8xf32>
    %cst_130 = arith.constant dense<0.000000e+00> : vector<8x96xf32>
    %341 = tpu.matmul %335, %8, %cst_130 {dimension_numbers = #tpu.dot_dimension_numbers<[1], [0], [0], [1], [0, 0, 1, 1], [], []>} : vector<8x32xf32>, vector<32x96xf32>, vector<8x96xf32> -> vector<8x96xf32>
    %342 = vector.broadcast %15 : vector<1x96xf32> to vector<8x96xf32>
    %343 = arith.addf %341, %342 : vector<8x96xf32>
    %344 = vector.extract_strided_slice %343 {offsets = [0, 0], sizes = [8, 8], strides = [1, 1]} : vector<8x96xf32> to vector<8x8xf32>
    %345 = vector.extract_strided_slice %343 {offsets = [0, 32], sizes = [8, 8], strides = [1, 1]} : vector<8x96xf32> to vector<8x8xf32>
    %346 = vector.extract_strided_slice %343 {offsets = [0, 64], sizes = [8, 8], strides = [1, 1]} : vector<8x96xf32> to vector<8x8xf32>
    %cst_131 = arith.constant dense<0.000000e+00> : vector<8x8xf32>
    %347 = tpu.matmul %344, %345, %cst_131 {dimension_numbers = #tpu.dot_dimension_numbers<[1], [1], [0], [0], [0, 0, 1, 0], [], []>} : vector<8x8xf32>, vector<8x8xf32>, vector<8x8xf32> -> vector<8x8xf32>
    %348 = vector.broadcast %340 : vector<1x8xf32> to vector<8x8xf32>
    %349 = arith.addf %347, %348 : vector<8x8xf32>
    %cst_132 = arith.constant dense<0xFF800000> : vector<8xf32>
    %350 = vector.multi_reduction <maximumf>, %349, %cst_132 [1] : vector<8x8xf32> to vector<8xf32>
    %351 = vector.shape_cast %350 : vector<8xf32> to vector<8x1xf32>
    %352 = vector.broadcast %351 : vector<8x1xf32> to vector<8x8xf32>
    %353 = arith.subf %349, %352 : vector<8x8xf32>
    %354 = math.exp %353 : vector<8x8xf32>
    %cst_133 = arith.constant dense<0.000000e+00> : vector<8xf32>
    %355 = vector.multi_reduction <add>, %354, %cst_133 [1] : vector<8x8xf32> to vector<8xf32>
    %356 = vector.shape_cast %355 : vector<8xf32> to vector<8x1xf32>
    %357 = tpu.reciprocal %356 {approx = true} : vector<8x1xf32> -> vector<8x1xf32>
    %358 = vector.broadcast %357 : vector<8x1xf32> to vector<8x8xf32>
    %359 = arith.mulf %354, %358 : vector<8x8xf32>
    %cst_134 = arith.constant dense<0.000000e+00> : vector<8x8xf32>
    %360 = tpu.matmul %359, %346, %cst_134 {dimension_numbers = #tpu.dot_dimension_numbers<[1], [0], [0], [1], [0, 0, 1, 1], [], []>} : vector<8x8xf32>, vector<8x8xf32>, vector<8x8xf32> -> vector<8x8xf32>
    %361 = vector.extract_strided_slice %343 {offsets = [0, 8], sizes = [8, 8], strides = [1, 1]} : vector<8x96xf32> to vector<8x8xf32>
    %362 = vector.extract_strided_slice %343 {offsets = [0, 40], sizes = [8, 8], strides = [1, 1]} : vector<8x96xf32> to vector<8x8xf32>
    %363 = vector.extract_strided_slice %343 {offsets = [0, 72], sizes = [8, 8], strides = [1, 1]} : vector<8x96xf32> to vector<8x8xf32>
    %cst_135 = arith.constant dense<0.000000e+00> : vector<8x8xf32>
    %364 = tpu.matmul %361, %362, %cst_135 {dimension_numbers = #tpu.dot_dimension_numbers<[1], [1], [0], [0], [0, 0, 1, 0], [], []>} : vector<8x8xf32>, vector<8x8xf32>, vector<8x8xf32> -> vector<8x8xf32>
    %365 = vector.broadcast %340 : vector<1x8xf32> to vector<8x8xf32>
    %366 = arith.addf %364, %365 : vector<8x8xf32>
    %cst_136 = arith.constant dense<0xFF800000> : vector<8xf32>
    %367 = vector.multi_reduction <maximumf>, %366, %cst_136 [1] : vector<8x8xf32> to vector<8xf32>
    %368 = vector.shape_cast %367 : vector<8xf32> to vector<8x1xf32>
    %369 = vector.broadcast %368 : vector<8x1xf32> to vector<8x8xf32>
    %370 = arith.subf %366, %369 : vector<8x8xf32>
    %371 = math.exp %370 : vector<8x8xf32>
    %cst_137 = arith.constant dense<0.000000e+00> : vector<8xf32>
    %372 = vector.multi_reduction <add>, %371, %cst_137 [1] : vector<8x8xf32> to vector<8xf32>
    %373 = vector.shape_cast %372 : vector<8xf32> to vector<8x1xf32>
    %374 = tpu.reciprocal %373 {approx = true} : vector<8x1xf32> -> vector<8x1xf32>
    %375 = vector.broadcast %374 : vector<8x1xf32> to vector<8x8xf32>
    %376 = arith.mulf %371, %375 : vector<8x8xf32>
    %cst_138 = arith.constant dense<0.000000e+00> : vector<8x8xf32>
    %377 = tpu.matmul %376, %363, %cst_138 {dimension_numbers = #tpu.dot_dimension_numbers<[1], [0], [0], [1], [0, 0, 1, 1], [], []>} : vector<8x8xf32>, vector<8x8xf32>, vector<8x8xf32> -> vector<8x8xf32>
    %378 = vector.extract_strided_slice %343 {offsets = [0, 16], sizes = [8, 8], strides = [1, 1]} : vector<8x96xf32> to vector<8x8xf32>
    %379 = vector.extract_strided_slice %343 {offsets = [0, 48], sizes = [8, 8], strides = [1, 1]} : vector<8x96xf32> to vector<8x8xf32>
    %380 = vector.extract_strided_slice %343 {offsets = [0, 80], sizes = [8, 8], strides = [1, 1]} : vector<8x96xf32> to vector<8x8xf32>
    %cst_139 = arith.constant dense<0.000000e+00> : vector<8x8xf32>
    %381 = tpu.matmul %378, %379, %cst_139 {dimension_numbers = #tpu.dot_dimension_numbers<[1], [1], [0], [0], [0, 0, 1, 0], [], []>} : vector<8x8xf32>, vector<8x8xf32>, vector<8x8xf32> -> vector<8x8xf32>
    %382 = vector.broadcast %340 : vector<1x8xf32> to vector<8x8xf32>
    %383 = arith.addf %381, %382 : vector<8x8xf32>
    %cst_140 = arith.constant dense<0xFF800000> : vector<8xf32>
    %384 = vector.multi_reduction <maximumf>, %383, %cst_140 [1] : vector<8x8xf32> to vector<8xf32>
    %385 = vector.shape_cast %384 : vector<8xf32> to vector<8x1xf32>
    %386 = vector.broadcast %385 : vector<8x1xf32> to vector<8x8xf32>
    %387 = arith.subf %383, %386 : vector<8x8xf32>
    %388 = math.exp %387 : vector<8x8xf32>
    %cst_141 = arith.constant dense<0.000000e+00> : vector<8xf32>
    %389 = vector.multi_reduction <add>, %388, %cst_141 [1] : vector<8x8xf32> to vector<8xf32>
    %390 = vector.shape_cast %389 : vector<8xf32> to vector<8x1xf32>
    %391 = tpu.reciprocal %390 {approx = true} : vector<8x1xf32> -> vector<8x1xf32>
    %392 = vector.broadcast %391 : vector<8x1xf32> to vector<8x8xf32>
    %393 = arith.mulf %388, %392 : vector<8x8xf32>
    %cst_142 = arith.constant dense<0.000000e+00> : vector<8x8xf32>
    %394 = tpu.matmul %393, %380, %cst_142 {dimension_numbers = #tpu.dot_dimension_numbers<[1], [0], [0], [1], [0, 0, 1, 1], [], []>} : vector<8x8xf32>, vector<8x8xf32>, vector<8x8xf32> -> vector<8x8xf32>
    %395 = vector.extract_strided_slice %343 {offsets = [0, 24], sizes = [8, 8], strides = [1, 1]} : vector<8x96xf32> to vector<8x8xf32>
    %396 = vector.extract_strided_slice %343 {offsets = [0, 56], sizes = [8, 8], strides = [1, 1]} : vector<8x96xf32> to vector<8x8xf32>
    %397 = vector.extract_strided_slice %343 {offsets = [0, 88], sizes = [8, 8], strides = [1, 1]} : vector<8x96xf32> to vector<8x8xf32>
    %cst_143 = arith.constant dense<0.000000e+00> : vector<8x8xf32>
    %398 = tpu.matmul %395, %396, %cst_143 {dimension_numbers = #tpu.dot_dimension_numbers<[1], [1], [0], [0], [0, 0, 1, 0], [], []>} : vector<8x8xf32>, vector<8x8xf32>, vector<8x8xf32> -> vector<8x8xf32>
    %399 = vector.broadcast %340 : vector<1x8xf32> to vector<8x8xf32>
    %400 = arith.addf %398, %399 : vector<8x8xf32>
    %cst_144 = arith.constant dense<0xFF800000> : vector<8xf32>
    %401 = vector.multi_reduction <maximumf>, %400, %cst_144 [1] : vector<8x8xf32> to vector<8xf32>
    %402 = vector.shape_cast %401 : vector<8xf32> to vector<8x1xf32>
    %403 = vector.broadcast %402 : vector<8x1xf32> to vector<8x8xf32>
    %404 = arith.subf %400, %403 : vector<8x8xf32>
    %405 = math.exp %404 : vector<8x8xf32>
    %cst_145 = arith.constant dense<0.000000e+00> : vector<8xf32>
    %406 = vector.multi_reduction <add>, %405, %cst_145 [1] : vector<8x8xf32> to vector<8xf32>
    %407 = vector.shape_cast %406 : vector<8xf32> to vector<8x1xf32>
    %408 = tpu.reciprocal %407 {approx = true} : vector<8x1xf32> -> vector<8x1xf32>
    %409 = vector.broadcast %408 : vector<8x1xf32> to vector<8x8xf32>
    %410 = arith.mulf %405, %409 : vector<8x8xf32>
    %cst_146 = arith.constant dense<0.000000e+00> : vector<8x8xf32>
    %411 = tpu.matmul %410, %397, %cst_146 {dimension_numbers = #tpu.dot_dimension_numbers<[1], [0], [0], [1], [0, 0, 1, 1], [], []>} : vector<8x8xf32>, vector<8x8xf32>, vector<8x8xf32> -> vector<8x8xf32>
    %412 = tpu.concatenate %360, %377, %394, %411 in 1 : vector<8x8xf32>, vector<8x8xf32>, vector<8x8xf32>, vector<8x8xf32> -> vector<8x32xf32>
    %cst_147 = arith.constant dense<0.000000e+00> : vector<8x32xf32>
    %413 = tpu.matmul %412, %10, %cst_147 {dimension_numbers = #tpu.dot_dimension_numbers<[1], [0], [0], [1], [0, 0, 1, 1], [], []>} : vector<8x32xf32>, vector<32x32xf32>, vector<8x32xf32> -> vector<8x32xf32>
    %414 = vector.broadcast %16 : vector<1x32xf32> to vector<8x32xf32>
    %415 = arith.addf %413, %414 : vector<8x32xf32>
    %416 = arith.addf %335, %415 : vector<8x32xf32>
    %cst_148 = arith.constant dense<0.000000e+00> : vector<8xf32>
    %417 = vector.multi_reduction <add>, %416, %cst_148 [1] : vector<8x32xf32> to vector<8xf32>
    %418 = vector.shape_cast %417 : vector<8xf32> to vector<8x1xf32>
    %cst_149 = arith.constant 3.200000e+01 : f32
    %419 = vector.broadcast %cst_149 : f32 to vector<8x1xf32>
    %420 = arith.divf %418, %419 : vector<8x1xf32>
    %421 = arith.mulf %416, %416 : vector<8x32xf32>
    %cst_150 = arith.constant dense<0.000000e+00> : vector<8xf32>
    %422 = vector.multi_reduction <add>, %421, %cst_150 [1] : vector<8x32xf32> to vector<8xf32>
    %423 = vector.shape_cast %422 : vector<8xf32> to vector<8x1xf32>
    %cst_151 = arith.constant 3.200000e+01 : f32
    %424 = vector.broadcast %cst_151 : f32 to vector<8x1xf32>
    %425 = arith.divf %423, %424 : vector<8x1xf32>
    %426 = arith.mulf %420, %420 : vector<8x1xf32>
    %427 = arith.subf %425, %426 : vector<8x1xf32>
    %428 = vector.broadcast %420 : vector<8x1xf32> to vector<8x32xf32>
    %429 = arith.subf %416, %428 : vector<8x32xf32>
    %cst_152 = arith.constant 9.99999974E-6 : f32
    %430 = vector.broadcast %cst_152 : f32 to vector<8x1xf32>
    %431 = arith.addf %427, %430 : vector<8x1xf32>
    %432 = math.rsqrt %431 : vector<8x1xf32>
    %433 = vector.broadcast %432 : vector<8x1xf32> to vector<8x32xf32>
    %434 = arith.mulf %429, %433 : vector<8x32xf32>
    %435 = vector.broadcast %17 : vector<1x32xf32> to vector<8x32xf32>
    %436 = arith.mulf %434, %435 : vector<8x32xf32>
    %437 = vector.broadcast %18 : vector<1x32xf32> to vector<8x32xf32>
    %438 = arith.addf %436, %437 : vector<8x32xf32>
    %cst_153 = arith.constant dense<0.000000e+00> : vector<8x64xf32>
    %439 = tpu.matmul %438, %12, %cst_153 {dimension_numbers = #tpu.dot_dimension_numbers<[1], [0], [0], [1], [0, 0, 1, 1], [], []>} : vector<8x32xf32>, vector<32x64xf32>, vector<8x64xf32> -> vector<8x64xf32>
    %440 = vector.broadcast %19 : vector<1x64xf32> to vector<8x64xf32>
    %441 = arith.addf %439, %440 : vector<8x64xf32>
    %cst_154 = arith.constant 0.000000e+00 : f32
    %442 = vector.broadcast %cst_154 : f32 to vector<8x64xf32>
    %443 = arith.maximumf %441, %442 : vector<8x64xf32>
    %cst_155 = arith.constant dense<0.000000e+00> : vector<8x32xf32>
    %444 = tpu.matmul %443, %14, %cst_155 {dimension_numbers = #tpu.dot_dimension_numbers<[1], [0], [0], [1], [0, 0, 1, 1], [], []>} : vector<8x64xf32>, vector<64x32xf32>, vector<8x32xf32> -> vector<8x32xf32>
    %445 = vector.broadcast %20 : vector<1x32xf32> to vector<8x32xf32>
    %446 = arith.addf %444, %445 : vector<8x32xf32>
    %447 = arith.addf %438, %446 : vector<8x32xf32>
    %cst_156 = arith.constant dense<0.000000e+00> : vector<8xf32>
    %448 = vector.multi_reduction <add>, %447, %cst_156 [1] : vector<8x32xf32> to vector<8xf32>
    %449 = vector.shape_cast %448 : vector<8xf32> to vector<8x1xf32>
    %cst_157 = arith.constant 3.200000e+01 : f32
    %450 = vector.broadcast %cst_157 : f32 to vector<8x1xf32>
    %451 = arith.divf %449, %450 : vector<8x1xf32>
    %452 = arith.mulf %447, %447 : vector<8x32xf32>
    %cst_158 = arith.constant dense<0.000000e+00> : vector<8xf32>
    %453 = vector.multi_reduction <add>, %452, %cst_158 [1] : vector<8x32xf32> to vector<8xf32>
    %454 = vector.shape_cast %453 : vector<8xf32> to vector<8x1xf32>
    %cst_159 = arith.constant 3.200000e+01 : f32
    %455 = vector.broadcast %cst_159 : f32 to vector<8x1xf32>
    %456 = arith.divf %454, %455 : vector<8x1xf32>
    %457 = arith.mulf %451, %451 : vector<8x1xf32>
    %458 = arith.subf %456, %457 : vector<8x1xf32>
    %459 = vector.broadcast %451 : vector<8x1xf32> to vector<8x32xf32>
    %460 = arith.subf %447, %459 : vector<8x32xf32>
    %cst_160 = arith.constant 9.99999974E-6 : f32
    %461 = vector.broadcast %cst_160 : f32 to vector<8x1xf32>
    %462 = arith.addf %458, %461 : vector<8x1xf32>
    %463 = math.rsqrt %462 : vector<8x1xf32>
    %464 = vector.broadcast %463 : vector<8x1xf32> to vector<8x32xf32>
    %465 = arith.mulf %460, %464 : vector<8x32xf32>
    %466 = vector.broadcast %21 : vector<1x32xf32> to vector<8x32xf32>
    %467 = arith.mulf %465, %466 : vector<8x32xf32>
    %468 = vector.broadcast %22 : vector<1x32xf32> to vector<8x32xf32>
    %469 = arith.addf %467, %468 : vector<8x32xf32>
    %cst_161 = arith.constant dense<0.000000e+00> : vector<8x96xf32>
    %470 = tpu.matmul %469, %24, %cst_161 {dimension_numbers = #tpu.dot_dimension_numbers<[1], [0], [0], [1], [0, 0, 1, 1], [], []>} : vector<8x32xf32>, vector<32x96xf32>, vector<8x96xf32> -> vector<8x96xf32>
    %471 = vector.broadcast %31 : vector<1x96xf32> to vector<8x96xf32>
    %472 = arith.addf %470, %471 : vector<8x96xf32>
    %473 = vector.extract_strided_slice %472 {offsets = [0, 0], sizes = [8, 8], strides = [1, 1]} : vector<8x96xf32> to vector<8x8xf32>
    %474 = vector.extract_strided_slice %472 {offsets = [0, 32], sizes = [8, 8], strides = [1, 1]} : vector<8x96xf32> to vector<8x8xf32>
    %475 = vector.extract_strided_slice %472 {offsets = [0, 64], sizes = [8, 8], strides = [1, 1]} : vector<8x96xf32> to vector<8x8xf32>
    %cst_162 = arith.constant dense<0.000000e+00> : vector<8x8xf32>
    %476 = tpu.matmul %473, %474, %cst_162 {dimension_numbers = #tpu.dot_dimension_numbers<[1], [1], [0], [0], [0, 0, 1, 0], [], []>} : vector<8x8xf32>, vector<8x8xf32>, vector<8x8xf32> -> vector<8x8xf32>
    %477 = vector.broadcast %340 : vector<1x8xf32> to vector<8x8xf32>
    %478 = arith.addf %476, %477 : vector<8x8xf32>
    %cst_163 = arith.constant dense<0xFF800000> : vector<8xf32>
    %479 = vector.multi_reduction <maximumf>, %478, %cst_163 [1] : vector<8x8xf32> to vector<8xf32>
    %480 = vector.shape_cast %479 : vector<8xf32> to vector<8x1xf32>
    %481 = vector.broadcast %480 : vector<8x1xf32> to vector<8x8xf32>
    %482 = arith.subf %478, %481 : vector<8x8xf32>
    %483 = math.exp %482 : vector<8x8xf32>
    %cst_164 = arith.constant dense<0.000000e+00> : vector<8xf32>
    %484 = vector.multi_reduction <add>, %483, %cst_164 [1] : vector<8x8xf32> to vector<8xf32>
    %485 = vector.shape_cast %484 : vector<8xf32> to vector<8x1xf32>
    %486 = tpu.reciprocal %485 {approx = true} : vector<8x1xf32> -> vector<8x1xf32>
    %487 = vector.broadcast %486 : vector<8x1xf32> to vector<8x8xf32>
    %488 = arith.mulf %483, %487 : vector<8x8xf32>
    %cst_165 = arith.constant dense<0.000000e+00> : vector<8x8xf32>
    %489 = tpu.matmul %488, %475, %cst_165 {dimension_numbers = #tpu.dot_dimension_numbers<[1], [0], [0], [1], [0, 0, 1, 1], [], []>} : vector<8x8xf32>, vector<8x8xf32>, vector<8x8xf32> -> vector<8x8xf32>
    %490 = vector.extract_strided_slice %472 {offsets = [0, 8], sizes = [8, 8], strides = [1, 1]} : vector<8x96xf32> to vector<8x8xf32>
    %491 = vector.extract_strided_slice %472 {offsets = [0, 40], sizes = [8, 8], strides = [1, 1]} : vector<8x96xf32> to vector<8x8xf32>
    %492 = vector.extract_strided_slice %472 {offsets = [0, 72], sizes = [8, 8], strides = [1, 1]} : vector<8x96xf32> to vector<8x8xf32>
    %cst_166 = arith.constant dense<0.000000e+00> : vector<8x8xf32>
    %493 = tpu.matmul %490, %491, %cst_166 {dimension_numbers = #tpu.dot_dimension_numbers<[1], [1], [0], [0], [0, 0, 1, 0], [], []>} : vector<8x8xf32>, vector<8x8xf32>, vector<8x8xf32> -> vector<8x8xf32>
    %494 = vector.broadcast %340 : vector<1x8xf32> to vector<8x8xf32>
    %495 = arith.addf %493, %494 : vector<8x8xf32>
    %cst_167 = arith.constant dense<0xFF800000> : vector<8xf32>
    %496 = vector.multi_reduction <maximumf>, %495, %cst_167 [1] : vector<8x8xf32> to vector<8xf32>
    %497 = vector.shape_cast %496 : vector<8xf32> to vector<8x1xf32>
    %498 = vector.broadcast %497 : vector<8x1xf32> to vector<8x8xf32>
    %499 = arith.subf %495, %498 : vector<8x8xf32>
    %500 = math.exp %499 : vector<8x8xf32>
    %cst_168 = arith.constant dense<0.000000e+00> : vector<8xf32>
    %501 = vector.multi_reduction <add>, %500, %cst_168 [1] : vector<8x8xf32> to vector<8xf32>
    %502 = vector.shape_cast %501 : vector<8xf32> to vector<8x1xf32>
    %503 = tpu.reciprocal %502 {approx = true} : vector<8x1xf32> -> vector<8x1xf32>
    %504 = vector.broadcast %503 : vector<8x1xf32> to vector<8x8xf32>
    %505 = arith.mulf %500, %504 : vector<8x8xf32>
    %cst_169 = arith.constant dense<0.000000e+00> : vector<8x8xf32>
    %506 = tpu.matmul %505, %492, %cst_169 {dimension_numbers = #tpu.dot_dimension_numbers<[1], [0], [0], [1], [0, 0, 1, 1], [], []>} : vector<8x8xf32>, vector<8x8xf32>, vector<8x8xf32> -> vector<8x8xf32>
    %507 = vector.extract_strided_slice %472 {offsets = [0, 16], sizes = [8, 8], strides = [1, 1]} : vector<8x96xf32> to vector<8x8xf32>
    %508 = vector.extract_strided_slice %472 {offsets = [0, 48], sizes = [8, 8], strides = [1, 1]} : vector<8x96xf32> to vector<8x8xf32>
    %509 = vector.extract_strided_slice %472 {offsets = [0, 80], sizes = [8, 8], strides = [1, 1]} : vector<8x96xf32> to vector<8x8xf32>
    %cst_170 = arith.constant dense<0.000000e+00> : vector<8x8xf32>
    %510 = tpu.matmul %507, %508, %cst_170 {dimension_numbers = #tpu.dot_dimension_numbers<[1], [1], [0], [0], [0, 0, 1, 0], [], []>} : vector<8x8xf32>, vector<8x8xf32>, vector<8x8xf32> -> vector<8x8xf32>
    %511 = vector.broadcast %340 : vector<1x8xf32> to vector<8x8xf32>
    %512 = arith.addf %510, %511 : vector<8x8xf32>
    %cst_171 = arith.constant dense<0xFF800000> : vector<8xf32>
    %513 = vector.multi_reduction <maximumf>, %512, %cst_171 [1] : vector<8x8xf32> to vector<8xf32>
    %514 = vector.shape_cast %513 : vector<8xf32> to vector<8x1xf32>
    %515 = vector.broadcast %514 : vector<8x1xf32> to vector<8x8xf32>
    %516 = arith.subf %512, %515 : vector<8x8xf32>
    %517 = math.exp %516 : vector<8x8xf32>
    %cst_172 = arith.constant dense<0.000000e+00> : vector<8xf32>
    %518 = vector.multi_reduction <add>, %517, %cst_172 [1] : vector<8x8xf32> to vector<8xf32>
    %519 = vector.shape_cast %518 : vector<8xf32> to vector<8x1xf32>
    %520 = tpu.reciprocal %519 {approx = true} : vector<8x1xf32> -> vector<8x1xf32>
    %521 = vector.broadcast %520 : vector<8x1xf32> to vector<8x8xf32>
    %522 = arith.mulf %517, %521 : vector<8x8xf32>
    %cst_173 = arith.constant dense<0.000000e+00> : vector<8x8xf32>
    %523 = tpu.matmul %522, %509, %cst_173 {dimension_numbers = #tpu.dot_dimension_numbers<[1], [0], [0], [1], [0, 0, 1, 1], [], []>} : vector<8x8xf32>, vector<8x8xf32>, vector<8x8xf32> -> vector<8x8xf32>
    %524 = vector.extract_strided_slice %472 {offsets = [0, 24], sizes = [8, 8], strides = [1, 1]} : vector<8x96xf32> to vector<8x8xf32>
    %525 = vector.extract_strided_slice %472 {offsets = [0, 56], sizes = [8, 8], strides = [1, 1]} : vector<8x96xf32> to vector<8x8xf32>
    %526 = vector.extract_strided_slice %472 {offsets = [0, 88], sizes = [8, 8], strides = [1, 1]} : vector<8x96xf32> to vector<8x8xf32>
    %cst_174 = arith.constant dense<0.000000e+00> : vector<8x8xf32>
    %527 = tpu.matmul %524, %525, %cst_174 {dimension_numbers = #tpu.dot_dimension_numbers<[1], [1], [0], [0], [0, 0, 1, 0], [], []>} : vector<8x8xf32>, vector<8x8xf32>, vector<8x8xf32> -> vector<8x8xf32>
    %528 = vector.broadcast %340 : vector<1x8xf32> to vector<8x8xf32>
    %529 = arith.addf %527, %528 : vector<8x8xf32>
    %cst_175 = arith.constant dense<0xFF800000> : vector<8xf32>
    %530 = vector.multi_reduction <maximumf>, %529, %cst_175 [1] : vector<8x8xf32> to vector<8xf32>
    %531 = vector.shape_cast %530 : vector<8xf32> to vector<8x1xf32>
    %532 = vector.broadcast %531 : vector<8x1xf32> to vector<8x8xf32>
    %533 = arith.subf %529, %532 : vector<8x8xf32>
    %534 = math.exp %533 : vector<8x8xf32>
    %cst_176 = arith.constant dense<0.000000e+00> : vector<8xf32>
    %535 = vector.multi_reduction <add>, %534, %cst_176 [1] : vector<8x8xf32> to vector<8xf32>
    %536 = vector.shape_cast %535 : vector<8xf32> to vector<8x1xf32>
    %537 = tpu.reciprocal %536 {approx = true} : vector<8x1xf32> -> vector<8x1xf32>
    %538 = vector.broadcast %537 : vector<8x1xf32> to vector<8x8xf32>
    %539 = arith.mulf %534, %538 : vector<8x8xf32>
    %cst_177 = arith.constant dense<0.000000e+00> : vector<8x8xf32>
    %540 = tpu.matmul %539, %526, %cst_177 {dimension_numbers = #tpu.dot_dimension_numbers<[1], [0], [0], [1], [0, 0, 1, 1], [], []>} : vector<8x8xf32>, vector<8x8xf32>, vector<8x8xf32> -> vector<8x8xf32>
    %541 = tpu.concatenate %489, %506, %523, %540 in 1 : vector<8x8xf32>, vector<8x8xf32>, vector<8x8xf32>, vector<8x8xf32> -> vector<8x32xf32>
    %cst_178 = arith.constant dense<0.000000e+00> : vector<8x32xf32>
    %542 = tpu.matmul %541, %26, %cst_178 {dimension_numbers = #tpu.dot_dimension_numbers<[1], [0], [0], [1], [0, 0, 1, 1], [], []>} : vector<8x32xf32>, vector<32x32xf32>, vector<8x32xf32> -> vector<8x32xf32>
    %543 = vector.broadcast %32 : vector<1x32xf32> to vector<8x32xf32>
    %544 = arith.addf %542, %543 : vector<8x32xf32>
    %545 = arith.addf %469, %544 : vector<8x32xf32>
    %cst_179 = arith.constant dense<0.000000e+00> : vector<8xf32>
    %546 = vector.multi_reduction <add>, %545, %cst_179 [1] : vector<8x32xf32> to vector<8xf32>
    %547 = vector.shape_cast %546 : vector<8xf32> to vector<8x1xf32>
    %cst_180 = arith.constant 3.200000e+01 : f32
    %548 = vector.broadcast %cst_180 : f32 to vector<8x1xf32>
    %549 = arith.divf %547, %548 : vector<8x1xf32>
    %550 = arith.mulf %545, %545 : vector<8x32xf32>
    %cst_181 = arith.constant dense<0.000000e+00> : vector<8xf32>
    %551 = vector.multi_reduction <add>, %550, %cst_181 [1] : vector<8x32xf32> to vector<8xf32>
    %552 = vector.shape_cast %551 : vector<8xf32> to vector<8x1xf32>
    %cst_182 = arith.constant 3.200000e+01 : f32
    %553 = vector.broadcast %cst_182 : f32 to vector<8x1xf32>
    %554 = arith.divf %552, %553 : vector<8x1xf32>
    %555 = arith.mulf %549, %549 : vector<8x1xf32>
    %556 = arith.subf %554, %555 : vector<8x1xf32>
    %557 = vector.broadcast %549 : vector<8x1xf32> to vector<8x32xf32>
    %558 = arith.subf %545, %557 : vector<8x32xf32>
    %cst_183 = arith.constant 9.99999974E-6 : f32
    %559 = vector.broadcast %cst_183 : f32 to vector<8x1xf32>
    %560 = arith.addf %556, %559 : vector<8x1xf32>
    %561 = math.rsqrt %560 : vector<8x1xf32>
    %562 = vector.broadcast %561 : vector<8x1xf32> to vector<8x32xf32>
    %563 = arith.mulf %558, %562 : vector<8x32xf32>
    %564 = vector.broadcast %33 : vector<1x32xf32> to vector<8x32xf32>
    %565 = arith.mulf %563, %564 : vector<8x32xf32>
    %566 = vector.broadcast %34 : vector<1x32xf32> to vector<8x32xf32>
    %567 = arith.addf %565, %566 : vector<8x32xf32>
    %cst_184 = arith.constant dense<0.000000e+00> : vector<8x64xf32>
    %568 = tpu.matmul %567, %28, %cst_184 {dimension_numbers = #tpu.dot_dimension_numbers<[1], [0], [0], [1], [0, 0, 1, 1], [], []>} : vector<8x32xf32>, vector<32x64xf32>, vector<8x64xf32> -> vector<8x64xf32>
    %569 = vector.broadcast %35 : vector<1x64xf32> to vector<8x64xf32>
    %570 = arith.addf %568, %569 : vector<8x64xf32>
    %cst_185 = arith.constant 0.000000e+00 : f32
    %571 = vector.broadcast %cst_185 : f32 to vector<8x64xf32>
    %572 = arith.maximumf %570, %571 : vector<8x64xf32>
    %cst_186 = arith.constant dense<0.000000e+00> : vector<8x32xf32>
    %573 = tpu.matmul %572, %30, %cst_186 {dimension_numbers = #tpu.dot_dimension_numbers<[1], [0], [0], [1], [0, 0, 1, 1], [], []>} : vector<8x64xf32>, vector<64x32xf32>, vector<8x32xf32> -> vector<8x32xf32>
    %574 = vector.broadcast %36 : vector<1x32xf32> to vector<8x32xf32>
    %575 = arith.addf %573, %574 : vector<8x32xf32>
    %576 = arith.addf %567, %575 : vector<8x32xf32>
    %cst_187 = arith.constant dense<0.000000e+00> : vector<8xf32>
    %577 = vector.multi_reduction <add>, %576, %cst_187 [1] : vector<8x32xf32> to vector<8xf32>
    %578 = vector.shape_cast %577 : vector<8xf32> to vector<8x1xf32>
    %cst_188 = arith.constant 3.200000e+01 : f32
    %579 = vector.broadcast %cst_188 : f32 to vector<8x1xf32>
    %580 = arith.divf %578, %579 : vector<8x1xf32>
    %581 = arith.mulf %576, %576 : vector<8x32xf32>
    %cst_189 = arith.constant dense<0.000000e+00> : vector<8xf32>
    %582 = vector.multi_reduction <add>, %581, %cst_189 [1] : vector<8x32xf32> to vector<8xf32>
    %583 = vector.shape_cast %582 : vector<8xf32> to vector<8x1xf32>
    %cst_190 = arith.constant 3.200000e+01 : f32
    %584 = vector.broadcast %cst_190 : f32 to vector<8x1xf32>
    %585 = arith.divf %583, %584 : vector<8x1xf32>
    %586 = arith.mulf %580, %580 : vector<8x1xf32>
    %587 = arith.subf %585, %586 : vector<8x1xf32>
    %588 = vector.broadcast %580 : vector<8x1xf32> to vector<8x32xf32>
    %589 = arith.subf %576, %588 : vector<8x32xf32>
    %cst_191 = arith.constant 9.99999974E-6 : f32
    %590 = vector.broadcast %cst_191 : f32 to vector<8x1xf32>
    %591 = arith.addf %587, %590 : vector<8x1xf32>
    %592 = math.rsqrt %591 : vector<8x1xf32>
    %593 = vector.broadcast %592 : vector<8x1xf32> to vector<8x32xf32>
    %594 = arith.mulf %589, %593 : vector<8x32xf32>
    %595 = vector.broadcast %37 : vector<1x32xf32> to vector<8x32xf32>
    %596 = arith.mulf %594, %595 : vector<8x32xf32>
    %597 = vector.broadcast %38 : vector<1x32xf32> to vector<8x32xf32>
    %598 = arith.addf %596, %597 : vector<8x32xf32>
    %599 = vector.broadcast %c1_i32_124 : i32 to vector<8x32xi32>
    %600 = arith.cmpi eq, %40, %599 : vector<8x32xi32>
    %cst_192 = arith.constant 0.000000e+00 : f32
    %601 = vector.broadcast %cst_192 : f32 to vector<8x32xf32>
    %602 = arith.select %600, %598, %601 : vector<8x32xi1>, vector<8x32xf32>
    %cst_193 = arith.constant dense<0.000000e+00> : vector<32xf32>
    %603 = vector.multi_reduction <add>, %602, %cst_193 [0] : vector<8x32xf32> to vector<32xf32>
    %604 = vector.shape_cast %603 : vector<32xf32> to vector<1x32xf32>
    %cst_194 = arith.constant dense<0.000000e+00> : vector<1x128xf32>
    %605 = tpu.matmul %604, %4, %cst_194 {dimension_numbers = #tpu.dot_dimension_numbers<[1], [0], [0], [1], [0, 0, 1, 1], [], []>} : vector<1x32xf32>, vector<32x128xf32>, vector<1x128xf32> -> vector<1x128xf32>
    %606 = arith.addf %605, %6 : vector<1x128xf32>
    %607 = arith.index_cast %c1_i32_124 : i32 to index
    %608 = memref.load %arg0[%607] : memref<5xf32, #tpu.memory_space<smem>>
    %c64_i32_195 = arith.constant 64 : i32
    %609 = vector.broadcast %c64_i32_195 : i32 to vector<1x128xi32>
    %610 = arith.cmpi slt, %41, %609 : vector<1x128xi32>
    %cst_196 = arith.constant 0.000000e+00 : f32
    %611 = vector.broadcast %cst_196 : f32 to vector<1x128xf32>
    %612 = arith.select %610, %606, %611 : vector<1x128xi1>, vector<1x128xf32>
    %c64_i32_197 = arith.constant 64 : i32
    %613 = vector.broadcast %c64_i32_197 : i32 to vector<1x128xi32>
    %614 = arith.cmpi eq, %41, %613 : vector<1x128xi32>
    %615 = vector.broadcast %608 : f32 to vector<1x128xf32>
    %616 = arith.select %614, %615, %612 : vector<1x128xi1>, vector<1x128xf32>
    %c1_i32_198 = arith.constant 1 : i32
    %617 = arith.addi %c1_i32_124, %c1_i32_198 : i32
    %618 = arith.index_cast %617 : i32 to index
    %c0_199 = arith.constant 0 : index
    %619 = vector.load %arg10[%618, %c0_199] : memref<8x128xf32, #tpu.memory_space<vmem>>, vector<1x128xf32>
    tpu.vector_store %arg10[%618, %c0_199], %616 {strides = array<i32>} : memref<8x128xf32, #tpu.memory_space<vmem>>, vector<1x128xf32>,
    %c2_i32 = arith.constant 2 : i32
    %c0_200 = arith.constant 0 : index
    %c0_201 = arith.constant 0 : index
    %620 = vector.load %arg10[%c0_200, %c0_201] : memref<8x128xf32, #tpu.memory_space<vmem>>, vector<8x128xf32>
    %cst_202 = arith.constant dense<0.000000e+00> : vector<8x32xf32>
    %621 = tpu.matmul %620, %3, %cst_202 {dimension_numbers = #tpu.dot_dimension_numbers<[1], [0], [0], [1], [0, 0, 1, 1], [], []>} : vector<8x128xf32>, vector<128x32xf32>, vector<8x32xf32> -> vector<8x32xf32>
    %622 = vector.broadcast %5 : vector<1x32xf32> to vector<8x32xf32>
    %623 = arith.addf %621, %622 : vector<8x32xf32>
    %624 = arith.addf %623, %2 : vector<8x32xf32>
    %625 = vector.broadcast %c2_i32 : i32 to vector<1x8xi32>
    %626 = arith.cmpi sle, %39, %625 : vector<1x8xi32>
    %cst_203 = arith.constant 0.000000e+00 : f32
    %cst_204 = arith.constant -1.000000e+30 : f32
    %627 = vector.broadcast %cst_203 : f32 to vector<1x8xf32>
    %628 = vector.broadcast %cst_204 : f32 to vector<1x8xf32>
    %629 = arith.select %626, %627, %628 : vector<1x8xi1>, vector<1x8xf32>
    %cst_205 = arith.constant dense<0.000000e+00> : vector<8x96xf32>
    %630 = tpu.matmul %624, %8, %cst_205 {dimension_numbers = #tpu.dot_dimension_numbers<[1], [0], [0], [1], [0, 0, 1, 1], [], []>} : vector<8x32xf32>, vector<32x96xf32>, vector<8x96xf32> -> vector<8x96xf32>
    %631 = vector.broadcast %15 : vector<1x96xf32> to vector<8x96xf32>
    %632 = arith.addf %630, %631 : vector<8x96xf32>
    %633 = vector.extract_strided_slice %632 {offsets = [0, 0], sizes = [8, 8], strides = [1, 1]} : vector<8x96xf32> to vector<8x8xf32>
    %634 = vector.extract_strided_slice %632 {offsets = [0, 32], sizes = [8, 8], strides = [1, 1]} : vector<8x96xf32> to vector<8x8xf32>
    %635 = vector.extract_strided_slice %632 {offsets = [0, 64], sizes = [8, 8], strides = [1, 1]} : vector<8x96xf32> to vector<8x8xf32>
    %cst_206 = arith.constant dense<0.000000e+00> : vector<8x8xf32>
    %636 = tpu.matmul %633, %634, %cst_206 {dimension_numbers = #tpu.dot_dimension_numbers<[1], [1], [0], [0], [0, 0, 1, 0], [], []>} : vector<8x8xf32>, vector<8x8xf32>, vector<8x8xf32> -> vector<8x8xf32>
    %637 = vector.broadcast %629 : vector<1x8xf32> to vector<8x8xf32>
    %638 = arith.addf %636, %637 : vector<8x8xf32>
    %cst_207 = arith.constant dense<0xFF800000> : vector<8xf32>
    %639 = vector.multi_reduction <maximumf>, %638, %cst_207 [1] : vector<8x8xf32> to vector<8xf32>
    %640 = vector.shape_cast %639 : vector<8xf32> to vector<8x1xf32>
    %641 = vector.broadcast %640 : vector<8x1xf32> to vector<8x8xf32>
    %642 = arith.subf %638, %641 : vector<8x8xf32>
    %643 = math.exp %642 : vector<8x8xf32>
    %cst_208 = arith.constant dense<0.000000e+00> : vector<8xf32>
    %644 = vector.multi_reduction <add>, %643, %cst_208 [1] : vector<8x8xf32> to vector<8xf32>
    %645 = vector.shape_cast %644 : vector<8xf32> to vector<8x1xf32>
    %646 = tpu.reciprocal %645 {approx = true} : vector<8x1xf32> -> vector<8x1xf32>
    %647 = vector.broadcast %646 : vector<8x1xf32> to vector<8x8xf32>
    %648 = arith.mulf %643, %647 : vector<8x8xf32>
    %cst_209 = arith.constant dense<0.000000e+00> : vector<8x8xf32>
    %649 = tpu.matmul %648, %635, %cst_209 {dimension_numbers = #tpu.dot_dimension_numbers<[1], [0], [0], [1], [0, 0, 1, 1], [], []>} : vector<8x8xf32>, vector<8x8xf32>, vector<8x8xf32> -> vector<8x8xf32>
    %650 = vector.extract_strided_slice %632 {offsets = [0, 8], sizes = [8, 8], strides = [1, 1]} : vector<8x96xf32> to vector<8x8xf32>
    %651 = vector.extract_strided_slice %632 {offsets = [0, 40], sizes = [8, 8], strides = [1, 1]} : vector<8x96xf32> to vector<8x8xf32>
    %652 = vector.extract_strided_slice %632 {offsets = [0, 72], sizes = [8, 8], strides = [1, 1]} : vector<8x96xf32> to vector<8x8xf32>
    %cst_210 = arith.constant dense<0.000000e+00> : vector<8x8xf32>
    %653 = tpu.matmul %650, %651, %cst_210 {dimension_numbers = #tpu.dot_dimension_numbers<[1], [1], [0], [0], [0, 0, 1, 0], [], []>} : vector<8x8xf32>, vector<8x8xf32>, vector<8x8xf32> -> vector<8x8xf32>
    %654 = vector.broadcast %629 : vector<1x8xf32> to vector<8x8xf32>
    %655 = arith.addf %653, %654 : vector<8x8xf32>
    %cst_211 = arith.constant dense<0xFF800000> : vector<8xf32>
    %656 = vector.multi_reduction <maximumf>, %655, %cst_211 [1] : vector<8x8xf32> to vector<8xf32>
    %657 = vector.shape_cast %656 : vector<8xf32> to vector<8x1xf32>
    %658 = vector.broadcast %657 : vector<8x1xf32> to vector<8x8xf32>
    %659 = arith.subf %655, %658 : vector<8x8xf32>
    %660 = math.exp %659 : vector<8x8xf32>
    %cst_212 = arith.constant dense<0.000000e+00> : vector<8xf32>
    %661 = vector.multi_reduction <add>, %660, %cst_212 [1] : vector<8x8xf32> to vector<8xf32>
    %662 = vector.shape_cast %661 : vector<8xf32> to vector<8x1xf32>
    %663 = tpu.reciprocal %662 {approx = true} : vector<8x1xf32> -> vector<8x1xf32>
    %664 = vector.broadcast %663 : vector<8x1xf32> to vector<8x8xf32>
    %665 = arith.mulf %660, %664 : vector<8x8xf32>
    %cst_213 = arith.constant dense<0.000000e+00> : vector<8x8xf32>
    %666 = tpu.matmul %665, %652, %cst_213 {dimension_numbers = #tpu.dot_dimension_numbers<[1], [0], [0], [1], [0, 0, 1, 1], [], []>} : vector<8x8xf32>, vector<8x8xf32>, vector<8x8xf32> -> vector<8x8xf32>
    %667 = vector.extract_strided_slice %632 {offsets = [0, 16], sizes = [8, 8], strides = [1, 1]} : vector<8x96xf32> to vector<8x8xf32>
    %668 = vector.extract_strided_slice %632 {offsets = [0, 48], sizes = [8, 8], strides = [1, 1]} : vector<8x96xf32> to vector<8x8xf32>
    %669 = vector.extract_strided_slice %632 {offsets = [0, 80], sizes = [8, 8], strides = [1, 1]} : vector<8x96xf32> to vector<8x8xf32>
    %cst_214 = arith.constant dense<0.000000e+00> : vector<8x8xf32>
    %670 = tpu.matmul %667, %668, %cst_214 {dimension_numbers = #tpu.dot_dimension_numbers<[1], [1], [0], [0], [0, 0, 1, 0], [], []>} : vector<8x8xf32>, vector<8x8xf32>, vector<8x8xf32> -> vector<8x8xf32>
    %671 = vector.broadcast %629 : vector<1x8xf32> to vector<8x8xf32>
    %672 = arith.addf %670, %671 : vector<8x8xf32>
    %cst_215 = arith.constant dense<0xFF800000> : vector<8xf32>
    %673 = vector.multi_reduction <maximumf>, %672, %cst_215 [1] : vector<8x8xf32> to vector<8xf32>
    %674 = vector.shape_cast %673 : vector<8xf32> to vector<8x1xf32>
    %675 = vector.broadcast %674 : vector<8x1xf32> to vector<8x8xf32>
    %676 = arith.subf %672, %675 : vector<8x8xf32>
    %677 = math.exp %676 : vector<8x8xf32>
    %cst_216 = arith.constant dense<0.000000e+00> : vector<8xf32>
    %678 = vector.multi_reduction <add>, %677, %cst_216 [1] : vector<8x8xf32> to vector<8xf32>
    %679 = vector.shape_cast %678 : vector<8xf32> to vector<8x1xf32>
    %680 = tpu.reciprocal %679 {approx = true} : vector<8x1xf32> -> vector<8x1xf32>
    %681 = vector.broadcast %680 : vector<8x1xf32> to vector<8x8xf32>
    %682 = arith.mulf %677, %681 : vector<8x8xf32>
    %cst_217 = arith.constant dense<0.000000e+00> : vector<8x8xf32>
    %683 = tpu.matmul %682, %669, %cst_217 {dimension_numbers = #tpu.dot_dimension_numbers<[1], [0], [0], [1], [0, 0, 1, 1], [], []>} : vector<8x8xf32>, vector<8x8xf32>, vector<8x8xf32> -> vector<8x8xf32>
    %684 = vector.extract_strided_slice %632 {offsets = [0, 24], sizes = [8, 8], strides = [1, 1]} : vector<8x96xf32> to vector<8x8xf32>
    %685 = vector.extract_strided_slice %632 {offsets = [0, 56], sizes = [8, 8], strides = [1, 1]} : vector<8x96xf32> to vector<8x8xf32>
    %686 = vector.extract_strided_slice %632 {offsets = [0, 88], sizes = [8, 8], strides = [1, 1]} : vector<8x96xf32> to vector<8x8xf32>
    %cst_218 = arith.constant dense<0.000000e+00> : vector<8x8xf32>
    %687 = tpu.matmul %684, %685, %cst_218 {dimension_numbers = #tpu.dot_dimension_numbers<[1], [1], [0], [0], [0, 0, 1, 0], [], []>} : vector<8x8xf32>, vector<8x8xf32>, vector<8x8xf32> -> vector<8x8xf32>
    %688 = vector.broadcast %629 : vector<1x8xf32> to vector<8x8xf32>
    %689 = arith.addf %687, %688 : vector<8x8xf32>
    %cst_219 = arith.constant dense<0xFF800000> : vector<8xf32>
    %690 = vector.multi_reduction <maximumf>, %689, %cst_219 [1] : vector<8x8xf32> to vector<8xf32>
    %691 = vector.shape_cast %690 : vector<8xf32> to vector<8x1xf32>
    %692 = vector.broadcast %691 : vector<8x1xf32> to vector<8x8xf32>
    %693 = arith.subf %689, %692 : vector<8x8xf32>
    %694 = math.exp %693 : vector<8x8xf32>
    %cst_220 = arith.constant dense<0.000000e+00> : vector<8xf32>
    %695 = vector.multi_reduction <add>, %694, %cst_220 [1] : vector<8x8xf32> to vector<8xf32>
    %696 = vector.shape_cast %695 : vector<8xf32> to vector<8x1xf32>
    %697 = tpu.reciprocal %696 {approx = true} : vector<8x1xf32> -> vector<8x1xf32>
    %698 = vector.broadcast %697 : vector<8x1xf32> to vector<8x8xf32>
    %699 = arith.mulf %694, %698 : vector<8x8xf32>
    %cst_221 = arith.constant dense<0.000000e+00> : vector<8x8xf32>
    %700 = tpu.matmul %699, %686, %cst_221 {dimension_numbers = #tpu.dot_dimension_numbers<[1], [0], [0], [1], [0, 0, 1, 1], [], []>} : vector<8x8xf32>, vector<8x8xf32>, vector<8x8xf32> -> vector<8x8xf32>
    %701 = tpu.concatenate %649, %666, %683, %700 in 1 : vector<8x8xf32>, vector<8x8xf32>, vector<8x8xf32>, vector<8x8xf32> -> vector<8x32xf32>
    %cst_222 = arith.constant dense<0.000000e+00> : vector<8x32xf32>
    %702 = tpu.matmul %701, %10, %cst_222 {dimension_numbers = #tpu.dot_dimension_numbers<[1], [0], [0], [1], [0, 0, 1, 1], [], []>} : vector<8x32xf32>, vector<32x32xf32>, vector<8x32xf32> -> vector<8x32xf32>
    %703 = vector.broadcast %16 : vector<1x32xf32> to vector<8x32xf32>
    %704 = arith.addf %702, %703 : vector<8x32xf32>
    %705 = arith.addf %624, %704 : vector<8x32xf32>
    %cst_223 = arith.constant dense<0.000000e+00> : vector<8xf32>
    %706 = vector.multi_reduction <add>, %705, %cst_223 [1] : vector<8x32xf32> to vector<8xf32>
    %707 = vector.shape_cast %706 : vector<8xf32> to vector<8x1xf32>
    %cst_224 = arith.constant 3.200000e+01 : f32
    %708 = vector.broadcast %cst_224 : f32 to vector<8x1xf32>
    %709 = arith.divf %707, %708 : vector<8x1xf32>
    %710 = arith.mulf %705, %705 : vector<8x32xf32>
    %cst_225 = arith.constant dense<0.000000e+00> : vector<8xf32>
    %711 = vector.multi_reduction <add>, %710, %cst_225 [1] : vector<8x32xf32> to vector<8xf32>
    %712 = vector.shape_cast %711 : vector<8xf32> to vector<8x1xf32>
    %cst_226 = arith.constant 3.200000e+01 : f32
    %713 = vector.broadcast %cst_226 : f32 to vector<8x1xf32>
    %714 = arith.divf %712, %713 : vector<8x1xf32>
    %715 = arith.mulf %709, %709 : vector<8x1xf32>
    %716 = arith.subf %714, %715 : vector<8x1xf32>
    %717 = vector.broadcast %709 : vector<8x1xf32> to vector<8x32xf32>
    %718 = arith.subf %705, %717 : vector<8x32xf32>
    %cst_227 = arith.constant 9.99999974E-6 : f32
    %719 = vector.broadcast %cst_227 : f32 to vector<8x1xf32>
    %720 = arith.addf %716, %719 : vector<8x1xf32>
    %721 = math.rsqrt %720 : vector<8x1xf32>
    %722 = vector.broadcast %721 : vector<8x1xf32> to vector<8x32xf32>
    %723 = arith.mulf %718, %722 : vector<8x32xf32>
    %724 = vector.broadcast %17 : vector<1x32xf32> to vector<8x32xf32>
    %725 = arith.mulf %723, %724 : vector<8x32xf32>
    %726 = vector.broadcast %18 : vector<1x32xf32> to vector<8x32xf32>
    %727 = arith.addf %725, %726 : vector<8x32xf32>
    %cst_228 = arith.constant dense<0.000000e+00> : vector<8x64xf32>
    %728 = tpu.matmul %727, %12, %cst_228 {dimension_numbers = #tpu.dot_dimension_numbers<[1], [0], [0], [1], [0, 0, 1, 1], [], []>} : vector<8x32xf32>, vector<32x64xf32>, vector<8x64xf32> -> vector<8x64xf32>
    %729 = vector.broadcast %19 : vector<1x64xf32> to vector<8x64xf32>
    %730 = arith.addf %728, %729 : vector<8x64xf32>
    %cst_229 = arith.constant 0.000000e+00 : f32
    %731 = vector.broadcast %cst_229 : f32 to vector<8x64xf32>
    %732 = arith.maximumf %730, %731 : vector<8x64xf32>
    %cst_230 = arith.constant dense<0.000000e+00> : vector<8x32xf32>
    %733 = tpu.matmul %732, %14, %cst_230 {dimension_numbers = #tpu.dot_dimension_numbers<[1], [0], [0], [1], [0, 0, 1, 1], [], []>} : vector<8x64xf32>, vector<64x32xf32>, vector<8x32xf32> -> vector<8x32xf32>
    %734 = vector.broadcast %20 : vector<1x32xf32> to vector<8x32xf32>
    %735 = arith.addf %733, %734 : vector<8x32xf32>
    %736 = arith.addf %727, %735 : vector<8x32xf32>
    %cst_231 = arith.constant dense<0.000000e+00> : vector<8xf32>
    %737 = vector.multi_reduction <add>, %736, %cst_231 [1] : vector<8x32xf32> to vector<8xf32>
    %738 = vector.shape_cast %737 : vector<8xf32> to vector<8x1xf32>
    %cst_232 = arith.constant 3.200000e+01 : f32
    %739 = vector.broadcast %cst_232 : f32 to vector<8x1xf32>
    %740 = arith.divf %738, %739 : vector<8x1xf32>
    %741 = arith.mulf %736, %736 : vector<8x32xf32>
    %cst_233 = arith.constant dense<0.000000e+00> : vector<8xf32>
    %742 = vector.multi_reduction <add>, %741, %cst_233 [1] : vector<8x32xf32> to vector<8xf32>
    %743 = vector.shape_cast %742 : vector<8xf32> to vector<8x1xf32>
    %cst_234 = arith.constant 3.200000e+01 : f32
    %744 = vector.broadcast %cst_234 : f32 to vector<8x1xf32>
    %745 = arith.divf %743, %744 : vector<8x1xf32>
    %746 = arith.mulf %740, %740 : vector<8x1xf32>
    %747 = arith.subf %745, %746 : vector<8x1xf32>
    %748 = vector.broadcast %740 : vector<8x1xf32> to vector<8x32xf32>
    %749 = arith.subf %736, %748 : vector<8x32xf32>
    %cst_235 = arith.constant 9.99999974E-6 : f32
    %750 = vector.broadcast %cst_235 : f32 to vector<8x1xf32>
    %751 = arith.addf %747, %750 : vector<8x1xf32>
    %752 = math.rsqrt %751 : vector<8x1xf32>
    %753 = vector.broadcast %752 : vector<8x1xf32> to vector<8x32xf32>
    %754 = arith.mulf %749, %753 : vector<8x32xf32>
    %755 = vector.broadcast %21 : vector<1x32xf32> to vector<8x32xf32>
    %756 = arith.mulf %754, %755 : vector<8x32xf32>
    %757 = vector.broadcast %22 : vector<1x32xf32> to vector<8x32xf32>
    %758 = arith.addf %756, %757 : vector<8x32xf32>
    %cst_236 = arith.constant dense<0.000000e+00> : vector<8x96xf32>
    %759 = tpu.matmul %758, %24, %cst_236 {dimension_numbers = #tpu.dot_dimension_numbers<[1], [0], [0], [1], [0, 0, 1, 1], [], []>} : vector<8x32xf32>, vector<32x96xf32>, vector<8x96xf32> -> vector<8x96xf32>
    %760 = vector.broadcast %31 : vector<1x96xf32> to vector<8x96xf32>
    %761 = arith.addf %759, %760 : vector<8x96xf32>
    %762 = vector.extract_strided_slice %761 {offsets = [0, 0], sizes = [8, 8], strides = [1, 1]} : vector<8x96xf32> to vector<8x8xf32>
    %763 = vector.extract_strided_slice %761 {offsets = [0, 32], sizes = [8, 8], strides = [1, 1]} : vector<8x96xf32> to vector<8x8xf32>
    %764 = vector.extract_strided_slice %761 {offsets = [0, 64], sizes = [8, 8], strides = [1, 1]} : vector<8x96xf32> to vector<8x8xf32>
    %cst_237 = arith.constant dense<0.000000e+00> : vector<8x8xf32>
    %765 = tpu.matmul %762, %763, %cst_237 {dimension_numbers = #tpu.dot_dimension_numbers<[1], [1], [0], [0], [0, 0, 1, 0], [], []>} : vector<8x8xf32>, vector<8x8xf32>, vector<8x8xf32> -> vector<8x8xf32>
    %766 = vector.broadcast %629 : vector<1x8xf32> to vector<8x8xf32>
    %767 = arith.addf %765, %766 : vector<8x8xf32>
    %cst_238 = arith.constant dense<0xFF800000> : vector<8xf32>
    %768 = vector.multi_reduction <maximumf>, %767, %cst_238 [1] : vector<8x8xf32> to vector<8xf32>
    %769 = vector.shape_cast %768 : vector<8xf32> to vector<8x1xf32>
    %770 = vector.broadcast %769 : vector<8x1xf32> to vector<8x8xf32>
    %771 = arith.subf %767, %770 : vector<8x8xf32>
    %772 = math.exp %771 : vector<8x8xf32>
    %cst_239 = arith.constant dense<0.000000e+00> : vector<8xf32>
    %773 = vector.multi_reduction <add>, %772, %cst_239 [1] : vector<8x8xf32> to vector<8xf32>
    %774 = vector.shape_cast %773 : vector<8xf32> to vector<8x1xf32>
    %775 = tpu.reciprocal %774 {approx = true} : vector<8x1xf32> -> vector<8x1xf32>
    %776 = vector.broadcast %775 : vector<8x1xf32> to vector<8x8xf32>
    %777 = arith.mulf %772, %776 : vector<8x8xf32>
    %cst_240 = arith.constant dense<0.000000e+00> : vector<8x8xf32>
    %778 = tpu.matmul %777, %764, %cst_240 {dimension_numbers = #tpu.dot_dimension_numbers<[1], [0], [0], [1], [0, 0, 1, 1], [], []>} : vector<8x8xf32>, vector<8x8xf32>, vector<8x8xf32> -> vector<8x8xf32>
    %779 = vector.extract_strided_slice %761 {offsets = [0, 8], sizes = [8, 8], strides = [1, 1]} : vector<8x96xf32> to vector<8x8xf32>
    %780 = vector.extract_strided_slice %761 {offsets = [0, 40], sizes = [8, 8], strides = [1, 1]} : vector<8x96xf32> to vector<8x8xf32>
    %781 = vector.extract_strided_slice %761 {offsets = [0, 72], sizes = [8, 8], strides = [1, 1]} : vector<8x96xf32> to vector<8x8xf32>
    %cst_241 = arith.constant dense<0.000000e+00> : vector<8x8xf32>
    %782 = tpu.matmul %779, %780, %cst_241 {dimension_numbers = #tpu.dot_dimension_numbers<[1], [1], [0], [0], [0, 0, 1, 0], [], []>} : vector<8x8xf32>, vector<8x8xf32>, vector<8x8xf32> -> vector<8x8xf32>
    %783 = vector.broadcast %629 : vector<1x8xf32> to vector<8x8xf32>
    %784 = arith.addf %782, %783 : vector<8x8xf32>
    %cst_242 = arith.constant dense<0xFF800000> : vector<8xf32>
    %785 = vector.multi_reduction <maximumf>, %784, %cst_242 [1] : vector<8x8xf32> to vector<8xf32>
    %786 = vector.shape_cast %785 : vector<8xf32> to vector<8x1xf32>
    %787 = vector.broadcast %786 : vector<8x1xf32> to vector<8x8xf32>
    %788 = arith.subf %784, %787 : vector<8x8xf32>
    %789 = math.exp %788 : vector<8x8xf32>
    %cst_243 = arith.constant dense<0.000000e+00> : vector<8xf32>
    %790 = vector.multi_reduction <add>, %789, %cst_243 [1] : vector<8x8xf32> to vector<8xf32>
    %791 = vector.shape_cast %790 : vector<8xf32> to vector<8x1xf32>
    %792 = tpu.reciprocal %791 {approx = true} : vector<8x1xf32> -> vector<8x1xf32>
    %793 = vector.broadcast %792 : vector<8x1xf32> to vector<8x8xf32>
    %794 = arith.mulf %789, %793 : vector<8x8xf32>
    %cst_244 = arith.constant dense<0.000000e+00> : vector<8x8xf32>
    %795 = tpu.matmul %794, %781, %cst_244 {dimension_numbers = #tpu.dot_dimension_numbers<[1], [0], [0], [1], [0, 0, 1, 1], [], []>} : vector<8x8xf32>, vector<8x8xf32>, vector<8x8xf32> -> vector<8x8xf32>
    %796 = vector.extract_strided_slice %761 {offsets = [0, 16], sizes = [8, 8], strides = [1, 1]} : vector<8x96xf32> to vector<8x8xf32>
    %797 = vector.extract_strided_slice %761 {offsets = [0, 48], sizes = [8, 8], strides = [1, 1]} : vector<8x96xf32> to vector<8x8xf32>
    %798 = vector.extract_strided_slice %761 {offsets = [0, 80], sizes = [8, 8], strides = [1, 1]} : vector<8x96xf32> to vector<8x8xf32>
    %cst_245 = arith.constant dense<0.000000e+00> : vector<8x8xf32>
    %799 = tpu.matmul %796, %797, %cst_245 {dimension_numbers = #tpu.dot_dimension_numbers<[1], [1], [0], [0], [0, 0, 1, 0], [], []>} : vector<8x8xf32>, vector<8x8xf32>, vector<8x8xf32> -> vector<8x8xf32>
    %800 = vector.broadcast %629 : vector<1x8xf32> to vector<8x8xf32>
    %801 = arith.addf %799, %800 : vector<8x8xf32>
    %cst_246 = arith.constant dense<0xFF800000> : vector<8xf32>
    %802 = vector.multi_reduction <maximumf>, %801, %cst_246 [1] : vector<8x8xf32> to vector<8xf32>
    %803 = vector.shape_cast %802 : vector<8xf32> to vector<8x1xf32>
    %804 = vector.broadcast %803 : vector<8x1xf32> to vector<8x8xf32>
    %805 = arith.subf %801, %804 : vector<8x8xf32>
    %806 = math.exp %805 : vector<8x8xf32>
    %cst_247 = arith.constant dense<0.000000e+00> : vector<8xf32>
    %807 = vector.multi_reduction <add>, %806, %cst_247 [1] : vector<8x8xf32> to vector<8xf32>
    %808 = vector.shape_cast %807 : vector<8xf32> to vector<8x1xf32>
    %809 = tpu.reciprocal %808 {approx = true} : vector<8x1xf32> -> vector<8x1xf32>
    %810 = vector.broadcast %809 : vector<8x1xf32> to vector<8x8xf32>
    %811 = arith.mulf %806, %810 : vector<8x8xf32>
    %cst_248 = arith.constant dense<0.000000e+00> : vector<8x8xf32>
    %812 = tpu.matmul %811, %798, %cst_248 {dimension_numbers = #tpu.dot_dimension_numbers<[1], [0], [0], [1], [0, 0, 1, 1], [], []>} : vector<8x8xf32>, vector<8x8xf32>, vector<8x8xf32> -> vector<8x8xf32>
    %813 = vector.extract_strided_slice %761 {offsets = [0, 24], sizes = [8, 8], strides = [1, 1]} : vector<8x96xf32> to vector<8x8xf32>
    %814 = vector.extract_strided_slice %761 {offsets = [0, 56], sizes = [8, 8], strides = [1, 1]} : vector<8x96xf32> to vector<8x8xf32>
    %815 = vector.extract_strided_slice %761 {offsets = [0, 88], sizes = [8, 8], strides = [1, 1]} : vector<8x96xf32> to vector<8x8xf32>
    %cst_249 = arith.constant dense<0.000000e+00> : vector<8x8xf32>
    %816 = tpu.matmul %813, %814, %cst_249 {dimension_numbers = #tpu.dot_dimension_numbers<[1], [1], [0], [0], [0, 0, 1, 0], [], []>} : vector<8x8xf32>, vector<8x8xf32>, vector<8x8xf32> -> vector<8x8xf32>
    %817 = vector.broadcast %629 : vector<1x8xf32> to vector<8x8xf32>
    %818 = arith.addf %816, %817 : vector<8x8xf32>
    %cst_250 = arith.constant dense<0xFF800000> : vector<8xf32>
    %819 = vector.multi_reduction <maximumf>, %818, %cst_250 [1] : vector<8x8xf32> to vector<8xf32>
    %820 = vector.shape_cast %819 : vector<8xf32> to vector<8x1xf32>
    %821 = vector.broadcast %820 : vector<8x1xf32> to vector<8x8xf32>
    %822 = arith.subf %818, %821 : vector<8x8xf32>
    %823 = math.exp %822 : vector<8x8xf32>
    %cst_251 = arith.constant dense<0.000000e+00> : vector<8xf32>
    %824 = vector.multi_reduction <add>, %823, %cst_251 [1] : vector<8x8xf32> to vector<8xf32>
    %825 = vector.shape_cast %824 : vector<8xf32> to vector<8x1xf32>
    %826 = tpu.reciprocal %825 {approx = true} : vector<8x1xf32> -> vector<8x1xf32>
    %827 = vector.broadcast %826 : vector<8x1xf32> to vector<8x8xf32>
    %828 = arith.mulf %823, %827 : vector<8x8xf32>
    %cst_252 = arith.constant dense<0.000000e+00> : vector<8x8xf32>
    %829 = tpu.matmul %828, %815, %cst_252 {dimension_numbers = #tpu.dot_dimension_numbers<[1], [0], [0], [1], [0, 0, 1, 1], [], []>} : vector<8x8xf32>, vector<8x8xf32>, vector<8x8xf32> -> vector<8x8xf32>
    %830 = tpu.concatenate %778, %795, %812, %829 in 1 : vector<8x8xf32>, vector<8x8xf32>, vector<8x8xf32>, vector<8x8xf32> -> vector<8x32xf32>
    %cst_253 = arith.constant dense<0.000000e+00> : vector<8x32xf32>
    %831 = tpu.matmul %830, %26, %cst_253 {dimension_numbers = #tpu.dot_dimension_numbers<[1], [0], [0], [1], [0, 0, 1, 1], [], []>} : vector<8x32xf32>, vector<32x32xf32>, vector<8x32xf32> -> vector<8x32xf32>
    %832 = vector.broadcast %32 : vector<1x32xf32> to vector<8x32xf32>
    %833 = arith.addf %831, %832 : vector<8x32xf32>
    %834 = arith.addf %758, %833 : vector<8x32xf32>
    %cst_254 = arith.constant dense<0.000000e+00> : vector<8xf32>
    %835 = vector.multi_reduction <add>, %834, %cst_254 [1] : vector<8x32xf32> to vector<8xf32>
    %836 = vector.shape_cast %835 : vector<8xf32> to vector<8x1xf32>
    %cst_255 = arith.constant 3.200000e+01 : f32
    %837 = vector.broadcast %cst_255 : f32 to vector<8x1xf32>
    %838 = arith.divf %836, %837 : vector<8x1xf32>
    %839 = arith.mulf %834, %834 : vector<8x32xf32>
    %cst_256 = arith.constant dense<0.000000e+00> : vector<8xf32>
    %840 = vector.multi_reduction <add>, %839, %cst_256 [1] : vector<8x32xf32> to vector<8xf32>
    %841 = vector.shape_cast %840 : vector<8xf32> to vector<8x1xf32>
    %cst_257 = arith.constant 3.200000e+01 : f32
    %842 = vector.broadcast %cst_257 : f32 to vector<8x1xf32>
    %843 = arith.divf %841, %842 : vector<8x1xf32>
    %844 = arith.mulf %838, %838 : vector<8x1xf32>
    %845 = arith.subf %843, %844 : vector<8x1xf32>
    %846 = vector.broadcast %838 : vector<8x1xf32> to vector<8x32xf32>
    %847 = arith.subf %834, %846 : vector<8x32xf32>
    %cst_258 = arith.constant 9.99999974E-6 : f32
    %848 = vector.broadcast %cst_258 : f32 to vector<8x1xf32>
    %849 = arith.addf %845, %848 : vector<8x1xf32>
    %850 = math.rsqrt %849 : vector<8x1xf32>
    %851 = vector.broadcast %850 : vector<8x1xf32> to vector<8x32xf32>
    %852 = arith.mulf %847, %851 : vector<8x32xf32>
    %853 = vector.broadcast %33 : vector<1x32xf32> to vector<8x32xf32>
    %854 = arith.mulf %852, %853 : vector<8x32xf32>
    %855 = vector.broadcast %34 : vector<1x32xf32> to vector<8x32xf32>
    %856 = arith.addf %854, %855 : vector<8x32xf32>
    %cst_259 = arith.constant dense<0.000000e+00> : vector<8x64xf32>
    %857 = tpu.matmul %856, %28, %cst_259 {dimension_numbers = #tpu.dot_dimension_numbers<[1], [0], [0], [1], [0, 0, 1, 1], [], []>} : vector<8x32xf32>, vector<32x64xf32>, vector<8x64xf32> -> vector<8x64xf32>
    %858 = vector.broadcast %35 : vector<1x64xf32> to vector<8x64xf32>
    %859 = arith.addf %857, %858 : vector<8x64xf32>
    %cst_260 = arith.constant 0.000000e+00 : f32
    %860 = vector.broadcast %cst_260 : f32 to vector<8x64xf32>
    %861 = arith.maximumf %859, %860 : vector<8x64xf32>
    %cst_261 = arith.constant dense<0.000000e+00> : vector<8x32xf32>
    %862 = tpu.matmul %861, %30, %cst_261 {dimension_numbers = #tpu.dot_dimension_numbers<[1], [0], [0], [1], [0, 0, 1, 1], [], []>} : vector<8x64xf32>, vector<64x32xf32>, vector<8x32xf32> -> vector<8x32xf32>
    %863 = vector.broadcast %36 : vector<1x32xf32> to vector<8x32xf32>
    %864 = arith.addf %862, %863 : vector<8x32xf32>
    %865 = arith.addf %856, %864 : vector<8x32xf32>
    %cst_262 = arith.constant dense<0.000000e+00> : vector<8xf32>
    %866 = vector.multi_reduction <add>, %865, %cst_262 [1] : vector<8x32xf32> to vector<8xf32>
    %867 = vector.shape_cast %866 : vector<8xf32> to vector<8x1xf32>
    %cst_263 = arith.constant 3.200000e+01 : f32
    %868 = vector.broadcast %cst_263 : f32 to vector<8x1xf32>
    %869 = arith.divf %867, %868 : vector<8x1xf32>
    %870 = arith.mulf %865, %865 : vector<8x32xf32>
    %cst_264 = arith.constant dense<0.000000e+00> : vector<8xf32>
    %871 = vector.multi_reduction <add>, %870, %cst_264 [1] : vector<8x32xf32> to vector<8xf32>
    %872 = vector.shape_cast %871 : vector<8xf32> to vector<8x1xf32>
    %cst_265 = arith.constant 3.200000e+01 : f32
    %873 = vector.broadcast %cst_265 : f32 to vector<8x1xf32>
    %874 = arith.divf %872, %873 : vector<8x1xf32>
    %875 = arith.mulf %869, %869 : vector<8x1xf32>
    %876 = arith.subf %874, %875 : vector<8x1xf32>
    %877 = vector.broadcast %869 : vector<8x1xf32> to vector<8x32xf32>
    %878 = arith.subf %865, %877 : vector<8x32xf32>
    %cst_266 = arith.constant 9.99999974E-6 : f32
    %879 = vector.broadcast %cst_266 : f32 to vector<8x1xf32>
    %880 = arith.addf %876, %879 : vector<8x1xf32>
    %881 = math.rsqrt %880 : vector<8x1xf32>
    %882 = vector.broadcast %881 : vector<8x1xf32> to vector<8x32xf32>
    %883 = arith.mulf %878, %882 : vector<8x32xf32>
    %884 = vector.broadcast %37 : vector<1x32xf32> to vector<8x32xf32>
    %885 = arith.mulf %883, %884 : vector<8x32xf32>
    %886 = vector.broadcast %38 : vector<1x32xf32> to vector<8x32xf32>
    %887 = arith.addf %885, %886 : vector<8x32xf32>
    %888 = vector.broadcast %c2_i32 : i32 to vector<8x32xi32>
    %889 = arith.cmpi eq, %40, %888 : vector<8x32xi32>
    %cst_267 = arith.constant 0.000000e+00 : f32
    %890 = vector.broadcast %cst_267 : f32 to vector<8x32xf32>
    %891 = arith.select %889, %887, %890 : vector<8x32xi1>, vector<8x32xf32>
    %cst_268 = arith.constant dense<0.000000e+00> : vector<32xf32>
    %892 = vector.multi_reduction <add>, %891, %cst_268 [0] : vector<8x32xf32> to vector<32xf32>
    %893 = vector.shape_cast %892 : vector<32xf32> to vector<1x32xf32>
    %cst_269 = arith.constant dense<0.000000e+00> : vector<1x128xf32>
    %894 = tpu.matmul %893, %4, %cst_269 {dimension_numbers = #tpu.dot_dimension_numbers<[1], [0], [0], [1], [0, 0, 1, 1], [], []>} : vector<1x32xf32>, vector<32x128xf32>, vector<1x128xf32> -> vector<1x128xf32>
    %895 = arith.addf %894, %6 : vector<1x128xf32>
    %896 = arith.index_cast %c2_i32 : i32 to index
    %897 = memref.load %arg0[%896] : memref<5xf32, #tpu.memory_space<smem>>
    %c64_i32_270 = arith.constant 64 : i32
    %898 = vector.broadcast %c64_i32_270 : i32 to vector<1x128xi32>
    %899 = arith.cmpi slt, %41, %898 : vector<1x128xi32>
    %cst_271 = arith.constant 0.000000e+00 : f32
    %900 = vector.broadcast %cst_271 : f32 to vector<1x128xf32>
    %901 = arith.select %899, %895, %900 : vector<1x128xi1>, vector<1x128xf32>
    %c64_i32_272 = arith.constant 64 : i32
    %902 = vector.broadcast %c64_i32_272 : i32 to vector<1x128xi32>
    %903 = arith.cmpi eq, %41, %902 : vector<1x128xi32>
    %904 = vector.broadcast %897 : f32 to vector<1x128xf32>
    %905 = arith.select %903, %904, %901 : vector<1x128xi1>, vector<1x128xf32>
    %c1_i32_273 = arith.constant 1 : i32
    %906 = arith.addi %c2_i32, %c1_i32_273 : i32
    %907 = arith.index_cast %906 : i32 to index
    %c0_274 = arith.constant 0 : index
    %908 = vector.load %arg10[%907, %c0_274] : memref<8x128xf32, #tpu.memory_space<vmem>>, vector<1x128xf32>
    tpu.vector_store %arg10[%907, %c0_274], %905 {strides = array<i32>} : memref<8x128xf32, #tpu.memory_space<vmem>>, vector<1x128xf32>,
    %c3_i32 = arith.constant 3 : i32
    %c0_275 = arith.constant 0 : index
    %c0_276 = arith.constant 0 : index
    %909 = vector.load %arg10[%c0_275, %c0_276] : memref<8x128xf32, #tpu.memory_space<vmem>>, vector<8x128xf32>
    %cst_277 = arith.constant dense<0.000000e+00> : vector<8x32xf32>
    %910 = tpu.matmul %909, %3, %cst_277 {dimension_numbers = #tpu.dot_dimension_numbers<[1], [0], [0], [1], [0, 0, 1, 1], [], []>} : vector<8x128xf32>, vector<128x32xf32>, vector<8x32xf32> -> vector<8x32xf32>
    %911 = vector.broadcast %5 : vector<1x32xf32> to vector<8x32xf32>
    %912 = arith.addf %910, %911 : vector<8x32xf32>
    %913 = arith.addf %912, %2 : vector<8x32xf32>
    %914 = vector.broadcast %c3_i32 : i32 to vector<1x8xi32>
    %915 = arith.cmpi sle, %39, %914 : vector<1x8xi32>
    %cst_278 = arith.constant 0.000000e+00 : f32
    %cst_279 = arith.constant -1.000000e+30 : f32
    %916 = vector.broadcast %cst_278 : f32 to vector<1x8xf32>
    %917 = vector.broadcast %cst_279 : f32 to vector<1x8xf32>
    %918 = arith.select %915, %916, %917 : vector<1x8xi1>, vector<1x8xf32>
    %cst_280 = arith.constant dense<0.000000e+00> : vector<8x96xf32>
    %919 = tpu.matmul %913, %8, %cst_280 {dimension_numbers = #tpu.dot_dimension_numbers<[1], [0], [0], [1], [0, 0, 1, 1], [], []>} : vector<8x32xf32>, vector<32x96xf32>, vector<8x96xf32> -> vector<8x96xf32>
    %920 = vector.broadcast %15 : vector<1x96xf32> to vector<8x96xf32>
    %921 = arith.addf %919, %920 : vector<8x96xf32>
    %922 = vector.extract_strided_slice %921 {offsets = [0, 0], sizes = [8, 8], strides = [1, 1]} : vector<8x96xf32> to vector<8x8xf32>
    %923 = vector.extract_strided_slice %921 {offsets = [0, 32], sizes = [8, 8], strides = [1, 1]} : vector<8x96xf32> to vector<8x8xf32>
    %924 = vector.extract_strided_slice %921 {offsets = [0, 64], sizes = [8, 8], strides = [1, 1]} : vector<8x96xf32> to vector<8x8xf32>
    %cst_281 = arith.constant dense<0.000000e+00> : vector<8x8xf32>
    %925 = tpu.matmul %922, %923, %cst_281 {dimension_numbers = #tpu.dot_dimension_numbers<[1], [1], [0], [0], [0, 0, 1, 0], [], []>} : vector<8x8xf32>, vector<8x8xf32>, vector<8x8xf32> -> vector<8x8xf32>
    %926 = vector.broadcast %918 : vector<1x8xf32> to vector<8x8xf32>
    %927 = arith.addf %925, %926 : vector<8x8xf32>
    %cst_282 = arith.constant dense<0xFF800000> : vector<8xf32>
    %928 = vector.multi_reduction <maximumf>, %927, %cst_282 [1] : vector<8x8xf32> to vector<8xf32>
    %929 = vector.shape_cast %928 : vector<8xf32> to vector<8x1xf32>
    %930 = vector.broadcast %929 : vector<8x1xf32> to vector<8x8xf32>
    %931 = arith.subf %927, %930 : vector<8x8xf32>
    %932 = math.exp %931 : vector<8x8xf32>
    %cst_283 = arith.constant dense<0.000000e+00> : vector<8xf32>
    %933 = vector.multi_reduction <add>, %932, %cst_283 [1] : vector<8x8xf32> to vector<8xf32>
    %934 = vector.shape_cast %933 : vector<8xf32> to vector<8x1xf32>
    %935 = tpu.reciprocal %934 {approx = true} : vector<8x1xf32> -> vector<8x1xf32>
    %936 = vector.broadcast %935 : vector<8x1xf32> to vector<8x8xf32>
    %937 = arith.mulf %932, %936 : vector<8x8xf32>
    %cst_284 = arith.constant dense<0.000000e+00> : vector<8x8xf32>
    %938 = tpu.matmul %937, %924, %cst_284 {dimension_numbers = #tpu.dot_dimension_numbers<[1], [0], [0], [1], [0, 0, 1, 1], [], []>} : vector<8x8xf32>, vector<8x8xf32>, vector<8x8xf32> -> vector<8x8xf32>
    %939 = vector.extract_strided_slice %921 {offsets = [0, 8], sizes = [8, 8], strides = [1, 1]} : vector<8x96xf32> to vector<8x8xf32>
    %940 = vector.extract_strided_slice %921 {offsets = [0, 40], sizes = [8, 8], strides = [1, 1]} : vector<8x96xf32> to vector<8x8xf32>
    %941 = vector.extract_strided_slice %921 {offsets = [0, 72], sizes = [8, 8], strides = [1, 1]} : vector<8x96xf32> to vector<8x8xf32>
    %cst_285 = arith.constant dense<0.000000e+00> : vector<8x8xf32>
    %942 = tpu.matmul %939, %940, %cst_285 {dimension_numbers = #tpu.dot_dimension_numbers<[1], [1], [0], [0], [0, 0, 1, 0], [], []>} : vector<8x8xf32>, vector<8x8xf32>, vector<8x8xf32> -> vector<8x8xf32>
    %943 = vector.broadcast %918 : vector<1x8xf32> to vector<8x8xf32>
    %944 = arith.addf %942, %943 : vector<8x8xf32>
    %cst_286 = arith.constant dense<0xFF800000> : vector<8xf32>
    %945 = vector.multi_reduction <maximumf>, %944, %cst_286 [1] : vector<8x8xf32> to vector<8xf32>
    %946 = vector.shape_cast %945 : vector<8xf32> to vector<8x1xf32>
    %947 = vector.broadcast %946 : vector<8x1xf32> to vector<8x8xf32>
    %948 = arith.subf %944, %947 : vector<8x8xf32>
    %949 = math.exp %948 : vector<8x8xf32>
    %cst_287 = arith.constant dense<0.000000e+00> : vector<8xf32>
    %950 = vector.multi_reduction <add>, %949, %cst_287 [1] : vector<8x8xf32> to vector<8xf32>
    %951 = vector.shape_cast %950 : vector<8xf32> to vector<8x1xf32>
    %952 = tpu.reciprocal %951 {approx = true} : vector<8x1xf32> -> vector<8x1xf32>
    %953 = vector.broadcast %952 : vector<8x1xf32> to vector<8x8xf32>
    %954 = arith.mulf %949, %953 : vector<8x8xf32>
    %cst_288 = arith.constant dense<0.000000e+00> : vector<8x8xf32>
    %955 = tpu.matmul %954, %941, %cst_288 {dimension_numbers = #tpu.dot_dimension_numbers<[1], [0], [0], [1], [0, 0, 1, 1], [], []>} : vector<8x8xf32>, vector<8x8xf32>, vector<8x8xf32> -> vector<8x8xf32>
    %956 = vector.extract_strided_slice %921 {offsets = [0, 16], sizes = [8, 8], strides = [1, 1]} : vector<8x96xf32> to vector<8x8xf32>
    %957 = vector.extract_strided_slice %921 {offsets = [0, 48], sizes = [8, 8], strides = [1, 1]} : vector<8x96xf32> to vector<8x8xf32>
    %958 = vector.extract_strided_slice %921 {offsets = [0, 80], sizes = [8, 8], strides = [1, 1]} : vector<8x96xf32> to vector<8x8xf32>
    %cst_289 = arith.constant dense<0.000000e+00> : vector<8x8xf32>
    %959 = tpu.matmul %956, %957, %cst_289 {dimension_numbers = #tpu.dot_dimension_numbers<[1], [1], [0], [0], [0, 0, 1, 0], [], []>} : vector<8x8xf32>, vector<8x8xf32>, vector<8x8xf32> -> vector<8x8xf32>
    %960 = vector.broadcast %918 : vector<1x8xf32> to vector<8x8xf32>
    %961 = arith.addf %959, %960 : vector<8x8xf32>
    %cst_290 = arith.constant dense<0xFF800000> : vector<8xf32>
    %962 = vector.multi_reduction <maximumf>, %961, %cst_290 [1] : vector<8x8xf32> to vector<8xf32>
    %963 = vector.shape_cast %962 : vector<8xf32> to vector<8x1xf32>
    %964 = vector.broadcast %963 : vector<8x1xf32> to vector<8x8xf32>
    %965 = arith.subf %961, %964 : vector<8x8xf32>
    %966 = math.exp %965 : vector<8x8xf32>
    %cst_291 = arith.constant dense<0.000000e+00> : vector<8xf32>
    %967 = vector.multi_reduction <add>, %966, %cst_291 [1] : vector<8x8xf32> to vector<8xf32>
    %968 = vector.shape_cast %967 : vector<8xf32> to vector<8x1xf32>
    %969 = tpu.reciprocal %968 {approx = true} : vector<8x1xf32> -> vector<8x1xf32>
    %970 = vector.broadcast %969 : vector<8x1xf32> to vector<8x8xf32>
    %971 = arith.mulf %966, %970 : vector<8x8xf32>
    %cst_292 = arith.constant dense<0.000000e+00> : vector<8x8xf32>
    %972 = tpu.matmul %971, %958, %cst_292 {dimension_numbers = #tpu.dot_dimension_numbers<[1], [0], [0], [1], [0, 0, 1, 1], [], []>} : vector<8x8xf32>, vector<8x8xf32>, vector<8x8xf32> -> vector<8x8xf32>
    %973 = vector.extract_strided_slice %921 {offsets = [0, 24], sizes = [8, 8], strides = [1, 1]} : vector<8x96xf32> to vector<8x8xf32>
    %974 = vector.extract_strided_slice %921 {offsets = [0, 56], sizes = [8, 8], strides = [1, 1]} : vector<8x96xf32> to vector<8x8xf32>
    %975 = vector.extract_strided_slice %921 {offsets = [0, 88], sizes = [8, 8], strides = [1, 1]} : vector<8x96xf32> to vector<8x8xf32>
    %cst_293 = arith.constant dense<0.000000e+00> : vector<8x8xf32>
    %976 = tpu.matmul %973, %974, %cst_293 {dimension_numbers = #tpu.dot_dimension_numbers<[1], [1], [0], [0], [0, 0, 1, 0], [], []>} : vector<8x8xf32>, vector<8x8xf32>, vector<8x8xf32> -> vector<8x8xf32>
    %977 = vector.broadcast %918 : vector<1x8xf32> to vector<8x8xf32>
    %978 = arith.addf %976, %977 : vector<8x8xf32>
    %cst_294 = arith.constant dense<0xFF800000> : vector<8xf32>
    %979 = vector.multi_reduction <maximumf>, %978, %cst_294 [1] : vector<8x8xf32> to vector<8xf32>
    %980 = vector.shape_cast %979 : vector<8xf32> to vector<8x1xf32>
    %981 = vector.broadcast %980 : vector<8x1xf32> to vector<8x8xf32>
    %982 = arith.subf %978, %981 : vector<8x8xf32>
    %983 = math.exp %982 : vector<8x8xf32>
    %cst_295 = arith.constant dense<0.000000e+00> : vector<8xf32>
    %984 = vector.multi_reduction <add>, %983, %cst_295 [1] : vector<8x8xf32> to vector<8xf32>
    %985 = vector.shape_cast %984 : vector<8xf32> to vector<8x1xf32>
    %986 = tpu.reciprocal %985 {approx = true} : vector<8x1xf32> -> vector<8x1xf32>
    %987 = vector.broadcast %986 : vector<8x1xf32> to vector<8x8xf32>
    %988 = arith.mulf %983, %987 : vector<8x8xf32>
    %cst_296 = arith.constant dense<0.000000e+00> : vector<8x8xf32>
    %989 = tpu.matmul %988, %975, %cst_296 {dimension_numbers = #tpu.dot_dimension_numbers<[1], [0], [0], [1], [0, 0, 1, 1], [], []>} : vector<8x8xf32>, vector<8x8xf32>, vector<8x8xf32> -> vector<8x8xf32>
    %990 = tpu.concatenate %938, %955, %972, %989 in 1 : vector<8x8xf32>, vector<8x8xf32>, vector<8x8xf32>, vector<8x8xf32> -> vector<8x32xf32>
    %cst_297 = arith.constant dense<0.000000e+00> : vector<8x32xf32>
    %991 = tpu.matmul %990, %10, %cst_297 {dimension_numbers = #tpu.dot_dimension_numbers<[1], [0], [0], [1], [0, 0, 1, 1], [], []>} : vector<8x32xf32>, vector<32x32xf32>, vector<8x32xf32> -> vector<8x32xf32>
    %992 = vector.broadcast %16 : vector<1x32xf32> to vector<8x32xf32>
    %993 = arith.addf %991, %992 : vector<8x32xf32>
    %994 = arith.addf %913, %993 : vector<8x32xf32>
    %cst_298 = arith.constant dense<0.000000e+00> : vector<8xf32>
    %995 = vector.multi_reduction <add>, %994, %cst_298 [1] : vector<8x32xf32> to vector<8xf32>
    %996 = vector.shape_cast %995 : vector<8xf32> to vector<8x1xf32>
    %cst_299 = arith.constant 3.200000e+01 : f32
    %997 = vector.broadcast %cst_299 : f32 to vector<8x1xf32>
    %998 = arith.divf %996, %997 : vector<8x1xf32>
    %999 = arith.mulf %994, %994 : vector<8x32xf32>
    %cst_300 = arith.constant dense<0.000000e+00> : vector<8xf32>
    %1000 = vector.multi_reduction <add>, %999, %cst_300 [1] : vector<8x32xf32> to vector<8xf32>
    %1001 = vector.shape_cast %1000 : vector<8xf32> to vector<8x1xf32>
    %cst_301 = arith.constant 3.200000e+01 : f32
    %1002 = vector.broadcast %cst_301 : f32 to vector<8x1xf32>
    %1003 = arith.divf %1001, %1002 : vector<8x1xf32>
    %1004 = arith.mulf %998, %998 : vector<8x1xf32>
    %1005 = arith.subf %1003, %1004 : vector<8x1xf32>
    %1006 = vector.broadcast %998 : vector<8x1xf32> to vector<8x32xf32>
    %1007 = arith.subf %994, %1006 : vector<8x32xf32>
    %cst_302 = arith.constant 9.99999974E-6 : f32
    %1008 = vector.broadcast %cst_302 : f32 to vector<8x1xf32>
    %1009 = arith.addf %1005, %1008 : vector<8x1xf32>
    %1010 = math.rsqrt %1009 : vector<8x1xf32>
    %1011 = vector.broadcast %1010 : vector<8x1xf32> to vector<8x32xf32>
    %1012 = arith.mulf %1007, %1011 : vector<8x32xf32>
    %1013 = vector.broadcast %17 : vector<1x32xf32> to vector<8x32xf32>
    %1014 = arith.mulf %1012, %1013 : vector<8x32xf32>
    %1015 = vector.broadcast %18 : vector<1x32xf32> to vector<8x32xf32>
    %1016 = arith.addf %1014, %1015 : vector<8x32xf32>
    %cst_303 = arith.constant dense<0.000000e+00> : vector<8x64xf32>
    %1017 = tpu.matmul %1016, %12, %cst_303 {dimension_numbers = #tpu.dot_dimension_numbers<[1], [0], [0], [1], [0, 0, 1, 1], [], []>} : vector<8x32xf32>, vector<32x64xf32>, vector<8x64xf32> -> vector<8x64xf32>
    %1018 = vector.broadcast %19 : vector<1x64xf32> to vector<8x64xf32>
    %1019 = arith.addf %1017, %1018 : vector<8x64xf32>
    %cst_304 = arith.constant 0.000000e+00 : f32
    %1020 = vector.broadcast %cst_304 : f32 to vector<8x64xf32>
    %1021 = arith.maximumf %1019, %1020 : vector<8x64xf32>
    %cst_305 = arith.constant dense<0.000000e+00> : vector<8x32xf32>
    %1022 = tpu.matmul %1021, %14, %cst_305 {dimension_numbers = #tpu.dot_dimension_numbers<[1], [0], [0], [1], [0, 0, 1, 1], [], []>} : vector<8x64xf32>, vector<64x32xf32>, vector<8x32xf32> -> vector<8x32xf32>
    %1023 = vector.broadcast %20 : vector<1x32xf32> to vector<8x32xf32>
    %1024 = arith.addf %1022, %1023 : vector<8x32xf32>
    %1025 = arith.addf %1016, %1024 : vector<8x32xf32>
    %cst_306 = arith.constant dense<0.000000e+00> : vector<8xf32>
    %1026 = vector.multi_reduction <add>, %1025, %cst_306 [1] : vector<8x32xf32> to vector<8xf32>
    %1027 = vector.shape_cast %1026 : vector<8xf32> to vector<8x1xf32>
    %cst_307 = arith.constant 3.200000e+01 : f32
    %1028 = vector.broadcast %cst_307 : f32 to vector<8x1xf32>
    %1029 = arith.divf %1027, %1028 : vector<8x1xf32>
    %1030 = arith.mulf %1025, %1025 : vector<8x32xf32>
    %cst_308 = arith.constant dense<0.000000e+00> : vector<8xf32>
    %1031 = vector.multi_reduction <add>, %1030, %cst_308 [1] : vector<8x32xf32> to vector<8xf32>
    %1032 = vector.shape_cast %1031 : vector<8xf32> to vector<8x1xf32>
    %cst_309 = arith.constant 3.200000e+01 : f32
    %1033 = vector.broadcast %cst_309 : f32 to vector<8x1xf32>
    %1034 = arith.divf %1032, %1033 : vector<8x1xf32>
    %1035 = arith.mulf %1029, %1029 : vector<8x1xf32>
    %1036 = arith.subf %1034, %1035 : vector<8x1xf32>
    %1037 = vector.broadcast %1029 : vector<8x1xf32> to vector<8x32xf32>
    %1038 = arith.subf %1025, %1037 : vector<8x32xf32>
    %cst_310 = arith.constant 9.99999974E-6 : f32
    %1039 = vector.broadcast %cst_310 : f32 to vector<8x1xf32>
    %1040 = arith.addf %1036, %1039 : vector<8x1xf32>
    %1041 = math.rsqrt %1040 : vector<8x1xf32>
    %1042 = vector.broadcast %1041 : vector<8x1xf32> to vector<8x32xf32>
    %1043 = arith.mulf %1038, %1042 : vector<8x32xf32>
    %1044 = vector.broadcast %21 : vector<1x32xf32> to vector<8x32xf32>
    %1045 = arith.mulf %1043, %1044 : vector<8x32xf32>
    %1046 = vector.broadcast %22 : vector<1x32xf32> to vector<8x32xf32>
    %1047 = arith.addf %1045, %1046 : vector<8x32xf32>
    %cst_311 = arith.constant dense<0.000000e+00> : vector<8x96xf32>
    %1048 = tpu.matmul %1047, %24, %cst_311 {dimension_numbers = #tpu.dot_dimension_numbers<[1], [0], [0], [1], [0, 0, 1, 1], [], []>} : vector<8x32xf32>, vector<32x96xf32>, vector<8x96xf32> -> vector<8x96xf32>
    %1049 = vector.broadcast %31 : vector<1x96xf32> to vector<8x96xf32>
    %1050 = arith.addf %1048, %1049 : vector<8x96xf32>
    %1051 = vector.extract_strided_slice %1050 {offsets = [0, 0], sizes = [8, 8], strides = [1, 1]} : vector<8x96xf32> to vector<8x8xf32>
    %1052 = vector.extract_strided_slice %1050 {offsets = [0, 32], sizes = [8, 8], strides = [1, 1]} : vector<8x96xf32> to vector<8x8xf32>
    %1053 = vector.extract_strided_slice %1050 {offsets = [0, 64], sizes = [8, 8], strides = [1, 1]} : vector<8x96xf32> to vector<8x8xf32>
    %cst_312 = arith.constant dense<0.000000e+00> : vector<8x8xf32>
    %1054 = tpu.matmul %1051, %1052, %cst_312 {dimension_numbers = #tpu.dot_dimension_numbers<[1], [1], [0], [0], [0, 0, 1, 0], [], []>} : vector<8x8xf32>, vector<8x8xf32>, vector<8x8xf32> -> vector<8x8xf32>
    %1055 = vector.broadcast %918 : vector<1x8xf32> to vector<8x8xf32>
    %1056 = arith.addf %1054, %1055 : vector<8x8xf32>
    %cst_313 = arith.constant dense<0xFF800000> : vector<8xf32>
    %1057 = vector.multi_reduction <maximumf>, %1056, %cst_313 [1] : vector<8x8xf32> to vector<8xf32>
    %1058 = vector.shape_cast %1057 : vector<8xf32> to vector<8x1xf32>
    %1059 = vector.broadcast %1058 : vector<8x1xf32> to vector<8x8xf32>
    %1060 = arith.subf %1056, %1059 : vector<8x8xf32>
    %1061 = math.exp %1060 : vector<8x8xf32>
    %cst_314 = arith.constant dense<0.000000e+00> : vector<8xf32>
    %1062 = vector.multi_reduction <add>, %1061, %cst_314 [1] : vector<8x8xf32> to vector<8xf32>
    %1063 = vector.shape_cast %1062 : vector<8xf32> to vector<8x1xf32>
    %1064 = tpu.reciprocal %1063 {approx = true} : vector<8x1xf32> -> vector<8x1xf32>
    %1065 = vector.broadcast %1064 : vector<8x1xf32> to vector<8x8xf32>
    %1066 = arith.mulf %1061, %1065 : vector<8x8xf32>
    %cst_315 = arith.constant dense<0.000000e+00> : vector<8x8xf32>
    %1067 = tpu.matmul %1066, %1053, %cst_315 {dimension_numbers = #tpu.dot_dimension_numbers<[1], [0], [0], [1], [0, 0, 1, 1], [], []>} : vector<8x8xf32>, vector<8x8xf32>, vector<8x8xf32> -> vector<8x8xf32>
    %1068 = vector.extract_strided_slice %1050 {offsets = [0, 8], sizes = [8, 8], strides = [1, 1]} : vector<8x96xf32> to vector<8x8xf32>
    %1069 = vector.extract_strided_slice %1050 {offsets = [0, 40], sizes = [8, 8], strides = [1, 1]} : vector<8x96xf32> to vector<8x8xf32>
    %1070 = vector.extract_strided_slice %1050 {offsets = [0, 72], sizes = [8, 8], strides = [1, 1]} : vector<8x96xf32> to vector<8x8xf32>
    %cst_316 = arith.constant dense<0.000000e+00> : vector<8x8xf32>
    %1071 = tpu.matmul %1068, %1069, %cst_316 {dimension_numbers = #tpu.dot_dimension_numbers<[1], [1], [0], [0], [0, 0, 1, 0], [], []>} : vector<8x8xf32>, vector<8x8xf32>, vector<8x8xf32> -> vector<8x8xf32>
    %1072 = vector.broadcast %918 : vector<1x8xf32> to vector<8x8xf32>
    %1073 = arith.addf %1071, %1072 : vector<8x8xf32>
    %cst_317 = arith.constant dense<0xFF800000> : vector<8xf32>
    %1074 = vector.multi_reduction <maximumf>, %1073, %cst_317 [1] : vector<8x8xf32> to vector<8xf32>
    %1075 = vector.shape_cast %1074 : vector<8xf32> to vector<8x1xf32>
    %1076 = vector.broadcast %1075 : vector<8x1xf32> to vector<8x8xf32>
    %1077 = arith.subf %1073, %1076 : vector<8x8xf32>
    %1078 = math.exp %1077 : vector<8x8xf32>
    %cst_318 = arith.constant dense<0.000000e+00> : vector<8xf32>
    %1079 = vector.multi_reduction <add>, %1078, %cst_318 [1] : vector<8x8xf32> to vector<8xf32>
    %1080 = vector.shape_cast %1079 : vector<8xf32> to vector<8x1xf32>
    %1081 = tpu.reciprocal %1080 {approx = true} : vector<8x1xf32> -> vector<8x1xf32>
    %1082 = vector.broadcast %1081 : vector<8x1xf32> to vector<8x8xf32>
    %1083 = arith.mulf %1078, %1082 : vector<8x8xf32>
    %cst_319 = arith.constant dense<0.000000e+00> : vector<8x8xf32>
    %1084 = tpu.matmul %1083, %1070, %cst_319 {dimension_numbers = #tpu.dot_dimension_numbers<[1], [0], [0], [1], [0, 0, 1, 1], [], []>} : vector<8x8xf32>, vector<8x8xf32>, vector<8x8xf32> -> vector<8x8xf32>
    %1085 = vector.extract_strided_slice %1050 {offsets = [0, 16], sizes = [8, 8], strides = [1, 1]} : vector<8x96xf32> to vector<8x8xf32>
    %1086 = vector.extract_strided_slice %1050 {offsets = [0, 48], sizes = [8, 8], strides = [1, 1]} : vector<8x96xf32> to vector<8x8xf32>
    %1087 = vector.extract_strided_slice %1050 {offsets = [0, 80], sizes = [8, 8], strides = [1, 1]} : vector<8x96xf32> to vector<8x8xf32>
    %cst_320 = arith.constant dense<0.000000e+00> : vector<8x8xf32>
    %1088 = tpu.matmul %1085, %1086, %cst_320 {dimension_numbers = #tpu.dot_dimension_numbers<[1], [1], [0], [0], [0, 0, 1, 0], [], []>} : vector<8x8xf32>, vector<8x8xf32>, vector<8x8xf32> -> vector<8x8xf32>
    %1089 = vector.broadcast %918 : vector<1x8xf32> to vector<8x8xf32>
    %1090 = arith.addf %1088, %1089 : vector<8x8xf32>
    %cst_321 = arith.constant dense<0xFF800000> : vector<8xf32>
    %1091 = vector.multi_reduction <maximumf>, %1090, %cst_321 [1] : vector<8x8xf32> to vector<8xf32>
    %1092 = vector.shape_cast %1091 : vector<8xf32> to vector<8x1xf32>
    %1093 = vector.broadcast %1092 : vector<8x1xf32> to vector<8x8xf32>
    %1094 = arith.subf %1090, %1093 : vector<8x8xf32>
    %1095 = math.exp %1094 : vector<8x8xf32>
    %cst_322 = arith.constant dense<0.000000e+00> : vector<8xf32>
    %1096 = vector.multi_reduction <add>, %1095, %cst_322 [1] : vector<8x8xf32> to vector<8xf32>
    %1097 = vector.shape_cast %1096 : vector<8xf32> to vector<8x1xf32>
    %1098 = tpu.reciprocal %1097 {approx = true} : vector<8x1xf32> -> vector<8x1xf32>
    %1099 = vector.broadcast %1098 : vector<8x1xf32> to vector<8x8xf32>
    %1100 = arith.mulf %1095, %1099 : vector<8x8xf32>
    %cst_323 = arith.constant dense<0.000000e+00> : vector<8x8xf32>
    %1101 = tpu.matmul %1100, %1087, %cst_323 {dimension_numbers = #tpu.dot_dimension_numbers<[1], [0], [0], [1], [0, 0, 1, 1], [], []>} : vector<8x8xf32>, vector<8x8xf32>, vector<8x8xf32> -> vector<8x8xf32>
    %1102 = vector.extract_strided_slice %1050 {offsets = [0, 24], sizes = [8, 8], strides = [1, 1]} : vector<8x96xf32> to vector<8x8xf32>
    %1103 = vector.extract_strided_slice %1050 {offsets = [0, 56], sizes = [8, 8], strides = [1, 1]} : vector<8x96xf32> to vector<8x8xf32>
    %1104 = vector.extract_strided_slice %1050 {offsets = [0, 88], sizes = [8, 8], strides = [1, 1]} : vector<8x96xf32> to vector<8x8xf32>
    %cst_324 = arith.constant dense<0.000000e+00> : vector<8x8xf32>
    %1105 = tpu.matmul %1102, %1103, %cst_324 {dimension_numbers = #tpu.dot_dimension_numbers<[1], [1], [0], [0], [0, 0, 1, 0], [], []>} : vector<8x8xf32>, vector<8x8xf32>, vector<8x8xf32> -> vector<8x8xf32>
    %1106 = vector.broadcast %918 : vector<1x8xf32> to vector<8x8xf32>
    %1107 = arith.addf %1105, %1106 : vector<8x8xf32>
    %cst_325 = arith.constant dense<0xFF800000> : vector<8xf32>
    %1108 = vector.multi_reduction <maximumf>, %1107, %cst_325 [1] : vector<8x8xf32> to vector<8xf32>
    %1109 = vector.shape_cast %1108 : vector<8xf32> to vector<8x1xf32>
    %1110 = vector.broadcast %1109 : vector<8x1xf32> to vector<8x8xf32>
    %1111 = arith.subf %1107, %1110 : vector<8x8xf32>
    %1112 = math.exp %1111 : vector<8x8xf32>
    %cst_326 = arith.constant dense<0.000000e+00> : vector<8xf32>
    %1113 = vector.multi_reduction <add>, %1112, %cst_326 [1] : vector<8x8xf32> to vector<8xf32>
    %1114 = vector.shape_cast %1113 : vector<8xf32> to vector<8x1xf32>
    %1115 = tpu.reciprocal %1114 {approx = true} : vector<8x1xf32> -> vector<8x1xf32>
    %1116 = vector.broadcast %1115 : vector<8x1xf32> to vector<8x8xf32>
    %1117 = arith.mulf %1112, %1116 : vector<8x8xf32>
    %cst_327 = arith.constant dense<0.000000e+00> : vector<8x8xf32>
    %1118 = tpu.matmul %1117, %1104, %cst_327 {dimension_numbers = #tpu.dot_dimension_numbers<[1], [0], [0], [1], [0, 0, 1, 1], [], []>} : vector<8x8xf32>, vector<8x8xf32>, vector<8x8xf32> -> vector<8x8xf32>
    %1119 = tpu.concatenate %1067, %1084, %1101, %1118 in 1 : vector<8x8xf32>, vector<8x8xf32>, vector<8x8xf32>, vector<8x8xf32> -> vector<8x32xf32>
    %cst_328 = arith.constant dense<0.000000e+00> : vector<8x32xf32>
    %1120 = tpu.matmul %1119, %26, %cst_328 {dimension_numbers = #tpu.dot_dimension_numbers<[1], [0], [0], [1], [0, 0, 1, 1], [], []>} : vector<8x32xf32>, vector<32x32xf32>, vector<8x32xf32> -> vector<8x32xf32>
    %1121 = vector.broadcast %32 : vector<1x32xf32> to vector<8x32xf32>
    %1122 = arith.addf %1120, %1121 : vector<8x32xf32>
    %1123 = arith.addf %1047, %1122 : vector<8x32xf32>
    %cst_329 = arith.constant dense<0.000000e+00> : vector<8xf32>
    %1124 = vector.multi_reduction <add>, %1123, %cst_329 [1] : vector<8x32xf32> to vector<8xf32>
    %1125 = vector.shape_cast %1124 : vector<8xf32> to vector<8x1xf32>
    %cst_330 = arith.constant 3.200000e+01 : f32
    %1126 = vector.broadcast %cst_330 : f32 to vector<8x1xf32>
    %1127 = arith.divf %1125, %1126 : vector<8x1xf32>
    %1128 = arith.mulf %1123, %1123 : vector<8x32xf32>
    %cst_331 = arith.constant dense<0.000000e+00> : vector<8xf32>
    %1129 = vector.multi_reduction <add>, %1128, %cst_331 [1] : vector<8x32xf32> to vector<8xf32>
    %1130 = vector.shape_cast %1129 : vector<8xf32> to vector<8x1xf32>
    %cst_332 = arith.constant 3.200000e+01 : f32
    %1131 = vector.broadcast %cst_332 : f32 to vector<8x1xf32>
    %1132 = arith.divf %1130, %1131 : vector<8x1xf32>
    %1133 = arith.mulf %1127, %1127 : vector<8x1xf32>
    %1134 = arith.subf %1132, %1133 : vector<8x1xf32>
    %1135 = vector.broadcast %1127 : vector<8x1xf32> to vector<8x32xf32>
    %1136 = arith.subf %1123, %1135 : vector<8x32xf32>
    %cst_333 = arith.constant 9.99999974E-6 : f32
    %1137 = vector.broadcast %cst_333 : f32 to vector<8x1xf32>
    %1138 = arith.addf %1134, %1137 : vector<8x1xf32>
    %1139 = math.rsqrt %1138 : vector<8x1xf32>
    %1140 = vector.broadcast %1139 : vector<8x1xf32> to vector<8x32xf32>
    %1141 = arith.mulf %1136, %1140 : vector<8x32xf32>
    %1142 = vector.broadcast %33 : vector<1x32xf32> to vector<8x32xf32>
    %1143 = arith.mulf %1141, %1142 : vector<8x32xf32>
    %1144 = vector.broadcast %34 : vector<1x32xf32> to vector<8x32xf32>
    %1145 = arith.addf %1143, %1144 : vector<8x32xf32>
    %cst_334 = arith.constant dense<0.000000e+00> : vector<8x64xf32>
    %1146 = tpu.matmul %1145, %28, %cst_334 {dimension_numbers = #tpu.dot_dimension_numbers<[1], [0], [0], [1], [0, 0, 1, 1], [], []>} : vector<8x32xf32>, vector<32x64xf32>, vector<8x64xf32> -> vector<8x64xf32>
    %1147 = vector.broadcast %35 : vector<1x64xf32> to vector<8x64xf32>
    %1148 = arith.addf %1146, %1147 : vector<8x64xf32>
    %cst_335 = arith.constant 0.000000e+00 : f32
    %1149 = vector.broadcast %cst_335 : f32 to vector<8x64xf32>
    %1150 = arith.maximumf %1148, %1149 : vector<8x64xf32>
    %cst_336 = arith.constant dense<0.000000e+00> : vector<8x32xf32>
    %1151 = tpu.matmul %1150, %30, %cst_336 {dimension_numbers = #tpu.dot_dimension_numbers<[1], [0], [0], [1], [0, 0, 1, 1], [], []>} : vector<8x64xf32>, vector<64x32xf32>, vector<8x32xf32> -> vector<8x32xf32>
    %1152 = vector.broadcast %36 : vector<1x32xf32> to vector<8x32xf32>
    %1153 = arith.addf %1151, %1152 : vector<8x32xf32>
    %1154 = arith.addf %1145, %1153 : vector<8x32xf32>
    %cst_337 = arith.constant dense<0.000000e+00> : vector<8xf32>
    %1155 = vector.multi_reduction <add>, %1154, %cst_337 [1] : vector<8x32xf32> to vector<8xf32>
    %1156 = vector.shape_cast %1155 : vector<8xf32> to vector<8x1xf32>
    %cst_338 = arith.constant 3.200000e+01 : f32
    %1157 = vector.broadcast %cst_338 : f32 to vector<8x1xf32>
    %1158 = arith.divf %1156, %1157 : vector<8x1xf32>
    %1159 = arith.mulf %1154, %1154 : vector<8x32xf32>
    %cst_339 = arith.constant dense<0.000000e+00> : vector<8xf32>
    %1160 = vector.multi_reduction <add>, %1159, %cst_339 [1] : vector<8x32xf32> to vector<8xf32>
    %1161 = vector.shape_cast %1160 : vector<8xf32> to vector<8x1xf32>
    %cst_340 = arith.constant 3.200000e+01 : f32
    %1162 = vector.broadcast %cst_340 : f32 to vector<8x1xf32>
    %1163 = arith.divf %1161, %1162 : vector<8x1xf32>
    %1164 = arith.mulf %1158, %1158 : vector<8x1xf32>
    %1165 = arith.subf %1163, %1164 : vector<8x1xf32>
    %1166 = vector.broadcast %1158 : vector<8x1xf32> to vector<8x32xf32>
    %1167 = arith.subf %1154, %1166 : vector<8x32xf32>
    %cst_341 = arith.constant 9.99999974E-6 : f32
    %1168 = vector.broadcast %cst_341 : f32 to vector<8x1xf32>
    %1169 = arith.addf %1165, %1168 : vector<8x1xf32>
    %1170 = math.rsqrt %1169 : vector<8x1xf32>
    %1171 = vector.broadcast %1170 : vector<8x1xf32> to vector<8x32xf32>
    %1172 = arith.mulf %1167, %1171 : vector<8x32xf32>
    %1173 = vector.broadcast %37 : vector<1x32xf32> to vector<8x32xf32>
    %1174 = arith.mulf %1172, %1173 : vector<8x32xf32>
    %1175 = vector.broadcast %38 : vector<1x32xf32> to vector<8x32xf32>
    %1176 = arith.addf %1174, %1175 : vector<8x32xf32>
    %1177 = vector.broadcast %c3_i32 : i32 to vector<8x32xi32>
    %1178 = arith.cmpi eq, %40, %1177 : vector<8x32xi32>
    %cst_342 = arith.constant 0.000000e+00 : f32
    %1179 = vector.broadcast %cst_342 : f32 to vector<8x32xf32>
    %1180 = arith.select %1178, %1176, %1179 : vector<8x32xi1>, vector<8x32xf32>
    %cst_343 = arith.constant dense<0.000000e+00> : vector<32xf32>
    %1181 = vector.multi_reduction <add>, %1180, %cst_343 [0] : vector<8x32xf32> to vector<32xf32>
    %1182 = vector.shape_cast %1181 : vector<32xf32> to vector<1x32xf32>
    %cst_344 = arith.constant dense<0.000000e+00> : vector<1x128xf32>
    %1183 = tpu.matmul %1182, %4, %cst_344 {dimension_numbers = #tpu.dot_dimension_numbers<[1], [0], [0], [1], [0, 0, 1, 1], [], []>} : vector<1x32xf32>, vector<32x128xf32>, vector<1x128xf32> -> vector<1x128xf32>
    %1184 = arith.addf %1183, %6 : vector<1x128xf32>
    %1185 = arith.index_cast %c3_i32 : i32 to index
    %1186 = memref.load %arg0[%1185] : memref<5xf32, #tpu.memory_space<smem>>
    %c64_i32_345 = arith.constant 64 : i32
    %1187 = vector.broadcast %c64_i32_345 : i32 to vector<1x128xi32>
    %1188 = arith.cmpi slt, %41, %1187 : vector<1x128xi32>
    %cst_346 = arith.constant 0.000000e+00 : f32
    %1189 = vector.broadcast %cst_346 : f32 to vector<1x128xf32>
    %1190 = arith.select %1188, %1184, %1189 : vector<1x128xi1>, vector<1x128xf32>
    %c64_i32_347 = arith.constant 64 : i32
    %1191 = vector.broadcast %c64_i32_347 : i32 to vector<1x128xi32>
    %1192 = arith.cmpi eq, %41, %1191 : vector<1x128xi32>
    %1193 = vector.broadcast %1186 : f32 to vector<1x128xf32>
    %1194 = arith.select %1192, %1193, %1190 : vector<1x128xi1>, vector<1x128xf32>
    %c1_i32_348 = arith.constant 1 : i32
    %1195 = arith.addi %c3_i32, %c1_i32_348 : i32
    %1196 = arith.index_cast %1195 : i32 to index
    %c0_349 = arith.constant 0 : index
    %1197 = vector.load %arg10[%1196, %c0_349] : memref<8x128xf32, #tpu.memory_space<vmem>>, vector<1x128xf32>
    tpu.vector_store %arg10[%1196, %c0_349], %1194 {strides = array<i32>} : memref<8x128xf32, #tpu.memory_space<vmem>>, vector<1x128xf32>,
    %c4_i32 = arith.constant 4 : i32
    return
  }
}

</mosaic_0001>

<llo_original>
// kernel: transformer_forward.1
$region0: #{transformer_forward.1}
  #allocation0 [shape = 'u32[]', space=smem, size = 0x4, offset = 0x4, fixed_abs, tag = 'smem constant byte address 0x4 - core index']
  #allocation1 [shape = 'u32[144,128]{1,0:T(1,128)}', space=vmem, size = 0x12000, scoped, tag = 'internal scratch']
  %s0 = inlined_call_operand.vmem [shape: f32[5], index: 0, kind: input, shape index: {}]
  %s1 = inlined_call_operand.vmem [shape: f32[8,128], index: 1, kind: input, shape index: {}, may-alias: {1,10}]
  %s2 = inlined_call_operand.vmem [shape: f32[8,32], index: 2, kind: input, shape index: {}]
  %s3 = inlined_call_operand.vmem [shape: f32[128,32], index: 3, kind: input, shape index: {}]
  %s4 = inlined_call_operand.vmem [shape: f32[32,128], index: 4, kind: input, shape index: {}]
  %s5 = inlined_call_operand.vmem [shape: f32[2,32,96], index: 5, kind: input, shape index: {}]
  %s6 = inlined_call_operand.vmem [shape: f32[2,32,32], index: 6, kind: input, shape index: {}]
  %s7 = inlined_call_operand.vmem [shape: f32[2,32,64], index: 7, kind: input, shape index: {}]
  %s8 = inlined_call_operand.vmem [shape: f32[2,64,32], index: 8, kind: input, shape index: {}]
  %s9 = inlined_call_operand.vmem [shape: f32[18,128], index: 9, kind: input, shape index: {}]
  %s10 = inlined_call_operand.vmem [shape: f32[8,128], index: 10, kind: output, shape index: {}, may-alias: {1,10}]
  %s11 = sld [smem:[#allocation0]]
  $region54: #{transformer_forward.1} parent=0
    _
  %s13 = ssub.s32 1, %s11
  %s14 = scalar_select 0, %s13, %s11
  $region1: #{transformer_forward.1} parent=0
    #allocation2 [shape = 'u8[512]{0}', space=smem, size = 0x200, scoped, tag = 'input window, operand 0, single buffered']
    #allocation3 [shape = 's32[1]{0}', space=sflag, size = 0x4, scoped, tag = 'scoped memory for transformer_forward.1']
    %15 = vsyncpa [#allocation3], 0
    // Predicated region
    $region2: #{transformer_forward.1} parent=1 // pred_check
      _
    $region3: #{transformer_forward.1} parent=1 // pred_check_branch
      %17 = sbr.rel (0) target = $region5
    $region4: #{transformer_forward.1} parent=1 // pred_region
      %s19 = ssub.s32 16, 16
      %20 = vsyncadd [#allocation3], %s19
      %s22 = sshll.u32 %s0, 4
      %s23 = int_to_ptr.vmem [resolvable:$true] %s22
      %25 = dma.vmem_to_smem %s23, 16, [#allocation2], [#allocation3]
    $region5: #{transformer_forward.1} parent=1 // pred_fallthru
      _
    // Predicated region
    $region6: #{transformer_forward.1} parent=1 // pred_check
      _
    $region7: #{transformer_forward.1} parent=1 // pred_check_branch
      %27 = sbr.rel (0) target = $region9
    $region8: #{transformer_forward.1} parent=1 // pred_region
      _
    $region9: #{transformer_forward.1} parent=1 // pred_fallthru
      _
    // Predicated region
    $region10: #{transformer_forward.1} parent=1 // pred_check
      _
    $region11: #{transformer_forward.1} parent=1 // pred_check_branch
      %29 = sbr.rel (0) target = $region13
    $region12: #{transformer_forward.1} parent=1 // pred_region
      _
    $region13: #{transformer_forward.1} parent=1 // pred_fallthru
      _
    // Predicated region
    $region14: #{transformer_forward.1} parent=1 // pred_check
      _
    $region15: #{transformer_forward.1} parent=1 // pred_check_branch
      %31 = sbr.rel (0) target = $region17
    $region16: #{transformer_forward.1} parent=1 // pred_region
      _
    $region17: #{transformer_forward.1} parent=1 // pred_fallthru
      _
    // Predicated region
    $region18: #{transformer_forward.1} parent=1 // pred_check
      _
    $region19: #{transformer_forward.1} parent=1 // pred_check_branch
      %33 = sbr.rel (0) target = $region21
    $region20: #{transformer_forward.1} parent=1 // pred_region
      _
    $region21: #{transformer_forward.1} parent=1 // pred_fallthru
      _
    // Predicated region
    $region22: #{transformer_forward.1} parent=1 // pred_check
      _
    $region23: #{transformer_forward.1} parent=1 // pred_check_branch
      %35 = sbr.rel (0) target = $region25
    $region24: #{transformer_forward.1} parent=1 // pred_region
      _
    $region25: #{transformer_forward.1} parent=1 // pred_fallthru
      _
    // Predicated region
    $region26: #{transformer_forward.1} parent=1 // pred_check
      _
    $region27: #{transformer_forward.1} parent=1 // pred_check_branch
      %37 = sbr.rel (0) target = $region29
    $region28: #{transformer_forward.1} parent=1 // pred_region
      _
    $region29: #{transformer_forward.1} parent=1 // pred_fallthru
      _
    // Predicated region
    $region30: #{transformer_forward.1} parent=1 // pred_check
      _
    $region31: #{transformer_forward.1} parent=1 // pred_check_branch
      %39 = sbr.rel (0) target = $region33
    $region32: #{transformer_forward.1} parent=1 // pred_region
      _
    $region33: #{transformer_forward.1} parent=1 // pred_fallthru
      _
    // Predicated region
    $region34: #{transformer_forward.1} parent=1 // pred_check
      _
    $region35: #{transformer_forward.1} parent=1 // pred_check_branch
      %41 = sbr.rel (0) target = $region37
    $region36: #{transformer_forward.1} parent=1 // pred_region
      _
    $region37: #{transformer_forward.1} parent=1 // pred_fallthru
      _
    // Predicated region
    $region38: #{transformer_forward.1} parent=1 // pred_check
      _
    $region39: #{transformer_forward.1} parent=1 // pred_check_branch
      %43 = sbr.rel (0) target = $region41
    $region40: #{transformer_forward.1} parent=1 // pred_region
      _
    $region41: #{transformer_forward.1} parent=1 // pred_fallthru
      _
    // Predicated region
    $region42: #{transformer_forward.1} parent=1 // pred_check
      _
    $region43: #{transformer_forward.1} parent=1 // pred_check_branch
      %45 = sbr.rel (0) target = $region45
    $region44: #{transformer_forward.1} parent=1 // pred_region
      %46 = dma.done [#allocation3], 16
    $region45: #{transformer_forward.1} parent=1 // pred_fallthru
      _
    %47 = sfence
    %v48 = vld [vmem:[%s1] sm:$0xff]
    %49 = vst [vmem:[%s10] sm:$0xff] %v48
    %v50 = vld [vmem:[%s2] sm:$0xff]
    %v51 = vld [vmem:[%s3] sm:$0xff]
    %v52 = vld [vmem:[%s3 + $0x8] sm:$0xff]
    %v53 = vld [vmem:[%s3 + $0x10] sm:$0xff]
    %v54 = vld [vmem:[%s3 + $0x18] sm:$0xff]
    %v55 = vld [vmem:[%s3 + $0x20] sm:$0xff]
    %v56 = vld [vmem:[%s3 + $0x28] sm:$0xff]
    %v57 = vld [vmem:[%s3 + $0x30] sm:$0xff]
    %v58 = vld [vmem:[%s3 + $0x38] sm:$0xff]
    %v59 = vld [vmem:[%s3 + $0x40] sm:$0xff]
    %v60 = vld [vmem:[%s3 + $0x48] sm:$0xff]
    %v61 = vld [vmem:[%s3 + $0x50] sm:$0xff]
    %v62 = vld [vmem:[%s3 + $0x58] sm:$0xff]
    %v63 = vld [vmem:[%s3 + $0x60] sm:$0xff]
    %v64 = vld [vmem:[%s3 + $0x68] sm:$0xff]
    %v65 = vld [vmem:[%s3 + $0x70] sm:$0xff]
    %v66 = vld [vmem:[%s3 + $0x78] sm:$0xff]
    %v67 = vld [vmem:[%s4] sm:$0xff]
    %v68 = vld [vmem:[%s4 + $0x8] sm:$0xff]
    %v69 = vld [vmem:[%s4 + $0x10] sm:$0xff]
    %v70 = vld [vmem:[%s4 + $0x18] sm:$0xff]
    %v71 = vld [vmem:[%s9] sm:$0x1]
    %v72 = vld [vmem:[%s9 + $0x1] sm:$0x1]
    %v73 = vld [vmem:[%s5] sm:$0xff]
    %v74 = vld [vmem:[%s5 + $0x8] sm:$0xff]
    %v75 = vld [vmem:[%s5 + $0x10] sm:$0xff]
    %v76 = vld [vmem:[%s5 + $0x18] sm:$0xff]
    %v77 = vld [vmem:[%s6] sm:$0xff]
    %v78 = vld [vmem:[%s6 + $0x8] sm:$0xff]
    %v79 = vld [vmem:[%s6 + $0x10] sm:$0xff]
    %v80 = vld [vmem:[%s6 + $0x18] sm:$0xff]
    %v81 = vld [vmem:[%s7] sm:$0xff]
    %v82 = vld [vmem:[%s7 + $0x8] sm:$0xff]
    %v83 = vld [vmem:[%s7 + $0x10] sm:$0xff]
    %v84 = vld [vmem:[%s7 + $0x18] sm:$0xff]
    %v85 = vld [vmem:[%s8] sm:$0xff]
    %v86 = vld [vmem:[%s8 + $0x8] sm:$0xff]
    %v87 = vld [vmem:[%s8 + $0x10] sm:$0xff]
    %v88 = vld [vmem:[%s8 + $0x18] sm:$0xff]
    %v89 = vld [vmem:[%s8 + $0x20] sm:$0xff]
    %v90 = vld [vmem:[%s8 + $0x28] sm:$0xff]
    %v91 = vld [vmem:[%s8 + $0x30] sm:$0xff]
    %v92 = vld [vmem:[%s8 + $0x38] sm:$0xff]
    %v93 = vld [vmem:[%s9 + $0x2] sm:$0x1]
    %v94 = vld [vmem:[%s9 + $0x3] sm:$0x1]
    %v95 = vld [vmem:[%s9 + $0x4] sm:$0x1]
    %v96 = vld [vmem:[%s9 + $0x5] sm:$0x1]
    %v97 = vld [vmem:[%s9 + $0x6] sm:$0x1]
    %v98 = vld [vmem:[%s9 + $0x7] sm:$0x1]
    %v99 = vld [vmem:[%s9 + $0x8] sm:$0x1]
    %v100 = vld [vmem:[%s9 + $0x9] sm:$0x1]
    %s101 = scalar_lea.vmem %s5, 32
    %v102 = vld [vmem:[%s101] sm:$0xff]
    %v103 = vld [vmem:[%s101 + $0x8] sm:$0xff]
    %v104 = vld [vmem:[%s101 + $0x10] sm:$0xff]
    %v105 = vld [vmem:[%s101 + $0x18] sm:$0xff]
    %s106 = scalar_lea.vmem %s6, 32
    %v107 = vld [vmem:[%s106] sm:$0xff]
    %v108 = vld [vmem:[%s106 + $0x8] sm:$0xff]
    %v109 = vld [vmem:[%s106 + $0x10] sm:$0xff]
    %v110 = vld [vmem:[%s106 + $0x18] sm:$0xff]
    %s111 = scalar_lea.vmem %s7, 32
    %v112 = vld [vmem:[%s111] sm:$0xff]
    %v113 = vld [vmem:[%s111 + $0x8] sm:$0xff]
    %v114 = vld [vmem:[%s111 + $0x10] sm:$0xff]
    %v115 = vld [vmem:[%s111 + $0x18] sm:$0xff]
    %s116 = scalar_lea.vmem %s8, 64
    %v117 = vld [vmem:[%s116] sm:$0xff]
    %v118 = vld [vmem:[%s116 + $0x8] sm:$0xff]
    %v119 = vld [vmem:[%s116 + $0x10] sm:$0xff]
    %v120 = vld [vmem:[%s116 + $0x18] sm:$0xff]
    %v121 = vld [vmem:[%s116 + $0x20] sm:$0xff]
    %v122 = vld [vmem:[%s116 + $0x28] sm:$0xff]
    %v123 = vld [vmem:[%s116 + $0x30] sm:$0xff]
    %v124 = vld [vmem:[%s116 + $0x38] sm:$0xff]
    %v125 = vld [vmem:[%s9 + $0xa] sm:$0x1]
    %v126 = vld [vmem:[%s9 + $0xb] sm:$0x1]
    %v127 = vld [vmem:[%s9 + $0xc] sm:$0x1]
    %v128 = vld [vmem:[%s9 + $0xd] sm:$0x1]
    %v129 = vld [vmem:[%s9 + $0xe] sm:$0x1]
    %v130 = vld [vmem:[%s9 + $0xf] sm:$0x1]
    %v131 = vld [vmem:[%s9 + $0x10] sm:$0x1]
    %v132 = vld [vmem:[%s9 + $0x11] sm:$0x1]
    %v133 = vlaneseq
    %v134 = vand.u32 %v133, 127
    %v135 = vlaneseq
    %v136 = vshrl.u32 %v135, 7
    %v137 = vld [vmem:[%s10] sm:$0xff]
    %v138 = vlaneseq
    %v139 = vshrl.u32 %v138, 7
    %v140 = vsub.s32 0, %v139
    %v141 = vrot.slane %v71, %v140
    %142 = vmatprep.subr.mxu0 0.0
    %143 = vmatpush1.msra.mxu0 %v51
    %144 = vmatprep.subr.mxu0 0.0
    %145 = vmatpush1.msra.mxu0 %v52
    %146 = vmatprep.subr.mxu0 0.0
    %147 = vmatpush1.msra.mxu0 %v53
    %148 = vmatprep.subr.mxu0 0.0
    %149 = vmatpush1.msra.mxu0 %v54
    %150 = vmatprep.subr.mxu0 0.0
    %151 = vmatpush1.msra.mxu0 %v55
    %152 = vmatprep.subr.mxu0 0.0
    %153 = vmatpush1.msra.mxu0 %v56
    %154 = vmatprep.subr.mxu0 0.0
    %155 = vmatpush1.msra.mxu0 %v57
    %156 = vmatprep.subr.mxu0 0.0
    %157 = vmatpush1.msra.mxu0 %v58
    %158 = vmatprep.subr.mxu0 0.0
    %159 = vmatpush1.msra.mxu0 %v59
    %160 = vmatprep.subr.mxu0 0.0
    %161 = vmatpush1.msra.mxu0 %v60
    %162 = vmatprep.subr.mxu0 0.0
    %163 = vmatpush1.msra.mxu0 %v61
    %164 = vmatprep.subr.mxu0 0.0
    %165 = vmatpush1.msra.mxu0 %v62
    %166 = vmatprep.subr.mxu0 0.0
    %167 = vmatpush1.msra.mxu0 %v63
    %168 = vmatprep.subr.mxu0 0.0
    %169 = vmatpush1.msra.mxu0 %v64
    %170 = vmatprep.subr.mxu0 0.0
    %171 = vmatpush1.msra.mxu0 %v65
    %172 = vmatprep.subr.mxu0 0.0
    %173 = vmatpush1.msra.mxu0 %v66
    %174 = vmatprep.subr.mxu0 0.0
    %175 = vmatpush1.msra.mxu0 0.0
    %176 = vmatprep.subr.mxu0 0.0
    %177 = vmatpush1.msra.mxu0 0.0
    %178 = vmatprep.subr.mxu0 0.0
    %179 = vmatpush1.msra.mxu0 0.0
    %180 = vmatprep.subr.mxu0 0.0
    %181 = vmatpush1.msra.mxu0 0.0
    %182 = vmatprep.subr.mxu0 0.0
    %183 = vmatpush1.msra.mxu0 0.0
    %184 = vmatprep.subr.mxu0 0.0
    %185 = vmatpush1.msra.mxu0 0.0
    %186 = vmatprep.subr.mxu0 0.0
    %187 = vmatpush1.msra.mxu0 0.0
    %188 = vmatprep.subr.mxu0 0.0
    %189 = vmatpush1.msra.mxu0 0.0
    %190 = vmatprep.subr.mxu0 0.0
    %191 = vmatpush1.msra.mxu0 0.0
    %192 = vmatprep.subr.mxu0 0.0
    %193 = vmatpush1.msra.mxu0 0.0
    %194 = vmatprep.subr.mxu0 0.0
    %195 = vmatpush1.msra.mxu0 0.0
    %196 = vmatprep.subr.mxu0 0.0
    %197 = vmatpush1.msra.mxu0 0.0
    %198 = vmatprep.subr.mxu0 0.0
    %199 = vmatpush1.msra.mxu0 0.0
    %200 = vmatprep.subr.mxu0 0.0
    %201 = vmatpush1.msra.mxu0 0.0
    %202 = vmatprep.subr.mxu0 0.0
    %203 = vmatpush1.msra.mxu0 0.0
    %204 = vmatprep.subr.mxu0 0.0
    %205 = vmatpush1.msra.mxu0 0.0
    %206 = vmatprep.mubr.f32.mxu0 0.0
    %207 = vmatmul.mubr.f32.gmra.mrb[0].mxu0 %v137
    %v208 = vpop.f32.mrb[0].mxu0
    %v209 = vadd.f32 %v141, %v208
    %v210 = vpop.f32.mrb[0].mxu0
    %211 = vdwg.mxu0
    %v212 = vadd.f32 %v209, %v50
    %vm213 = vcmp.le.s32.totalorder %v134, 0
    %v214 = vsel %vm213, 0.0, -1e+30
    %v215 = vlaneseq
    %v216 = vshrl.u32 %v215, 7
    %v217 = vsub.s32 0, %v216
    %v218 = vrot.slane %v93, %v217
    %vm219 = vcmask 261120
    %v221 = vsel %vm219, %v212, 0
    %223 = vmatprep.subr.mxu0 0.0
    %224 = vmatpush1.msra.mxu0 %v73
    %225 = vmatprep.subr.mxu0 0.0
    %226 = vmatpush1.msra.mxu0 %v74
    %227 = vmatprep.subr.mxu0 0.0
    %228 = vmatpush1.msra.mxu0 %v75
    %229 = vmatprep.subr.mxu0 0.0
    %230 = vmatpush1.msra.mxu0 %v76
    %231 = vmatprep.subr.mxu0 0.0
    %232 = vmatpush1.msra.mxu0 0.0
    %233 = vmatprep.subr.mxu0 0.0
    %234 = vmatpush1.msra.mxu0 0.0
    %235 = vmatprep.subr.mxu0 0.0
    %236 = vmatpush1.msra.mxu0 0.0
    %237 = vmatprep.subr.mxu0 0.0
    %238 = vmatpush1.msra.mxu0 0.0
    %239 = vmatprep.subr.mxu0 0.0
    %240 = vmatpush1.msra.mxu0 0.0
    %241 = vmatprep.subr.mxu0 0.0
    %242 = vmatpush1.msra.mxu0 0.0
    %243 = vmatprep.subr.mxu0 0.0
    %244 = vmatpush1.msra.mxu0 0.0
    %245 = vmatprep.subr.mxu0 0.0
    %246 = vmatpush1.msra.mxu0 0.0
    %247 = vmatprep.subr.mxu0 0.0
    %248 = vmatpush1.msra.mxu0 0.0
    %249 = vmatprep.subr.mxu0 0.0
    %250 = vmatpush1.msra.mxu0 0.0
    %251 = vmatprep.subr.mxu0 0.0
    %252 = vmatpush1.msra.mxu0 0.0
    %253 = vmatprep.subr.mxu0 0.0
    %254 = vmatpush1.msra.mxu0 0.0
    %255 = vmatprep.subr.mxu0 0.0
    %256 = vmatpush1.msra.mxu0 0.0
    %257 = vmatprep.subr.mxu0 0.0
    %258 = vmatpush1.msra.mxu0 0.0
    %259 = vmatprep.subr.mxu0 0.0
    %260 = vmatpush1.msra.mxu0 0.0
    %261 = vmatprep.subr.mxu0 0.0
    %262 = vmatpush1.msra.mxu0 0.0
    %263 = vmatprep.subr.mxu0 0.0
    %264 = vmatpush1.msra.mxu0 0.0
    %265 = vmatprep.subr.mxu0 0.0
    %266 = vmatpush1.msra.mxu0 0.0
    %267 = vmatprep.subr.mxu0 0.0
    %268 = vmatpush1.msra.mxu0 0.0
    %269 = vmatprep.subr.mxu0 0.0
    %270 = vmatpush1.msra.mxu0 0.0
    %271 = vmatprep.subr.mxu0 0.0
    %272 = vmatpush1.msra.mxu0 0.0
    %273 = vmatprep.subr.mxu0 0.0
    %274 = vmatpush1.msra.mxu0 0.0
    %275 = vmatprep.subr.mxu0 0.0
    %276 = vmatpush1.msra.mxu0 0.0
    %277 = vmatprep.subr.mxu0 0.0
    %278 = vmatpush1.msra.mxu0 0.0
    %279 = vmatprep.subr.mxu0 0.0
    %280 = vmatpush1.msra.mxu0 0.0
    %281 = vmatprep.subr.mxu0 0.0
    %282 = vmatpush1.msra.mxu0 0.0
    %283 = vmatprep.subr.mxu0 0.0
    %284 = vmatpush1.msra.mxu0 0.0
    %285 = vmatprep.subr.mxu0 0.0
    %286 = vmatpush1.msra.mxu0 0.0
    %287 = vmatprep.mubr.f32.mxu0 0.0
    %288 = vmatmul.mubr.f32.gmra.mrb[0].mxu0 %v221
    %v289 = vpop.f32.mrb[0].mxu0
    %v290 = vadd.f32 %v218, %v289
    %v291 = vpop.f32.mrb[0].mxu0
    %292 = vdwg.mxu0
    %294 = vrot.lane.b32.xlu0 %v290, 96
    %v295 = vpop.permute.xlu0 %294
    %vm296 = vcmask 64512
    %v297 = vsel %vm296, %v290, 0
    %v299 = vsel %vm296, %v295, 0
    %301 = vmatprep.subr.mxu0 0.0
    %302 = vmatpush1.xpose.msra.mxu0 %v299
    %303 = vmatprep.subr.mxu0 0.0
    %304 = vmatpush1.xpose.msra.mxu0 0.0
    %305 = vmatprep.subr.mxu0 0.0
    %306 = vmatpush1.xpose.msra.mxu0 0.0
    %307 = vmatprep.subr.mxu0 0.0
    %308 = vmatpush1.xpose.msra.mxu0 0.0
    %309 = vmatprep.subr.mxu0 0.0
    %310 = vmatpush1.xpose.msra.mxu0 0.0
    %311 = vmatprep.subr.mxu0 0.0
    %312 = vmatpush1.xpose.msra.mxu0 0.0
    %313 = vmatprep.subr.mxu0 0.0
    %314 = vmatpush1.xpose.msra.mxu0 0.0
    %315 = vmatprep.subr.mxu0 0.0
    %316 = vmatpush1.xpose.msra.mxu0 0.0
    %317 = vmatprep.subr.mxu0 0.0
    %318 = vmatpush1.xpose.msra.mxu0 0.0
    %319 = vmatprep.subr.mxu0 0.0
    %320 = vmatpush1.xpose.msra.mxu0 0.0
    %321 = vmatprep.subr.mxu0 0.0
    %322 = vmatpush1.xpose.msra.mxu0 0.0
    %323 = vmatprep.subr.mxu0 0.0
    %324 = vmatpush1.xpose.msra.mxu0 0.0
    %325 = vmatprep.subr.mxu0 0.0
    %326 = vmatpush1.xpose.msra.mxu0 0.0
    %327 = vmatprep.subr.mxu0 0.0
    %328 = vmatpush1.xpose.msra.mxu0 0.0
    %329 = vmatprep.subr.mxu0 0.0
    %330 = vmatpush1.xpose.msra.mxu0 0.0
    %331 = vmatprep.subr.mxu0 0.0
    %332 = vmatpush1.xpose.msra.mxu0 0.0
    %333 = vmatprep.subr.mxu0 0.0
    %334 = vmatpush1.xpose.msra.mxu0 0.0
    %335 = vmatprep.subr.mxu0 0.0
    %336 = vmatpush1.xpose.msra.mxu0 0.0
    %337 = vmatprep.subr.mxu0 0.0
    %338 = vmatpush1.xpose.msra.mxu0 0.0
    %339 = vmatprep.subr.mxu0 0.0
    %340 = vmatpush1.xpose.msra.mxu0 0.0
    %341 = vmatprep.subr.mxu0 0.0
    %342 = vmatpush1.xpose.msra.mxu0 0.0
    %343 = vmatprep.subr.mxu0 0.0
    %344 = vmatpush1.xpose.msra.mxu0 0.0
    %345 = vmatprep.subr.mxu0 0.0
    %346 = vmatpush1.xpose.msra.mxu0 0.0
    %347 = vmatprep.subr.mxu0 0.0
    %348 = vmatpush1.xpose.msra.mxu0 0.0
    %349 = vmatprep.subr.mxu0 0.0
    %350 = vmatpush1.xpose.msra.mxu0 0.0
    %351 = vmatprep.subr.mxu0 0.0
    %352 = vmatpush1.xpose.msra.mxu0 0.0
    %353 = vmatprep.subr.mxu0 0.0
    %354 = vmatpush1.xpose.msra.mxu0 0.0
    %355 = vmatprep.subr.mxu0 0.0
    %356 = vmatpush1.xpose.msra.mxu0 0.0
    %357 = vmatprep.subr.mxu0 0.0
    %358 = vmatpush1.xpose.msra.mxu0 0.0
    %359 = vmatprep.subr.mxu0 0.0
    %360 = vmatpush1.xpose.msra.mxu0 0.0
    %361 = vmatprep.subr.mxu0 0.0
    %362 = vmatpush1.xpose.msra.mxu0 0.0
    %363 = vmatprep.subr.mxu0 0.0
    %364 = vmatpush1.xpose.msra.mxu0 0.0
    %365 = vmatprep.mubr.f32.mxu0 0.0
    %366 = vmatmul.mubr.f32.gmra.mrb[0].mxu0 %v297
    %v367 = vpop.f32.mrb[0].mxu0
    %v368 = vadd.f32 %v214, %v367
    %v369 = vpop.f32.mrb[0].mxu0
    %370 = vdwg.mxu0
    %v371 = vsel %vm296, %v368, -inf
    %372 = vmax.xlane.f32.xlu0 %v371
    %v373 = vpop.xlane.xlu0 %372
    %v374 = vsub.f32 %v368, %v373
    %v375 = vmul.f32 %v374, 1.442695
    %v376 = vpow.pop %v375
    %v377 = vsel %vm296, %v376, 0.0
    %378 = vadd.xlane.f32.xlu0 %v377
    %v379 = vpop.xlane.xlu0 %378
    %v380 = vrcp.pop %v379
    %v381 = vmul.f32 %v376, %v380
    %382 = vrot.lane.b32.xlu0 %v290, 64
    %v383 = vpop.permute.xlu0 %382
    %v386 = vsel %vm296, %v381, 0
    %388 = vmatprep.subr.mxu0 0.0
    %389 = vmatpush1.msra.mxu0 %v383
    %390 = vmatprep.subr.mxu0 0.0
    %391 = vmatpush1.msra.mxu0 0.0
    %392 = vmatprep.subr.mxu0 0.0
    %393 = vmatpush1.msra.mxu0 0.0
    %394 = vmatprep.subr.mxu0 0.0
    %395 = vmatpush1.msra.mxu0 0.0
    %396 = vmatprep.subr.mxu0 0.0
    %397 = vmatpush1.msra.mxu0 0.0
    %398 = vmatprep.subr.mxu0 0.0
    %399 = vmatpush1.msra.mxu0 0.0
    %400 = vmatprep.subr.mxu0 0.0
    %401 = vmatpush1.msra.mxu0 0.0
    %402 = vmatprep.subr.mxu0 0.0
    %403 = vmatpush1.msra.mxu0 0.0
    %404 = vmatprep.subr.mxu0 0.0
    %405 = vmatpush1.msra.mxu0 0.0
    %406 = vmatprep.subr.mxu0 0.0
    %407 = vmatpush1.msra.mxu0 0.0
    %408 = vmatprep.subr.mxu0 0.0
    %409 = vmatpush1.msra.mxu0 0.0
    %410 = vmatprep.subr.mxu0 0.0
    %411 = vmatpush1.msra.mxu0 0.0
    %412 = vmatprep.subr.mxu0 0.0
    %413 = vmatpush1.msra.mxu0 0.0
    %414 = vmatprep.subr.mxu0 0.0
    %415 = vmatpush1.msra.mxu0 0.0
    %416 = vmatprep.subr.mxu0 0.0
    %417 = vmatpush1.msra.mxu0 0.0
    %418 = vmatprep.subr.mxu0 0.0
    %419 = vmatpush1.msra.mxu0 0.0
    %420 = vmatprep.subr.mxu0 0.0
    %421 = vmatpush1.msra.mxu0 0.0
    %422 = vmatprep.subr.mxu0 0.0
    %423 = vmatpush1.msra.mxu0 0.0
    %424 = vmatprep.subr.mxu0 0.0
    %425 = vmatpush1.msra.mxu0 0.0
    %426 = vmatprep.subr.mxu0 0.0
    %427 = vmatpush1.msra.mxu0 0.0
    %428 = vmatprep.subr.mxu0 0.0
    %429 = vmatpush1.msra.mxu0 0.0
    %430 = vmatprep.subr.mxu0 0.0
    %431 = vmatpush1.msra.mxu0 0.0
    %432 = vmatprep.subr.mxu0 0.0
    %433 = vmatpush1.msra.mxu0 0.0
    %434 = vmatprep.subr.mxu0 0.0
    %435 = vmatpush1.msra.mxu0 0.0
    %436 = vmatprep.subr.mxu0 0.0
    %437 = vmatpush1.msra.mxu0 0.0
    %438 = vmatprep.subr.mxu0 0.0
    %439 = vmatpush1.msra.mxu0 0.0
    %440 = vmatprep.subr.mxu0 0.0
    %441 = vmatpush1.msra.mxu0 0.0
    %442 = vmatprep.subr.mxu0 0.0
    %443 = vmatpush1.msra.mxu0 0.0
    %444 = vmatprep.subr.mxu0 0.0
    %445 = vmatpush1.msra.mxu0 0.0
    %446 = vmatprep.subr.mxu0 0.0
    %447 = vmatpush1.msra.mxu0 0.0
    %448 = vmatprep.subr.mxu0 0.0
    %449 = vmatpush1.msra.mxu0 0.0
    %450 = vmatprep.subr.mxu0 0.0
    %451 = vmatpush1.msra.mxu0 0.0
    %452 = vmatprep.mubr.f32.mxu0 0.0
    %453 = vmatmul.mubr.f32.gmra.mrb[0].mxu0 %v386
    %v454 = vpop.f32.mrb[0].mxu0
    %v455 = vadd.f32 0.0, %v454
    %v456 = vpop.f32.mrb[0].mxu0
    %457 = vdwg.mxu0
    %458 = vrot.lane.b32.xlu0 %v290, 120
    %v459 = vpop.permute.xlu0 %458
    %460 = vrot.lane.b32.xlu0 %v290, 88
    %v461 = vpop.permute.xlu0 %460
    %v462 = vsel %vm296, %v459, 0
    %v464 = vsel %vm296, %v461, 0
    %466 = vmatprep.subr.mxu0 0.0
    %467 = vmatpush1.xpose.msra.mxu0 %v464
    %468 = vmatprep.subr.mxu0 0.0
    %469 = vmatpush1.xpose.msra.mxu0 0.0
    %470 = vmatprep.subr.mxu0 0.0
    %471 = vmatpush1.xpose.msra.mxu0 0.0
    %472 = vmatprep.subr.mxu0 0.0
    %473 = vmatpush1.xpose.msra.mxu0 0.0
    %474 = vmatprep.subr.mxu0 0.0
    %475 = vmatpush1.xpose.msra.mxu0 0.0
    %476 = vmatprep.subr.mxu0 0.0
    %477 = vmatpush1.xpose.msra.mxu0 0.0
    %478 = vmatprep.subr.mxu0 0.0
    %479 = vmatpush1.xpose.msra.mxu0 0.0
    %480 = vmatprep.subr.mxu0 0.0
    %481 = vmatpush1.xpose.msra.mxu0 0.0
    %482 = vmatprep.subr.mxu0 0.0
    %483 = vmatpush1.xpose.msra.mxu0 0.0
    %484 = vmatprep.subr.mxu0 0.0
    %485 = vmatpush1.xpose.msra.mxu0 0.0
    %486 = vmatprep.subr.mxu0 0.0
    %487 = vmatpush1.xpose.msra.mxu0 0.0
    %488 = vmatprep.subr.mxu0 0.0
    %489 = vmatpush1.xpose.msra.mxu0 0.0
    %490 = vmatprep.subr.mxu0 0.0
    %491 = vmatpush1.xpose.msra.mxu0 0.0
    %492 = vmatprep.subr.mxu0 0.0
    %493 = vmatpush1.xpose.msra.mxu0 0.0
    %494 = vmatprep.subr.mxu0 0.0
    %495 = vmatpush1.xpose.msra.mxu0 0.0
    %496 = vmatprep.subr.mxu0 0.0
    %497 = vmatpush1.xpose.msra.mxu0 0.0
    %498 = vmatprep.subr.mxu0 0.0
    %499 = vmatpush1.xpose.msra.mxu0 0.0
    %500 = vmatprep.subr.mxu0 0.0
    %501 = vmatpush1.xpose.msra.mxu0 0.0
    %502 = vmatprep.subr.mxu0 0.0
    %503 = vmatpush1.xpose.msra.mxu0 0.0
    %504 = vmatprep.subr.mxu0 0.0
    %505 = vmatpush1.xpose.msra.mxu0 0.0
    %506 = vmatprep.subr.mxu0 0.0
    %507 = vmatpush1.xpose.msra.mxu0 0.0
    %508 = vmatprep.subr.mxu0 0.0
    %509 = vmatpush1.xpose.msra.mxu0 0.0
    %510 = vmatprep.subr.mxu0 0.0
    %511 = vmatpush1.xpose.msra.mxu0 0.0
    %512 = vmatprep.subr.mxu0 0.0
    %513 = vmatpush1.xpose.msra.mxu0 0.0
    %514 = vmatprep.subr.mxu0 0.0
    %515 = vmatpush1.xpose.msra.mxu0 0.0
    %516 = vmatprep.subr.mxu0 0.0
    %517 = vmatpush1.xpose.msra.mxu0 0.0
    %518 = vmatprep.subr.mxu0 0.0
    %519 = vmatpush1.xpose.msra.mxu0 0.0
    %520 = vmatprep.subr.mxu0 0.0
    %521 = vmatpush1.xpose.msra.mxu0 0.0
    %522 = vmatprep.subr.mxu0 0.0
    %523 = vmatpush1.xpose.msra.mxu0 0.0
    %524 = vmatprep.subr.mxu0 0.0
    %525 = vmatpush1.xpose.msra.mxu0 0.0
    %526 = vmatprep.subr.mxu0 0.0
    %527 = vmatpush1.xpose.msra.mxu0 0.0
    %528 = vmatprep.subr.mxu0 0.0
    %529 = vmatpush1.xpose.msra.mxu0 0.0
    %530 = vmatprep.mubr.f32.mxu0 0.0
    %531 = vmatmul.mubr.f32.gmra.mrb[0].mxu0 %v462
    %v532 = vpop.f32.mrb[0].mxu0
    %v533 = vadd.f32 %v214, %v532
    %v534 = vpop.f32.mrb[0].mxu0
    %535 = vdwg.mxu0
    %v536 = vsel %vm296, %v533, -inf
    %537 = vmax.xlane.f32.xlu0 %v536
    %v538 = vpop.xlane.xlu0 %537
    %v539 = vsub.f32 %v533, %v538
    %v540 = vmul.f32 %v539, 1.442695
    %v541 = vpow.pop %v540
    %v542 = vsel %vm296, %v541, 0.0
    %543 = vadd.xlane.f32.xlu0 %v542
    %v544 = vpop.xlane.xlu0 %543
    %v545 = vrcp.pop %v544
    %v546 = vmul.f32 %v541, %v545
    %547 = vrot.lane.b32.xlu0 %v290, 56
    %v548 = vpop.permute.xlu0 %547
    %v551 = vsel %vm296, %v546, 0
    %553 = vmatprep.subr.mxu0 0.0
    %554 = vmatpush1.msra.mxu0 %v548
    %555 = vmatprep.subr.mxu0 0.0
    %556 = vmatpush1.msra.mxu0 0.0
    %557 = vmatprep.subr.mxu0 0.0
    %558 = vmatpush1.msra.mxu0 0.0
    %559 = vmatprep.subr.mxu0 0.0
    %560 = vmatpush1.msra.mxu0 0.0
    %561 = vmatprep.subr.mxu0 0.0
    %562 = vmatpush1.msra.mxu0 0.0
    %563 = vmatprep.subr.mxu0 0.0
    %564 = vmatpush1.msra.mxu0 0.0
    %565 = vmatprep.subr.mxu0 0.0
    %566 = vmatpush1.msra.mxu0 0.0
    %567 = vmatprep.subr.mxu0 0.0
    %568 = vmatpush1.msra.mxu0 0.0
    %569 = vmatprep.subr.mxu0 0.0
    %570 = vmatpush1.msra.mxu0 0.0
    %571 = vmatprep.subr.mxu0 0.0
    %572 = vmatpush1.msra.mxu0 0.0
    %573 = vmatprep.subr.mxu0 0.0
    %574 = vmatpush1.msra.mxu0 0.0
    %575 = vmatprep.subr.mxu0 0.0
    %576 = vmatpush1.msra.mxu0 0.0
    %577 = vmatprep.subr.mxu0 0.0
    %578 = vmatpush1.msra.mxu0 0.0
    %579 = vmatprep.subr.mxu0 0.0
    %580 = vmatpush1.msra.mxu0 0.0
    %581 = vmatprep.subr.mxu0 0.0
    %582 = vmatpush1.msra.mxu0 0.0
    %583 = vmatprep.subr.mxu0 0.0
    %584 = vmatpush1.msra.mxu0 0.0
    %585 = vmatprep.subr.mxu0 0.0
    %586 = vmatpush1.msra.mxu0 0.0
    %587 = vmatprep.subr.mxu0 0.0
    %588 = vmatpush1.msra.mxu0 0.0
    %589 = vmatprep.subr.mxu0 0.0
    %590 = vmatpush1.msra.mxu0 0.0
    %591 = vmatprep.subr.mxu0 0.0
    %592 = vmatpush1.msra.mxu0 0.0
    %593 = vmatprep.subr.mxu0 0.0
    %594 = vmatpush1.msra.mxu0 0.0
    %595 = vmatprep.subr.mxu0 0.0
    %596 = vmatpush1.msra.mxu0 0.0
    %597 = vmatprep.subr.mxu0 0.0
    %598 = vmatpush1.msra.mxu0 0.0
    %599 = vmatprep.subr.mxu0 0.0
    %600 = vmatpush1.msra.mxu0 0.0
    %601 = vmatprep.subr.mxu0 0.0
    %602 = vmatpush1.msra.mxu0 0.0
    %603 = vmatprep.subr.mxu0 0.0
    %604 = vmatpush1.msra.mxu0 0.0
    %605 = vmatprep.subr.mxu0 0.0
    %606 = vmatpush1.msra.mxu0 0.0
    %607 = vmatprep.subr.mxu0 0.0
    %608 = vmatpush1.msra.mxu0 0.0
    %609 = vmatprep.subr.mxu0 0.0
    %610 = vmatpush1.msra.mxu0 0.0
    %611 = vmatprep.subr.mxu0 0.0
    %612 = vmatpush1.msra.mxu0 0.0
    %613 = vmatprep.subr.mxu0 0.0
    %614 = vmatpush1.msra.mxu0 0.0
    %615 = vmatprep.subr.mxu0 0.0
    %616 = vmatpush1.msra.mxu0 0.0
    %617 = vmatprep.mubr.f32.mxu0 0.0
    %618 = vmatmul.mubr.f32.gmra.mrb[0].mxu0 %v551
    %v619 = vpop.f32.mrb[0].mxu0
    %v620 = vadd.f32 0.0, %v619
    %v621 = vpop.f32.mrb[0].mxu0
    %622 = vdwg.mxu0
    %623 = vrot.lane.b32.xlu0 %v290, 112
    %v624 = vpop.permute.xlu0 %623
    %625 = vrot.lane.b32.xlu0 %v290, 80
    %v626 = vpop.permute.xlu0 %625
    %v627 = vsel %vm296, %v624, 0
    %v629 = vsel %vm296, %v626, 0
    %631 = vmatprep.subr.mxu0 0.0
    %632 = vmatpush1.xpose.msra.mxu0 %v629
    %633 = vmatprep.subr.mxu0 0.0
    %634 = vmatpush1.xpose.msra.mxu0 0.0
    %635 = vmatprep.subr.mxu0 0.0
    %636 = vmatpush1.xpose.msra.mxu0 0.0
    %637 = vmatprep.subr.mxu0 0.0
    %638 = vmatpush1.xpose.msra.mxu0 0.0
    %639 = vmatprep.subr.mxu0 0.0
    %640 = vmatpush1.xpose.msra.mxu0 0.0
    %641 = vmatprep.subr.mxu0 0.0
    %642 = vmatpush1.xpose.msra.mxu0 0.0
    %643 = vmatprep.subr.mxu0 0.0
    %644 = vmatpush1.xpose.msra.mxu0 0.0
    %645 = vmatprep.subr.mxu0 0.0
    %646 = vmatpush1.xpose.msra.mxu0 0.0
    %647 = vmatprep.subr.mxu0 0.0
    %648 = vmatpush1.xpose.msra.mxu0 0.0
    %649 = vmatprep.subr.mxu0 0.0
    %650 = vmatpush1.xpose.msra.mxu0 0.0
    %651 = vmatprep.subr.mxu0 0.0
    %652 = vmatpush1.xpose.msra.mxu0 0.0
    %653 = vmatprep.subr.mxu0 0.0
    %654 = vmatpush1.xpose.msra.mxu0 0.0
    %655 = vmatprep.subr.mxu0 0.0
    %656 = vmatpush1.xpose.msra.mxu0 0.0
    %657 = vmatprep.subr.mxu0 0.0
    %658 = vmatpush1.xpose.msra.mxu0 0.0
    %659 = vmatprep.subr.mxu0 0.0
    %660 = vmatpush1.xpose.msra.mxu0 0.0
    %661 = vmatprep.subr.mxu0 0.0
    %662 = vmatpush1.xpose.msra.mxu0 0.0
    %663 = vmatprep.subr.mxu0 0.0
    %664 = vmatpush1.xpose.msra.mxu0 0.0
    %665 = vmatprep.subr.mxu0 0.0
    %666 = vmatpush1.xpose.msra.mxu0 0.0
    %667 = vmatprep.subr.mxu0 0.0
    %668 = vmatpush1.xpose.msra.mxu0 0.0
    %669 = vmatprep.subr.mxu0 0.0
    %670 = vmatpush1.xpose.msra.mxu0 0.0
    %671 = vmatprep.subr.mxu0 0.0
    %672 = vmatpush1.xpose.msra.mxu0 0.0
    %673 = vmatprep.subr.mxu0 0.0
    %674 = vmatpush1.xpose.msra.mxu0 0.0
    %675 = vmatprep.subr.mxu0 0.0
    %676 = vmatpush1.xpose.msra.mxu0 0.0
    %677 = vmatprep.subr.mxu0 0.0
    %678 = vmatpush1.xpose.msra.mxu0 0.0
    %679 = vmatprep.subr.mxu0 0.0
    %680 = vmatpush1.xpose.msra.mxu0 0.0
    %681 = vmatprep.subr.mxu0 0.0
    %682 = vmatpush1.xpose.msra.mxu0 0.0
    %683 = vmatprep.subr.mxu0 0.0
    %684 = vmatpush1.xpose.msra.mxu0 0.0
    %685 = vmatprep.subr.mxu0 0.0
    %686 = vmatpush1.xpose.msra.mxu0 0.0
    %687 = vmatprep.subr.mxu0 0.0
    %688 = vmatpush1.xpose.msra.mxu0 0.0
    %689 = vmatprep.subr.mxu0 0.0
    %690 = vmatpush1.xpose.msra.mxu0 0.0
    %691 = vmatprep.subr.mxu0 0.0
    %692 = vmatpush1.xpose.msra.mxu0 0.0
    %693 = vmatprep.subr.mxu0 0.0
    %694 = vmatpush1.xpose.msra.mxu0 0.0
    %695 = vmatprep.mubr.f32.mxu0 0.0
    %696 = vmatmul.mubr.f32.gmra.mrb[0].mxu0 %v627
    %v697 = vpop.f32.mrb[0].mxu0
    %v698 = vadd.f32 %v214, %v697
    %v699 = vpop.f32.mrb[0].mxu0
    %700 = vdwg.mxu0
    %v701 = vsel %vm296, %v698, -inf
    %702 = vmax.xlane.f32.xlu0 %v701
    %v703 = vpop.xlane.xlu0 %702
    %v704 = vsub.f32 %v698, %v703
    %v705 = vmul.f32 %v704, 1.442695
    %v706 = vpow.pop %v705
    %v707 = vsel %vm296, %v706, 0.0
    %708 = vadd.xlane.f32.xlu0 %v707
    %v709 = vpop.xlane.xlu0 %708
    %v710 = vrcp.pop %v709
    %v711 = vmul.f32 %v706, %v710
    %712 = vrot.lane.b32.xlu0 %v290, 48
    %v713 = vpop.permute.xlu0 %712
    %v716 = vsel %vm296, %v711, 0
    %718 = vmatprep.subr.mxu0 0.0
    %719 = vmatpush1.msra.mxu0 %v713
    %720 = vmatprep.subr.mxu0 0.0
    %721 = vmatpush1.msra.mxu0 0.0
    %722 = vmatprep.subr.mxu0 0.0
    %723 = vmatpush1.msra.mxu0 0.0
    %724 = vmatprep.subr.mxu0 0.0
    %725 = vmatpush1.msra.mxu0 0.0
    %726 = vmatprep.subr.mxu0 0.0
    %727 = vmatpush1.msra.mxu0 0.0
    %728 = vmatprep.subr.mxu0 0.0
    %729 = vmatpush1.msra.mxu0 0.0
    %730 = vmatprep.subr.mxu0 0.0
    %731 = vmatpush1.msra.mxu0 0.0
    %732 = vmatprep.subr.mxu0 0.0
    %733 = vmatpush1.msra.mxu0 0.0
    %734 = vmatprep.subr.mxu0 0.0
    %735 = vmatpush1.msra.mxu0 0.0
    %736 = vmatprep.subr.mxu0 0.0
    %737 = vmatpush1.msra.mxu0 0.0
    %738 = vmatprep.subr.mxu0 0.0
    %739 = vmatpush1.msra.mxu0 0.0
    %740 = vmatprep.subr.mxu0 0.0
    %741 = vmatpush1.msra.mxu0 0.0
    %742 = vmatprep.subr.mxu0 0.0
    %743 = vmatpush1.msra.mxu0 0.0
    %744 = vmatprep.subr.mxu0 0.0
    %745 = vmatpush1.msra.mxu0 0.0
    %746 = vmatprep.subr.mxu0 0.0
    %747 = vmatpush1.msra.mxu0 0.0
    %748 = vmatprep.subr.mxu0 0.0
    %749 = vmatpush1.msra.mxu0 0.0
    %750 = vmatprep.subr.mxu0 0.0
    %751 = vmatpush1.msra.mxu0 0.0
    %752 = vmatprep.subr.mxu0 0.0
    %753 = vmatpush1.msra.mxu0 0.0
    %754 = vmatprep.subr.mxu0 0.0
    %755 = vmatpush1.msra.mxu0 0.0
    %756 = vmatprep.subr.mxu0 0.0
    %757 = vmatpush1.msra.mxu0 0.0
    %758 = vmatprep.subr.mxu0 0.0
    %759 = vmatpush1.msra.mxu0 0.0
    %760 = vmatprep.subr.mxu0 0.0
    %761 = vmatpush1.msra.mxu0 0.0
    %762 = vmatprep.subr.mxu0 0.0
    %763 = vmatpush1.msra.mxu0 0.0
    %764 = vmatprep.subr.mxu0 0.0
    %765 = vmatpush1.msra.mxu0 0.0
    %766 = vmatprep.subr.mxu0 0.0
    %767 = vmatpush1.msra.mxu0 0.0
    %768 = vmatprep.subr.mxu0 0.0
    %769 = vmatpush1.msra.mxu0 0.0
    %770 = vmatprep.subr.mxu0 0.0
    %771 = vmatpush1.msra.mxu0 0.0
    %772 = vmatprep.subr.mxu0 0.0
    %773 = vmatpush1.msra.mxu0 0.0
    %774 = vmatprep.subr.mxu0 0.0
    %775 = vmatpush1.msra.mxu0 0.0
    %776 = vmatprep.subr.mxu0 0.0
    %777 = vmatpush1.msra.mxu0 0.0
    %778 = vmatprep.subr.mxu0 0.0
    %779 = vmatpush1.msra.mxu0 0.0
    %780 = vmatprep.subr.mxu0 0.0
    %781 = vmatpush1.msra.mxu0 0.0
    %782 = vmatprep.mubr.f32.mxu0 0.0
    %783 = vmatmul.mubr.f32.gmra.mrb[0].mxu0 %v716
    %v784 = vpop.f32.mrb[0].mxu0
    %v785 = vadd.f32 0.0, %v784
    %v786 = vpop.f32.mrb[0].mxu0
    %787 = vdwg.mxu0
    %788 = vrot.lane.b32.xlu0 %v290, 104
    %v789 = vpop.permute.xlu0 %788
    %790 = vrot.lane.b32.xlu0 %v290, 72
    %v791 = vpop.permute.xlu0 %790
    %v792 = vsel %vm296, %v789, 0
    %v794 = vsel %vm296, %v791, 0
    %796 = vmatprep.subr.mxu0 0.0
    %797 = vmatpush1.xpose.msra.mxu0 %v794
    %798 = vmatprep.subr.mxu0 0.0
    %799 = vmatpush1.xpose.msra.mxu0 0.0
    %800 = vmatprep.subr.mxu0 0.0
    %801 = vmatpush1.xpose.msra.mxu0 0.0
    %802 = vmatprep.subr.mxu0 0.0
    %803 = vmatpush1.xpose.msra.mxu0 0.0
    %804 = vmatprep.subr.mxu0 0.0
    %805 = vmatpush1.xpose.msra.mxu0 0.0
    %806 = vmatprep.subr.mxu0 0.0
    %807 = vmatpush1.xpose.msra.mxu0 0.0
    %808 = vmatprep.subr.mxu0 0.0
    %809 = vmatpush1.xpose.msra.mxu0 0.0
    %810 = vmatprep.subr.mxu0 0.0
    %811 = vmatpush1.xpose.msra.mxu0 0.0
    %812 = vmatprep.subr.mxu0 0.0
    %813 = vmatpush1.xpose.msra.mxu0 0.0
    %814 = vmatprep.subr.mxu0 0.0
    %815 = vmatpush1.xpose.msra.mxu0 0.0
    %816 = vmatprep.subr.mxu0 0.0
    %817 = vmatpush1.xpose.msra.mxu0 0.0
    %818 = vmatprep.subr.mxu0 0.0
    %819 = vmatpush1.xpose.msra.mxu0 0.0
    %820 = vmatprep.subr.mxu0 0.0
    %821 = vmatpush1.xpose.msra.mxu0 0.0
    %822 = vmatprep.subr.mxu0 0.0
    %823 = vmatpush1.xpose.msra.mxu0 0.0
    %824 = vmatprep.subr.mxu0 0.0
    %825 = vmatpush1.xpose.msra.mxu0 0.0
    %826 = vmatprep.subr.mxu0 0.0
    %827 = vmatpush1.xpose.msra.mxu0 0.0
    %828 = vmatprep.subr.mxu0 0.0
    %829 = vmatpush1.xpose.msra.mxu0 0.0
    %830 = vmatprep.subr.mxu0 0.0
    %831 = vmatpush1.xpose.msra.mxu0 0.0
    %832 = vmatprep.subr.mxu0 0.0
    %833 = vmatpush1.xpose.msra.mxu0 0.0
    %834 = vmatprep.subr.mxu0 0.0
    %835 = vmatpush1.xpose.msra.mxu0 0.0
    %836 = vmatprep.subr.mxu0 0.0
    %837 = vmatpush1.xpose.msra.mxu0 0.0
    %838 = vmatprep.subr.mxu0 0.0
    %839 = vmatpush1.xpose.msra.mxu0 0.0
    %840 = vmatprep.subr.mxu0 0.0
    %841 = vmatpush1.xpose.msra.mxu0 0.0
    %842 = vmatprep.subr.mxu0 0.0
    %843 = vmatpush1.xpose.msra.mxu0 0.0
    %844 = vmatprep.subr.mxu0 0.0
    %845 = vmatpush1.xpose.msra.mxu0 0.0
    %846 = vmatprep.subr.mxu0 0.0
    %847 = vmatpush1.xpose.msra.mxu0 0.0
    %848 = vmatprep.subr.mxu0 0.0
    %849 = vmatpush1.xpose.msra.mxu0 0.0
    %850 = vmatprep.subr.mxu0 0.0
    %851 = vmatpush1.xpose.msra.mxu0 0.0
    %852 = vmatprep.subr.mxu0 0.0
    %853 = vmatpush1.xpose.msra.mxu0 0.0
    %854 = vmatprep.subr.mxu0 0.0
    %855 = vmatpush1.xpose.msra.mxu0 0.0
    %856 = vmatprep.subr.mxu0 0.0
    %857 = vmatpush1.xpose.msra.mxu0 0.0
    %858 = vmatprep.subr.mxu0 0.0
    %859 = vmatpush1.xpose.msra.mxu0 0.0
    %860 = vmatprep.mubr.f32.mxu0 0.0
    %861 = vmatmul.mubr.f32.gmra.mrb[0].mxu0 %v792
    %v862 = vpop.f32.mrb[0].mxu0
    %v863 = vadd.f32 %v214, %v862
    %v864 = vpop.f32.mrb[0].mxu0
    %865 = vdwg.mxu0
    %v866 = vsel %vm296, %v863, -inf
    %867 = vmax.xlane.f32.xlu0 %v866
    %v868 = vpop.xlane.xlu0 %867
    %v869 = vsub.f32 %v863, %v868
    %v870 = vmul.f32 %v869, 1.442695
    %v871 = vpow.pop %v870
    %v872 = vsel %vm296, %v871, 0.0
    %873 = vadd.xlane.f32.xlu0 %v872
    %v874 = vpop.xlane.xlu0 %873
    %v875 = vrcp.pop %v874
    %v876 = vmul.f32 %v871, %v875
    %877 = vrot.lane.b32.xlu0 %v290, 40
    %v878 = vpop.permute.xlu0 %877
    %v881 = vsel %vm296, %v876, 0
    %883 = vmatprep.subr.mxu0 0.0
    %884 = vmatpush1.msra.mxu0 %v878
    %885 = vmatprep.subr.mxu0 0.0
    %886 = vmatpush1.msra.mxu0 0.0
    %887 = vmatprep.subr.mxu0 0.0
    %888 = vmatpush1.msra.mxu0 0.0
    %889 = vmatprep.subr.mxu0 0.0
    %890 = vmatpush1.msra.mxu0 0.0
    %891 = vmatprep.subr.mxu0 0.0
    %892 = vmatpush1.msra.mxu0 0.0
    %893 = vmatprep.subr.mxu0 0.0
    %894 = vmatpush1.msra.mxu0 0.0
    %895 = vmatprep.subr.mxu0 0.0
    %896 = vmatpush1.msra.mxu0 0.0
    %897 = vmatprep.subr.mxu0 0.0
    %898 = vmatpush1.msra.mxu0 0.0
    %899 = vmatprep.subr.mxu0 0.0
    %900 = vmatpush1.msra.mxu0 0.0
    %901 = vmatprep.subr.mxu0 0.0
    %902 = vmatpush1.msra.mxu0 0.0
    %903 = vmatprep.subr.mxu0 0.0
    %904 = vmatpush1.msra.mxu0 0.0
    %905 = vmatprep.subr.mxu0 0.0
    %906 = vmatpush1.msra.mxu0 0.0
    %907 = vmatprep.subr.mxu0 0.0
    %908 = vmatpush1.msra.mxu0 0.0
    %909 = vmatprep.subr.mxu0 0.0
    %910 = vmatpush1.msra.mxu0 0.0
    %911 = vmatprep.subr.mxu0 0.0
    %912 = vmatpush1.msra.mxu0 0.0
    %913 = vmatprep.subr.mxu0 0.0
    %914 = vmatpush1.msra.mxu0 0.0
    %915 = vmatprep.subr.mxu0 0.0
    %916 = vmatpush1.msra.mxu0 0.0
    %917 = vmatprep.subr.mxu0 0.0
    %918 = vmatpush1.msra.mxu0 0.0
    %919 = vmatprep.subr.mxu0 0.0
    %920 = vmatpush1.msra.mxu0 0.0
    %921 = vmatprep.subr.mxu0 0.0
    %922 = vmatpush1.msra.mxu0 0.0
    %923 = vmatprep.subr.mxu0 0.0
    %924 = vmatpush1.msra.mxu0 0.0
    %925 = vmatprep.subr.mxu0 0.0
    %926 = vmatpush1.msra.mxu0 0.0
    %927 = vmatprep.subr.mxu0 0.0
    %928 = vmatpush1.msra.mxu0 0.0
    %929 = vmatprep.subr.mxu0 0.0
    %930 = vmatpush1.msra.mxu0 0.0
    %931 = vmatprep.subr.mxu0 0.0
    %932 = vmatpush1.msra.mxu0 0.0
    %933 = vmatprep.subr.mxu0 0.0
    %934 = vmatpush1.msra.mxu0 0.0
    %935 = vmatprep.subr.mxu0 0.0
    %936 = vmatpush1.msra.mxu0 0.0
    %937 = vmatprep.subr.mxu0 0.0
    %938 = vmatpush1.msra.mxu0 0.0
    %939 = vmatprep.subr.mxu0 0.0
    %940 = vmatpush1.msra.mxu0 0.0
    %941 = vmatprep.subr.mxu0 0.0
    %942 = vmatpush1.msra.mxu0 0.0
    %943 = vmatprep.subr.mxu0 0.0
    %944 = vmatpush1.msra.mxu0 0.0
    %945 = vmatprep.subr.mxu0 0.0
    %946 = vmatpush1.msra.mxu0 0.0
    %947 = vmatprep.mubr.f32.mxu0 0.0
    %948 = vmatmul.mubr.f32.gmra.mrb[0].mxu0 %v881
    %v949 = vpop.f32.mrb[0].mxu0
    %v950 = vadd.f32 0.0, %v949
    %v951 = vpop.f32.mrb[0].mxu0
    %952 = vdwg.mxu0
    %954 = vrot.lane.b32.xlu0 %v620, 8
    %v955 = vpop.permute.xlu0 %954
    %958 = vrot.lane.b32.xlu0 %v785, 16
    %v959 = vpop.permute.xlu0 %958
    %962 = vrot.lane.b32.xlu0 %v950, 24
    %v963 = vpop.permute.xlu0 %962
    %v965 = vsel %vm296, %v455, %v955
    %vm966 = vcmask 130048
    %v967 = vsel %vm966, %v965, %v959
    %vm968 = vcmask 195584
    %v969 = vsel %vm968, %v967, %v963
    %v970 = vlaneseq
    %v971 = vshrl.u32 %v970, 7
    %v972 = vsub.s32 0, %v971
    %v973 = vrot.slane %v94, %v972
    %v975 = vsel %vm219, %v969, 0
    %977 = vmatprep.subr.mxu0 0.0
    %978 = vmatpush1.msra.mxu0 %v77
    %979 = vmatprep.subr.mxu0 0.0
    %980 = vmatpush1.msra.mxu0 %v78
    %981 = vmatprep.subr.mxu0 0.0
    %982 = vmatpush1.msra.mxu0 %v79
    %983 = vmatprep.subr.mxu0 0.0
    %984 = vmatpush1.msra.mxu0 %v80
    %985 = vmatprep.subr.mxu0 0.0
    %986 = vmatpush1.msra.mxu0 0.0
    %987 = vmatprep.subr.mxu0 0.0
    %988 = vmatpush1.msra.mxu0 0.0
    %989 = vmatprep.subr.mxu0 0.0
    %990 = vmatpush1.msra.mxu0 0.0
    %991 = vmatprep.subr.mxu0 0.0
    %992 = vmatpush1.msra.mxu0 0.0
    %993 = vmatprep.subr.mxu0 0.0
    %994 = vmatpush1.msra.mxu0 0.0
    %995 = vmatprep.subr.mxu0 0.0
    %996 = vmatpush1.msra.mxu0 0.0
    %997 = vmatprep.subr.mxu0 0.0
    %998 = vmatpush1.msra.mxu0 0.0
    %999 = vmatprep.subr.mxu0 0.0
    %1000 = vmatpush1.msra.mxu0 0.0
    %1001 = vmatprep.subr.mxu0 0.0
    %1002 = vmatpush1.msra.mxu0 0.0
    %1003 = vmatprep.subr.mxu0 0.0
    %1004 = vmatpush1.msra.mxu0 0.0
    %1005 = vmatprep.subr.mxu0 0.0
    %1006 = vmatpush1.msra.mxu0 0.0
    %1007 = vmatprep.subr.mxu0 0.0
    %1008 = vmatpush1.msra.mxu0 0.0
    %1009 = vmatprep.subr.mxu0 0.0
    %1010 = vmatpush1.msra.mxu0 0.0
    %1011 = vmatprep.subr.mxu0 0.0
    %1012 = vmatpush1.msra.mxu0 0.0
    %1013 = vmatprep.subr.mxu0 0.0
    %1014 = vmatpush1.msra.mxu0 0.0
    %1015 = vmatprep.subr.mxu0 0.0
    %1016 = vmatpush1.msra.mxu0 0.0
    %1017 = vmatprep.subr.mxu0 0.0
    %1018 = vmatpush1.msra.mxu0 0.0
    %1019 = vmatprep.subr.mxu0 0.0
    %1020 = vmatpush1.msra.mxu0 0.0
    %1021 = vmatprep.subr.mxu0 0.0
    %1022 = vmatpush1.msra.mxu0 0.0
    %1023 = vmatprep.subr.mxu0 0.0
    %1024 = vmatpush1.msra.mxu0 0.0
    %1025 = vmatprep.subr.mxu0 0.0
    %1026 = vmatpush1.msra.mxu0 0.0
    %1027 = vmatprep.subr.mxu0 0.0
    %1028 = vmatpush1.msra.mxu0 0.0
    %1029 = vmatprep.subr.mxu0 0.0
    %1030 = vmatpush1.msra.mxu0 0.0
    %1031 = vmatprep.subr.mxu0 0.0
    %1032 = vmatpush1.msra.mxu0 0.0
    %1033 = vmatprep.subr.mxu0 0.0
    %1034 = vmatpush1.msra.mxu0 0.0
    %1035 = vmatprep.subr.mxu0 0.0
    %1036 = vmatpush1.msra.mxu0 0.0
    %1037 = vmatprep.subr.mxu0 0.0
    %1038 = vmatpush1.msra.mxu0 0.0
    %1039 = vmatprep.subr.mxu0 0.0
    %1040 = vmatpush1.msra.mxu0 0.0
    %1041 = vmatprep.mubr.f32.mxu0 0.0
    %1042 = vmatmul.mubr.f32.gmra.mrb[0].mxu0 %v975
    %v1043 = vpop.f32.mrb[0].mxu0
    %v1044 = vadd.f32 %v973, %v1043
    %v1045 = vpop.f32.mrb[0].mxu0
    %1046 = vdwg.mxu0
    %v1047 = vadd.f32 %v212, %v1044
    %v1048 = vsel %vm219, %v1047, 0.0
    %1049 = vadd.xlane.f32.xlu0 %v1048
    %v1050 = vpop.xlane.xlu0 %1049
    %v1051 = vrcp.pop 32.0
    %v1052 = vmul.f32 %v1050, %v1051
    %v1053 = vmul.f32 %v1047, %v1047
    %v1054 = vsel %vm219, %v1053, 0.0
    %1055 = vadd.xlane.f32.xlu0 %v1054
    %v1056 = vpop.xlane.xlu0 %1055
    %v1057 = vmul.f32 %v1056, %v1051
    %v1058 = vmul.f32 %v1052, %v1052
    %v1059 = vsub.f32 %v1057, %v1058
    %v1060 = vsub.f32 %v1047, %v1052
    %v1061 = vadd.f32 %v1059, 1e-05
    %v1062 = vrsqrt.pop %v1061
    %v1063 = vmul.f32 %v1060, %v1062
    %v1064 = vlaneseq
    %v1065 = vshrl.u32 %v1064, 7
    %v1066 = vsub.s32 0, %v1065
    %v1067 = vrot.slane %v95, %v1066
    %v1068 = vmul.f32 %v1063, %v1067
    %v1069 = vlaneseq
    %v1070 = vshrl.u32 %v1069, 7
    %v1071 = vsub.s32 0, %v1070
    %v1072 = vrot.slane %v96, %v1071
    %v1073 = vadd.f32 %v1068, %v1072
    %v1074 = vlaneseq
    %v1075 = vshrl.u32 %v1074, 7
    %v1076 = vsub.s32 0, %v1075
    %v1077 = vrot.slane %v97, %v1076
    %v1079 = vsel %vm219, %v1073, 0
    %1081 = vmatprep.subr.mxu0 0.0
    %1082 = vmatpush1.msra.mxu0 %v81
    %1083 = vmatprep.subr.mxu0 0.0
    %1084 = vmatpush1.msra.mxu0 %v82
    %1085 = vmatprep.subr.mxu0 0.0
    %1086 = vmatpush1.msra.mxu0 %v83
    %1087 = vmatprep.subr.mxu0 0.0
    %1088 = vmatpush1.msra.mxu0 %v84
    %1089 = vmatprep.subr.mxu0 0.0
    %1090 = vmatpush1.msra.mxu0 0.0
    %1091 = vmatprep.subr.mxu0 0.0
    %1092 = vmatpush1.msra.mxu0 0.0
    %1093 = vmatprep.subr.mxu0 0.0
    %1094 = vmatpush1.msra.mxu0 0.0
    %1095 = vmatprep.subr.mxu0 0.0
    %1096 = vmatpush1.msra.mxu0 0.0
    %1097 = vmatprep.subr.mxu0 0.0
    %1098 = vmatpush1.msra.mxu0 0.0
    %1099 = vmatprep.subr.mxu0 0.0
    %1100 = vmatpush1.msra.mxu0 0.0
    %1101 = vmatprep.subr.mxu0 0.0
    %1102 = vmatpush1.msra.mxu0 0.0
    %1103 = vmatprep.subr.mxu0 0.0
    %1104 = vmatpush1.msra.mxu0 0.0
    %1105 = vmatprep.subr.mxu0 0.0
    %1106 = vmatpush1.msra.mxu0 0.0
    %1107 = vmatprep.subr.mxu0 0.0
    %1108 = vmatpush1.msra.mxu0 0.0
    %1109 = vmatprep.subr.mxu0 0.0
    %1110 = vmatpush1.msra.mxu0 0.0
    %1111 = vmatprep.subr.mxu0 0.0
    %1112 = vmatpush1.msra.mxu0 0.0
    %1113 = vmatprep.subr.mxu0 0.0
    %1114 = vmatpush1.msra.mxu0 0.0
    %1115 = vmatprep.subr.mxu0 0.0
    %1116 = vmatpush1.msra.mxu0 0.0
    %1117 = vmatprep.subr.mxu0 0.0
    %1118 = vmatpush1.msra.mxu0 0.0
    %1119 = vmatprep.subr.mxu0 0.0
    %1120 = vmatpush1.msra.mxu0 0.0
    %1121 = vmatprep.subr.mxu0 0.0
    %1122 = vmatpush1.msra.mxu0 0.0
    %1123 = vmatprep.subr.mxu0 0.0
    %1124 = vmatpush1.msra.mxu0 0.0
    %1125 = vmatprep.subr.mxu0 0.0
    %1126 = vmatpush1.msra.mxu0 0.0
    %1127 = vmatprep.subr.mxu0 0.0
    %1128 = vmatpush1.msra.mxu0 0.0
    %1129 = vmatprep.subr.mxu0 0.0
    %1130 = vmatpush1.msra.mxu0 0.0
    %1131 = vmatprep.subr.mxu0 0.0
    %1132 = vmatpush1.msra.mxu0 0.0
    %1133 = vmatprep.subr.mxu0 0.0
    %1134 = vmatpush1.msra.mxu0 0.0
    %1135 = vmatprep.subr.mxu0 0.0
    %1136 = vmatpush1.msra.mxu0 0.0
    %1137 = vmatprep.subr.mxu0 0.0
    %1138 = vmatpush1.msra.mxu0 0.0
    %1139 = vmatprep.subr.mxu0 0.0
    %1140 = vmatpush1.msra.mxu0 0.0
    %1141 = vmatprep.subr.mxu0 0.0
    %1142 = vmatpush1.msra.mxu0 0.0
    %1143 = vmatprep.subr.mxu0 0.0
    %1144 = vmatpush1.msra.mxu0 0.0
    %1145 = vmatprep.mubr.f32.mxu0 0.0
    %1146 = vmatmul.mubr.f32.gmra.mrb[0].mxu0 %v1079
    %v1147 = vpop.f32.mrb[0].mxu0
    %v1148 = vadd.f32 %v1077, %v1147
    %v1149 = vpop.f32.mrb[0].mxu0
    %1150 = vdwg.mxu0
    %v1151 = vmax.f32 %v1148, 0.0
    %v1152 = vlaneseq
    %v1153 = vshrl.u32 %v1152, 7
    %v1154 = vsub.s32 0, %v1153
    %v1155 = vrot.slane %v98, %v1154
    %vm1156 = vcmask 523264
    %v1158 = vsel %vm1156, %v1151, 0
    %1160 = vmatprep.subr.mxu0 0.0
    %1161 = vmatpush1.msra.mxu0 %v85
    %1162 = vmatprep.subr.mxu0 0.0
    %1163 = vmatpush1.msra.mxu0 %v86
    %1164 = vmatprep.subr.mxu0 0.0
    %1165 = vmatpush1.msra.mxu0 %v87
    %1166 = vmatprep.subr.mxu0 0.0
    %1167 = vmatpush1.msra.mxu0 %v88
    %1168 = vmatprep.subr.mxu0 0.0
    %1169 = vmatpush1.msra.mxu0 %v89
    %1170 = vmatprep.subr.mxu0 0.0
    %1171 = vmatpush1.msra.mxu0 %v90
    %1172 = vmatprep.subr.mxu0 0.0
    %1173 = vmatpush1.msra.mxu0 %v91
    %1174 = vmatprep.subr.mxu0 0.0
    %1175 = vmatpush1.msra.mxu0 %v92
    %1176 = vmatprep.subr.mxu0 0.0
    %1177 = vmatpush1.msra.mxu0 0.0
    %1178 = vmatprep.subr.mxu0 0.0
    %1179 = vmatpush1.msra.mxu0 0.0
    %1180 = vmatprep.subr.mxu0 0.0
    %1181 = vmatpush1.msra.mxu0 0.0
    %1182 = vmatprep.subr.mxu0 0.0
    %1183 = vmatpush1.msra.mxu0 0.0
    %1184 = vmatprep.subr.mxu0 0.0
    %1185 = vmatpush1.msra.mxu0 0.0
    %1186 = vmatprep.subr.mxu0 0.0
    %1187 = vmatpush1.msra.mxu0 0.0
    %1188 = vmatprep.subr.mxu0 0.0
    %1189 = vmatpush1.msra.mxu0 0.0
    %1190 = vmatprep.subr.mxu0 0.0
    %1191 = vmatpush1.msra.mxu0 0.0
    %1192 = vmatprep.subr.mxu0 0.0
    %1193 = vmatpush1.msra.mxu0 0.0
    %1194 = vmatprep.subr.mxu0 0.0
    %1195 = vmatpush1.msra.mxu0 0.0
    %1196 = vmatprep.subr.mxu0 0.0
    %1197 = vmatpush1.msra.mxu0 0.0
    %1198 = vmatprep.subr.mxu0 0.0
    %1199 = vmatpush1.msra.mxu0 0.0
    %1200 = vmatprep.subr.mxu0 0.0
    %1201 = vmatpush1.msra.mxu0 0.0
    %1202 = vmatprep.subr.mxu0 0.0
    %1203 = vmatpush1.msra.mxu0 0.0
    %1204 = vmatprep.subr.mxu0 0.0
    %1205 = vmatpush1.msra.mxu0 0.0
    %1206 = vmatprep.subr.mxu0 0.0
    %1207 = vmatpush1.msra.mxu0 0.0
    %1208 = vmatprep.subr.mxu0 0.0
    %1209 = vmatpush1.msra.mxu0 0.0
    %1210 = vmatprep.subr.mxu0 0.0
    %1211 = vmatpush1.msra.mxu0 0.0
    %1212 = vmatprep.subr.mxu0 0.0
    %1213 = vmatpush1.msra.mxu0 0.0
    %1214 = vmatprep.subr.mxu0 0.0
    %1215 = vmatpush1.msra.mxu0 0.0
    %1216 = vmatprep.subr.mxu0 0.0
    %1217 = vmatpush1.msra.mxu0 0.0
    %1218 = vmatprep.subr.mxu0 0.0
    %1219 = vmatpush1.msra.mxu0 0.0
    %1220 = vmatprep.subr.mxu0 0.0
    %1221 = vmatpush1.msra.mxu0 0.0
    %1222 = vmatprep.subr.mxu0 0.0
    %1223 = vmatpush1.msra.mxu0 0.0
    %1224 = vmatprep.mubr.f32.mxu0 0.0
    %1225 = vmatmul.mubr.f32.gmra.mrb[0].mxu0 %v1158
    %v1226 = vpop.f32.mrb[0].mxu0
    %v1227 = vadd.f32 %v1155, %v1226
    %v1228 = vpop.f32.mrb[0].mxu0
    %1229 = vdwg.mxu0
    %v1230 = vadd.f32 %v1073, %v1227
    %v1231 = vsel %vm219, %v1230, 0.0
    %1232 = vadd.xlane.f32.xlu0 %v1231
    %v1233 = vpop.xlane.xlu0 %1232
    %v1234 = vmul.f32 %v1233, %v1051
    %v1235 = vmul.f32 %v1230, %v1230
    %v1236 = vsel %vm219, %v1235, 0.0
    %1237 = vadd.xlane.f32.xlu0 %v1236
    %v1238 = vpop.xlane.xlu0 %1237
    %v1239 = vmul.f32 %v1238, %v1051
    %v1240 = vmul.f32 %v1234, %v1234
    %v1241 = vsub.f32 %v1239, %v1240
    %v1242 = vsub.f32 %v1230, %v1234
    %v1243 = vadd.f32 %v1241, 1e-05
    %v1244 = vrsqrt.pop %v1243
    %v1245 = vmul.f32 %v1242, %v1244
    %v1246 = vlaneseq
    %v1247 = vshrl.u32 %v1246, 7
    %v1248 = vsub.s32 0, %v1247
    %v1249 = vrot.slane %v99, %v1248
    %v1250 = vmul.f32 %v1245, %v1249
    %v1251 = vlaneseq
    %v1252 = vshrl.u32 %v1251, 7
    %v1253 = vsub.s32 0, %v1252
    %v1254 = vrot.slane %v100, %v1253
    %v1255 = vadd.f32 %v1250, %v1254
    %v1256 = vlaneseq
    %v1257 = vshrl.u32 %v1256, 7
    %v1258 = vsub.s32 0, %v1257
    %v1259 = vrot.slane %v125, %v1258
    %v1261 = vsel %vm219, %v1255, 0
    %1263 = vmatprep.subr.mxu0 0.0
    %1264 = vmatpush1.msra.mxu0 %v102
    %1265 = vmatprep.subr.mxu0 0.0
    %1266 = vmatpush1.msra.mxu0 %v103
    %1267 = vmatprep.subr.mxu0 0.0
    %1268 = vmatpush1.msra.mxu0 %v104
    %1269 = vmatprep.subr.mxu0 0.0
    %1270 = vmatpush1.msra.mxu0 %v105
    %1271 = vmatprep.subr.mxu0 0.0
    %1272 = vmatpush1.msra.mxu0 0.0
    %1273 = vmatprep.subr.mxu0 0.0
    %1274 = vmatpush1.msra.mxu0 0.0
    %1275 = vmatprep.subr.mxu0 0.0
    %1276 = vmatpush1.msra.mxu0 0.0
    %1277 = vmatprep.subr.mxu0 0.0
    %1278 = vmatpush1.msra.mxu0 0.0
    %1279 = vmatprep.subr.mxu0 0.0
    %1280 = vmatpush1.msra.mxu0 0.0
    %1281 = vmatprep.subr.mxu0 0.0
    %1282 = vmatpush1.msra.mxu0 0.0
    %1283 = vmatprep.subr.mxu0 0.0
    %1284 = vmatpush1.msra.mxu0 0.0
    %1285 = vmatprep.subr.mxu0 0.0
    %1286 = vmatpush1.msra.mxu0 0.0
    %1287 = vmatprep.subr.mxu0 0.0
    %1288 = vmatpush1.msra.mxu0 0.0
    %1289 = vmatprep.subr.mxu0 0.0
    %1290 = vmatpush1.msra.mxu0 0.0
    %1291 = vmatprep.subr.mxu0 0.0
    %1292 = vmatpush1.msra.mxu0 0.0
    %1293 = vmatprep.subr.mxu0 0.0
    %1294 = vmatpush1.msra.mxu0 0.0
    %1295 = vmatprep.subr.mxu0 0.0
    %1296 = vmatpush1.msra.mxu0 0.0
    %1297 = vmatprep.subr.mxu0 0.0
    %1298 = vmatpush1.msra.mxu0 0.0
    %1299 = vmatprep.subr.mxu0 0.0
    %1300 = vmatpush1.msra.mxu0 0.0
    %1301 = vmatprep.subr.mxu0 0.0
    %1302 = vmatpush1.msra.mxu0 0.0
    %1303 = vmatprep.subr.mxu0 0.0
    %1304 = vmatpush1.msra.mxu0 0.0
    %1305 = vmatprep.subr.mxu0 0.0
    %1306 = vmatpush1.msra.mxu0 0.0
    %1307 = vmatprep.subr.mxu0 0.0
    %1308 = vmatpush1.msra.mxu0 0.0
    %1309 = vmatprep.subr.mxu0 0.0
    %1310 = vmatpush1.msra.mxu0 0.0
    %1311 = vmatprep.subr.mxu0 0.0
    %1312 = vmatpush1.msra.mxu0 0.0
    %1313 = vmatprep.subr.mxu0 0.0
    %1314 = vmatpush1.msra.mxu0 0.0
    %1315 = vmatprep.subr.mxu0 0.0
    %1316 = vmatpush1.msra.mxu0 0.0
    %1317 = vmatprep.subr.mxu0 0.0
    %1318 = vmatpush1.msra.mxu0 0.0
    %1319 = vmatprep.subr.mxu0 0.0
    %1320 = vmatpush1.msra.mxu0 0.0
    %1321 = vmatprep.subr.mxu0 0.0
    %1322 = vmatpush1.msra.mxu0 0.0
    %1323 = vmatprep.subr.mxu0 0.0
    %1324 = vmatpush1.msra.mxu0 0.0
    %1325 = vmatprep.subr.mxu0 0.0
    %1326 = vmatpush1.msra.mxu0 0.0
    %1327 = vmatprep.mubr.f32.mxu0 0.0
    %1328 = vmatmul.mubr.f32.gmra.mrb[0].mxu0 %v1261
    %v1329 = vpop.f32.mrb[0].mxu0
    %v1330 = vadd.f32 %v1259, %v1329
    %v1331 = vpop.f32.mrb[0].mxu0
    %1332 = vdwg.mxu0
    %1334 = vrot.lane.b32.xlu0 %v1330, 96
    %v1335 = vpop.permute.xlu0 %1334
    %v1336 = vsel %vm296, %v1330, 0
    %v1338 = vsel %vm296, %v1335, 0
    %1340 = vmatprep.subr.mxu0 0.0
    %1341 = vmatpush1.xpose.msra.mxu0 %v1338
    %1342 = vmatprep.subr.mxu0 0.0
    %1343 = vmatpush1.xpose.msra.mxu0 0.0
    %1344 = vmatprep.subr.mxu0 0.0
    %1345 = vmatpush1.xpose.msra.mxu0 0.0
    %1346 = vmatprep.subr.mxu0 0.0
    %1347 = vmatpush1.xpose.msra.mxu0 0.0
    %1348 = vmatprep.subr.mxu0 0.0
    %1349 = vmatpush1.xpose.msra.mxu0 0.0
    %1350 = vmatprep.subr.mxu0 0.0
    %1351 = vmatpush1.xpose.msra.mxu0 0.0
    %1352 = vmatprep.subr.mxu0 0.0
    %1353 = vmatpush1.xpose.msra.mxu0 0.0
    %1354 = vmatprep.subr.mxu0 0.0
    %1355 = vmatpush1.xpose.msra.mxu0 0.0
    %1356 = vmatprep.subr.mxu0 0.0
    %1357 = vmatpush1.xpose.msra.mxu0 0.0
    %1358 = vmatprep.subr.mxu0 0.0
    %1359 = vmatpush1.xpose.msra.mxu0 0.0
    %1360 = vmatprep.subr.mxu0 0.0
    %1361 = vmatpush1.xpose.msra.mxu0 0.0
    %1362 = vmatprep.subr.mxu0 0.0
    %1363 = vmatpush1.xpose.msra.mxu0 0.0
    %1364 = vmatprep.subr.mxu0 0.0
    %1365 = vmatpush1.xpose.msra.mxu0 0.0
    %1366 = vmatprep.subr.mxu0 0.0
    %1367 = vmatpush1.xpose.msra.mxu0 0.0
    %1368 = vmatprep.subr.mxu0 0.0
    %1369 = vmatpush1.xpose.msra.mxu0 0.0
    %1370 = vmatprep.subr.mxu0 0.0
    %1371 = vmatpush1.xpose.msra.mxu0 0.0
    %1372 = vmatprep.subr.mxu0 0.0
    %1373 = vmatpush1.xpose.msra.mxu0 0.0
    %1374 = vmatprep.subr.mxu0 0.0
    %1375 = vmatpush1.xpose.msra.mxu0 0.0
    %1376 = vmatprep.subr.mxu0 0.0
    %1377 = vmatpush1.xpose.msra.mxu0 0.0
    %1378 = vmatprep.subr.mxu0 0.0
    %1379 = vmatpush1.xpose.msra.mxu0 0.0
    %1380 = vmatprep.subr.mxu0 0.0
    %1381 = vmatpush1.xpose.msra.mxu0 0.0
    %1382 = vmatprep.subr.mxu0 0.0
    %1383 = vmatpush1.xpose.msra.mxu0 0.0
    %1384 = vmatprep.subr.mxu0 0.0
    %1385 = vmatpush1.xpose.msra.mxu0 0.0
    %1386 = vmatprep.subr.mxu0 0.0
    %1387 = vmatpush1.xpose.msra.mxu0 0.0
    %1388 = vmatprep.subr.mxu0 0.0
    %1389 = vmatpush1.xpose.msra.mxu0 0.0
    %1390 = vmatprep.subr.mxu0 0.0
    %1391 = vmatpush1.xpose.msra.mxu0 0.0
    %1392 = vmatprep.subr.mxu0 0.0
    %1393 = vmatpush1.xpose.msra.mxu0 0.0
    %1394 = vmatprep.subr.mxu0 0.0
    %1395 = vmatpush1.xpose.msra.mxu0 0.0
    %1396 = vmatprep.subr.mxu0 0.0
    %1397 = vmatpush1.xpose.msra.mxu0 0.0
    %1398 = vmatprep.subr.mxu0 0.0
    %1399 = vmatpush1.xpose.msra.mxu0 0.0
    %1400 = vmatprep.subr.mxu0 0.0
    %1401 = vmatpush1.xpose.msra.mxu0 0.0
    %1402 = vmatprep.subr.mxu0 0.0
    %1403 = vmatpush1.xpose.msra.mxu0 0.0
    %1404 = vmatprep.mubr.f32.mxu0 0.0
    %1405 = vmatmul.mubr.f32.gmra.mrb[0].mxu0 %v1336
    %v1406 = vpop.f32.mrb[0].mxu0
    %v1407 = vadd.f32 %v214, %v1406
    %v1408 = vpop.f32.mrb[0].mxu0
    %1409 = vdwg.mxu0
    %v1410 = vsel %vm296, %v1407, -inf
    %1411 = vmax.xlane.f32.xlu0 %v1410
    %v1412 = vpop.xlane.xlu0 %1411
    %v1413 = vsub.f32 %v1407, %v1412
    %v1414 = vmul.f32 %v1413, 1.442695
    %v1415 = vpow.pop %v1414
    %v1416 = vsel %vm296, %v1415, 0.0
    %1417 = vadd.xlane.f32.xlu0 %v1416
    %v1418 = vpop.xlane.xlu0 %1417
    %v1419 = vrcp.pop %v1418
    %v1420 = vmul.f32 %v1415, %v1419
    %1421 = vrot.lane.b32.xlu0 %v1330, 64
    %v1422 = vpop.permute.xlu0 %1421
    %v1425 = vsel %vm296, %v1420, 0
    %1427 = vmatprep.subr.mxu0 0.0
    %1428 = vmatpush1.msra.mxu0 %v1422
    %1429 = vmatprep.subr.mxu0 0.0
    %1430 = vmatpush1.msra.mxu0 0.0
    %1431 = vmatprep.subr.mxu0 0.0
    %1432 = vmatpush1.msra.mxu0 0.0
    %1433 = vmatprep.subr.mxu0 0.0
    %1434 = vmatpush1.msra.mxu0 0.0
    %1435 = vmatprep.subr.mxu0 0.0
    %1436 = vmatpush1.msra.mxu0 0.0
    %1437 = vmatprep.subr.mxu0 0.0
    %1438 = vmatpush1.msra.mxu0 0.0
    %1439 = vmatprep.subr.mxu0 0.0
    %1440 = vmatpush1.msra.mxu0 0.0
    %1441 = vmatprep.subr.mxu0 0.0
    %1442 = vmatpush1.msra.mxu0 0.0
    %1443 = vmatprep.subr.mxu0 0.0
    %1444 = vmatpush1.msra.mxu0 0.0
    %1445 = vmatprep.subr.mxu0 0.0
    %1446 = vmatpush1.msra.mxu0 0.0
    %1447 = vmatprep.subr.mxu0 0.0
    %1448 = vmatpush1.msra.mxu0 0.0
    %1449 = vmatprep.subr.mxu0 0.0
    %1450 = vmatpush1.msra.mxu0 0.0
    %1451 = vmatprep.subr.mxu0 0.0
    %1452 = vmatpush1.msra.mxu0 0.0
    %1453 = vmatprep.subr.mxu0 0.0
    %1454 = vmatpush1.msra.mxu0 0.0
    %1455 = vmatprep.subr.mxu0 0.0
    %1456 = vmatpush1.msra.mxu0 0.0
    %1457 = vmatprep.subr.mxu0 0.0
    %1458 = vmatpush1.msra.mxu0 0.0
    %1459 = vmatprep.subr.mxu0 0.0
    %1460 = vmatpush1.msra.mxu0 0.0
    %1461 = vmatprep.subr.mxu0 0.0
    %1462 = vmatpush1.msra.mxu0 0.0
    %1463 = vmatprep.subr.mxu0 0.0
    %1464 = vmatpush1.msra.mxu0 0.0
    %1465 = vmatprep.subr.mxu0 0.0
    %1466 = vmatpush1.msra.mxu0 0.0
    %1467 = vmatprep.subr.mxu0 0.0
    %1468 = vmatpush1.msra.mxu0 0.0
    %1469 = vmatprep.subr.mxu0 0.0
    %1470 = vmatpush1.msra.mxu0 0.0
    %1471 = vmatprep.subr.mxu0 0.0
    %1472 = vmatpush1.msra.mxu0 0.0
    %1473 = vmatprep.subr.mxu0 0.0
    %1474 = vmatpush1.msra.mxu0 0.0
    %1475 = vmatprep.subr.mxu0 0.0
    %1476 = vmatpush1.msra.mxu0 0.0
    %1477 = vmatprep.subr.mxu0 0.0
    %1478 = vmatpush1.msra.mxu0 0.0
    %1479 = vmatprep.subr.mxu0 0.0
    %1480 = vmatpush1.msra.mxu0 0.0
    %1481 = vmatprep.subr.mxu0 0.0
    %1482 = vmatpush1.msra.mxu0 0.0
    %1483 = vmatprep.subr.mxu0 0.0
    %1484 = vmatpush1.msra.mxu0 0.0
    %1485 = vmatprep.subr.mxu0 0.0
    %1486 = vmatpush1.msra.mxu0 0.0
    %1487 = vmatprep.subr.mxu0 0.0
    %1488 = vmatpush1.msra.mxu0 0.0
    %1489 = vmatprep.subr.mxu0 0.0
    %1490 = vmatpush1.msra.mxu0 0.0
    %1491 = vmatprep.mubr.f32.mxu0 0.0
    %1492 = vmatmul.mubr.f32.gmra.mrb[0].mxu0 %v1425
    %v1493 = vpop.f32.mrb[0].mxu0
    %v1494 = vadd.f32 0.0, %v1493
    %v1495 = vpop.f32.mrb[0].mxu0
    %1496 = vdwg.mxu0
    %1497 = vrot.lane.b32.xlu0 %v1330, 120
    %v1498 = vpop.permute.xlu0 %1497
    %1499 = vrot.lane.b32.xlu0 %v1330, 88
    %v1500 = vpop.permute.xlu0 %1499
    %v1501 = vsel %vm296, %v1498, 0
    %v1503 = vsel %vm296, %v1500, 0
    %1505 = vmatprep.subr.mxu0 0.0
    %1506 = vmatpush1.xpose.msra.mxu0 %v1503
    %1507 = vmatprep.subr.mxu0 0.0
    %1508 = vmatpush1.xpose.msra.mxu0 0.0
    %1509 = vmatprep.subr.mxu0 0.0
    %1510 = vmatpush1.xpose.msra.mxu0 0.0
    %1511 = vmatprep.subr.mxu0 0.0
    %1512 = vmatpush1.xpose.msra.mxu0 0.0
    %1513 = vmatprep.subr.mxu0 0.0
    %1514 = vmatpush1.xpose.msra.mxu0 0.0
    %1515 = vmatprep.subr.mxu0 0.0
    %1516 = vmatpush1.xpose.msra.mxu0 0.0
    %1517 = vmatprep.subr.mxu0 0.0
    %1518 = vmatpush1.xpose.msra.mxu0 0.0
    %1519 = vmatprep.subr.mxu0 0.0
    %1520 = vmatpush1.xpose.msra.mxu0 0.0
    %1521 = vmatprep.subr.mxu0 0.0
    %1522 = vmatpush1.xpose.msra.mxu0 0.0
    %1523 = vmatprep.subr.mxu0 0.0
    %1524 = vmatpush1.xpose.msra.mxu0 0.0
    %1525 = vmatprep.subr.mxu0 0.0
    %1526 = vmatpush1.xpose.msra.mxu0 0.0
    %1527 = vmatprep.subr.mxu0 0.0
    %1528 = vmatpush1.xpose.msra.mxu0 0.0
    %1529 = vmatprep.subr.mxu0 0.0
    %1530 = vmatpush1.xpose.msra.mxu0 0.0
    %1531 = vmatprep.subr.mxu0 0.0
    %1532 = vmatpush1.xpose.msra.mxu0 0.0
    %1533 = vmatprep.subr.mxu0 0.0
    %1534 = vmatpush1.xpose.msra.mxu0 0.0
    %1535 = vmatprep.subr.mxu0 0.0
    %1536 = vmatpush1.xpose.msra.mxu0 0.0
    %1537 = vmatprep.subr.mxu0 0.0
    %1538 = vmatpush1.xpose.msra.mxu0 0.0
    %1539 = vmatprep.subr.mxu0 0.0
    %1540 = vmatpush1.xpose.msra.mxu0 0.0
    %1541 = vmatprep.subr.mxu0 0.0
    %1542 = vmatpush1.xpose.msra.mxu0 0.0
    %1543 = vmatprep.subr.mxu0 0.0
    %1544 = vmatpush1.xpose.msra.mxu0 0.0
    %1545 = vmatprep.subr.mxu0 0.0
    %1546 = vmatpush1.xpose.msra.mxu0 0.0
    %1547 = vmatprep.subr.mxu0 0.0
    %1548 = vmatpush1.xpose.msra.mxu0 0.0
    %1549 = vmatprep.subr.mxu0 0.0
    %1550 = vmatpush1.xpose.msra.mxu0 0.0
    %1551 = vmatprep.subr.mxu0 0.0
    %1552 = vmatpush1.xpose.msra.mxu0 0.0
    %1553 = vmatprep.subr.mxu0 0.0
    %1554 = vmatpush1.xpose.msra.mxu0 0.0
    %1555 = vmatprep.subr.mxu0 0.0
    %1556 = vmatpush1.xpose.msra.mxu0 0.0
    %1557 = vmatprep.subr.mxu0 0.0
    %1558 = vmatpush1.xpose.msra.mxu0 0.0
    %1559 = vmatprep.subr.mxu0 0.0
    %1560 = vmatpush1.xpose.msra.mxu0 0.0
    %1561 = vmatprep.subr.mxu0 0.0
    %1562 = vmatpush1.xpose.msra.mxu0 0.0
    %1563 = vmatprep.subr.mxu0 0.0
    %1564 = vmatpush1.xpose.msra.mxu0 0.0
    %1565 = vmatprep.subr.mxu0 0.0
    %1566 = vmatpush1.xpose.msra.mxu0 0.0
    %1567 = vmatprep.subr.mxu0 0.0
    %1568 = vmatpush1.xpose.msra.mxu0 0.0
    %1569 = vmatprep.mubr.f32.mxu0 0.0
    %1570 = vmatmul.mubr.f32.gmra.mrb[0].mxu0 %v1501
    %v1571 = vpop.f32.mrb[0].mxu0
    %v1572 = vadd.f32 %v214, %v1571
    %v1573 = vpop.f32.mrb[0].mxu0
    %1574 = vdwg.mxu0
    %v1575 = vsel %vm296, %v1572, -inf
    %1576 = vmax.xlane.f32.xlu0 %v1575
    %v1577 = vpop.xlane.xlu0 %1576
    %v1578 = vsub.f32 %v1572, %v1577
    %v1579 = vmul.f32 %v1578, 1.442695
    %v1580 = vpow.pop %v1579
    %v1581 = vsel %vm296, %v1580, 0.0
    %1582 = vadd.xlane.f32.xlu0 %v1581
    %v1583 = vpop.xlane.xlu0 %1582
    %v1584 = vrcp.pop %v1583
    %v1585 = vmul.f32 %v1580, %v1584
    %1586 = vrot.lane.b32.xlu0 %v1330, 56
    %v1587 = vpop.permute.xlu0 %1586
    %v1590 = vsel %vm296, %v1585, 0
    %1592 = vmatprep.subr.mxu0 0.0
    %1593 = vmatpush1.msra.mxu0 %v1587
    %1594 = vmatprep.subr.mxu0 0.0
    %1595 = vmatpush1.msra.mxu0 0.0
    %1596 = vmatprep.subr.mxu0 0.0
    %1597 = vmatpush1.msra.mxu0 0.0
    %1598 = vmatprep.subr.mxu0 0.0
    %1599 = vmatpush1.msra.mxu0 0.0
    %1600 = vmatprep.subr.mxu0 0.0
    %1601 = vmatpush1.msra.mxu0 0.0
    %1602 = vmatprep.subr.mxu0 0.0
    %1603 = vmatpush1.msra.mxu0 0.0
    %1604 = vmatprep.subr.mxu0 0.0
    %1605 = vmatpush1.msra.mxu0 0.0
    %1606 = vmatprep.subr.mxu0 0.0
    %1607 = vmatpush1.msra.mxu0 0.0
    %1608 = vmatprep.subr.mxu0 0.0
    %1609 = vmatpush1.msra.mxu0 0.0
    %1610 = vmatprep.subr.mxu0 0.0
    %1611 = vmatpush1.msra.mxu0 0.0
    %1612 = vmatprep.subr.mxu0 0.0
    %1613 = vmatpush1.msra.mxu0 0.0
    %1614 = vmatprep.subr.mxu0 0.0
    %1615 = vmatpush1.msra.mxu0 0.0
    %1616 = vmatprep.subr.mxu0 0.0
    %1617 = vmatpush1.msra.mxu0 0.0
    %1618 = vmatprep.subr.mxu0 0.0
    %1619 = vmatpush1.msra.mxu0 0.0
    %1620 = vmatprep.subr.mxu0 0.0
    %1621 = vmatpush1.msra.mxu0 0.0
    %1622 = vmatprep.subr.mxu0 0.0
    %1623 = vmatpush1.msra.mxu0 0.0
    %1624 = vmatprep.subr.mxu0 0.0
    %1625 = vmatpush1.msra.mxu0 0.0
    %1626 = vmatprep.subr.mxu0 0.0
    %1627 = vmatpush1.msra.mxu0 0.0
    %1628 = vmatprep.subr.mxu0 0.0
    %1629 = vmatpush1.msra.mxu0 0.0
    %1630 = vmatprep.subr.mxu0 0.0
    %1631 = vmatpush1.msra.mxu0 0.0
    %1632 = vmatprep.subr.mxu0 0.0
    %1633 = vmatpush1.msra.mxu0 0.0
    %1634 = vmatprep.subr.mxu0 0.0
    %1635 = vmatpush1.msra.mxu0 0.0
    %1636 = vmatprep.subr.mxu0 0.0
    %1637 = vmatpush1.msra.mxu0 0.0
    %1638 = vmatprep.subr.mxu0 0.0
    %1639 = vmatpush1.msra.mxu0 0.0
    %1640 = vmatprep.subr.mxu0 0.0
    %1641 = vmatpush1.msra.mxu0 0.0
    %1642 = vmatprep.subr.mxu0 0.0
    %1643 = vmatpush1.msra.mxu0 0.0
    %1644 = vmatprep.subr.mxu0 0.0
    %1645 = vmatpush1.msra.mxu0 0.0
    %1646 = vmatprep.subr.mxu0 0.0
    %1647 = vmatpush1.msra.mxu0 0.0
    %1648 = vmatprep.subr.mxu0 0.0
    %1649 = vmatpush1.msra.mxu0 0.0
    %1650 = vmatprep.subr.mxu0 0.0
    %1651 = vmatpush1.msra.mxu0 0.0
    %1652 = vmatprep.subr.mxu0 0.0
    %1653 = vmatpush1.msra.mxu0 0.0
    %1654 = vmatprep.subr.mxu0 0.0
    %1655 = vmatpush1.msra.mxu0 0.0
    %1656 = vmatprep.mubr.f32.mxu0 0.0
    %1657 = vmatmul.mubr.f32.gmra.mrb[0].mxu0 %v1590
    %v1658 = vpop.f32.mrb[0].mxu0
    %v1659 = vadd.f32 0.0, %v1658
    %v1660 = vpop.f32.mrb[0].mxu0
    %1661 = vdwg.mxu0
    %1662 = vrot.lane.b32.xlu0 %v1330, 112
    %v1663 = vpop.permute.xlu0 %1662
    %1664 = vrot.lane.b32.xlu0 %v1330, 80
    %v1665 = vpop.permute.xlu0 %1664
    %v1666 = vsel %vm296, %v1663, 0
    %v1668 = vsel %vm296, %v1665, 0
    %1670 = vmatprep.subr.mxu0 0.0
    %1671 = vmatpush1.xpose.msra.mxu0 %v1668
    %1672 = vmatprep.subr.mxu0 0.0
    %1673 = vmatpush1.xpose.msra.mxu0 0.0
    %1674 = vmatprep.subr.mxu0 0.0
    %1675 = vmatpush1.xpose.msra.mxu0 0.0
    %1676 = vmatprep.subr.mxu0 0.0
    %1677 = vmatpush1.xpose.msra.mxu0 0.0
    %1678 = vmatprep.subr.mxu0 0.0
    %1679 = vmatpush1.xpose.msra.mxu0 0.0
    %1680 = vmatprep.subr.mxu0 0.0
    %1681 = vmatpush1.xpose.msra.mxu0 0.0
    %1682 = vmatprep.subr.mxu0 0.0
    %1683 = vmatpush1.xpose.msra.mxu0 0.0
    %1684 = vmatprep.subr.mxu0 0.0
    %1685 = vmatpush1.xpose.msra.mxu0 0.0
    %1686 = vmatprep.subr.mxu0 0.0
    %1687 = vmatpush1.xpose.msra.mxu0 0.0
    %1688 = vmatprep.subr.mxu0 0.0
    %1689 = vmatpush1.xpose.msra.mxu0 0.0
    %1690 = vmatprep.subr.mxu0 0.0
    %1691 = vmatpush1.xpose.msra.mxu0 0.0
    %1692 = vmatprep.subr.mxu0 0.0
    %1693 = vmatpush1.xpose.msra.mxu0 0.0
    %1694 = vmatprep.subr.mxu0 0.0
    %1695 = vmatpush1.xpose.msra.mxu0 0.0
    %1696 = vmatprep.subr.mxu0 0.0
    %1697 = vmatpush1.xpose.msra.mxu0 0.0
    %1698 = vmatprep.subr.mxu0 0.0
    %1699 = vmatpush1.xpose.msra.mxu0 0.0
    %1700 = vmatprep.subr.mxu0 0.0
    %1701 = vmatpush1.xpose.msra.mxu0 0.0
    %1702 = vmatprep.subr.mxu0 0.0
    %1703 = vmatpush1.xpose.msra.mxu0 0.0
    %1704 = vmatprep.subr.mxu0 0.0
    %1705 = vmatpush1.xpose.msra.mxu0 0.0
    %1706 = vmatprep.subr.mxu0 0.0
    %1707 = vmatpush1.xpose.msra.mxu0 0.0
    %1708 = vmatprep.subr.mxu0 0.0
    %1709 = vmatpush1.xpose.msra.mxu0 0.0
    %1710 = vmatprep.subr.mxu0 0.0
    %1711 = vmatpush1.xpose.msra.mxu0 0.0
    %1712 = vmatprep.subr.mxu0 0.0
    %1713 = vmatpush1.xpose.msra.mxu0 0.0
    %1714 = vmatprep.subr.mxu0 0.0
    %1715 = vmatpush1.xpose.msra.mxu0 0.0
    %1716 = vmatprep.subr.mxu0 0.0
    %1717 = vmatpush1.xpose.msra.mxu0 0.0
    %1718 = vmatprep.subr.mxu0 0.0
    %1719 = vmatpush1.xpose.msra.mxu0 0.0
    %1720 = vmatprep.subr.mxu0 0.0
    %1721 = vmatpush1.xpose.msra.mxu0 0.0
    %1722 = vmatprep.subr.mxu0 0.0
    %1723 = vmatpush1.xpose.msra.mxu0 0.0
    %1724 = vmatprep.subr.mxu0 0.0
    %1725 = vmatpush1.xpose.msra.mxu0 0.0
    %1726 = vmatprep.subr.mxu0 0.0
    %1727 = vmatpush1.xpose.msra.mxu0 0.0
    %1728 = vmatprep.subr.mxu0 0.0
    %1729 = vmatpush1.xpose.msra.mxu0 0.0
    %1730 = vmatprep.subr.mxu0 0.0
    %1731 = vmatpush1.xpose.msra.mxu0 0.0
    %1732 = vmatprep.subr.mxu0 0.0
    %1733 = vmatpush1.xpose.msra.mxu0 0.0
    %1734 = vmatprep.mubr.f32.mxu0 0.0
    %1735 = vmatmul.mubr.f32.gmra.mrb[0].mxu0 %v1666
    %v1736 = vpop.f32.mrb[0].mxu0
    %v1737 = vadd.f32 %v214, %v1736
    %v1738 = vpop.f32.mrb[0].mxu0
    %1739 = vdwg.mxu0
    %v1740 = vsel %vm296, %v1737, -inf
    %1741 = vmax.xlane.f32.xlu0 %v1740
    %v1742 = vpop.xlane.xlu0 %1741
    %v1743 = vsub.f32 %v1737, %v1742
    %v1744 = vmul.f32 %v1743, 1.442695
    %v1745 = vpow.pop %v1744
    %v1746 = vsel %vm296, %v1745, 0.0
    %1747 = vadd.xlane.f32.xlu0 %v1746
    %v1748 = vpop.xlane.xlu0 %1747
    %v1749 = vrcp.pop %v1748
    %v1750 = vmul.f32 %v1745, %v1749
    %1751 = vrot.lane.b32.xlu0 %v1330, 48
    %v1752 = vpop.permute.xlu0 %1751
    %v1755 = vsel %vm296, %v1750, 0
    %1757 = vmatprep.subr.mxu0 0.0
    %1758 = vmatpush1.msra.mxu0 %v1752
    %1759 = vmatprep.subr.mxu0 0.0
    %1760 = vmatpush1.msra.mxu0 0.0
    %1761 = vmatprep.subr.mxu0 0.0
    %1762 = vmatpush1.msra.mxu0 0.0
    %1763 = vmatprep.subr.mxu0 0.0
    %1764 = vmatpush1.msra.mxu0 0.0
    %1765 = vmatprep.subr.mxu0 0.0
    %1766 = vmatpush1.msra.mxu0 0.0
    %1767 = vmatprep.subr.mxu0 0.0
    %1768 = vmatpush1.msra.mxu0 0.0
    %1769 = vmatprep.subr.mxu0 0.0
    %1770 = vmatpush1.msra.mxu0 0.0
    %1771 = vmatprep.subr.mxu0 0.0
    %1772 = vmatpush1.msra.mxu0 0.0
    %1773 = vmatprep.subr.mxu0 0.0
    %1774 = vmatpush1.msra.mxu0 0.0
    %1775 = vmatprep.subr.mxu0 0.0
    %1776 = vmatpush1.msra.mxu0 0.0
    %1777 = vmatprep.subr.mxu0 0.0
    %1778 = vmatpush1.msra.mxu0 0.0
    %1779 = vmatprep.subr.mxu0 0.0
    %1780 = vmatpush1.msra.mxu0 0.0
    %1781 = vmatprep.subr.mxu0 0.0
    %1782 = vmatpush1.msra.mxu0 0.0
    %1783 = vmatprep.subr.mxu0 0.0
    %1784 = vmatpush1.msra.mxu0 0.0
    %1785 = vmatprep.subr.mxu0 0.0
    %1786 = vmatpush1.msra.mxu0 0.0
    %1787 = vmatprep.subr.mxu0 0.0
    %1788 = vmatpush1.msra.mxu0 0.0
    %1789 = vmatprep.subr.mxu0 0.0
    %1790 = vmatpush1.msra.mxu0 0.0
    %1791 = vmatprep.subr.mxu0 0.0
    %1792 = vmatpush1.msra.mxu0 0.0
    %1793 = vmatprep.subr.mxu0 0.0
    %1794 = vmatpush1.msra.mxu0 0.0
    %1795 = vmatprep.subr.mxu0 0.0
    %1796 = vmatpush1.msra.mxu0 0.0
    %1797 = vmatprep.subr.mxu0 0.0
    %1798 = vmatpush1.msra.mxu0 0.0
    %1799 = vmatprep.subr.mxu0 0.0
    %1800 = vmatpush1.msra.mxu0 0.0
    %1801 = vmatprep.subr.mxu0 0.0
    %1802 = vmatpush1.msra.mxu0 0.0
    %1803 = vmatprep.subr.mxu0 0.0
    %1804 = vmatpush1.msra.mxu0 0.0
    %1805 = vmatprep.subr.mxu0 0.0
    %1806 = vmatpush1.msra.mxu0 0.0
    %1807 = vmatprep.subr.mxu0 0.0
    %1808 = vmatpush1.msra.mxu0 0.0
    %1809 = vmatprep.subr.mxu0 0.0
    %1810 = vmatpush1.msra.mxu0 0.0
    %1811 = vmatprep.subr.mxu0 0.0
    %1812 = vmatpush1.msra.mxu0 0.0
    %1813 = vmatprep.subr.mxu0 0.0
    %1814 = vmatpush1.msra.mxu0 0.0
    %1815 = vmatprep.subr.mxu0 0.0
    %1816 = vmatpush1.msra.mxu0 0.0
    %1817 = vmatprep.subr.mxu0 0.0
    %1818 = vmatpush1.msra.mxu0 0.0
    %1819 = vmatprep.subr.mxu0 0.0
    %1820 = vmatpush1.msra.mxu0 0.0
    %1821 = vmatprep.mubr.f32.mxu0 0.0
    %1822 = vmatmul.mubr.f32.gmra.mrb[0].mxu0 %v1755
    %v1823 = vpop.f32.mrb[0].mxu0
    %v1824 = vadd.f32 0.0, %v1823
    %v1825 = vpop.f32.mrb[0].mxu0
    %1826 = vdwg.mxu0
    %1827 = vrot.lane.b32.xlu0 %v1330, 104
    %v1828 = vpop.permute.xlu0 %1827
    %1829 = vrot.lane.b32.xlu0 %v1330, 72
    %v1830 = vpop.permute.xlu0 %1829
    %v1831 = vsel %vm296, %v1828, 0
    %v1833 = vsel %vm296, %v1830, 0
    %1835 = vmatprep.subr.mxu0 0.0
    %1836 = vmatpush1.xpose.msra.mxu0 %v1833
    %1837 = vmatprep.subr.mxu0 0.0
    %1838 = vmatpush1.xpose.msra.mxu0 0.0
    %1839 = vmatprep.subr.mxu0 0.0
    %1840 = vmatpush1.xpose.msra.mxu0 0.0
    %1841 = vmatprep.subr.mxu0 0.0
    %1842 = vmatpush1.xpose.msra.mxu0 0.0
    %1843 = vmatprep.subr.mxu0 0.0
    %1844 = vmatpush1.xpose.msra.mxu0 0.0
    %1845 = vmatprep.subr.mxu0 0.0
    %1846 = vmatpush1.xpose.msra.mxu0 0.0
    %1847 = vmatprep.subr.mxu0 0.0
    %1848 = vmatpush1.xpose.msra.mxu0 0.0
    %1849 = vmatprep.subr.mxu0 0.0
    %1850 = vmatpush1.xpose.msra.mxu0 0.0
    %1851 = vmatprep.subr.mxu0 0.0
    %1852 = vmatpush1.xpose.msra.mxu0 0.0
    %1853 = vmatprep.subr.mxu0 0.0
    %1854 = vmatpush1.xpose.msra.mxu0 0.0
    %1855 = vmatprep.subr.mxu0 0.0
    %1856 = vmatpush1.xpose.msra.mxu0 0.0
    %1857 = vmatprep.subr.mxu0 0.0
    %1858 = vmatpush1.xpose.msra.mxu0 0.0
    %1859 = vmatprep.subr.mxu0 0.0
    %1860 = vmatpush1.xpose.msra.mxu0 0.0
    %1861 = vmatprep.subr.mxu0 0.0
    %1862 = vmatpush1.xpose.msra.mxu0 0.0
    %1863 = vmatprep.subr.mxu0 0.0
    %1864 = vmatpush1.xpose.msra.mxu0 0.0
    %1865 = vmatprep.subr.mxu0 0.0
    %1866 = vmatpush1.xpose.msra.mxu0 0.0
    %1867 = vmatprep.subr.mxu0 0.0
    %1868 = vmatpush1.xpose.msra.mxu0 0.0
    %1869 = vmatprep.subr.mxu0 0.0
    %1870 = vmatpush1.xpose.msra.mxu0 0.0
    %1871 = vmatprep.subr.mxu0 0.0
    %1872 = vmatpush1.xpose.msra.mxu0 0.0
    %1873 = vmatprep.subr.mxu0 0.0
    %1874 = vmatpush1.xpose.msra.mxu0 0.0
    %1875 = vmatprep.subr.mxu0 0.0
    %1876 = vmatpush1.xpose.msra.mxu0 0.0
    %1877 = vmatprep.subr.mxu0 0.0
    %1878 = vmatpush1.xpose.msra.mxu0 0.0
    %1879 = vmatprep.subr.mxu0 0.0
    %1880 = vmatpush1.xpose.msra.mxu0 0.0
    %1881 = vmatprep.subr.mxu0 0.0
    %1882 = vmatpush1.xpose.msra.mxu0 0.0
    %1883 = vmatprep.subr.mxu0 0.0
    %1884 = vmatpush1.xpose.msra.mxu0 0.0
    %1885 = vmatprep.subr.mxu0 0.0
    %1886 = vmatpush1.xpose.msra.mxu0 0.0
    %1887 = vmatprep.subr.mxu0 0.0
    %1888 = vmatpush1.xpose.msra.mxu0 0.0
    %1889 = vmatprep.subr.mxu0 0.0
    %1890 = vmatpush1.xpose.msra.mxu0 0.0
    %1891 = vmatprep.subr.mxu0 0.0
    %1892 = vmatpush1.xpose.msra.mxu0 0.0
    %1893 = vmatprep.subr.mxu0 0.0
    %1894 = vmatpush1.xpose.msra.mxu0 0.0
    %1895 = vmatprep.subr.mxu0 0.0
    %1896 = vmatpush1.xpose.msra.mxu0 0.0
    %1897 = vmatprep.subr.mxu0 0.0
    %1898 = vmatpush1.xpose.msra.mxu0 0.0
    %1899 = vmatprep.mubr.f32.mxu0 0.0
    %1900 = vmatmul.mubr.f32.gmra.mrb[0].mxu0 %v1831
    %v1901 = vpop.f32.mrb[0].mxu0
    %v1902 = vadd.f32 %v214, %v1901
    %v1903 = vpop.f32.mrb[0].mxu0
    %1904 = vdwg.mxu0
    %v1905 = vsel %vm296, %v1902, -inf
    %1906 = vmax.xlane.f32.xlu0 %v1905
    %v1907 = vpop.xlane.xlu0 %1906
    %v1908 = vsub.f32 %v1902, %v1907
    %v1909 = vmul.f32 %v1908, 1.442695
    %v1910 = vpow.pop %v1909
    %v1911 = vsel %vm296, %v1910, 0.0
    %1912 = vadd.xlane.f32.xlu0 %v1911
    %v1913 = vpop.xlane.xlu0 %1912
    %v1914 = vrcp.pop %v1913
    %v1915 = vmul.f32 %v1910, %v1914
    %1916 = vrot.lane.b32.xlu0 %v1330, 40
    %v1917 = vpop.permute.xlu0 %1916
    %v1920 = vsel %vm296, %v1915, 0
    %1922 = vmatprep.subr.mxu0 0.0
    %1923 = vmatpush1.msra.mxu0 %v1917
    %1924 = vmatprep.subr.mxu0 0.0
    %1925 = vmatpush1.msra.mxu0 0.0
    %1926 = vmatprep.subr.mxu0 0.0
    %1927 = vmatpush1.msra.mxu0 0.0
    %1928 = vmatprep.subr.mxu0 0.0
    %1929 = vmatpush1.msra.mxu0 0.0
    %1930 = vmatprep.subr.mxu0 0.0
    %1931 = vmatpush1.msra.mxu0 0.0
    %1932 = vmatprep.subr.mxu0 0.0
    %1933 = vmatpush1.msra.mxu0 0.0
    %1934 = vmatprep.subr.mxu0 0.0
    %1935 = vmatpush1.msra.mxu0 0.0
    %1936 = vmatprep.subr.mxu0 0.0
    %1937 = vmatpush1.msra.mxu0 0.0
    %1938 = vmatprep.subr.mxu0 0.0
    %1939 = vmatpush1.msra.mxu0 0.0
    %1940 = vmatprep.subr.mxu0 0.0
    %1941 = vmatpush1.msra.mxu0 0.0
    %1942 = vmatprep.subr.mxu0 0.0
    %1943 = vmatpush1.msra.mxu0 0.0
    %1944 = vmatprep.subr.mxu0 0.0
    %1945 = vmatpush1.msra.mxu0 0.0
    %1946 = vmatprep.subr.mxu0 0.0
    %1947 = vmatpush1.msra.mxu0 0.0
    %1948 = vmatprep.subr.mxu0 0.0
    %1949 = vmatpush1.msra.mxu0 0.0
    %1950 = vmatprep.subr.mxu0 0.0
    %1951 = vmatpush1.msra.mxu0 0.0
    %1952 = vmatprep.subr.mxu0 0.0
    %1953 = vmatpush1.msra.mxu0 0.0
    %1954 = vmatprep.subr.mxu0 0.0
    %1955 = vmatpush1.msra.mxu0 0.0
    %1956 = vmatprep.subr.mxu0 0.0
    %1957 = vmatpush1.msra.mxu0 0.0
    %1958 = vmatprep.subr.mxu0 0.0
    %1959 = vmatpush1.msra.mxu0 0.0
    %1960 = vmatprep.subr.mxu0 0.0
    %1961 = vmatpush1.msra.mxu0 0.0
    %1962 = vmatprep.subr.mxu0 0.0
    %1963 = vmatpush1.msra.mxu0 0.0
    %1964 = vmatprep.subr.mxu0 0.0
    %1965 = vmatpush1.msra.mxu0 0.0
    %1966 = vmatprep.subr.mxu0 0.0
    %1967 = vmatpush1.msra.mxu0 0.0
    %1968 = vmatprep.subr.mxu0 0.0
    %1969 = vmatpush1.msra.mxu0 0.0
    %1970 = vmatprep.subr.mxu0 0.0
    %1971 = vmatpush1.msra.mxu0 0.0
    %1972 = vmatprep.subr.mxu0 0.0
    %1973 = vmatpush1.msra.mxu0 0.0
    %1974 = vmatprep.subr.mxu0 0.0
    %1975 = vmatpush1.msra.mxu0 0.0
    %1976 = vmatprep.subr.mxu0 0.0
    %1977 = vmatpush1.msra.mxu0 0.0
    %1978 = vmatprep.subr.mxu0 0.0
    %1979 = vmatpush1.msra.mxu0 0.0
    %1980 = vmatprep.subr.mxu0 0.0
    %1981 = vmatpush1.msra.mxu0 0.0
    %1982 = vmatprep.subr.mxu0 0.0
    %1983 = vmatpush1.msra.mxu0 0.0
    %1984 = vmatprep.subr.mxu0 0.0
    %1985 = vmatpush1.msra.mxu0 0.0
    %1986 = vmatprep.mubr.f32.mxu0 0.0
    %1987 = vmatmul.mubr.f32.gmra.mrb[0].mxu0 %v1920
    %v1988 = vpop.f32.mrb[0].mxu0
    %v1989 = vadd.f32 0.0, %v1988
    %v1990 = vpop.f32.mrb[0].mxu0
    %1991 = vdwg.mxu0
    %1993 = vrot.lane.b32.xlu0 %v1659, 8
    %v1994 = vpop.permute.xlu0 %1993
    %1997 = vrot.lane.b32.xlu0 %v1824, 16
    %v1998 = vpop.permute.xlu0 %1997
    %2001 = vrot.lane.b32.xlu0 %v1989, 24
    %v2002 = vpop.permute.xlu0 %2001
    %v2004 = vsel %vm296, %v1494, %v1994
    %v2005 = vsel %vm966, %v2004, %v1998
    %v2006 = vsel %vm968, %v2005, %v2002
    %v2007 = vlaneseq
    %v2008 = vshrl.u32 %v2007, 7
    %v2009 = vsub.s32 0, %v2008
    %v2010 = vrot.slane %v126, %v2009
    %v2012 = vsel %vm219, %v2006, 0
    %2014 = vmatprep.subr.mxu0 0.0
    %2015 = vmatpush1.msra.mxu0 %v107
    %2016 = vmatprep.subr.mxu0 0.0
    %2017 = vmatpush1.msra.mxu0 %v108
    %2018 = vmatprep.subr.mxu0 0.0
    %2019 = vmatpush1.msra.mxu0 %v109
    %2020 = vmatprep.subr.mxu0 0.0
    %2021 = vmatpush1.msra.mxu0 %v110
    %2022 = vmatprep.subr.mxu0 0.0
    %2023 = vmatpush1.msra.mxu0 0.0
    %2024 = vmatprep.subr.mxu0 0.0
    %2025 = vmatpush1.msra.mxu0 0.0
    %2026 = vmatprep.subr.mxu0 0.0
    %2027 = vmatpush1.msra.mxu0 0.0
    %2028 = vmatprep.subr.mxu0 0.0
    %2029 = vmatpush1.msra.mxu0 0.0
    %2030 = vmatprep.subr.mxu0 0.0
    %2031 = vmatpush1.msra.mxu0 0.0
    %2032 = vmatprep.subr.mxu0 0.0
    %2033 = vmatpush1.msra.mxu0 0.0
    %2034 = vmatprep.subr.mxu0 0.0
    %2035 = vmatpush1.msra.mxu0 0.0
    %2036 = vmatprep.subr.mxu0 0.0
    %2037 = vmatpush1.msra.mxu0 0.0
    %2038 = vmatprep.subr.mxu0 0.0
    %2039 = vmatpush1.msra.mxu0 0.0
    %2040 = vmatprep.subr.mxu0 0.0
    %2041 = vmatpush1.msra.mxu0 0.0
    %2042 = vmatprep.subr.mxu0 0.0
    %2043 = vmatpush1.msra.mxu0 0.0
    %2044 = vmatprep.subr.mxu0 0.0
    %2045 = vmatpush1.msra.mxu0 0.0
    %2046 = vmatprep.subr.mxu0 0.0
    %2047 = vmatpush1.msra.mxu0 0.0
    %2048 = vmatprep.subr.mxu0 0.0
    %2049 = vmatpush1.msra.mxu0 0.0
    %2050 = vmatprep.subr.mxu0 0.0
    %2051 = vmatpush1.msra.mxu0 0.0
    %2052 = vmatprep.subr.mxu0 0.0
    %2053 = vmatpush1.msra.mxu0 0.0
    %2054 = vmatprep.subr.mxu0 0.0
    %2055 = vmatpush1.msra.mxu0 0.0
    %2056 = vmatprep.subr.mxu0 0.0
    %2057 = vmatpush1.msra.mxu0 0.0
    %2058 = vmatprep.subr.mxu0 0.0
    %2059 = vmatpush1.msra.mxu0 0.0
    %2060 = vmatprep.subr.mxu0 0.0
    %2061 = vmatpush1.msra.mxu0 0.0
    %2062 = vmatprep.subr.mxu0 0.0
    %2063 = vmatpush1.msra.mxu0 0.0
    %2064 = vmatprep.subr.mxu0 0.0
    %2065 = vmatpush1.msra.mxu0 0.0
    %2066 = vmatprep.subr.mxu0 0.0
    %2067 = vmatpush1.msra.mxu0 0.0
    %2068 = vmatprep.subr.mxu0 0.0
    %2069 = vmatpush1.msra.mxu0 0.0
    %2070 = vmatprep.subr.mxu0 0.0
    %2071 = vmatpush1.msra.mxu0 0.0
    %2072 = vmatprep.subr.mxu0 0.0
    %2073 = vmatpush1.msra.mxu0 0.0
    %2074 = vmatprep.subr.mxu0 0.0
    %2075 = vmatpush1.msra.mxu0 0.0
    %2076 = vmatprep.subr.mxu0 0.0
    %2077 = vmatpush1.msra.mxu0 0.0
    %2078 = vmatprep.mubr.f32.mxu0 0.0
    %2079 = vmatmul.mubr.f32.gmra.mrb[0].mxu0 %v2012
    %v2080 = vpop.f32.mrb[0].mxu0
    %v2081 = vadd.f32 %v2010, %v2080
    %v2082 = vpop.f32.mrb[0].mxu0
    %2083 = vdwg.mxu0
    %v2084 = vadd.f32 %v1255, %v2081
    %v2085 = vsel %vm219, %v2084, 0.0
    %2086 = vadd.xlane.f32.xlu0 %v2085
    %v2087 = vpop.xlane.xlu0 %2086
    %v2088 = vmul.f32 %v2087, %v1051
    %v2089 = vmul.f32 %v2084, %v2084
    %v2090 = vsel %vm219, %v2089, 0.0
    %2091 = vadd.xlane.f32.xlu0 %v2090
    %v2092 = vpop.xlane.xlu0 %2091
    %v2093 = vmul.f32 %v2092, %v1051
    %v2094 = vmul.f32 %v2088, %v2088
    %v2095 = vsub.f32 %v2093, %v2094
    %v2096 = vsub.f32 %v2084, %v2088
    %v2097 = vadd.f32 %v2095, 1e-05
    %v2098 = vrsqrt.pop %v2097
    %v2099 = vmul.f32 %v2096, %v2098
    %v2100 = vlaneseq
    %v2101 = vshrl.u32 %v2100, 7
    %v2102 = vsub.s32 0, %v2101
    %v2103 = vrot.slane %v127, %v2102
    %v2104 = vmul.f32 %v2099, %v2103
    %v2105 = vlaneseq
    %v2106 = vshrl.u32 %v2105, 7
    %v2107 = vsub.s32 0, %v2106
    %v2108 = vrot.slane %v128, %v2107
    %v2109 = vadd.f32 %v2104, %v2108
    %v2110 = vlaneseq
    %v2111 = vshrl.u32 %v2110, 7
    %v2112 = vsub.s32 0, %v2111
    %v2113 = vrot.slane %v129, %v2112
    %v2115 = vsel %vm219, %v2109, 0
    %2117 = vmatprep.subr.mxu0 0.0
    %2118 = vmatpush1.msra.mxu0 %v112
    %2119 = vmatprep.subr.mxu0 0.0
    %2120 = vmatpush1.msra.mxu0 %v113
    %2121 = vmatprep.subr.mxu0 0.0
    %2122 = vmatpush1.msra.mxu0 %v114
    %2123 = vmatprep.subr.mxu0 0.0
    %2124 = vmatpush1.msra.mxu0 %v115
    %2125 = vmatprep.subr.mxu0 0.0
    %2126 = vmatpush1.msra.mxu0 0.0
    %2127 = vmatprep.subr.mxu0 0.0
    %2128 = vmatpush1.msra.mxu0 0.0
    %2129 = vmatprep.subr.mxu0 0.0
    %2130 = vmatpush1.msra.mxu0 0.0
    %2131 = vmatprep.subr.mxu0 0.0
    %2132 = vmatpush1.msra.mxu0 0.0
    %2133 = vmatprep.subr.mxu0 0.0
    %2134 = vmatpush1.msra.mxu0 0.0
    %2135 = vmatprep.subr.mxu0 0.0
    %2136 = vmatpush1.msra.mxu0 0.0
    %2137 = vmatprep.subr.mxu0 0.0
    %2138 = vmatpush1.msra.mxu0 0.0
    %2139 = vmatprep.subr.mxu0 0.0
    %2140 = vmatpush1.msra.mxu0 0.0
    %2141 = vmatprep.subr.mxu0 0.0
    %2142 = vmatpush1.msra.mxu0 0.0
    %2143 = vmatprep.subr.mxu0 0.0
    %2144 = vmatpush1.msra.mxu0 0.0
    %2145 = vmatprep.subr.mxu0 0.0
    %2146 = vmatpush1.msra.mxu0 0.0
    %2147 = vmatprep.subr.mxu0 0.0
    %2148 = vmatpush1.msra.mxu0 0.0
    %2149 = vmatprep.subr.mxu0 0.0
    %2150 = vmatpush1.msra.mxu0 0.0
    %2151 = vmatprep.subr.mxu0 0.0
    %2152 = vmatpush1.msra.mxu0 0.0
    %2153 = vmatprep.subr.mxu0 0.0
    %2154 = vmatpush1.msra.mxu0 0.0
    %2155 = vmatprep.subr.mxu0 0.0
    %2156 = vmatpush1.msra.mxu0 0.0
    %2157 = vmatprep.subr.mxu0 0.0
    %2158 = vmatpush1.msra.mxu0 0.0
    %2159 = vmatprep.subr.mxu0 0.0
    %2160 = vmatpush1.msra.mxu0 0.0
    %2161 = vmatprep.subr.mxu0 0.0
    %2162 = vmatpush1.msra.mxu0 0.0
    %2163 = vmatprep.subr.mxu0 0.0
    %2164 = vmatpush1.msra.mxu0 0.0
    %2165 = vmatprep.subr.mxu0 0.0
    %2166 = vmatpush1.msra.mxu0 0.0
    %2167 = vmatprep.subr.mxu0 0.0
    %2168 = vmatpush1.msra.mxu0 0.0
    %2169 = vmatprep.subr.mxu0 0.0
    %2170 = vmatpush1.msra.mxu0 0.0
    %2171 = vmatprep.subr.mxu0 0.0
    %2172 = vmatpush1.msra.mxu0 0.0
    %2173 = vmatprep.subr.mxu0 0.0
    %2174 = vmatpush1.msra.mxu0 0.0
    %2175 = vmatprep.subr.mxu0 0.0
    %2176 = vmatpush1.msra.mxu0 0.0
    %2177 = vmatprep.subr.mxu0 0.0
    %2178 = vmatpush1.msra.mxu0 0.0
    %2179 = vmatprep.subr.mxu0 0.0
    %2180 = vmatpush1.msra.mxu0 0.0
    %2181 = vmatprep.mubr.f32.mxu0 0.0
    %2182 = vmatmul.mubr.f32.gmra.mrb[0].mxu0 %v2115
    %v2183 = vpop.f32.mrb[0].mxu0
    %v2184 = vadd.f32 %v2113, %v2183
    %v2185 = vpop.f32.mrb[0].mxu0
    %2186 = vdwg.mxu0
    %v2187 = vmax.f32 %v2184, 0.0
    %v2188 = vlaneseq
    %v2189 = vshrl.u32 %v2188, 7
    %v2190 = vsub.s32 0, %v2189
    %v2191 = vrot.slane %v130, %v2190
    %v2193 = vsel %vm1156, %v2187, 0
    %2195 = vmatprep.subr.mxu0 0.0
    %2196 = vmatpush1.msra.mxu0 %v117
    %2197 = vmatprep.subr.mxu0 0.0
    %2198 = vmatpush1.msra.mxu0 %v118
    %2199 = vmatprep.subr.mxu0 0.0
    %2200 = vmatpush1.msra.mxu0 %v119
    %2201 = vmatprep.subr.mxu0 0.0
    %2202 = vmatpush1.msra.mxu0 %v120
    %2203 = vmatprep.subr.mxu0 0.0
    %2204 = vmatpush1.msra.mxu0 %v121
    %2205 = vmatprep.subr.mxu0 0.0
    %2206 = vmatpush1.msra.mxu0 %v122
    %2207 = vmatprep.subr.mxu0 0.0
    %2208 = vmatpush1.msra.mxu0 %v123
    %2209 = vmatprep.subr.mxu0 0.0
    %2210 = vmatpush1.msra.mxu0 %v124
    %2211 = vmatprep.subr.mxu0 0.0
    %2212 = vmatpush1.msra.mxu0 0.0
    %2213 = vmatprep.subr.mxu0 0.0
    %2214 = vmatpush1.msra.mxu0 0.0
    %2215 = vmatprep.subr.mxu0 0.0
    %2216 = vmatpush1.msra.mxu0 0.0
    %2217 = vmatprep.subr.mxu0 0.0
    %2218 = vmatpush1.msra.mxu0 0.0
    %2219 = vmatprep.subr.mxu0 0.0
    %2220 = vmatpush1.msra.mxu0 0.0
    %2221 = vmatprep.subr.mxu0 0.0
    %2222 = vmatpush1.msra.mxu0 0.0
    %2223 = vmatprep.subr.mxu0 0.0
    %2224 = vmatpush1.msra.mxu0 0.0
    %2225 = vmatprep.subr.mxu0 0.0
    %2226 = vmatpush1.msra.mxu0 0.0
    %2227 = vmatprep.subr.mxu0 0.0
    %2228 = vmatpush1.msra.mxu0 0.0
    %2229 = vmatprep.subr.mxu0 0.0
    %2230 = vmatpush1.msra.mxu0 0.0
    %2231 = vmatprep.subr.mxu0 0.0
    %2232 = vmatpush1.msra.mxu0 0.0
    %2233 = vmatprep.subr.mxu0 0.0
    %2234 = vmatpush1.msra.mxu0 0.0
    %2235 = vmatprep.subr.mxu0 0.0
    %2236 = vmatpush1.msra.mxu0 0.0
    %2237 = vmatprep.subr.mxu0 0.0
    %2238 = vmatpush1.msra.mxu0 0.0
    %2239 = vmatprep.subr.mxu0 0.0
    %2240 = vmatpush1.msra.mxu0 0.0
    %2241 = vmatprep.subr.mxu0 0.0
    %2242 = vmatpush1.msra.mxu0 0.0
    %2243 = vmatprep.subr.mxu0 0.0
    %2244 = vmatpush1.msra.mxu0 0.0
    %2245 = vmatprep.subr.mxu0 0.0
    %2246 = vmatpush1.msra.mxu0 0.0
    %2247 = vmatprep.subr.mxu0 0.0
    %2248 = vmatpush1.msra.mxu0 0.0
    %2249 = vmatprep.subr.mxu0 0.0
    %2250 = vmatpush1.msra.mxu0 0.0
    %2251 = vmatprep.subr.mxu0 0.0
    %2252 = vmatpush1.msra.mxu0 0.0
    %2253 = vmatprep.subr.mxu0 0.0
    %2254 = vmatpush1.msra.mxu0 0.0
    %2255 = vmatprep.subr.mxu0 0.0
    %2256 = vmatpush1.msra.mxu0 0.0
    %2257 = vmatprep.subr.mxu0 0.0
    %2258 = vmatpush1.msra.mxu0 0.0
    %2259 = vmatprep.mubr.f32.mxu0 0.0
    %2260 = vmatmul.mubr.f32.gmra.mrb[0].mxu0 %v2193
    %v2261 = vpop.f32.mrb[0].mxu0
    %v2262 = vadd.f32 %v2191, %v2261
    %v2263 = vpop.f32.mrb[0].mxu0
    %2264 = vdwg.mxu0
    %v2265 = vadd.f32 %v2109, %v2262
    %v2266 = vsel %vm219, %v2265, 0.0
    %2267 = vadd.xlane.f32.xlu0 %v2266
    %v2268 = vpop.xlane.xlu0 %2267
    %v2269 = vmul.f32 %v2268, %v1051
    %v2270 = vmul.f32 %v2265, %v2265
    %v2271 = vsel %vm219, %v2270, 0.0
    %2272 = vadd.xlane.f32.xlu0 %v2271
    %v2273 = vpop.xlane.xlu0 %2272
    %v2274 = vmul.f32 %v2273, %v1051
    %v2275 = vmul.f32 %v2269, %v2269
    %v2276 = vsub.f32 %v2274, %v2275
    %v2277 = vsub.f32 %v2265, %v2269
    %v2278 = vadd.f32 %v2276, 1e-05
    %v2279 = vrsqrt.pop %v2278
    %v2280 = vmul.f32 %v2277, %v2279
    %v2281 = vlaneseq
    %v2282 = vshrl.u32 %v2281, 7
    %v2283 = vsub.s32 0, %v2282
    %v2284 = vrot.slane %v131, %v2283
    %v2285 = vmul.f32 %v2280, %v2284
    %v2286 = vlaneseq
    %v2287 = vshrl.u32 %v2286, 7
    %v2288 = vsub.s32 0, %v2287
    %v2289 = vrot.slane %v132, %v2288
    %v2290 = vadd.f32 %v2285, %v2289
    %vm2291 = vcmp.eq.s32.totalorder %v136, 0
    %v2292 = vsel %vm2291, %v2290, 0.0
    %v2293 = vsel %vm219, %v2292, 0.0
    %v2294 = vrot.slane %v2293, 4
    %v2295 = vadd.f32 %v2293, %v2294
    %v2296 = vrot.slane %v2295, 2
    %v2297 = vadd.f32 %v2295, %v2296
    %v2298 = vrot.slane %v2297, 1
    %v2299 = vadd.f32 %v2297, %v2298
    %v2301 = vsel %vm219, %v2299, 0
    %2303 = vmatprep.subr.mxu0 0.0
    %2304 = vmatpush1.msra.mxu0 %v67
    %2305 = vmatprep.subr.mxu0 0.0
    %2306 = vmatpush1.msra.mxu0 %v68
    %2307 = vmatprep.subr.mxu0 0.0
    %2308 = vmatpush1.msra.mxu0 %v69
    %2309 = vmatprep.subr.mxu0 0.0
    %2310 = vmatpush1.msra.mxu0 %v70
    %2311 = vmatprep.subr.mxu0 0.0
    %2312 = vmatpush1.msra.mxu0 0.0
    %2313 = vmatprep.subr.mxu0 0.0
    %2314 = vmatpush1.msra.mxu0 0.0
    %2315 = vmatprep.subr.mxu0 0.0
    %2316 = vmatpush1.msra.mxu0 0.0
    %2317 = vmatprep.subr.mxu0 0.0
    %2318 = vmatpush1.msra.mxu0 0.0
    %2319 = vmatprep.subr.mxu0 0.0
    %2320 = vmatpush1.msra.mxu0 0.0
    %2321 = vmatprep.subr.mxu0 0.0
    %2322 = vmatpush1.msra.mxu0 0.0
    %2323 = vmatprep.subr.mxu0 0.0
    %2324 = vmatpush1.msra.mxu0 0.0
    %2325 = vmatprep.subr.mxu0 0.0
    %2326 = vmatpush1.msra.mxu0 0.0
    %2327 = vmatprep.subr.mxu0 0.0
    %2328 = vmatpush1.msra.mxu0 0.0
    %2329 = vmatprep.subr.mxu0 0.0
    %2330 = vmatpush1.msra.mxu0 0.0
    %2331 = vmatprep.subr.mxu0 0.0
    %2332 = vmatpush1.msra.mxu0 0.0
    %2333 = vmatprep.subr.mxu0 0.0
    %2334 = vmatpush1.msra.mxu0 0.0
    %2335 = vmatprep.subr.mxu0 0.0
    %2336 = vmatpush1.msra.mxu0 0.0
    %2337 = vmatprep.subr.mxu0 0.0
    %2338 = vmatpush1.msra.mxu0 0.0
    %2339 = vmatprep.subr.mxu0 0.0
    %2340 = vmatpush1.msra.mxu0 0.0
    %2341 = vmatprep.subr.mxu0 0.0
    %2342 = vmatpush1.msra.mxu0 0.0
    %2343 = vmatprep.subr.mxu0 0.0
    %2344 = vmatpush1.msra.mxu0 0.0
    %2345 = vmatprep.subr.mxu0 0.0
    %2346 = vmatpush1.msra.mxu0 0.0
    %2347 = vmatprep.subr.mxu0 0.0
    %2348 = vmatpush1.msra.mxu0 0.0
    %2349 = vmatprep.subr.mxu0 0.0
    %2350 = vmatpush1.msra.mxu0 0.0
    %2351 = vmatprep.subr.mxu0 0.0
    %2352 = vmatpush1.msra.mxu0 0.0
    %2353 = vmatprep.subr.mxu0 0.0
    %2354 = vmatpush1.msra.mxu0 0.0
    %2355 = vmatprep.subr.mxu0 0.0
    %2356 = vmatpush1.msra.mxu0 0.0
    %2357 = vmatprep.subr.mxu0 0.0
    %2358 = vmatpush1.msra.mxu0 0.0
    %2359 = vmatprep.subr.mxu0 0.0
    %2360 = vmatpush1.msra.mxu0 0.0
    %2361 = vmatprep.subr.mxu0 0.0
    %2362 = vmatpush1.msra.mxu0 0.0
    %2363 = vmatprep.subr.mxu0 0.0
    %2364 = vmatpush1.msra.mxu0 0.0
    %2365 = vmatprep.subr.mxu0 0.0
    %2366 = vmatpush1.msra.mxu0 0.0
    %2367 = vmatprep.mubr.f32.mxu0 0.0
    %2368 = vmatmul.mubr.f32.gmra.mrb[0].mxu0 %v2301
    %v2369 = vpop.f32.mrb[0].mxu0
    %v2370 = vadd.f32 %v72, %v2369
    %v2371 = vpop.f32.mrb[0].mxu0
    %2372 = vdwg.mxu0
    %s2373 = sld [smem:[#allocation2]]
    %vm2374 = vcmp.lt.s32.totalorder %v134, 64
    %v2375 = vsel %vm2374, %v2370, 0.0
    %vm2376 = vcmp.eq.s32.totalorder %v134, 64
    %v2377 = vstv %s2373
    %v2378 = vsel %vm2376, %v2377, %v2375
    %2379 = vst [vmem:[%s10 + $0x1] sm:$0x1] %v2378
    %v2380 = vld [vmem:[%s10] sm:$0xff]
    %2381 = vmatprep.subr.mxu0 0.0
    %2382 = vmatpush1.msra.mxu0 %v51
    %2383 = vmatprep.subr.mxu0 0.0
    %2384 = vmatpush1.msra.mxu0 %v52
    %2385 = vmatprep.subr.mxu0 0.0
    %2386 = vmatpush1.msra.mxu0 %v53
    %2387 = vmatprep.subr.mxu0 0.0
    %2388 = vmatpush1.msra.mxu0 %v54
    %2389 = vmatprep.subr.mxu0 0.0
    %2390 = vmatpush1.msra.mxu0 %v55
    %2391 = vmatprep.subr.mxu0 0.0
    %2392 = vmatpush1.msra.mxu0 %v56
    %2393 = vmatprep.subr.mxu0 0.0
    %2394 = vmatpush1.msra.mxu0 %v57
    %2395 = vmatprep.subr.mxu0 0.0
    %2396 = vmatpush1.msra.mxu0 %v58
    %2397 = vmatprep.subr.mxu0 0.0
    %2398 = vmatpush1.msra.mxu0 %v59
    %2399 = vmatprep.subr.mxu0 0.0
    %2400 = vmatpush1.msra.mxu0 %v60
    %2401 = vmatprep.subr.mxu0 0.0
    %2402 = vmatpush1.msra.mxu0 %v61
    %2403 = vmatprep.subr.mxu0 0.0
    %2404 = vmatpush1.msra.mxu0 %v62
    %2405 = vmatprep.subr.mxu0 0.0
    %2406 = vmatpush1.msra.mxu0 %v63
    %2407 = vmatprep.subr.mxu0 0.0
    %2408 = vmatpush1.msra.mxu0 %v64
    %2409 = vmatprep.subr.mxu0 0.0
    %2410 = vmatpush1.msra.mxu0 %v65
    %2411 = vmatprep.subr.mxu0 0.0
    %2412 = vmatpush1.msra.mxu0 %v66
    %2413 = vmatprep.subr.mxu0 0.0
    %2414 = vmatpush1.msra.mxu0 0.0
    %2415 = vmatprep.subr.mxu0 0.0
    %2416 = vmatpush1.msra.mxu0 0.0
    %2417 = vmatprep.subr.mxu0 0.0
    %2418 = vmatpush1.msra.mxu0 0.0
    %2419 = vmatprep.subr.mxu0 0.0
    %2420 = vmatpush1.msra.mxu0 0.0
    %2421 = vmatprep.subr.mxu0 0.0
    %2422 = vmatpush1.msra.mxu0 0.0
    %2423 = vmatprep.subr.mxu0 0.0
    %2424 = vmatpush1.msra.mxu0 0.0
    %2425 = vmatprep.subr.mxu0 0.0
    %2426 = vmatpush1.msra.mxu0 0.0
    %2427 = vmatprep.subr.mxu0 0.0
    %2428 = vmatpush1.msra.mxu0 0.0
    %2429 = vmatprep.subr.mxu0 0.0
    %2430 = vmatpush1.msra.mxu0 0.0
    %2431 = vmatprep.subr.mxu0 0.0
    %2432 = vmatpush1.msra.mxu0 0.0
    %2433 = vmatprep.subr.mxu0 0.0
    %2434 = vmatpush1.msra.mxu0 0.0
    %2435 = vmatprep.subr.mxu0 0.0
    %2436 = vmatpush1.msra.mxu0 0.0
    %2437 = vmatprep.subr.mxu0 0.0
    %2438 = vmatpush1.msra.mxu0 0.0
    %2439 = vmatprep.subr.mxu0 0.0
    %2440 = vmatpush1.msra.mxu0 0.0
    %2441 = vmatprep.subr.mxu0 0.0
    %2442 = vmatpush1.msra.mxu0 0.0
    %2443 = vmatprep.subr.mxu0 0.0
    %2444 = vmatpush1.msra.mxu0 0.0
    %2445 = vmatprep.mubr.f32.mxu0 0.0
    %2446 = vmatmul.mubr.f32.gmra.mrb[0].mxu0 %v2380
    %v2447 = vpop.f32.mrb[0].mxu0
    %v2448 = vadd.f32 %v141, %v2447
    %v2449 = vpop.f32.mrb[0].mxu0
    %2450 = vdwg.mxu0
    %v2451 = vadd.f32 %v2448, %v50
    %vm2452 = vcmp.le.s32.totalorder %v134, 1
    %v2453 = vsel %vm2452, 0.0, -1e+30
    %v2455 = vsel %vm219, %v2451, 0
    %2457 = vmatprep.subr.mxu0 0.0
    %2458 = vmatpush1.msra.mxu0 %v73
    %2459 = vmatprep.subr.mxu0 0.0
    %2460 = vmatpush1.msra.mxu0 %v74
    %2461 = vmatprep.subr.mxu0 0.0
    %2462 = vmatpush1.msra.mxu0 %v75
    %2463 = vmatprep.subr.mxu0 0.0
    %2464 = vmatpush1.msra.mxu0 %v76
    %2465 = vmatprep.subr.mxu0 0.0
    %2466 = vmatpush1.msra.mxu0 0.0
    %2467 = vmatprep.subr.mxu0 0.0
    %2468 = vmatpush1.msra.mxu0 0.0
    %2469 = vmatprep.subr.mxu0 0.0
    %2470 = vmatpush1.msra.mxu0 0.0
    %2471 = vmatprep.subr.mxu0 0.0
    %2472 = vmatpush1.msra.mxu0 0.0
    %2473 = vmatprep.subr.mxu0 0.0
    %2474 = vmatpush1.msra.mxu0 0.0
    %2475 = vmatprep.subr.mxu0 0.0
    %2476 = vmatpush1.msra.mxu0 0.0
    %2477 = vmatprep.subr.mxu0 0.0
    %2478 = vmatpush1.msra.mxu0 0.0
    %2479 = vmatprep.subr.mxu0 0.0
    %2480 = vmatpush1.msra.mxu0 0.0
    %2481 = vmatprep.subr.mxu0 0.0
    %2482 = vmatpush1.msra.mxu0 0.0
    %2483 = vmatprep.subr.mxu0 0.0
    %2484 = vmatpush1.msra.mxu0 0.0
    %2485 = vmatprep.subr.mxu0 0.0
    %2486 = vmatpush1.msra.mxu0 0.0
    %2487 = vmatprep.subr.mxu0 0.0
    %2488 = vmatpush1.msra.mxu0 0.0
    %2489 = vmatprep.subr.mxu0 0.0
    %2490 = vmatpush1.msra.mxu0 0.0
    %2491 = vmatprep.subr.mxu0 0.0
    %2492 = vmatpush1.msra.mxu0 0.0
    %2493 = vmatprep.subr.mxu0 0.0
    %2494 = vmatpush1.msra.mxu0 0.0
    %2495 = vmatprep.subr.mxu0 0.0
    %2496 = vmatpush1.msra.mxu0 0.0
    %2497 = vmatprep.subr.mxu0 0.0
    %2498 = vmatpush1.msra.mxu0 0.0
    %2499 = vmatprep.subr.mxu0 0.0
    %2500 = vmatpush1.msra.mxu0 0.0
    %2501 = vmatprep.subr.mxu0 0.0
    %2502 = vmatpush1.msra.mxu0 0.0
    %2503 = vmatprep.subr.mxu0 0.0
    %2504 = vmatpush1.msra.mxu0 0.0
    %2505 = vmatprep.subr.mxu0 0.0
    %2506 = vmatpush1.msra.mxu0 0.0
    %2507 = vmatprep.subr.mxu0 0.0
    %2508 = vmatpush1.msra.mxu0 0.0
    %2509 = vmatprep.subr.mxu0 0.0
    %2510 = vmatpush1.msra.mxu0 0.0
    %2511 = vmatprep.subr.mxu0 0.0
    %2512 = vmatpush1.msra.mxu0 0.0
    %2513 = vmatprep.subr.mxu0 0.0
    %2514 = vmatpush1.msra.mxu0 0.0
    %2515 = vmatprep.subr.mxu0 0.0
    %2516 = vmatpush1.msra.mxu0 0.0
    %2517 = vmatprep.subr.mxu0 0.0
    %2518 = vmatpush1.msra.mxu0 0.0
    %2519 = vmatprep.subr.mxu0 0.0
    %2520 = vmatpush1.msra.mxu0 0.0
    %2521 = vmatprep.mubr.f32.mxu0 0.0
    %2522 = vmatmul.mubr.f32.gmra.mrb[0].mxu0 %v2455
    %v2523 = vpop.f32.mrb[0].mxu0
    %v2524 = vadd.f32 %v218, %v2523
    %v2525 = vpop.f32.mrb[0].mxu0
    %2526 = vdwg.mxu0
    %2528 = vrot.lane.b32.xlu0 %v2524, 96
    %v2529 = vpop.permute.xlu0 %2528
    %v2530 = vsel %vm296, %v2524, 0
    %v2532 = vsel %vm296, %v2529, 0
    %2534 = vmatprep.subr.mxu0 0.0
    %2535 = vmatpush1.xpose.msra.mxu0 %v2532
    %2536 = vmatprep.subr.mxu0 0.0
    %2537 = vmatpush1.xpose.msra.mxu0 0.0
    %2538 = vmatprep.subr.mxu0 0.0
    %2539 = vmatpush1.xpose.msra.mxu0 0.0
    %2540 = vmatprep.subr.mxu0 0.0
    %2541 = vmatpush1.xpose.msra.mxu0 0.0
    %2542 = vmatprep.subr.mxu0 0.0
    %2543 = vmatpush1.xpose.msra.mxu0 0.0
    %2544 = vmatprep.subr.mxu0 0.0
    %2545 = vmatpush1.xpose.msra.mxu0 0.0
    %2546 = vmatprep.subr.mxu0 0.0
    %2547 = vmatpush1.xpose.msra.mxu0 0.0
    %2548 = vmatprep.subr.mxu0 0.0
    %2549 = vmatpush1.xpose.msra.mxu0 0.0
    %2550 = vmatprep.subr.mxu0 0.0
    %2551 = vmatpush1.xpose.msra.mxu0 0.0
    %2552 = vmatprep.subr.mxu0 0.0
    %2553 = vmatpush1.xpose.msra.mxu0 0.0
    %2554 = vmatprep.subr.mxu0 0.0
    %2555 = vmatpush1.xpose.msra.mxu0 0.0
    %2556 = vmatprep.subr.mxu0 0.0
    %2557 = vmatpush1.xpose.msra.mxu0 0.0
    %2558 = vmatprep.subr.mxu0 0.0
    %2559 = vmatpush1.xpose.msra.mxu0 0.0
    %2560 = vmatprep.subr.mxu0 0.0
    %2561 = vmatpush1.xpose.msra.mxu0 0.0
    %2562 = vmatprep.subr.mxu0 0.0
    %2563 = vmatpush1.xpose.msra.mxu0 0.0
    %2564 = vmatprep.subr.mxu0 0.0
    %2565 = vmatpush1.xpose.msra.mxu0 0.0
    %2566 = vmatprep.subr.mxu0 0.0
    %2567 = vmatpush1.xpose.msra.mxu0 0.0
    %2568 = vmatprep.subr.mxu0 0.0
    %2569 = vmatpush1.xpose.msra.mxu0 0.0
    %2570 = vmatprep.subr.mxu0 0.0
    %2571 = vmatpush1.xpose.msra.mxu0 0.0
    %2572 = vmatprep.subr.mxu0 0.0
    %2573 = vmatpush1.xpose.msra.mxu0 0.0
    %2574 = vmatprep.subr.mxu0 0.0
    %2575 = vmatpush1.xpose.msra.mxu0 0.0
    %2576 = vmatprep.subr.mxu0 0.0
    %2577 = vmatpush1.xpose.msra.mxu0 0.0
    %2578 = vmatprep.subr.mxu0 0.0
    %2579 = vmatpush1.xpose.msra.mxu0 0.0
    %2580 = vmatprep.subr.mxu0 0.0
    %2581 = vmatpush1.xpose.msra.mxu0 0.0
    %2582 = vmatprep.subr.mxu0 0.0
    %2583 = vmatpush1.xpose.msra.mxu0 0.0
    %2584 = vmatprep.subr.mxu0 0.0
    %2585 = vmatpush1.xpose.msra.mxu0 0.0
    %2586 = vmatprep.subr.mxu0 0.0
    %2587 = vmatpush1.xpose.msra.mxu0 0.0
    %2588 = vmatprep.subr.mxu0 0.0
    %2589 = vmatpush1.xpose.msra.mxu0 0.0
    %2590 = vmatprep.subr.mxu0 0.0
    %2591 = vmatpush1.xpose.msra.mxu0 0.0
    %2592 = vmatprep.subr.mxu0 0.0
    %2593 = vmatpush1.xpose.msra.mxu0 0.0
    %2594 = vmatprep.subr.mxu0 0.0
    %2595 = vmatpush1.xpose.msra.mxu0 0.0
    %2596 = vmatprep.subr.mxu0 0.0
    %2597 = vmatpush1.xpose.msra.mxu0 0.0
    %2598 = vmatprep.mubr.f32.mxu0 0.0
    %2599 = vmatmul.mubr.f32.gmra.mrb[0].mxu0 %v2530
    %v2600 = vpop.f32.mrb[0].mxu0
    %v2601 = vadd.f32 %v2453, %v2600
    %v2602 = vpop.f32.mrb[0].mxu0
    %2603 = vdwg.mxu0
    %v2604 = vsel %vm296, %v2601, -inf
    %2605 = vmax.xlane.f32.xlu0 %v2604
    %v2606 = vpop.xlane.xlu0 %2605
    %v2607 = vsub.f32 %v2601, %v2606
    %v2608 = vmul.f32 %v2607, 1.442695
    %v2609 = vpow.pop %v2608
    %v2610 = vsel %vm296, %v2609, 0.0
    %2611 = vadd.xlane.f32.xlu0 %v2610
    %v2612 = vpop.xlane.xlu0 %2611
    %v2613 = vrcp.pop %v2612
    %v2614 = vmul.f32 %v2609, %v2613
    %2615 = vrot.lane.b32.xlu0 %v2524, 64
    %v2616 = vpop.permute.xlu0 %2615
    %v2619 = vsel %vm296, %v2614, 0
    %2621 = vmatprep.subr.mxu0 0.0
    %2622 = vmatpush1.msra.mxu0 %v2616
    %2623 = vmatprep.subr.mxu0 0.0
    %2624 = vmatpush1.msra.mxu0 0.0
    %2625 = vmatprep.subr.mxu0 0.0
    %2626 = vmatpush1.msra.mxu0 0.0
    %2627 = vmatprep.subr.mxu0 0.0
    %2628 = vmatpush1.msra.mxu0 0.0
    %2629 = vmatprep.subr.mxu0 0.0
    %2630 = vmatpush1.msra.mxu0 0.0
    %2631 = vmatprep.subr.mxu0 0.0
    %2632 = vmatpush1.msra.mxu0 0.0
    %2633 = vmatprep.subr.mxu0 0.0
    %2634 = vmatpush1.msra.mxu0 0.0
    %2635 = vmatprep.subr.mxu0 0.0
    %2636 = vmatpush1.msra.mxu0 0.0
    %2637 = vmatprep.subr.mxu0 0.0
    %2638 = vmatpush1.msra.mxu0 0.0
    %2639 = vmatprep.subr.mxu0 0.0
    %2640 = vmatpush1.msra.mxu0 0.0
    %2641 = vmatprep.subr.mxu0 0.0
    %2642 = vmatpush1.msra.mxu0 0.0
    %2643 = vmatprep.subr.mxu0 0.0
    %2644 = vmatpush1.msra.mxu0 0.0
    %2645 = vmatprep.subr.mxu0 0.0
    %2646 = vmatpush1.msra.mxu0 0.0
    %2647 = vmatprep.subr.mxu0 0.0
    %2648 = vmatpush1.msra.mxu0 0.0
    %2649 = vmatprep.subr.mxu0 0.0
    %2650 = vmatpush1.msra.mxu0 0.0
    %2651 = vmatprep.subr.mxu0 0.0
    %2652 = vmatpush1.msra.mxu0 0.0
    %2653 = vmatprep.subr.mxu0 0.0
    %2654 = vmatpush1.msra.mxu0 0.0
    %2655 = vmatprep.subr.mxu0 0.0
    %2656 = vmatpush1.msra.mxu0 0.0
    %2657 = vmatprep.subr.mxu0 0.0
    %2658 = vmatpush1.msra.mxu0 0.0
    %2659 = vmatprep.subr.mxu0 0.0
    %2660 = vmatpush1.msra.mxu0 0.0
    %2661 = vmatprep.subr.mxu0 0.0
    %2662 = vmatpush1.msra.mxu0 0.0
    %2663 = vmatprep.subr.mxu0 0.0
    %2664 = vmatpush1.msra.mxu0 0.0
    %2665 = vmatprep.subr.mxu0 0.0
    %2666 = vmatpush1.msra.mxu0 0.0
    %2667 = vmatprep.subr.mxu0 0.0
    %2668 = vmatpush1.msra.mxu0 0.0
    %2669 = vmatprep.subr.mxu0 0.0
    %2670 = vmatpush1.msra.mxu0 0.0
    %2671 = vmatprep.subr.mxu0 0.0
    %2672 = vmatpush1.msra.mxu0 0.0
    %2673 = vmatprep.subr.mxu0 0.0
    %2674 = vmatpush1.msra.mxu0 0.0
    %2675 = vmatprep.subr.mxu0 0.0
    %2676 = vmatpush1.msra.mxu0 0.0
    %2677 = vmatprep.subr.mxu0 0.0
    %2678 = vmatpush1.msra.mxu0 0.0
    %2679 = vmatprep.subr.mxu0 0.0
    %2680 = vmatpush1.msra.mxu0 0.0
    %2681 = vmatprep.subr.mxu0 0.0
    %2682 = vmatpush1.msra.mxu0 0.0
    %2683 = vmatprep.subr.mxu0 0.0
    %2684 = vmatpush1.msra.mxu0 0.0
    %2685 = vmatprep.mubr.f32.mxu0 0.0
    %2686 = vmatmul.mubr.f32.gmra.mrb[0].mxu0 %v2619
    %v2687 = vpop.f32.mrb[0].mxu0
    %v2688 = vadd.f32 0.0, %v2687
    %v2689 = vpop.f32.mrb[0].mxu0
    %2690 = vdwg.mxu0
    %2691 = vrot.lane.b32.xlu0 %v2524, 120
    %v2692 = vpop.permute.xlu0 %2691
    %2693 = vrot.lane.b32.xlu0 %v2524, 88
    %v2694 = vpop.permute.xlu0 %2693
    %v2695 = vsel %vm296, %v2692, 0
    %v2697 = vsel %vm296, %v2694, 0
    %2699 = vmatprep.subr.mxu0 0.0
    %2700 = vmatpush1.xpose.msra.mxu0 %v2697
    %2701 = vmatprep.subr.mxu0 0.0
    %2702 = vmatpush1.xpose.msra.mxu0 0.0
    %2703 = vmatprep.subr.mxu0 0.0
    %2704 = vmatpush1.xpose.msra.mxu0 0.0
    %2705 = vmatprep.subr.mxu0 0.0
    %2706 = vmatpush1.xpose.msra.mxu0 0.0
    %2707 = vmatprep.subr.mxu0 0.0
    %2708 = vmatpush1.xpose.msra.mxu0 0.0
    %2709 = vmatprep.subr.mxu0 0.0
    %2710 = vmatpush1.xpose.msra.mxu0 0.0
    %2711 = vmatprep.subr.mxu0 0.0
    %2712 = vmatpush1.xpose.msra.mxu0 0.0
    %2713 = vmatprep.subr.mxu0 0.0
    %2714 = vmatpush1.xpose.msra.mxu0 0.0
    %2715 = vmatprep.subr.mxu0 0.0
    %2716 = vmatpush1.xpose.msra.mxu0 0.0
    %2717 = vmatprep.subr.mxu0 0.0
    %2718 = vmatpush1.xpose.msra.mxu0 0.0
    %2719 = vmatprep.subr.mxu0 0.0
    %2720 = vmatpush1.xpose.msra.mxu0 0.0
    %2721 = vmatprep.subr.mxu0 0.0
    %2722 = vmatpush1.xpose.msra.mxu0 0.0
    %2723 = vmatprep.subr.mxu0 0.0
    %2724 = vmatpush1.xpose.msra.mxu0 0.0
    %2725 = vmatprep.subr.mxu0 0.0
    %2726 = vmatpush1.xpose.msra.mxu0 0.0
    %2727 = vmatprep.subr.mxu0 0.0
    %2728 = vmatpush1.xpose.msra.mxu0 0.0
    %2729 = vmatprep.subr.mxu0 0.0
    %2730 = vmatpush1.xpose.msra.mxu0 0.0
    %2731 = vmatprep.subr.mxu0 0.0
    %2732 = vmatpush1.xpose.msra.mxu0 0.0
    %2733 = vmatprep.subr.mxu0 0.0
    %2734 = vmatpush1.xpose.msra.mxu0 0.0
    %2735 = vmatprep.subr.mxu0 0.0
    %2736 = vmatpush1.xpose.msra.mxu0 0.0
    %2737 = vmatprep.subr.mxu0 0.0
    %2738 = vmatpush1.xpose.msra.mxu0 0.0
    %2739 = vmatprep.subr.mxu0 0.0
    %2740 = vmatpush1.xpose.msra.mxu0 0.0
    %2741 = vmatprep.subr.mxu0 0.0
    %2742 = vmatpush1.xpose.msra.mxu0 0.0
    %2743 = vmatprep.subr.mxu0 0.0
    %2744 = vmatpush1.xpose.msra.mxu0 0.0
    %2745 = vmatprep.subr.mxu0 0.0
    %2746 = vmatpush1.xpose.msra.mxu0 0.0
    %2747 = vmatprep.subr.mxu0 0.0
    %2748 = vmatpush1.xpose.msra.mxu0 0.0
    %2749 = vmatprep.subr.mxu0 0.0
    %2750 = vmatpush1.xpose.msra.mxu0 0.0
    %2751 = vmatprep.subr.mxu0 0.0
    %2752 = vmatpush1.xpose.msra.mxu0 0.0
    %2753 = vmatprep.subr.mxu0 0.0
    %2754 = vmatpush1.xpose.msra.mxu0 0.0
    %2755 = vmatprep.subr.mxu0 0.0
    %2756 = vmatpush1.xpose.msra.mxu0 0.0
    %2757 = vmatprep.subr.mxu0 0.0
    %2758 = vmatpush1.xpose.msra.mxu0 0.0
    %2759 = vmatprep.subr.mxu0 0.0
    %2760 = vmatpush1.xpose.msra.mxu0 0.0
    %2761 = vmatprep.subr.mxu0 0.0
    %2762 = vmatpush1.xpose.msra.mxu0 0.0
    %2763 = vmatprep.mubr.f32.mxu0 0.0
    %2764 = vmatmul.mubr.f32.gmra.mrb[0].mxu0 %v2695
    %v2765 = vpop.f32.mrb[0].mxu0
    %v2766 = vadd.f32 %v2453, %v2765
    %v2767 = vpop.f32.mrb[0].mxu0
    %2768 = vdwg.mxu0
    %v2769 = vsel %vm296, %v2766, -inf
    %2770 = vmax.xlane.f32.xlu0 %v2769
    %v2771 = vpop.xlane.xlu0 %2770
    %v2772 = vsub.f32 %v2766, %v2771
    %v2773 = vmul.f32 %v2772, 1.442695
    %v2774 = vpow.pop %v2773
    %v2775 = vsel %vm296, %v2774, 0.0
    %2776 = vadd.xlane.f32.xlu0 %v2775
    %v2777 = vpop.xlane.xlu0 %2776
    %v2778 = vrcp.pop %v2777
    %v2779 = vmul.f32 %v2774, %v2778
    %2780 = vrot.lane.b32.xlu0 %v2524, 56
    %v2781 = vpop.permute.xlu0 %2780
    %v2784 = vsel %vm296, %v2779, 0
    %2786 = vmatprep.subr.mxu0 0.0
    %2787 = vmatpush1.msra.mxu0 %v2781
    %2788 = vmatprep.subr.mxu0 0.0
    %2789 = vmatpush1.msra.mxu0 0.0
    %2790 = vmatprep.subr.mxu0 0.0
    %2791 = vmatpush1.msra.mxu0 0.0
    %2792 = vmatprep.subr.mxu0 0.0
    %2793 = vmatpush1.msra.mxu0 0.0
    %2794 = vmatprep.subr.mxu0 0.0
    %2795 = vmatpush1.msra.mxu0 0.0
    %2796 = vmatprep.subr.mxu0 0.0
    %2797 = vmatpush1.msra.mxu0 0.0
    %2798 = vmatprep.subr.mxu0 0.0
    %2799 = vmatpush1.msra.mxu0 0.0
    %2800 = vmatprep.subr.mxu0 0.0
    %2801 = vmatpush1.msra.mxu0 0.0
    %2802 = vmatprep.subr.mxu0 0.0
    %2803 = vmatpush1.msra.mxu0 0.0
    %2804 = vmatprep.subr.mxu0 0.0
    %2805 = vmatpush1.msra.mxu0 0.0
    %2806 = vmatprep.subr.mxu0 0.0
    %2807 = vmatpush1.msra.mxu0 0.0
    %2808 = vmatprep.subr.mxu0 0.0
    %2809 = vmatpush1.msra.mxu0 0.0
    %2810 = vmatprep.subr.mxu0 0.0
    %2811 = vmatpush1.msra.mxu0 0.0
    %2812 = vmatprep.subr.mxu0 0.0
    %2813 = vmatpush1.msra.mxu0 0.0
    %2814 = vmatprep.subr.mxu0 0.0
    %2815 = vmatpush1.msra.mxu0 0.0
    %2816 = vmatprep.subr.mxu0 0.0
    %2817 = vmatpush1.msra.mxu0 0.0
    %2818 = vmatprep.subr.mxu0 0.0
    %2819 = vmatpush1.msra.mxu0 0.0
    %2820 = vmatprep.subr.mxu0 0.0
    %2821 = vmatpush1.msra.mxu0 0.0
    %2822 = vmatprep.subr.mxu0 0.0
    %2823 = vmatpush1.msra.mxu0 0.0
    %2824 = vmatprep.subr.mxu0 0.0
    %2825 = vmatpush1.msra.mxu0 0.0
    %2826 = vmatprep.subr.mxu0 0.0
    %2827 = vmatpush1.msra.mxu0 0.0
    %2828 = vmatprep.subr.mxu0 0.0
    %2829 = vmatpush1.msra.mxu0 0.0
    %2830 = vmatprep.subr.mxu0 0.0
    %2831 = vmatpush1.msra.mxu0 0.0
    %2832 = vmatprep.subr.mxu0 0.0
    %2833 = vmatpush1.msra.mxu0 0.0
    %2834 = vmatprep.subr.mxu0 0.0
    %2835 = vmatpush1.msra.mxu0 0.0
    %2836 = vmatprep.subr.mxu0 0.0
    %2837 = vmatpush1.msra.mxu0 0.0
    %2838 = vmatprep.subr.mxu0 0.0
    %2839 = vmatpush1.msra.mxu0 0.0
    %2840 = vmatprep.subr.mxu0 0.0
    %2841 = vmatpush1.msra.mxu0 0.0
    %2842 = vmatprep.subr.mxu0 0.0
    %2843 = vmatpush1.msra.mxu0 0.0
    %2844 = vmatprep.subr.mxu0 0.0
    %2845 = vmatpush1.msra.mxu0 0.0
    %2846 = vmatprep.subr.mxu0 0.0
    %2847 = vmatpush1.msra.mxu0 0.0
    %2848 = vmatprep.subr.mxu0 0.0
    %2849 = vmatpush1.msra.mxu0 0.0
    %2850 = vmatprep.mubr.f32.mxu0 0.0
    %2851 = vmatmul.mubr.f32.gmra.mrb[0].mxu0 %v2784
    %v2852 = vpop.f32.mrb[0].mxu0
    %v2853 = vadd.f32 0.0, %v2852
    %v2854 = vpop.f32.mrb[0].mxu0
    %2855 = vdwg.mxu0
    %2856 = vrot.lane.b32.xlu0 %v2524, 112
    %v2857 = vpop.permute.xlu0 %2856
    %2858 = vrot.lane.b32.xlu0 %v2524, 80
    %v2859 = vpop.permute.xlu0 %2858
    %v2860 = vsel %vm296, %v2857, 0
    %v2862 = vsel %vm296, %v2859, 0
    %2864 = vmatprep.subr.mxu0 0.0
    %2865 = vmatpush1.xpose.msra.mxu0 %v2862
    %2866 = vmatprep.subr.mxu0 0.0
    %2867 = vmatpush1.xpose.msra.mxu0 0.0
    %2868 = vmatprep.subr.mxu0 0.0
    %2869 = vmatpush1.xpose.msra.mxu0 0.0
    %2870 = vmatprep.subr.mxu0 0.0
    %2871 = vmatpush1.xpose.msra.mxu0 0.0
    %2872 = vmatprep.subr.mxu0 0.0
    %2873 = vmatpush1.xpose.msra.mxu0 0.0
    %2874 = vmatprep.subr.mxu0 0.0
    %2875 = vmatpush1.xpose.msra.mxu0 0.0
    %2876 = vmatprep.subr.mxu0 0.0
    %2877 = vmatpush1.xpose.msra.mxu0 0.0
    %2878 = vmatprep.subr.mxu0 0.0
    %2879 = vmatpush1.xpose.msra.mxu0 0.0
    %2880 = vmatprep.subr.mxu0 0.0
    %2881 = vmatpush1.xpose.msra.mxu0 0.0
    %2882 = vmatprep.subr.mxu0 0.0
    %2883 = vmatpush1.xpose.msra.mxu0 0.0
    %2884 = vmatprep.subr.mxu0 0.0
    %2885 = vmatpush1.xpose.msra.mxu0 0.0
    %2886 = vmatprep.subr.mxu0 0.0
    %2887 = vmatpush1.xpose.msra.mxu0 0.0
    %2888 = vmatprep.subr.mxu0 0.0
    %2889 = vmatpush1.xpose.msra.mxu0 0.0
    %2890 = vmatprep.subr.mxu0 0.0
    %2891 = vmatpush1.xpose.msra.mxu0 0.0
    %2892 = vmatprep.subr.mxu0 0.0
    %2893 = vmatpush1.xpose.msra.mxu0 0.0
    %2894 = vmatprep.subr.mxu0 0.0
    %2895 = vmatpush1.xpose.msra.mxu0 0.0
    %2896 = vmatprep.subr.mxu0 0.0
    %2897 = vmatpush1.xpose.msra.mxu0 0.0
    %2898 = vmatprep.subr.mxu0 0.0
    %2899 = vmatpush1.xpose.msra.mxu0 0.0
    %2900 = vmatprep.subr.mxu0 0.0
    %2901 = vmatpush1.xpose.msra.mxu0 0.0
    %2902 = vmatprep.subr.mxu0 0.0
    %2903 = vmatpush1.xpose.msra.mxu0 0.0
    %2904 = vmatprep.subr.mxu0 0.0
    %2905 = vmatpush1.xpose.msra.mxu0 0.0
    %2906 = vmatprep.subr.mxu0 0.0
    %2907 = vmatpush1.xpose.msra.mxu0 0.0
    %2908 = vmatprep.subr.mxu0 0.0
    %2909 = vmatpush1.xpose.msra.mxu0 0.0
    %2910 = vmatprep.subr.mxu0 0.0
    %2911 = vmatpush1.xpose.msra.mxu0 0.0
    %2912 = vmatprep.subr.mxu0 0.0
    %2913 = vmatpush1.xpose.msra.mxu0 0.0
    %2914 = vmatprep.subr.mxu0 0.0
    %2915 = vmatpush1.xpose.msra.mxu0 0.0
    %2916 = vmatprep.subr.mxu0 0.0
    %2917 = vmatpush1.xpose.msra.mxu0 0.0
    %2918 = vmatprep.subr.mxu0 0.0
    %2919 = vmatpush1.xpose.msra.mxu0 0.0
    %2920 = vmatprep.subr.mxu0 0.0
    %2921 = vmatpush1.xpose.msra.mxu0 0.0
    %2922 = vmatprep.subr.mxu0 0.0
    %2923 = vmatpush1.xpose.msra.mxu0 0.0
    %2924 = vmatprep.subr.mxu0 0.0
    %2925 = vmatpush1.xpose.msra.mxu0 0.0
    %2926 = vmatprep.subr.mxu0 0.0
    %2927 = vmatpush1.xpose.msra.mxu0 0.0
    %2928 = vmatprep.mubr.f32.mxu0 0.0
    %2929 = vmatmul.mubr.f32.gmra.mrb[0].mxu0 %v2860
    %v2930 = vpop.f32.mrb[0].mxu0
    %v2931 = vadd.f32 %v2453, %v2930
    %v2932 = vpop.f32.mrb[0].mxu0
    %2933 = vdwg.mxu0
    %v2934 = vsel %vm296, %v2931, -inf
    %2935 = vmax.xlane.f32.xlu0 %v2934
    %v2936 = vpop.xlane.xlu0 %2935
    %v2937 = vsub.f32 %v2931, %v2936
    %v2938 = vmul.f32 %v2937, 1.442695
    %v2939 = vpow.pop %v2938
    %v2940 = vsel %vm296, %v2939, 0.0
    %2941 = vadd.xlane.f32.xlu0 %v2940
    %v2942 = vpop.xlane.xlu0 %2941
    %v2943 = vrcp.pop %v2942
    %v2944 = vmul.f32 %v2939, %v2943
    %2945 = vrot.lane.b32.xlu0 %v2524, 48
    %v2946 = vpop.permute.xlu0 %2945
    %v2949 = vsel %vm296, %v2944, 0
    %2951 = vmatprep.subr.mxu0 0.0
    %2952 = vmatpush1.msra.mxu0 %v2946
    %2953 = vmatprep.subr.mxu0 0.0
    %2954 = vmatpush1.msra.mxu0 0.0
    %2955 = vmatprep.subr.mxu0 0.0
    %2956 = vmatpush1.msra.mxu0 0.0
    %2957 = vmatprep.subr.mxu0 0.0
    %2958 = vmatpush1.msra.mxu0 0.0
    %2959 = vmatprep.subr.mxu0 0.0
    %2960 = vmatpush1.msra.mxu0 0.0
    %2961 = vmatprep.subr.mxu0 0.0
    %2962 = vmatpush1.msra.mxu0 0.0
    %2963 = vmatprep.subr.mxu0 0.0
    %2964 = vmatpush1.msra.mxu0 0.0
    %2965 = vmatprep.subr.mxu0 0.0
    %2966 = vmatpush1.msra.mxu0 0.0
    %2967 = vmatprep.subr.mxu0 0.0
    %2968 = vmatpush1.msra.mxu0 0.0
    %2969 = vmatprep.subr.mxu0 0.0
    %2970 = vmatpush1.msra.mxu0 0.0
    %2971 = vmatprep.subr.mxu0 0.0
    %2972 = vmatpush1.msra.mxu0 0.0
    %2973 = vmatprep.subr.mxu0 0.0
    %2974 = vmatpush1.msra.mxu0 0.0
    %2975 = vmatprep.subr.mxu0 0.0
    %2976 = vmatpush1.msra.mxu0 0.0
    %2977 = vmatprep.subr.mxu0 0.0
    %2978 = vmatpush1.msra.mxu0 0.0
    %2979 = vmatprep.subr.mxu0 0.0
    %2980 = vmatpush1.msra.mxu0 0.0
    %2981 = vmatprep.subr.mxu0 0.0
    %2982 = vmatpush1.msra.mxu0 0.0
    %2983 = vmatprep.subr.mxu0 0.0
    %2984 = vmatpush1.msra.mxu0 0.0
    %2985 = vmatprep.subr.mxu0 0.0
    %2986 = vmatpush1.msra.mxu0 0.0
    %2987 = vmatprep.subr.mxu0 0.0
    %2988 = vmatpush1.msra.mxu0 0.0
    %2989 = vmatprep.subr.mxu0 0.0
    %2990 = vmatpush1.msra.mxu0 0.0
    %2991 = vmatprep.subr.mxu0 0.0
    %2992 = vmatpush1.msra.mxu0 0.0
    %2993 = vmatprep.subr.mxu0 0.0
    %2994 = vmatpush1.msra.mxu0 0.0
    %2995 = vmatprep.subr.mxu0 0.0
    %2996 = vmatpush1.msra.mxu0 0.0
    %2997 = vmatprep.subr.mxu0 0.0
    %2998 = vmatpush1.msra.mxu0 0.0
    %2999 = vmatprep.subr.mxu0 0.0
    %3000 = vmatpush1.msra.mxu0 0.0
    %3001 = vmatprep.subr.mxu0 0.0
    %3002 = vmatpush1.msra.mxu0 0.0
    %3003 = vmatprep.subr.mxu0 0.0
    %3004 = vmatpush1.msra.mxu0 0.0
    %3005 = vmatprep.subr.mxu0 0.0
    %3006 = vmatpush1.msra.mxu0 0.0
    %3007 = vmatprep.subr.mxu0 0.0
    %3008 = vmatpush1.msra.mxu0 0.0
    %3009 = vmatprep.subr.mxu0 0.0
    %3010 = vmatpush1.msra.mxu0 0.0
    %3011 = vmatprep.subr.mxu0 0.0
    %3012 = vmatpush1.msra.mxu0 0.0
    %3013 = vmatprep.subr.mxu0 0.0
    %3014 = vmatpush1.msra.mxu0 0.0
    %3015 = vmatprep.mubr.f32.mxu0 0.0
    %3016 = vmatmul.mubr.f32.gmra.mrb[0].mxu0 %v2949
    %v3017 = vpop.f32.mrb[0].mxu0
    %v3018 = vadd.f32 0.0, %v3017
    %v3019 = vpop.f32.mrb[0].mxu0
    %3020 = vdwg.mxu0
    %3021 = vrot.lane.b32.xlu0 %v2524, 104
    %v3022 = vpop.permute.xlu0 %3021
    %3023 = vrot.lane.b32.xlu0 %v2524, 72
    %v3024 = vpop.permute.xlu0 %3023
    %v3025 = vsel %vm296, %v3022, 0
    %v3027 = vsel %vm296, %v3024, 0
    %3029 = vmatprep.subr.mxu0 0.0
    %3030 = vmatpush1.xpose.msra.mxu0 %v3027
    %3031 = vmatprep.subr.mxu0 0.0
    %3032 = vmatpush1.xpose.msra.mxu0 0.0
    %3033 = vmatprep.subr.mxu0 0.0
    %3034 = vmatpush1.xpose.msra.mxu0 0.0
    %3035 = vmatprep.subr.mxu0 0.0
    %3036 = vmatpush1.xpose.msra.mxu0 0.0
    %3037 = vmatprep.subr.mxu0 0.0
    %3038 = vmatpush1.xpose.msra.mxu0 0.0
    %3039 = vmatprep.subr.mxu0 0.0
    %3040 = vmatpush1.xpose.msra.mxu0 0.0
    %3041 = vmatprep.subr.mxu0 0.0
    %3042 = vmatpush1.xpose.msra.mxu0 0.0
    %3043 = vmatprep.subr.mxu0 0.0
    %3044 = vmatpush1.xpose.msra.mxu0 0.0
    %3045 = vmatprep.subr.mxu0 0.0
    %3046 = vmatpush1.xpose.msra.mxu0 0.0
    %3047 = vmatprep.subr.mxu0 0.0
    %3048 = vmatpush1.xpose.msra.mxu0 0.0
    %3049 = vmatprep.subr.mxu0 0.0
    %3050 = vmatpush1.xpose.msra.mxu0 0.0
    %3051 = vmatprep.subr.mxu0 0.0
    %3052 = vmatpush1.xpose.msra.mxu0 0.0
    %3053 = vmatprep.subr.mxu0 0.0
    %3054 = vmatpush1.xpose.msra.mxu0 0.0
    %3055 = vmatprep.subr.mxu0 0.0
    %3056 = vmatpush1.xpose.msra.mxu0 0.0
    %3057 = vmatprep.subr.mxu0 0.0
    %3058 = vmatpush1.xpose.msra.mxu0 0.0
    %3059 = vmatprep.subr.mxu0 0.0
    %3060 = vmatpush1.xpose.msra.mxu0 0.0
    %3061 = vmatprep.subr.mxu0 0.0
    %3062 = vmatpush1.xpose.msra.mxu0 0.0
    %3063 = vmatprep.subr.mxu0 0.0
    %3064 = vmatpush1.xpose.msra.mxu0 0.0
    %3065 = vmatprep.subr.mxu0 0.0
    %3066 = vmatpush1.xpose.msra.mxu0 0.0
    %3067 = vmatprep.subr.mxu0 0.0
    %3068 = vmatpush1.xpose.msra.mxu0 0.0
    %3069 = vmatprep.subr.mxu0 0.0
    %3070 = vmatpush1.xpose.msra.mxu0 0.0
    %3071 = vmatprep.subr.mxu0 0.0
    %3072 = vmatpush1.xpose.msra.mxu0 0.0
    %3073 = vmatprep.subr.mxu0 0.0
    %3074 = vmatpush1.xpose.msra.mxu0 0.0
    %3075 = vmatprep.subr.mxu0 0.0
    %3076 = vmatpush1.xpose.msra.mxu0 0.0
    %3077 = vmatprep.subr.mxu0 0.0
    %3078 = vmatpush1.xpose.msra.mxu0 0.0
    %3079 = vmatprep.subr.mxu0 0.0
    %3080 = vmatpush1.xpose.msra.mxu0 0.0
    %3081 = vmatprep.subr.mxu0 0.0
    %3082 = vmatpush1.xpose.msra.mxu0 0.0
    %3083 = vmatprep.subr.mxu0 0.0
    %3084 = vmatpush1.xpose.msra.mxu0 0.0
    %3085 = vmatprep.subr.mxu0 0.0
    %3086 = vmatpush1.xpose.msra.mxu0 0.0
    %3087 = vmatprep.subr.mxu0 0.0
    %3088 = vmatpush1.xpose.msra.mxu0 0.0
    %3089 = vmatprep.subr.mxu0 0.0
    %3090 = vmatpush1.xpose.msra.mxu0 0.0
    %3091 = vmatprep.subr.mxu0 0.0
    %3092 = vmatpush1.xpose.msra.mxu0 0.0
    %3093 = vmatprep.mubr.f32.mxu0 0.0
    %3094 = vmatmul.mubr.f32.gmra.mrb[0].mxu0 %v3025
    %v3095 = vpop.f32.mrb[0].mxu0
    %v3096 = vadd.f32 %v2453, %v3095
    %v3097 = vpop.f32.mrb[0].mxu0
    %3098 = vdwg.mxu0
    %v3099 = vsel %vm296, %v3096, -inf
    %3100 = vmax.xlane.f32.xlu0 %v3099
    %v3101 = vpop.xlane.xlu0 %3100
    %v3102 = vsub.f32 %v3096, %v3101
    %v3103 = vmul.f32 %v3102, 1.442695
    %v3104 = vpow.pop %v3103
    %v3105 = vsel %vm296, %v3104, 0.0
    %3106 = vadd.xlane.f32.xlu0 %v3105
    %v3107 = vpop.xlane.xlu0 %3106
    %v3108 = vrcp.pop %v3107
    %v3109 = vmul.f32 %v3104, %v3108
    %3110 = vrot.lane.b32.xlu0 %v2524, 40
    %v3111 = vpop.permute.xlu0 %3110
    %v3114 = vsel %vm296, %v3109, 0
    %3116 = vmatprep.subr.mxu0 0.0
    %3117 = vmatpush1.msra.mxu0 %v3111
    %3118 = vmatprep.subr.mxu0 0.0
    %3119 = vmatpush1.msra.mxu0 0.0
    %3120 = vmatprep.subr.mxu0 0.0
    %3121 = vmatpush1.msra.mxu0 0.0
    %3122 = vmatprep.subr.mxu0 0.0
    %3123 = vmatpush1.msra.mxu0 0.0
    %3124 = vmatprep.subr.mxu0 0.0
    %3125 = vmatpush1.msra.mxu0 0.0
    %3126 = vmatprep.subr.mxu0 0.0
    %3127 = vmatpush1.msra.mxu0 0.0
    %3128 = vmatprep.subr.mxu0 0.0
    %3129 = vmatpush1.msra.mxu0 0.0
    %3130 = vmatprep.subr.mxu0 0.0
    %3131 = vmatpush1.msra.mxu0 0.0
    %3132 = vmatprep.subr.mxu0 0.0
    %3133 = vmatpush1.msra.mxu0 0.0
    %3134 = vmatprep.subr.mxu0 0.0
    %3135 = vmatpush1.msra.mxu0 0.0
    %3136 = vmatprep.subr.mxu0 0.0
    %3137 = vmatpush1.msra.mxu0 0.0
    %3138 = vmatprep.subr.mxu0 0.0
    %3139 = vmatpush1.msra.mxu0 0.0
    %3140 = vmatprep.subr.mxu0 0.0
    %3141 = vmatpush1.msra.mxu0 0.0
    %3142 = vmatprep.subr.mxu0 0.0
    %3143 = vmatpush1.msra.mxu0 0.0
    %3144 = vmatprep.subr.mxu0 0.0
    %3145 = vmatpush1.msra.mxu0 0.0
    %3146 = vmatprep.subr.mxu0 0.0
    %3147 = vmatpush1.msra.mxu0 0.0
    %3148 = vmatprep.subr.mxu0 0.0
    %3149 = vmatpush1.msra.mxu0 0.0
    %3150 = vmatprep.subr.mxu0 0.0
    %3151 = vmatpush1.msra.mxu0 0.0
    %3152 = vmatprep.subr.mxu0 0.0
    %3153 = vmatpush1.msra.mxu0 0.0
    %3154 = vmatprep.subr.mxu0 0.0
    %3155 = vmatpush1.msra.mxu0 0.0
    %3156 = vmatprep.subr.mxu0 0.0
    %3157 = vmatpush1.msra.mxu0 0.0
    %3158 = vmatprep.subr.mxu0 0.0
    %3159 = vmatpush1.msra.mxu0 0.0
    %3160 = vmatprep.subr.mxu0 0.0
    %3161 = vmatpush1.msra.mxu0 0.0
    %3162 = vmatprep.subr.mxu0 0.0
    %3163 = vmatpush1.msra.mxu0 0.0
    %3164 = vmatprep.subr.mxu0 0.0
    %3165 = vmatpush1.msra.mxu0 0.0
    %3166 = vmatprep.subr.mxu0 0.0
    %3167 = vmatpush1.msra.mxu0 0.0
    %3168 = vmatprep.subr.mxu0 0.0
    %3169 = vmatpush1.msra.mxu0 0.0
    %3170 = vmatprep.subr.mxu0 0.0
    %3171 = vmatpush1.msra.mxu0 0.0
    %3172 = vmatprep.subr.mxu0 0.0
    %3173 = vmatpush1.msra.mxu0 0.0
    %3174 = vmatprep.subr.mxu0 0.0
    %3175 = vmatpush1.msra.mxu0 0.0
    %3176 = vmatprep.subr.mxu0 0.0
    %3177 = vmatpush1.msra.mxu0 0.0
    %3178 = vmatprep.subr.mxu0 0.0
    %3179 = vmatpush1.msra.mxu0 0.0
    %3180 = vmatprep.mubr.f32.mxu0 0.0
    %3181 = vmatmul.mubr.f32.gmra.mrb[0].mxu0 %v3114
    %v3182 = vpop.f32.mrb[0].mxu0
    %v3183 = vadd.f32 0.0, %v3182
    %v3184 = vpop.f32.mrb[0].mxu0
    %3185 = vdwg.mxu0
    %3187 = vrot.lane.b32.xlu0 %v2853, 8
    %v3188 = vpop.permute.xlu0 %3187
    %3191 = vrot.lane.b32.xlu0 %v3018, 16
    %v3192 = vpop.permute.xlu0 %3191
    %3195 = vrot.lane.b32.xlu0 %v3183, 24
    %v3196 = vpop.permute.xlu0 %3195
    %v3198 = vsel %vm296, %v2688, %v3188
    %v3199 = vsel %vm966, %v3198, %v3192
    %v3200 = vsel %vm968, %v3199, %v3196
    %v3202 = vsel %vm219, %v3200, 0
    %3204 = vmatprep.subr.mxu0 0.0
    %3205 = vmatpush1.msra.mxu0 %v77
    %3206 = vmatprep.subr.mxu0 0.0
    %3207 = vmatpush1.msra.mxu0 %v78
    %3208 = vmatprep.subr.mxu0 0.0
    %3209 = vmatpush1.msra.mxu0 %v79
    %3210 = vmatprep.subr.mxu0 0.0
    %3211 = vmatpush1.msra.mxu0 %v80
    %3212 = vmatprep.subr.mxu0 0.0
    %3213 = vmatpush1.msra.mxu0 0.0
    %3214 = vmatprep.subr.mxu0 0.0
    %3215 = vmatpush1.msra.mxu0 0.0
    %3216 = vmatprep.subr.mxu0 0.0
    %3217 = vmatpush1.msra.mxu0 0.0
    %3218 = vmatprep.subr.mxu0 0.0
    %3219 = vmatpush1.msra.mxu0 0.0
    %3220 = vmatprep.subr.mxu0 0.0
    %3221 = vmatpush1.msra.mxu0 0.0
    %3222 = vmatprep.subr.mxu0 0.0
    %3223 = vmatpush1.msra.mxu0 0.0
    %3224 = vmatprep.subr.mxu0 0.0
    %3225 = vmatpush1.msra.mxu0 0.0
    %3226 = vmatprep.subr.mxu0 0.0
    %3227 = vmatpush1.msra.mxu0 0.0
    %3228 = vmatprep.subr.mxu0 0.0
    %3229 = vmatpush1.msra.mxu0 0.0
    %3230 = vmatprep.subr.mxu0 0.0
    %3231 = vmatpush1.msra.mxu0 0.0
    %3232 = vmatprep.subr.mxu0 0.0
    %3233 = vmatpush1.msra.mxu0 0.0
    %3234 = vmatprep.subr.mxu0 0.0
    %3235 = vmatpush1.msra.mxu0 0.0
    %3236 = vmatprep.subr.mxu0 0.0
    %3237 = vmatpush1.msra.mxu0 0.0
    %3238 = vmatprep.subr.mxu0 0.0
    %3239 = vmatpush1.msra.mxu0 0.0
    %3240 = vmatprep.subr.mxu0 0.0
    %3241 = vmatpush1.msra.mxu0 0.0
    %3242 = vmatprep.subr.mxu0 0.0
    %3243 = vmatpush1.msra.mxu0 0.0
    %3244 = vmatprep.subr.mxu0 0.0
    %3245 = vmatpush1.msra.mxu0 0.0
    %3246 = vmatprep.subr.mxu0 0.0
    %3247 = vmatpush1.msra.mxu0 0.0
    %3248 = vmatprep.subr.mxu0 0.0
    %3249 = vmatpush1.msra.mxu0 0.0
    %3250 = vmatprep.subr.mxu0 0.0
    %3251 = vmatpush1.msra.mxu0 0.0
    %3252 = vmatprep.subr.mxu0 0.0
    %3253 = vmatpush1.msra.mxu0 0.0
    %3254 = vmatprep.subr.mxu0 0.0
    %3255 = vmatpush1.msra.mxu0 0.0
    %3256 = vmatprep.subr.mxu0 0.0
    %3257 = vmatpush1.msra.mxu0 0.0
    %3258 = vmatprep.subr.mxu0 0.0
    %3259 = vmatpush1.msra.mxu0 0.0
    %3260 = vmatprep.subr.mxu0 0.0
    %3261 = vmatpush1.msra.mxu0 0.0
    %3262 = vmatprep.subr.mxu0 0.0
    %3263 = vmatpush1.msra.mxu0 0.0
    %3264 = vmatprep.subr.mxu0 0.0
    %3265 = vmatpush1.msra.mxu0 0.0
    %3266 = vmatprep.subr.mxu0 0.0
    %3267 = vmatpush1.msra.mxu0 0.0
    %3268 = vmatprep.mubr.f32.mxu0 0.0
    %3269 = vmatmul.mubr.f32.gmra.mrb[0].mxu0 %v3202
    %v3270 = vpop.f32.mrb[0].mxu0
    %v3271 = vadd.f32 %v973, %v3270
    %v3272 = vpop.f32.mrb[0].mxu0
    %3273 = vdwg.mxu0
    %v3274 = vadd.f32 %v2451, %v3271
    %v3275 = vsel %vm219, %v3274, 0.0
    %3276 = vadd.xlane.f32.xlu0 %v3275
    %v3277 = vpop.xlane.xlu0 %3276
    %v3278 = vmul.f32 %v3277, %v1051
    %v3279 = vmul.f32 %v3274, %v3274
    %v3280 = vsel %vm219, %v3279, 0.0
    %3281 = vadd.xlane.f32.xlu0 %v3280
    %v3282 = vpop.xlane.xlu0 %3281
    %v3283 = vmul.f32 %v3282, %v1051
    %v3284 = vmul.f32 %v3278, %v3278
    %v3285 = vsub.f32 %v3283, %v3284
    %v3286 = vsub.f32 %v3274, %v3278
    %v3287 = vadd.f32 %v3285, 1e-05
    %v3288 = vrsqrt.pop %v3287
    %v3289 = vmul.f32 %v3286, %v3288
    %v3290 = vmul.f32 %v3289, %v1067
    %v3291 = vadd.f32 %v3290, %v1072
    %v3293 = vsel %vm219, %v3291, 0
    %3295 = vmatprep.subr.mxu0 0.0
    %3296 = vmatpush1.msra.mxu0 %v81
    %3297 = vmatprep.subr.mxu0 0.0
    %3298 = vmatpush1.msra.mxu0 %v82
    %3299 = vmatprep.subr.mxu0 0.0
    %3300 = vmatpush1.msra.mxu0 %v83
    %3301 = vmatprep.subr.mxu0 0.0
    %3302 = vmatpush1.msra.mxu0 %v84
    %3303 = vmatprep.subr.mxu0 0.0
    %3304 = vmatpush1.msra.mxu0 0.0
    %3305 = vmatprep.subr.mxu0 0.0
    %3306 = vmatpush1.msra.mxu0 0.0
    %3307 = vmatprep.subr.mxu0 0.0
    %3308 = vmatpush1.msra.mxu0 0.0
    %3309 = vmatprep.subr.mxu0 0.0
    %3310 = vmatpush1.msra.mxu0 0.0
    %3311 = vmatprep.subr.mxu0 0.0
    %3312 = vmatpush1.msra.mxu0 0.0
    %3313 = vmatprep.subr.mxu0 0.0
    %3314 = vmatpush1.msra.mxu0 0.0
    %3315 = vmatprep.subr.mxu0 0.0
    %3316 = vmatpush1.msra.mxu0 0.0
    %3317 = vmatprep.subr.mxu0 0.0
    %3318 = vmatpush1.msra.mxu0 0.0
    %3319 = vmatprep.subr.mxu0 0.0
    %3320 = vmatpush1.msra.mxu0 0.0
    %3321 = vmatprep.subr.mxu0 0.0
    %3322 = vmatpush1.msra.mxu0 0.0
    %3323 = vmatprep.subr.mxu0 0.0
    %3324 = vmatpush1.msra.mxu0 0.0
    %3325 = vmatprep.subr.mxu0 0.0
    %3326 = vmatpush1.msra.mxu0 0.0
    %3327 = vmatprep.subr.mxu0 0.0
    %3328 = vmatpush1.msra.mxu0 0.0
    %3329 = vmatprep.subr.mxu0 0.0
    %3330 = vmatpush1.msra.mxu0 0.0
    %3331 = vmatprep.subr.mxu0 0.0
    %3332 = vmatpush1.msra.mxu0 0.0
    %3333 = vmatprep.subr.mxu0 0.0
    %3334 = vmatpush1.msra.mxu0 0.0
    %3335 = vmatprep.subr.mxu0 0.0
    %3336 = vmatpush1.msra.mxu0 0.0
    %3337 = vmatprep.subr.mxu0 0.0
    %3338 = vmatpush1.msra.mxu0 0.0
    %3339 = vmatprep.subr.mxu0 0.0
    %3340 = vmatpush1.msra.mxu0 0.0
    %3341 = vmatprep.subr.mxu0 0.0
    %3342 = vmatpush1.msra.mxu0 0.0
    %3343 = vmatprep.subr.mxu0 0.0
    %3344 = vmatpush1.msra.mxu0 0.0
    %3345 = vmatprep.subr.mxu0 0.0
    %3346 = vmatpush1.msra.mxu0 0.0
    %3347 = vmatprep.subr.mxu0 0.0
    %3348 = vmatpush1.msra.mxu0 0.0
    %3349 = vmatprep.subr.mxu0 0.0
    %3350 = vmatpush1.msra.mxu0 0.0
    %3351 = vmatprep.subr.mxu0 0.0
    %3352 = vmatpush1.msra.mxu0 0.0
    %3353 = vmatprep.subr.mxu0 0.0
    %3354 = vmatpush1.msra.mxu0 0.0
    %3355 = vmatprep.subr.mxu0 0.0
    %3356 = vmatpush1.msra.mxu0 0.0
    %3357 = vmatprep.subr.mxu0 0.0
    %3358 = vmatpush1.msra.mxu0 0.0
    %3359 = vmatprep.mubr.f32.mxu0 0.0
    %3360 = vmatmul.mubr.f32.gmra.mrb[0].mxu0 %v3293
    %v3361 = vpop.f32.mrb[0].mxu0
    %v3362 = vadd.f32 %v1077, %v3361
    %v3363 = vpop.f32.mrb[0].mxu0
    %3364 = vdwg.mxu0
    %v3365 = vmax.f32 %v3362, 0.0
    %v3367 = vsel %vm1156, %v3365, 0
    %3369 = vmatprep.subr.mxu0 0.0
    %3370 = vmatpush1.msra.mxu0 %v85
    %3371 = vmatprep.subr.mxu0 0.0
    %3372 = vmatpush1.msra.mxu0 %v86
    %3373 = vmatprep.subr.mxu0 0.0
    %3374 = vmatpush1.msra.mxu0 %v87
    %3375 = vmatprep.subr.mxu0 0.0
    %3376 = vmatpush1.msra.mxu0 %v88
    %3377 = vmatprep.subr.mxu0 0.0
    %3378 = vmatpush1.msra.mxu0 %v89
    %3379 = vmatprep.subr.mxu0 0.0
    %3380 = vmatpush1.msra.mxu0 %v90
    %3381 = vmatprep.subr.mxu0 0.0
    %3382 = vmatpush1.msra.mxu0 %v91
    %3383 = vmatprep.subr.mxu0 0.0
    %3384 = vmatpush1.msra.mxu0 %v92
    %3385 = vmatprep.subr.mxu0 0.0
    %3386 = vmatpush1.msra.mxu0 0.0
    %3387 = vmatprep.subr.mxu0 0.0
    %3388 = vmatpush1.msra.mxu0 0.0
    %3389 = vmatprep.subr.mxu0 0.0
    %3390 = vmatpush1.msra.mxu0 0.0
    %3391 = vmatprep.subr.mxu0 0.0
    %3392 = vmatpush1.msra.mxu0 0.0
    %3393 = vmatprep.subr.mxu0 0.0
    %3394 = vmatpush1.msra.mxu0 0.0
    %3395 = vmatprep.subr.mxu0 0.0
    %3396 = vmatpush1.msra.mxu0 0.0
    %3397 = vmatprep.subr.mxu0 0.0
    %3398 = vmatpush1.msra.mxu0 0.0
    %3399 = vmatprep.subr.mxu0 0.0
    %3400 = vmatpush1.msra.mxu0 0.0
    %3401 = vmatprep.subr.mxu0 0.0
    %3402 = vmatpush1.msra.mxu0 0.0
    %3403 = vmatprep.subr.mxu0 0.0
    %3404 = vmatpush1.msra.mxu0 0.0
    %3405 = vmatprep.subr.mxu0 0.0
    %3406 = vmatpush1.msra.mxu0 0.0
    %3407 = vmatprep.subr.mxu0 0.0
    %3408 = vmatpush1.msra.mxu0 0.0
    %3409 = vmatprep.subr.mxu0 0.0
    %3410 = vmatpush1.msra.mxu0 0.0
    %3411 = vmatprep.subr.mxu0 0.0
    %3412 = vmatpush1.msra.mxu0 0.0
    %3413 = vmatprep.subr.mxu0 0.0
    %3414 = vmatpush1.msra.mxu0 0.0
    %3415 = vmatprep.subr.mxu0 0.0
    %3416 = vmatpush1.msra.mxu0 0.0
    %3417 = vmatprep.subr.mxu0 0.0
    %3418 = vmatpush1.msra.mxu0 0.0
    %3419 = vmatprep.subr.mxu0 0.0
    %3420 = vmatpush1.msra.mxu0 0.0
    %3421 = vmatprep.subr.mxu0 0.0
    %3422 = vmatpush1.msra.mxu0 0.0
    %3423 = vmatprep.subr.mxu0 0.0
    %3424 = vmatpush1.msra.mxu0 0.0
    %3425 = vmatprep.subr.mxu0 0.0
    %3426 = vmatpush1.msra.mxu0 0.0
    %3427 = vmatprep.subr.mxu0 0.0
    %3428 = vmatpush1.msra.mxu0 0.0
    %3429 = vmatprep.subr.mxu0 0.0
    %3430 = vmatpush1.msra.mxu0 0.0
    %3431 = vmatprep.subr.mxu0 0.0
    %3432 = vmatpush1.msra.mxu0 0.0
    %3433 = vmatprep.mubr.f32.mxu0 0.0
    %3434 = vmatmul.mubr.f32.gmra.mrb[0].mxu0 %v3367
    %v3435 = vpop.f32.mrb[0].mxu0
    %v3436 = vadd.f32 %v1155, %v3435
    %v3437 = vpop.f32.mrb[0].mxu0
    %3438 = vdwg.mxu0
    %v3439 = vadd.f32 %v3291, %v3436
    %v3440 = vsel %vm219, %v3439, 0.0
    %3441 = vadd.xlane.f32.xlu0 %v3440
    %v3442 = vpop.xlane.xlu0 %3441
    %v3443 = vmul.f32 %v3442, %v1051
    %v3444 = vmul.f32 %v3439, %v3439
    %v3445 = vsel %vm219, %v3444, 0.0
    %3446 = vadd.xlane.f32.xlu0 %v3445
    %v3447 = vpop.xlane.xlu0 %3446
    %v3448 = vmul.f32 %v3447, %v1051
    %v3449 = vmul.f32 %v3443, %v3443
    %v3450 = vsub.f32 %v3448, %v3449
    %v3451 = vsub.f32 %v3439, %v3443
    %v3452 = vadd.f32 %v3450, 1e-05
    %v3453 = vrsqrt.pop %v3452
    %v3454 = vmul.f32 %v3451, %v3453
    %v3455 = vmul.f32 %v3454, %v1249
    %v3456 = vadd.f32 %v3455, %v1254
    %v3458 = vsel %vm219, %v3456, 0
    %3460 = vmatprep.subr.mxu0 0.0
    %3461 = vmatpush1.msra.mxu0 %v102
    %3462 = vmatprep.subr.mxu0 0.0
    %3463 = vmatpush1.msra.mxu0 %v103
    %3464 = vmatprep.subr.mxu0 0.0
    %3465 = vmatpush1.msra.mxu0 %v104
    %3466 = vmatprep.subr.mxu0 0.0
    %3467 = vmatpush1.msra.mxu0 %v105
    %3468 = vmatprep.subr.mxu0 0.0
    %3469 = vmatpush1.msra.mxu0 0.0
    %3470 = vmatprep.subr.mxu0 0.0
    %3471 = vmatpush1.msra.mxu0 0.0
    %3472 = vmatprep.subr.mxu0 0.0
    %3473 = vmatpush1.msra.mxu0 0.0
    %3474 = vmatprep.subr.mxu0 0.0
    %3475 = vmatpush1.msra.mxu0 0.0
    %3476 = vmatprep.subr.mxu0 0.0
    %3477 = vmatpush1.msra.mxu0 0.0
    %3478 = vmatprep.subr.mxu0 0.0
    %3479 = vmatpush1.msra.mxu0 0.0
    %3480 = vmatprep.subr.mxu0 0.0
    %3481 = vmatpush1.msra.mxu0 0.0
    %3482 = vmatprep.subr.mxu0 0.0
    %3483 = vmatpush1.msra.mxu0 0.0
    %3484 = vmatprep.subr.mxu0 0.0
    %3485 = vmatpush1.msra.mxu0 0.0
    %3486 = vmatprep.subr.mxu0 0.0
    %3487 = vmatpush1.msra.mxu0 0.0
    %3488 = vmatprep.subr.mxu0 0.0
    %3489 = vmatpush1.msra.mxu0 0.0
    %3490 = vmatprep.subr.mxu0 0.0
    %3491 = vmatpush1.msra.mxu0 0.0
    %3492 = vmatprep.subr.mxu0 0.0
    %3493 = vmatpush1.msra.mxu0 0.0
    %3494 = vmatprep.subr.mxu0 0.0
    %3495 = vmatpush1.msra.mxu0 0.0
    %3496 = vmatprep.subr.mxu0 0.0
    %3497 = vmatpush1.msra.mxu0 0.0
    %3498 = vmatprep.subr.mxu0 0.0
    %3499 = vmatpush1.msra.mxu0 0.0
    %3500 = vmatprep.subr.mxu0 0.0
    %3501 = vmatpush1.msra.mxu0 0.0
    %3502 = vmatprep.subr.mxu0 0.0
    %3503 = vmatpush1.msra.mxu0 0.0
    %3504 = vmatprep.subr.mxu0 0.0
    %3505 = vmatpush1.msra.mxu0 0.0
    %3506 = vmatprep.subr.mxu0 0.0
    %3507 = vmatpush1.msra.mxu0 0.0
    %3508 = vmatprep.subr.mxu0 0.0
    %3509 = vmatpush1.msra.mxu0 0.0
    %3510 = vmatprep.subr.mxu0 0.0
    %3511 = vmatpush1.msra.mxu0 0.0
    %3512 = vmatprep.subr.mxu0 0.0
    %3513 = vmatpush1.msra.mxu0 0.0
    %3514 = vmatprep.subr.mxu0 0.0
    %3515 = vmatpush1.msra.mxu0 0.0
    %3516 = vmatprep.subr.mxu0 0.0
    %3517 = vmatpush1.msra.mxu0 0.0
    %3518 = vmatprep.subr.mxu0 0.0
    %3519 = vmatpush1.msra.mxu0 0.0
    %3520 = vmatprep.subr.mxu0 0.0
    %3521 = vmatpush1.msra.mxu0 0.0
    %3522 = vmatprep.subr.mxu0 0.0
    %3523 = vmatpush1.msra.mxu0 0.0
    %3524 = vmatprep.mubr.f32.mxu0 0.0
    %3525 = vmatmul.mubr.f32.gmra.mrb[0].mxu0 %v3458
    %v3526 = vpop.f32.mrb[0].mxu0
    %v3527 = vadd.f32 %v1259, %v3526
    %v3528 = vpop.f32.mrb[0].mxu0
    %3529 = vdwg.mxu0
    %3531 = vrot.lane.b32.xlu0 %v3527, 96
    %v3532 = vpop.permute.xlu0 %3531
    %v3533 = vsel %vm296, %v3527, 0
    %v3535 = vsel %vm296, %v3532, 0
    %3537 = vmatprep.subr.mxu0 0.0
    %3538 = vmatpush1.xpose.msra.mxu0 %v3535
    %3539 = vmatprep.subr.mxu0 0.0
    %3540 = vmatpush1.xpose.msra.mxu0 0.0
    %3541 = vmatprep.subr.mxu0 0.0
    %3542 = vmatpush1.xpose.msra.mxu0 0.0
    %3543 = vmatprep.subr.mxu0 0.0
    %3544 = vmatpush1.xpose.msra.mxu0 0.0
    %3545 = vmatprep.subr.mxu0 0.0
    %3546 = vmatpush1.xpose.msra.mxu0 0.0
    %3547 = vmatprep.subr.mxu0 0.0
    %3548 = vmatpush1.xpose.msra.mxu0 0.0
    %3549 = vmatprep.subr.mxu0 0.0
    %3550 = vmatpush1.xpose.msra.mxu0 0.0
    %3551 = vmatprep.subr.mxu0 0.0
    %3552 = vmatpush1.xpose.msra.mxu0 0.0
    %3553 = vmatprep.subr.mxu0 0.0
    %3554 = vmatpush1.xpose.msra.mxu0 0.0
    %3555 = vmatprep.subr.mxu0 0.0
    %3556 = vmatpush1.xpose.msra.mxu0 0.0
    %3557 = vmatprep.subr.mxu0 0.0
    %3558 = vmatpush1.xpose.msra.mxu0 0.0
    %3559 = vmatprep.subr.mxu0 0.0
    %3560 = vmatpush1.xpose.msra.mxu0 0.0
    %3561 = vmatprep.subr.mxu0 0.0
    %3562 = vmatpush1.xpose.msra.mxu0 0.0
    %3563 = vmatprep.subr.mxu0 0.0
    %3564 = vmatpush1.xpose.msra.mxu0 0.0
    %3565 = vmatprep.subr.mxu0 0.0
    %3566 = vmatpush1.xpose.msra.mxu0 0.0
    %3567 = vmatprep.subr.mxu0 0.0
    %3568 = vmatpush1.xpose.msra.mxu0 0.0
    %3569 = vmatprep.subr.mxu0 0.0
    %3570 = vmatpush1.xpose.msra.mxu0 0.0
    %3571 = vmatprep.subr.mxu0 0.0
    %3572 = vmatpush1.xpose.msra.mxu0 0.0
    %3573 = vmatprep.subr.mxu0 0.0
    %3574 = vmatpush1.xpose.msra.mxu0 0.0
    %3575 = vmatprep.subr.mxu0 0.0
    %3576 = vmatpush1.xpose.msra.mxu0 0.0
    %3577 = vmatprep.subr.mxu0 0.0
    %3578 = vmatpush1.xpose.msra.mxu0 0.0
    %3579 = vmatprep.subr.mxu0 0.0
    %3580 = vmatpush1.xpose.msra.mxu0 0.0
    %3581 = vmatprep.subr.mxu0 0.0
    %3582 = vmatpush1.xpose.msra.mxu0 0.0
    %3583 = vmatprep.subr.mxu0 0.0
    %3584 = vmatpush1.xpose.msra.mxu0 0.0
    %3585 = vmatprep.subr.mxu0 0.0
    %3586 = vmatpush1.xpose.msra.mxu0 0.0
    %3587 = vmatprep.subr.mxu0 0.0
    %3588 = vmatpush1.xpose.msra.mxu0 0.0
    %3589 = vmatprep.subr.mxu0 0.0
    %3590 = vmatpush1.xpose.msra.mxu0 0.0
    %3591 = vmatprep.subr.mxu0 0.0
    %3592 = vmatpush1.xpose.msra.mxu0 0.0
    %3593 = vmatprep.subr.mxu0 0.0
    %3594 = vmatpush1.xpose.msra.mxu0 0.0
    %3595 = vmatprep.subr.mxu0 0.0
    %3596 = vmatpush1.xpose.msra.mxu0 0.0
    %3597 = vmatprep.subr.mxu0 0.0
    %3598 = vmatpush1.xpose.msra.mxu0 0.0
    %3599 = vmatprep.subr.mxu0 0.0
    %3600 = vmatpush1.xpose.msra.mxu0 0.0
    %3601 = vmatprep.mubr.f32.mxu0 0.0
    %3602 = vmatmul.mubr.f32.gmra.mrb[0].mxu0 %v3533
    %v3603 = vpop.f32.mrb[0].mxu0
    %v3604 = vadd.f32 %v2453, %v3603
    %v3605 = vpop.f32.mrb[0].mxu0
    %3606 = vdwg.mxu0
    %v3607 = vsel %vm296, %v3604, -inf
    %3608 = vmax.xlane.f32.xlu0 %v3607
    %v3609 = vpop.xlane.xlu0 %3608
    %v3610 = vsub.f32 %v3604, %v3609
    %v3611 = vmul.f32 %v3610, 1.442695
    %v3612 = vpow.pop %v3611
    %v3613 = vsel %vm296, %v3612, 0.0
    %3614 = vadd.xlane.f32.xlu0 %v3613
    %v3615 = vpop.xlane.xlu0 %3614
    %v3616 = vrcp.pop %v3615
    %v3617 = vmul.f32 %v3612, %v3616
    %3618 = vrot.lane.b32.xlu0 %v3527, 64
    %v3619 = vpop.permute.xlu0 %3618
    %v3622 = vsel %vm296, %v3617, 0
    %3624 = vmatprep.subr.mxu0 0.0
    %3625 = vmatpush1.msra.mxu0 %v3619
    %3626 = vmatprep.subr.mxu0 0.0
    %3627 = vmatpush1.msra.mxu0 0.0
    %3628 = vmatprep.subr.mxu0 0.0
    %3629 = vmatpush1.msra.mxu0 0.0
    %3630 = vmatprep.subr.mxu0 0.0
    %3631 = vmatpush1.msra.mxu0 0.0
    %3632 = vmatprep.subr.mxu0 0.0
    %3633 = vmatpush1.msra.mxu0 0.0
    %3634 = vmatprep.subr.mxu0 0.0
    %3635 = vmatpush1.msra.mxu0 0.0
    %3636 = vmatprep.subr.mxu0 0.0
    %3637 = vmatpush1.msra.mxu0 0.0
    %3638 = vmatprep.subr.mxu0 0.0
    %3639 = vmatpush1.msra.mxu0 0.0
    %3640 = vmatprep.subr.mxu0 0.0
    %3641 = vmatpush1.msra.mxu0 0.0
    %3642 = vmatprep.subr.mxu0 0.0
    %3643 = vmatpush1.msra.mxu0 0.0
    %3644 = vmatprep.subr.mxu0 0.0
    %3645 = vmatpush1.msra.mxu0 0.0
    %3646 = vmatprep.subr.mxu0 0.0
    %3647 = vmatpush1.msra.mxu0 0.0
    %3648 = vmatprep.subr.mxu0 0.0
    %3649 = vmatpush1.msra.mxu0 0.0
    %3650 = vmatprep.subr.mxu0 0.0
    %3651 = vmatpush1.msra.mxu0 0.0
    %3652 = vmatprep.subr.mxu0 0.0
    %3653 = vmatpush1.msra.mxu0 0.0
    %3654 = vmatprep.subr.mxu0 0.0
    %3655 = vmatpush1.msra.mxu0 0.0
    %3656 = vmatprep.subr.mxu0 0.0
    %3657 = vmatpush1.msra.mxu0 0.0
    %3658 = vmatprep.subr.mxu0 0.0
    %3659 = vmatpush1.msra.mxu0 0.0
    %3660 = vmatprep.subr.mxu0 0.0
    %3661 = vmatpush1.msra.mxu0 0.0
    %3662 = vmatprep.subr.mxu0 0.0
    %3663 = vmatpush1.msra.mxu0 0.0
    %3664 = vmatprep.subr.mxu0 0.0
    %3665 = vmatpush1.msra.mxu0 0.0
    %3666 = vmatprep.subr.mxu0 0.0
    %3667 = vmatpush1.msra.mxu0 0.0
    %3668 = vmatprep.subr.mxu0 0.0
    %3669 = vmatpush1.msra.mxu0 0.0
    %3670 = vmatprep.subr.mxu0 0.0
    %3671 = vmatpush1.msra.mxu0 0.0
    %3672 = vmatprep.subr.mxu0 0.0
    %3673 = vmatpush1.msra.mxu0 0.0
    %3674 = vmatprep.subr.mxu0 0.0
    %3675 = vmatpush1.msra.mxu0 0.0
    %3676 = vmatprep.subr.mxu0 0.0
    %3677 = vmatpush1.msra.mxu0 0.0
    %3678 = vmatprep.subr.mxu0 0.0
    %3679 = vmatpush1.msra.mxu0 0.0
    %3680 = vmatprep.subr.mxu0 0.0
    %3681 = vmatpush1.msra.mxu0 0.0
    %3682 = vmatprep.subr.mxu0 0.0
    %3683 = vmatpush1.msra.mxu0 0.0
    %3684 = vmatprep.subr.mxu0 0.0
    %3685 = vmatpush1.msra.mxu0 0.0
    %3686 = vmatprep.subr.mxu0 0.0
    %3687 = vmatpush1.msra.mxu0 0.0
    %3688 = vmatprep.mubr.f32.mxu0 0.0
    %3689 = vmatmul.mubr.f32.gmra.mrb[0].mxu0 %v3622
    %v3690 = vpop.f32.mrb[0].mxu0
    %v3691 = vadd.f32 0.0, %v3690
    %v3692 = vpop.f32.mrb[0].mxu0
    %3693 = vdwg.mxu0
    %3694 = vrot.lane.b32.xlu0 %v3527, 120
    %v3695 = vpop.permute.xlu0 %3694
    %3696 = vrot.lane.b32.xlu0 %v3527, 88
    %v3697 = vpop.permute.xlu0 %3696
    %v3698 = vsel %vm296, %v3695, 0
    %v3700 = vsel %vm296, %v3697, 0
    %3702 = vmatprep.subr.mxu0 0.0
    %3703 = vmatpush1.xpose.msra.mxu0 %v3700
    %3704 = vmatprep.subr.mxu0 0.0
    %3705 = vmatpush1.xpose.msra.mxu0 0.0
    %3706 = vmatprep.subr.mxu0 0.0
    %3707 = vmatpush1.xpose.msra.mxu0 0.0
    %3708 = vmatprep.subr.mxu0 0.0
    %3709 = vmatpush1.xpose.msra.mxu0 0.0
    %3710 = vmatprep.subr.mxu0 0.0
    %3711 = vmatpush1.xpose.msra.mxu0 0.0
    %3712 = vmatprep.subr.mxu0 0.0
    %3713 = vmatpush1.xpose.msra.mxu0 0.0
    %3714 = vmatprep.subr.mxu0 0.0
    %3715 = vmatpush1.xpose.msra.mxu0 0.0
    %3716 = vmatprep.subr.mxu0 0.0
    %3717 = vmatpush1.xpose.msra.mxu0 0.0
    %3718 = vmatprep.subr.mxu0 0.0
    %3719 = vmatpush1.xpose.msra.mxu0 0.0
    %3720 = vmatprep.subr.mxu0 0.0
    %3721 = vmatpush1.xpose.msra.mxu0 0.0
    %3722 = vmatprep.subr.mxu0 0.0
    %3723 = vmatpush1.xpose.msra.mxu0 0.0
    %3724 = vmatprep.subr.mxu0 0.0
    %3725 = vmatpush1.xpose.msra.mxu0 0.0
    %3726 = vmatprep.subr.mxu0 0.0
    %3727 = vmatpush1.xpose.msra.mxu0 0.0
    %3728 = vmatprep.subr.mxu0 0.0
    %3729 = vmatpush1.xpose.msra.mxu0 0.0
    %3730 = vmatprep.subr.mxu0 0.0
    %3731 = vmatpush1.xpose.msra.mxu0 0.0
    %3732 = vmatprep.subr.mxu0 0.0
    %3733 = vmatpush1.xpose.msra.mxu0 0.0
    %3734 = vmatprep.subr.mxu0 0.0
    %3735 = vmatpush1.xpose.msra.mxu0 0.0
    %3736 = vmatprep.subr.mxu0 0.0
    %3737 = vmatpush1.xpose.msra.mxu0 0.0
    %3738 = vmatprep.subr.mxu0 0.0
    %3739 = vmatpush1.xpose.msra.mxu0 0.0
    %3740 = vmatprep.subr.mxu0 0.0
    %3741 = vmatpush1.xpose.msra.mxu0 0.0
    %3742 = vmatprep.subr.mxu0 0.0
    %3743 = vmatpush1.xpose.msra.mxu0 0.0
    %3744 = vmatprep.subr.mxu0 0.0
    %3745 = vmatpush1.xpose.msra.mxu0 0.0
    %3746 = vmatprep.subr.mxu0 0.0
    %3747 = vmatpush1.xpose.msra.mxu0 0.0
    %3748 = vmatprep.subr.mxu0 0.0
    %3749 = vmatpush1.xpose.msra.mxu0 0.0
    %3750 = vmatprep.subr.mxu0 0.0
    %3751 = vmatpush1.xpose.msra.mxu0 0.0
    %3752 = vmatprep.subr.mxu0 0.0
    %3753 = vmatpush1.xpose.msra.mxu0 0.0
    %3754 = vmatprep.subr.mxu0 0.0
    %3755 = vmatpush1.xpose.msra.mxu0 0.0
    %3756 = vmatprep.subr.mxu0 0.0
    %3757 = vmatpush1.xpose.msra.mxu0 0.0
    %3758 = vmatprep.subr.mxu0 0.0
    %3759 = vmatpush1.xpose.msra.mxu0 0.0
    %3760 = vmatprep.subr.mxu0 0.0
    %3761 = vmatpush1.xpose.msra.mxu0 0.0
    %3762 = vmatprep.subr.mxu0 0.0
    %3763 = vmatpush1.xpose.msra.mxu0 0.0
    %3764 = vmatprep.subr.mxu0 0.0
    %3765 = vmatpush1.xpose.msra.mxu0 0.0
    %3766 = vmatprep.mubr.f32.mxu0 0.0
    %3767 = vmatmul.mubr.f32.gmra.mrb[0].mxu0 %v3698
    %v3768 = vpop.f32.mrb[0].mxu0
    %v3769 = vadd.f32 %v2453, %v3768
    %v3770 = vpop.f32.mrb[0].mxu0
    %3771 = vdwg.mxu0
    %v3772 = vsel %vm296, %v3769, -inf
    %3773 = vmax.xlane.f32.xlu0 %v3772
    %v3774 = vpop.xlane.xlu0 %3773
    %v3775 = vsub.f32 %v3769, %v3774
    %v3776 = vmul.f32 %v3775, 1.442695
    %v3777 = vpow.pop %v3776
    %v3778 = vsel %vm296, %v3777, 0.0
    %3779 = vadd.xlane.f32.xlu0 %v3778
    %v3780 = vpop.xlane.xlu0 %3779
    %v3781 = vrcp.pop %v3780
    %v3782 = vmul.f32 %v3777, %v3781
    %3783 = vrot.lane.b32.xlu0 %v3527, 56
    %v3784 = vpop.permute.xlu0 %3783
    %v3787 = vsel %vm296, %v3782, 0
    %3789 = vmatprep.subr.mxu0 0.0
    %3790 = vmatpush1.msra.mxu0 %v3784
    %3791 = vmatprep.subr.mxu0 0.0
    %3792 = vmatpush1.msra.mxu0 0.0
    %3793 = vmatprep.subr.mxu0 0.0
    %3794 = vmatpush1.msra.mxu0 0.0
    %3795 = vmatprep.subr.mxu0 0.0
    %3796 = vmatpush1.msra.mxu0 0.0
    %3797 = vmatprep.subr.mxu0 0.0
    %3798 = vmatpush1.msra.mxu0 0.0
    %3799 = vmatprep.subr.mxu0 0.0
    %3800 = vmatpush1.msra.mxu0 0.0
    %3801 = vmatprep.subr.mxu0 0.0
    %3802 = vmatpush1.msra.mxu0 0.0
    %3803 = vmatprep.subr.mxu0 0.0
    %3804 = vmatpush1.msra.mxu0 0.0
    %3805 = vmatprep.subr.mxu0 0.0
    %3806 = vmatpush1.msra.mxu0 0.0
    %3807 = vmatprep.subr.mxu0 0.0
    %3808 = vmatpush1.msra.mxu0 0.0
    %3809 = vmatprep.subr.mxu0 0.0
    %3810 = vmatpush1.msra.mxu0 0.0
    %3811 = vmatprep.subr.mxu0 0.0
    %3812 = vmatpush1.msra.mxu0 0.0
    %3813 = vmatprep.subr.mxu0 0.0
    %3814 = vmatpush1.msra.mxu0 0.0
    %3815 = vmatprep.subr.mxu0 0.0
    %3816 = vmatpush1.msra.mxu0 0.0
    %3817 = vmatprep.subr.mxu0 0.0
    %3818 = vmatpush1.msra.mxu0 0.0
    %3819 = vmatprep.subr.mxu0 0.0
    %3820 = vmatpush1.msra.mxu0 0.0
    %3821 = vmatprep.subr.mxu0 0.0
    %3822 = vmatpush1.msra.mxu0 0.0
    %3823 = vmatprep.subr.mxu0 0.0
    %3824 = vmatpush1.msra.mxu0 0.0
    %3825 = vmatprep.subr.mxu0 0.0
    %3826 = vmatpush1.msra.mxu0 0.0
    %3827 = vmatprep.subr.mxu0 0.0
    %3828 = vmatpush1.msra.mxu0 0.0
    %3829 = vmatprep.subr.mxu0 0.0
    %3830 = vmatpush1.msra.mxu0 0.0
    %3831 = vmatprep.subr.mxu0 0.0
    %3832 = vmatpush1.msra.mxu0 0.0
    %3833 = vmatprep.subr.mxu0 0.0
    %3834 = vmatpush1.msra.mxu0 0.0
    %3835 = vmatprep.subr.mxu0 0.0
    %3836 = vmatpush1.msra.mxu0 0.0
    %3837 = vmatprep.subr.mxu0 0.0
    %3838 = vmatpush1.msra.mxu0 0.0
    %3839 = vmatprep.subr.mxu0 0.0
    %3840 = vmatpush1.msra.mxu0 0.0
    %3841 = vmatprep.subr.mxu0 0.0
    %3842 = vmatpush1.msra.mxu0 0.0
    %3843 = vmatprep.subr.mxu0 0.0
    %3844 = vmatpush1.msra.mxu0 0.0
    %3845 = vmatprep.subr.mxu0 0.0
    %3846 = vmatpush1.msra.mxu0 0.0
    %3847 = vmatprep.subr.mxu0 0.0
    %3848 = vmatpush1.msra.mxu0 0.0
    %3849 = vmatprep.subr.mxu0 0.0
    %3850 = vmatpush1.msra.mxu0 0.0
    %3851 = vmatprep.subr.mxu0 0.0
    %3852 = vmatpush1.msra.mxu0 0.0
    %3853 = vmatprep.mubr.f32.mxu0 0.0
    %3854 = vmatmul.mubr.f32.gmra.mrb[0].mxu0 %v3787
    %v3855 = vpop.f32.mrb[0].mxu0
    %v3856 = vadd.f32 0.0, %v3855
    %v3857 = vpop.f32.mrb[0].mxu0
    %3858 = vdwg.mxu0
    %3859 = vrot.lane.b32.xlu0 %v3527, 112
    %v3860 = vpop.permute.xlu0 %3859
    %3861 = vrot.lane.b32.xlu0 %v3527, 80
    %v3862 = vpop.permute.xlu0 %3861
    %v3863 = vsel %vm296, %v3860, 0
    %v3865 = vsel %vm296, %v3862, 0
    %3867 = vmatprep.subr.mxu0 0.0
    %3868 = vmatpush1.xpose.msra.mxu0 %v3865
    %3869 = vmatprep.subr.mxu0 0.0
    %3870 = vmatpush1.xpose.msra.mxu0 0.0
    %3871 = vmatprep.subr.mxu0 0.0
    %3872 = vmatpush1.xpose.msra.mxu0 0.0
    %3873 = vmatprep.subr.mxu0 0.0
    %3874 = vmatpush1.xpose.msra.mxu0 0.0
    %3875 = vmatprep.subr.mxu0 0.0
    %3876 = vmatpush1.xpose.msra.mxu0 0.0
    %3877 = vmatprep.subr.mxu0 0.0
    %3878 = vmatpush1.xpose.msra.mxu0 0.0
    %3879 = vmatprep.subr.mxu0 0.0
    %3880 = vmatpush1.xpose.msra.mxu0 0.0
    %3881 = vmatprep.subr.mxu0 0.0
    %3882 = vmatpush1.xpose.msra.mxu0 0.0
    %3883 = vmatprep.subr.mxu0 0.0
    %3884 = vmatpush1.xpose.msra.mxu0 0.0
    %3885 = vmatprep.subr.mxu0 0.0
    %3886 = vmatpush1.xpose.msra.mxu0 0.0
    %3887 = vmatprep.subr.mxu0 0.0
    %3888 = vmatpush1.xpose.msra.mxu0 0.0
    %3889 = vmatprep.subr.mxu0 0.0
    %3890 = vmatpush1.xpose.msra.mxu0 0.0
    %3891 = vmatprep.subr.mxu0 0.0
    %3892 = vmatpush1.xpose.msra.mxu0 0.0
    %3893 = vmatprep.subr.mxu0 0.0
    %3894 = vmatpush1.xpose.msra.mxu0 0.0
    %3895 = vmatprep.subr.mxu0 0.0
    %3896 = vmatpush1.xpose.msra.mxu0 0.0
    %3897 = vmatprep.subr.mxu0 0.0
    %3898 = vmatpush1.xpose.msra.mxu0 0.0
    %3899 = vmatprep.subr.mxu0 0.0
    %3900 = vmatpush1.xpose.msra.mxu0 0.0
    %3901 = vmatprep.subr.mxu0 0.0
    %3902 = vmatpush1.xpose.msra.mxu0 0.0
    %3903 = vmatprep.subr.mxu0 0.0
    %3904 = vmatpush1.xpose.msra.mxu0 0.0
    %3905 = vmatprep.subr.mxu0 0.0
    %3906 = vmatpush1.xpose.msra.mxu0 0.0
    %3907 = vmatprep.subr.mxu0 0.0
    %3908 = vmatpush1.xpose.msra.mxu0 0.0
    %3909 = vmatprep.subr.mxu0 0.0
    %3910 = vmatpush1.xpose.msra.mxu0 0.0
    %3911 = vmatprep.subr.mxu0 0.0
    %3912 = vmatpush1.xpose.msra.mxu0 0.0
    %3913 = vmatprep.subr.mxu0 0.0
    %3914 = vmatpush1.xpose.msra.mxu0 0.0
    %3915 = vmatprep.subr.mxu0 0.0
    %3916 = vmatpush1.xpose.msra.mxu0 0.0
    %3917 = vmatprep.subr.mxu0 0.0
    %3918 = vmatpush1.xpose.msra.mxu0 0.0
    %3919 = vmatprep.subr.mxu0 0.0
    %3920 = vmatpush1.xpose.msra.mxu0 0.0
    %3921 = vmatprep.subr.mxu0 0.0
    %3922 = vmatpush1.xpose.msra.mxu0 0.0
    %3923 = vmatprep.subr.mxu0 0.0
    %3924 = vmatpush1.xpose.msra.mxu0 0.0
    %3925 = vmatprep.subr.mxu0 0.0
    %3926 = vmatpush1.xpose.msra.mxu0 0.0
    %3927 = vmatprep.subr.mxu0 0.0
    %3928 = vmatpush1.xpose.msra.mxu0 0.0
    %3929 = vmatprep.subr.mxu0 0.0
    %3930 = vmatpush1.xpose.msra.mxu0 0.0
    %3931 = vmatprep.mubr.f32.mxu0 0.0
    %3932 = vmatmul.mubr.f32.gmra.mrb[0].mxu0 %v3863
    %v3933 = vpop.f32.mrb[0].mxu0
    %v3934 = vadd.f32 %v2453, %v3933
    %v3935 = vpop.f32.mrb[0].mxu0
    %3936 = vdwg.mxu0
    %v3937 = vsel %vm296, %v3934, -inf
    %3938 = vmax.xlane.f32.xlu0 %v3937
    %v3939 = vpop.xlane.xlu0 %3938
    %v3940 = vsub.f32 %v3934, %v3939
    %v3941 = vmul.f32 %v3940, 1.442695
    %v3942 = vpow.pop %v3941
    %v3943 = vsel %vm296, %v3942, 0.0
    %3944 = vadd.xlane.f32.xlu0 %v3943
    %v3945 = vpop.xlane.xlu0 %3944
    %v3946 = vrcp.pop %v3945
    %v3947 = vmul.f32 %v3942, %v3946
    %3948 = vrot.lane.b32.xlu0 %v3527, 48
    %v3949 = vpop.permute.xlu0 %3948
    %v3952 = vsel %vm296, %v3947, 0
    %3954 = vmatprep.subr.mxu0 0.0
    %3955 = vmatpush1.msra.mxu0 %v3949
    %3956 = vmatprep.subr.mxu0 0.0
    %3957 = vmatpush1.msra.mxu0 0.0
    %3958 = vmatprep.subr.mxu0 0.0
    %3959 = vmatpush1.msra.mxu0 0.0
    %3960 = vmatprep.subr.mxu0 0.0
    %3961 = vmatpush1.msra.mxu0 0.0
    %3962 = vmatprep.subr.mxu0 0.0
    %3963 = vmatpush1.msra.mxu0 0.0
    %3964 = vmatprep.subr.mxu0 0.0
    %3965 = vmatpush1.msra.mxu0 0.0
    %3966 = vmatprep.subr.mxu0 0.0
    %3967 = vmatpush1.msra.mxu0 0.0
    %3968 = vmatprep.subr.mxu0 0.0
    %3969 = vmatpush1.msra.mxu0 0.0
    %3970 = vmatprep.subr.mxu0 0.0
    %3971 = vmatpush1.msra.mxu0 0.0
    %3972 = vmatprep.subr.mxu0 0.0
    %3973 = vmatpush1.msra.mxu0 0.0
    %3974 = vmatprep.subr.mxu0 0.0
    %3975 = vmatpush1.msra.mxu0 0.0
    %3976 = vmatprep.subr.mxu0 0.0
    %3977 = vmatpush1.msra.mxu0 0.0
    %3978 = vmatprep.subr.mxu0 0.0
    %3979 = vmatpush1.msra.mxu0 0.0
    %3980 = vmatprep.subr.mxu0 0.0
    %3981 = vmatpush1.msra.mxu0 0.0
    %3982 = vmatprep.subr.mxu0 0.0
    %3983 = vmatpush1.msra.mxu0 0.0
    %3984 = vmatprep.subr.mxu0 0.0
    %3985 = vmatpush1.msra.mxu0 0.0
    %3986 = vmatprep.subr.mxu0 0.0
    %3987 = vmatpush1.msra.mxu0 0.0
    %3988 = vmatprep.subr.mxu0 0.0
    %3989 = vmatpush1.msra.mxu0 0.0
    %3990 = vmatprep.subr.mxu0 0.0
    %3991 = vmatpush1.msra.mxu0 0.0
    %3992 = vmatprep.subr.mxu0 0.0
    %3993 = vmatpush1.msra.mxu0 0.0
    %3994 = vmatprep.subr.mxu0 0.0
    %3995 = vmatpush1.msra.mxu0 0.0
    %3996 = vmatprep.subr.mxu0 0.0
    %3997 = vmatpush1.msra.mxu0 0.0
    %3998 = vmatprep.subr.mxu0 0.0
    %3999 = vmatpush1.msra.mxu0 0.0
    %4000 = vmatprep.subr.mxu0 0.0
    %4001 = vmatpush1.msra.mxu0 0.0
    %4002 = vmatprep.subr.mxu0 0.0
    %4003 = vmatpush1.msra.mxu0 0.0
    %4004 = vmatprep.subr.mxu0 0.0
    %4005 = vmatpush1.msra.mxu0 0.0
    %4006 = vmatprep.subr.mxu0 0.0
    %4007 = vmatpush1.msra.mxu0 0.0
    %4008 = vmatprep.subr.mxu0 0.0
    %4009 = vmatpush1.msra.mxu0 0.0
    %4010 = vmatprep.subr.mxu0 0.0
    %4011 = vmatpush1.msra.mxu0 0.0
    %4012 = vmatprep.subr.mxu0 0.0
    %4013 = vmatpush1.msra.mxu0 0.0
    %4014 = vmatprep.subr.mxu0 0.0
    %4015 = vmatpush1.msra.mxu0 0.0
    %4016 = vmatprep.subr.mxu0 0.0
    %4017 = vmatpush1.msra.mxu0 0.0
    %4018 = vmatprep.mubr.f32.mxu0 0.0
    %4019 = vmatmul.mubr.f32.gmra.mrb[0].mxu0 %v3952
    %v4020 = vpop.f32.mrb[0].mxu0
    %v4021 = vadd.f32 0.0, %v4020
    %v4022 = vpop.f32.mrb[0].mxu0
    %4023 = vdwg.mxu0
    %4024 = vrot.lane.b32.xlu0 %v3527, 104
    %v4025 = vpop.permute.xlu0 %4024
    %4026 = vrot.lane.b32.xlu0 %v3527, 72
    %v4027 = vpop.permute.xlu0 %4026
    %v4028 = vsel %vm296, %v4025, 0
    %v4030 = vsel %vm296, %v4027, 0
    %4032 = vmatprep.subr.mxu0 0.0
    %4033 = vmatpush1.xpose.msra.mxu0 %v4030
    %4034 = vmatprep.subr.mxu0 0.0
    %4035 = vmatpush1.xpose.msra.mxu0 0.0
    %4036 = vmatprep.subr.mxu0 0.0
    %4037 = vmatpush1.xpose.msra.mxu0 0.0
    %4038 = vmatprep.subr.mxu0 0.0
    %4039 = vmatpush1.xpose.msra.mxu0 0.0
    %4040 = vmatprep.subr.mxu0 0.0
    %4041 = vmatpush1.xpose.msra.mxu0 0.0
    %4042 = vmatprep.subr.mxu0 0.0
    %4043 = vmatpush1.xpose.msra.mxu0 0.0
    %4044 = vmatprep.subr.mxu0 0.0
    %4045 = vmatpush1.xpose.msra.mxu0 0.0
    %4046 = vmatprep.subr.mxu0 0.0
    %4047 = vmatpush1.xpose.msra.mxu0 0.0
    %4048 = vmatprep.subr.mxu0 0.0
    %4049 = vmatpush1.xpose.msra.mxu0 0.0
    %4050 = vmatprep.subr.mxu0 0.0
    %4051 = vmatpush1.xpose.msra.mxu0 0.0
    %4052 = vmatprep.subr.mxu0 0.0
    %4053 = vmatpush1.xpose.msra.mxu0 0.0
    %4054 = vmatprep.subr.mxu0 0.0
    %4055 = vmatpush1.xpose.msra.mxu0 0.0
    %4056 = vmatprep.subr.mxu0 0.0
    %4057 = vmatpush1.xpose.msra.mxu0 0.0
    %4058 = vmatprep.subr.mxu0 0.0
    %4059 = vmatpush1.xpose.msra.mxu0 0.0
    %4060 = vmatprep.subr.mxu0 0.0
    %4061 = vmatpush1.xpose.msra.mxu0 0.0
    %4062 = vmatprep.subr.mxu0 0.0
    %4063 = vmatpush1.xpose.msra.mxu0 0.0
    %4064 = vmatprep.subr.mxu0 0.0
    %4065 = vmatpush1.xpose.msra.mxu0 0.0
    %4066 = vmatprep.subr.mxu0 0.0
    %4067 = vmatpush1.xpose.msra.mxu0 0.0
    %4068 = vmatprep.subr.mxu0 0.0
    %4069 = vmatpush1.xpose.msra.mxu0 0.0
    %4070 = vmatprep.subr.mxu0 0.0
    %4071 = vmatpush1.xpose.msra.mxu0 0.0
    %4072 = vmatprep.subr.mxu0 0.0
    %4073 = vmatpush1.xpose.msra.mxu0 0.0
    %4074 = vmatprep.subr.mxu0 0.0
    %4075 = vmatpush1.xpose.msra.mxu0 0.0
    %4076 = vmatprep.subr.mxu0 0.0
    %4077 = vmatpush1.xpose.msra.mxu0 0.0
    %4078 = vmatprep.subr.mxu0 0.0
    %4079 = vmatpush1.xpose.msra.mxu0 0.0
    %4080 = vmatprep.subr.mxu0 0.0
    %4081 = vmatpush1.xpose.msra.mxu0 0.0
    %4082 = vmatprep.subr.mxu0 0.0
    %4083 = vmatpush1.xpose.msra.mxu0 0.0
    %4084 = vmatprep.subr.mxu0 0.0
    %4085 = vmatpush1.xpose.msra.mxu0 0.0
    %4086 = vmatprep.subr.mxu0 0.0
    %4087 = vmatpush1.xpose.msra.mxu0 0.0
    %4088 = vmatprep.subr.mxu0 0.0
    %4089 = vmatpush1.xpose.msra.mxu0 0.0
    %4090 = vmatprep.subr.mxu0 0.0
    %4091 = vmatpush1.xpose.msra.mxu0 0.0
    %4092 = vmatprep.subr.mxu0 0.0
    %4093 = vmatpush1.xpose.msra.mxu0 0.0
    %4094 = vmatprep.subr.mxu0 0.0
    %4095 = vmatpush1.xpose.msra.mxu0 0.0
    %4096 = vmatprep.mubr.f32.mxu0 0.0
    %4097 = vmatmul.mubr.f32.gmra.mrb[0].mxu0 %v4028
    %v4098 = vpop.f32.mrb[0].mxu0
    %v4099 = vadd.f32 %v2453, %v4098
    %v4100 = vpop.f32.mrb[0].mxu0
    %4101 = vdwg.mxu0
    %v4102 = vsel %vm296, %v4099, -inf
    %4103 = vmax.xlane.f32.xlu0 %v4102
    %v4104 = vpop.xlane.xlu0 %4103
    %v4105 = vsub.f32 %v4099, %v4104
    %v4106 = vmul.f32 %v4105, 1.442695
    %v4107 = vpow.pop %v4106
    %v4108 = vsel %vm296, %v4107, 0.0
    %4109 = vadd.xlane.f32.xlu0 %v4108
    %v4110 = vpop.xlane.xlu0 %4109
    %v4111 = vrcp.pop %v4110
    %v4112 = vmul.f32 %v4107, %v4111
    %4113 = vrot.lane.b32.xlu0 %v3527, 40
    %v4114 = vpop.permute.xlu0 %4113
    %v4117 = vsel %vm296, %v4112, 0
    %4119 = vmatprep.subr.mxu0 0.0
    %4120 = vmatpush1.msra.mxu0 %v4114
    %4121 = vmatprep.subr.mxu0 0.0
    %4122 = vmatpush1.msra.mxu0 0.0
    %4123 = vmatprep.subr.mxu0 0.0
    %4124 = vmatpush1.msra.mxu0 0.0
    %4125 = vmatprep.subr.mxu0 0.0
    %4126 = vmatpush1.msra.mxu0 0.0
    %4127 = vmatprep.subr.mxu0 0.0
    %4128 = vmatpush1.msra.mxu0 0.0
    %4129 = vmatprep.subr.mxu0 0.0
    %4130 = vmatpush1.msra.mxu0 0.0
    %4131 = vmatprep.subr.mxu0 0.0
    %4132 = vmatpush1.msra.mxu0 0.0
    %4133 = vmatprep.subr.mxu0 0.0
    %4134 = vmatpush1.msra.mxu0 0.0
    %4135 = vmatprep.subr.mxu0 0.0
    %4136 = vmatpush1.msra.mxu0 0.0
    %4137 = vmatprep.subr.mxu0 0.0
    %4138 = vmatpush1.msra.mxu0 0.0
    %4139 = vmatprep.subr.mxu0 0.0
    %4140 = vmatpush1.msra.mxu0 0.0
    %4141 = vmatprep.subr.mxu0 0.0
    %4142 = vmatpush1.msra.mxu0 0.0
    %4143 = vmatprep.subr.mxu0 0.0
    %4144 = vmatpush1.msra.mxu0 0.0
    %4145 = vmatprep.subr.mxu0 0.0
    %4146 = vmatpush1.msra.mxu0 0.0
    %4147 = vmatprep.subr.mxu0 0.0
    %4148 = vmatpush1.msra.mxu0 0.0
    %4149 = vmatprep.subr.mxu0 0.0
    %4150 = vmatpush1.msra.mxu0 0.0
    %4151 = vmatprep.subr.mxu0 0.0
    %4152 = vmatpush1.msra.mxu0 0.0
    %4153 = vmatprep.subr.mxu0 0.0
    %4154 = vmatpush1.msra.mxu0 0.0
    %4155 = vmatprep.subr.mxu0 0.0
    %4156 = vmatpush1.msra.mxu0 0.0
    %4157 = vmatprep.subr.mxu0 0.0
    %4158 = vmatpush1.msra.mxu0 0.0
    %4159 = vmatprep.subr.mxu0 0.0
    %4160 = vmatpush1.msra.mxu0 0.0
    %4161 = vmatprep.subr.mxu0 0.0
    %4162 = vmatpush1.msra.mxu0 0.0
    %4163 = vmatprep.subr.mxu0 0.0
    %4164 = vmatpush1.msra.mxu0 0.0
    %4165 = vmatprep.subr.mxu0 0.0
    %4166 = vmatpush1.msra.mxu0 0.0
    %4167 = vmatprep.subr.mxu0 0.0
    %4168 = vmatpush1.msra.mxu0 0.0
    %4169 = vmatprep.subr.mxu0 0.0
    %4170 = vmatpush1.msra.mxu0 0.0
    %4171 = vmatprep.subr.mxu0 0.0
    %4172 = vmatpush1.msra.mxu0 0.0
    %4173 = vmatprep.subr.mxu0 0.0
    %4174 = vmatpush1.msra.mxu0 0.0
    %4175 = vmatprep.subr.mxu0 0.0
    %4176 = vmatpush1.msra.mxu0 0.0
    %4177 = vmatprep.subr.mxu0 0.0
    %4178 = vmatpush1.msra.mxu0 0.0
    %4179 = vmatprep.subr.mxu0 0.0
    %4180 = vmatpush1.msra.mxu0 0.0
    %4181 = vmatprep.subr.mxu0 0.0
    %4182 = vmatpush1.msra.mxu0 0.0
    %4183 = vmatprep.mubr.f32.mxu0 0.0
    %4184 = vmatmul.mubr.f32.gmra.mrb[0].mxu0 %v4117
    %v4185 = vpop.f32.mrb[0].mxu0
    %v4186 = vadd.f32 0.0, %v4185
    %v4187 = vpop.f32.mrb[0].mxu0
    %4188 = vdwg.mxu0
    %4190 = vrot.lane.b32.xlu0 %v3856, 8
    %v4191 = vpop.permute.xlu0 %4190
    %4194 = vrot.lane.b32.xlu0 %v4021, 16
    %v4195 = vpop.permute.xlu0 %4194
    %4198 = vrot.lane.b32.xlu0 %v4186, 24
    %v4199 = vpop.permute.xlu0 %4198
    %v4201 = vsel %vm296, %v3691, %v4191
    %v4202 = vsel %vm966, %v4201, %v4195
    %v4203 = vsel %vm968, %v4202, %v4199
    %v4205 = vsel %vm219, %v4203, 0
    %4207 = vmatprep.subr.mxu0 0.0
    %4208 = vmatpush1.msra.mxu0 %v107
    %4209 = vmatprep.subr.mxu0 0.0
    %4210 = vmatpush1.msra.mxu0 %v108
    %4211 = vmatprep.subr.mxu0 0.0
    %4212 = vmatpush1.msra.mxu0 %v109
    %4213 = vmatprep.subr.mxu0 0.0
    %4214 = vmatpush1.msra.mxu0 %v110
    %4215 = vmatprep.subr.mxu0 0.0
    %4216 = vmatpush1.msra.mxu0 0.0
    %4217 = vmatprep.subr.mxu0 0.0
    %4218 = vmatpush1.msra.mxu0 0.0
    %4219 = vmatprep.subr.mxu0 0.0
    %4220 = vmatpush1.msra.mxu0 0.0
    %4221 = vmatprep.subr.mxu0 0.0
    %4222 = vmatpush1.msra.mxu0 0.0
    %4223 = vmatprep.subr.mxu0 0.0
    %4224 = vmatpush1.msra.mxu0 0.0
    %4225 = vmatprep.subr.mxu0 0.0
    %4226 = vmatpush1.msra.mxu0 0.0
    %4227 = vmatprep.subr.mxu0 0.0
    %4228 = vmatpush1.msra.mxu0 0.0
    %4229 = vmatprep.subr.mxu0 0.0
    %4230 = vmatpush1.msra.mxu0 0.0
    %4231 = vmatprep.subr.mxu0 0.0
    %4232 = vmatpush1.msra.mxu0 0.0
    %4233 = vmatprep.subr.mxu0 0.0
    %4234 = vmatpush1.msra.mxu0 0.0
    %4235 = vmatprep.subr.mxu0 0.0
    %4236 = vmatpush1.msra.mxu0 0.0
    %4237 = vmatprep.subr.mxu0 0.0
    %4238 = vmatpush1.msra.mxu0 0.0
    %4239 = vmatprep.subr.mxu0 0.0
    %4240 = vmatpush1.msra.mxu0 0.0
    %4241 = vmatprep.subr.mxu0 0.0
    %4242 = vmatpush1.msra.mxu0 0.0
    %4243 = vmatprep.subr.mxu0 0.0
    %4244 = vmatpush1.msra.mxu0 0.0
    %4245 = vmatprep.subr.mxu0 0.0
    %4246 = vmatpush1.msra.mxu0 0.0
    %4247 = vmatprep.subr.mxu0 0.0
    %4248 = vmatpush1.msra.mxu0 0.0
    %4249 = vmatprep.subr.mxu0 0.0
    %4250 = vmatpush1.msra.mxu0 0.0
    %4251 = vmatprep.subr.mxu0 0.0
    %4252 = vmatpush1.msra.mxu0 0.0
    %4253 = vmatprep.subr.mxu0 0.0
    %4254 = vmatpush1.msra.mxu0 0.0
    %4255 = vmatprep.subr.mxu0 0.0
    %4256 = vmatpush1.msra.mxu0 0.0
    %4257 = vmatprep.subr.mxu0 0.0
    %4258 = vmatpush1.msra.mxu0 0.0
    %4259 = vmatprep.subr.mxu0 0.0
    %4260 = vmatpush1.msra.mxu0 0.0
    %4261 = vmatprep.subr.mxu0 0.0
    %4262 = vmatpush1.msra.mxu0 0.0
    %4263 = vmatprep.subr.mxu0 0.0
    %4264 = vmatpush1.msra.mxu0 0.0
    %4265 = vmatprep.subr.mxu0 0.0
    %4266 = vmatpush1.msra.mxu0 0.0
    %4267 = vmatprep.subr.mxu0 0.0
    %4268 = vmatpush1.msra.mxu0 0.0
    %4269 = vmatprep.subr.mxu0 0.0
    %4270 = vmatpush1.msra.mxu0 0.0
    %4271 = vmatprep.mubr.f32.mxu0 0.0
    %4272 = vmatmul.mubr.f32.gmra.mrb[0].mxu0 %v4205
    %v4273 = vpop.f32.mrb[0].mxu0
    %v4274 = vadd.f32 %v2010, %v4273
    %v4275 = vpop.f32.mrb[0].mxu0
    %4276 = vdwg.mxu0
    %v4277 = vadd.f32 %v3456, %v4274
    %v4278 = vsel %vm219, %v4277, 0.0
    %4279 = vadd.xlane.f32.xlu0 %v4278
    %v4280 = vpop.xlane.xlu0 %4279
    %v4281 = vmul.f32 %v4280, %v1051
    %v4282 = vmul.f32 %v4277, %v4277
    %v4283 = vsel %vm219, %v4282, 0.0
    %4284 = vadd.xlane.f32.xlu0 %v4283
    %v4285 = vpop.xlane.xlu0 %4284
    %v4286 = vmul.f32 %v4285, %v1051
    %v4287 = vmul.f32 %v4281, %v4281
    %v4288 = vsub.f32 %v4286, %v4287
    %v4289 = vsub.f32 %v4277, %v4281
    %v4290 = vadd.f32 %v4288, 1e-05
    %v4291 = vrsqrt.pop %v4290
    %v4292 = vmul.f32 %v4289, %v4291
    %v4293 = vmul.f32 %v4292, %v2103
    %v4294 = vadd.f32 %v4293, %v2108
    %v4296 = vsel %vm219, %v4294, 0
    %4298 = vmatprep.subr.mxu0 0.0
    %4299 = vmatpush1.msra.mxu0 %v112
    %4300 = vmatprep.subr.mxu0 0.0
    %4301 = vmatpush1.msra.mxu0 %v113
    %4302 = vmatprep.subr.mxu0 0.0
    %4303 = vmatpush1.msra.mxu0 %v114
    %4304 = vmatprep.subr.mxu0 0.0
    %4305 = vmatpush1.msra.mxu0 %v115
    %4306 = vmatprep.subr.mxu0 0.0
    %4307 = vmatpush1.msra.mxu0 0.0
    %4308 = vmatprep.subr.mxu0 0.0
    %4309 = vmatpush1.msra.mxu0 0.0
    %4310 = vmatprep.subr.mxu0 0.0
    %4311 = vmatpush1.msra.mxu0 0.0
    %4312 = vmatprep.subr.mxu0 0.0
    %4313 = vmatpush1.msra.mxu0 0.0
    %4314 = vmatprep.subr.mxu0 0.0
    %4315 = vmatpush1.msra.mxu0 0.0
    %4316 = vmatprep.subr.mxu0 0.0
    %4317 = vmatpush1.msra.mxu0 0.0
    %4318 = vmatprep.subr.mxu0 0.0
    %4319 = vmatpush1.msra.mxu0 0.0
    %4320 = vmatprep.subr.mxu0 0.0
    %4321 = vmatpush1.msra.mxu0 0.0
    %4322 = vmatprep.subr.mxu0 0.0
    %4323 = vmatpush1.msra.mxu0 0.0
    %4324 = vmatprep.subr.mxu0 0.0
    %4325 = vmatpush1.msra.mxu0 0.0
    %4326 = vmatprep.subr.mxu0 0.0
    %4327 = vmatpush1.msra.mxu0 0.0
    %4328 = vmatprep.subr.mxu0 0.0
    %4329 = vmatpush1.msra.mxu0 0.0
    %4330 = vmatprep.subr.mxu0 0.0
    %4331 = vmatpush1.msra.mxu0 0.0
    %4332 = vmatprep.subr.mxu0 0.0
    %4333 = vmatpush1.msra.mxu0 0.0
    %4334 = vmatprep.subr.mxu0 0.0
    %4335 = vmatpush1.msra.mxu0 0.0
    %4336 = vmatprep.subr.mxu0 0.0
    %4337 = vmatpush1.msra.mxu0 0.0
    %4338 = vmatprep.subr.mxu0 0.0
    %4339 = vmatpush1.msra.mxu0 0.0
    %4340 = vmatprep.subr.mxu0 0.0
    %4341 = vmatpush1.msra.mxu0 0.0
    %4342 = vmatprep.subr.mxu0 0.0
    %4343 = vmatpush1.msra.mxu0 0.0
    %4344 = vmatprep.subr.mxu0 0.0
    %4345 = vmatpush1.msra.mxu0 0.0
    %4346 = vmatprep.subr.mxu0 0.0
    %4347 = vmatpush1.msra.mxu0 0.0
    %4348 = vmatprep.subr.mxu0 0.0
    %4349 = vmatpush1.msra.mxu0 0.0
    %4350 = vmatprep.subr.mxu0 0.0
    %4351 = vmatpush1.msra.mxu0 0.0
    %4352 = vmatprep.subr.mxu0 0.0
    %4353 = vmatpush1.msra.mxu0 0.0
    %4354 = vmatprep.subr.mxu0 0.0
    %4355 = vmatpush1.msra.mxu0 0.0
    %4356 = vmatprep.subr.mxu0 0.0
    %4357 = vmatpush1.msra.mxu0 0.0
    %4358 = vmatprep.subr.mxu0 0.0
    %4359 = vmatpush1.msra.mxu0 0.0
    %4360 = vmatprep.subr.mxu0 0.0
    %4361 = vmatpush1.msra.mxu0 0.0
    %4362 = vmatprep.mubr.f32.mxu0 0.0
    %4363 = vmatmul.mubr.f32.gmra.mrb[0].mxu0 %v4296
    %v4364 = vpop.f32.mrb[0].mxu0
    %v4365 = vadd.f32 %v2113, %v4364
    %v4366 = vpop.f32.mrb[0].mxu0
    %4367 = vdwg.mxu0
    %v4368 = vmax.f32 %v4365, 0.0
    %v4370 = vsel %vm1156, %v4368, 0
    %4372 = vmatprep.subr.mxu0 0.0
    %4373 = vmatpush1.msra.mxu0 %v117
    %4374 = vmatprep.subr.mxu0 0.0
    %4375 = vmatpush1.msra.mxu0 %v118
    %4376 = vmatprep.subr.mxu0 0.0
    %4377 = vmatpush1.msra.mxu0 %v119
    %4378 = vmatprep.subr.mxu0 0.0
    %4379 = vmatpush1.msra.mxu0 %v120
    %4380 = vmatprep.subr.mxu0 0.0
    %4381 = vmatpush1.msra.mxu0 %v121
    %4382 = vmatprep.subr.mxu0 0.0
    %4383 = vmatpush1.msra.mxu0 %v122
    %4384 = vmatprep.subr.mxu0 0.0
    %4385 = vmatpush1.msra.mxu0 %v123
    %4386 = vmatprep.subr.mxu0 0.0
    %4387 = vmatpush1.msra.mxu0 %v124
    %4388 = vmatprep.subr.mxu0 0.0
    %4389 = vmatpush1.msra.mxu0 0.0
    %4390 = vmatprep.subr.mxu0 0.0
    %4391 = vmatpush1.msra.mxu0 0.0
    %4392 = vmatprep.subr.mxu0 0.0
    %4393 = vmatpush1.msra.mxu0 0.0
    %4394 = vmatprep.subr.mxu0 0.0
    %4395 = vmatpush1.msra.mxu0 0.0
    %4396 = vmatprep.subr.mxu0 0.0
    %4397 = vmatpush1.msra.mxu0 0.0
    %4398 = vmatprep.subr.mxu0 0.0
    %4399 = vmatpush1.msra.mxu0 0.0
    %4400 = vmatprep.subr.mxu0 0.0
    %4401 = vmatpush1.msra.mxu0 0.0
    %4402 = vmatprep.subr.mxu0 0.0
    %4403 = vmatpush1.msra.mxu0 0.0
    %4404 = vmatprep.subr.mxu0 0.0
    %4405 = vmatpush1.msra.mxu0 0.0
    %4406 = vmatprep.subr.mxu0 0.0
    %4407 = vmatpush1.msra.mxu0 0.0
    %4408 = vmatprep.subr.mxu0 0.0
    %4409 = vmatpush1.msra.mxu0 0.0
    %4410 = vmatprep.subr.mxu0 0.0
    %4411 = vmatpush1.msra.mxu0 0.0
    %4412 = vmatprep.subr.mxu0 0.0
    %4413 = vmatpush1.msra.mxu0 0.0
    %4414 = vmatprep.subr.mxu0 0.0
    %4415 = vmatpush1.msra.mxu0 0.0
    %4416 = vmatprep.subr.mxu0 0.0
    %4417 = vmatpush1.msra.mxu0 0.0
    %4418 = vmatprep.subr.mxu0 0.0
    %4419 = vmatpush1.msra.mxu0 0.0
    %4420 = vmatprep.subr.mxu0 0.0
    %4421 = vmatpush1.msra.mxu0 0.0
    %4422 = vmatprep.subr.mxu0 0.0
    %4423 = vmatpush1.msra.mxu0 0.0
    %4424 = vmatprep.subr.mxu0 0.0
    %4425 = vmatpush1.msra.mxu0 0.0
    %4426 = vmatprep.subr.mxu0 0.0
    %4427 = vmatpush1.msra.mxu0 0.0
    %4428 = vmatprep.subr.mxu0 0.0
    %4429 = vmatpush1.msra.mxu0 0.0
    %4430 = vmatprep.subr.mxu0 0.0
    %4431 = vmatpush1.msra.mxu0 0.0
    %4432 = vmatprep.subr.mxu0 0.0
    %4433 = vmatpush1.msra.mxu0 0.0
    %4434 = vmatprep.subr.mxu0 0.0
    %4435 = vmatpush1.msra.mxu0 0.0
    %4436 = vmatprep.mubr.f32.mxu0 0.0
    %4437 = vmatmul.mubr.f32.gmra.mrb[0].mxu0 %v4370
    %v4438 = vpop.f32.mrb[0].mxu0
    %v4439 = vadd.f32 %v2191, %v4438
    %v4440 = vpop.f32.mrb[0].mxu0
    %4441 = vdwg.mxu0
    %v4442 = vadd.f32 %v4294, %v4439
    %v4443 = vsel %vm219, %v4442, 0.0
    %4444 = vadd.xlane.f32.xlu0 %v4443
    %v4445 = vpop.xlane.xlu0 %4444
    %v4446 = vmul.f32 %v4445, %v1051
    %v4447 = vmul.f32 %v4442, %v4442
    %v4448 = vsel %vm219, %v4447, 0.0
    %4449 = vadd.xlane.f32.xlu0 %v4448
    %v4450 = vpop.xlane.xlu0 %4449
    %v4451 = vmul.f32 %v4450, %v1051
    %v4452 = vmul.f32 %v4446, %v4446
    %v4453 = vsub.f32 %v4451, %v4452
    %v4454 = vsub.f32 %v4442, %v4446
    %v4455 = vadd.f32 %v4453, 1e-05
    %v4456 = vrsqrt.pop %v4455
    %v4457 = vmul.f32 %v4454, %v4456
    %v4458 = vmul.f32 %v4457, %v2284
    %v4459 = vadd.f32 %v4458, %v2289
    %vm4460 = vcmp.eq.s32.totalorder %v136, 1
    %v4461 = vsel %vm4460, %v4459, 0.0
    %v4462 = vsel %vm219, %v4461, 0.0
    %v4463 = vrot.slane %v4462, 4
    %v4464 = vadd.f32 %v4462, %v4463
    %v4465 = vrot.slane %v4464, 2
    %v4466 = vadd.f32 %v4464, %v4465
    %v4467 = vrot.slane %v4466, 1
    %v4468 = vadd.f32 %v4466, %v4467
    %v4470 = vsel %vm219, %v4468, 0
    %4472 = vmatprep.subr.mxu0 0.0
    %4473 = vmatpush1.msra.mxu0 %v67
    %4474 = vmatprep.subr.mxu0 0.0
    %4475 = vmatpush1.msra.mxu0 %v68
    %4476 = vmatprep.subr.mxu0 0.0
    %4477 = vmatpush1.msra.mxu0 %v69
    %4478 = vmatprep.subr.mxu0 0.0
    %4479 = vmatpush1.msra.mxu0 %v70
    %4480 = vmatprep.subr.mxu0 0.0
    %4481 = vmatpush1.msra.mxu0 0.0
    %4482 = vmatprep.subr.mxu0 0.0
    %4483 = vmatpush1.msra.mxu0 0.0
    %4484 = vmatprep.subr.mxu0 0.0
    %4485 = vmatpush1.msra.mxu0 0.0
    %4486 = vmatprep.subr.mxu0 0.0
    %4487 = vmatpush1.msra.mxu0 0.0
    %4488 = vmatprep.subr.mxu0 0.0
    %4489 = vmatpush1.msra.mxu0 0.0
    %4490 = vmatprep.subr.mxu0 0.0
    %4491 = vmatpush1.msra.mxu0 0.0
    %4492 = vmatprep.subr.mxu0 0.0
    %4493 = vmatpush1.msra.mxu0 0.0
    %4494 = vmatprep.subr.mxu0 0.0
    %4495 = vmatpush1.msra.mxu0 0.0
    %4496 = vmatprep.subr.mxu0 0.0
    %4497 = vmatpush1.msra.mxu0 0.0
    %4498 = vmatprep.subr.mxu0 0.0
    %4499 = vmatpush1.msra.mxu0 0.0
    %4500 = vmatprep.subr.mxu0 0.0
    %4501 = vmatpush1.msra.mxu0 0.0
    %4502 = vmatprep.subr.mxu0 0.0
    %4503 = vmatpush1.msra.mxu0 0.0
    %4504 = vmatprep.subr.mxu0 0.0
    %4505 = vmatpush1.msra.mxu0 0.0
    %4506 = vmatprep.subr.mxu0 0.0
    %4507 = vmatpush1.msra.mxu0 0.0
    %4508 = vmatprep.subr.mxu0 0.0
    %4509 = vmatpush1.msra.mxu0 0.0
    %4510 = vmatprep.subr.mxu0 0.0
    %4511 = vmatpush1.msra.mxu0 0.0
    %4512 = vmatprep.subr.mxu0 0.0
    %4513 = vmatpush1.msra.mxu0 0.0
    %4514 = vmatprep.subr.mxu0 0.0
    %4515 = vmatpush1.msra.mxu0 0.0
    %4516 = vmatprep.subr.mxu0 0.0
    %4517 = vmatpush1.msra.mxu0 0.0
    %4518 = vmatprep.subr.mxu0 0.0
    %4519 = vmatpush1.msra.mxu0 0.0
    %4520 = vmatprep.subr.mxu0 0.0
    %4521 = vmatpush1.msra.mxu0 0.0
    %4522 = vmatprep.subr.mxu0 0.0
    %4523 = vmatpush1.msra.mxu0 0.0
    %4524 = vmatprep.subr.mxu0 0.0
    %4525 = vmatpush1.msra.mxu0 0.0
    %4526 = vmatprep.subr.mxu0 0.0
    %4527 = vmatpush1.msra.mxu0 0.0
    %4528 = vmatprep.subr.mxu0 0.0
    %4529 = vmatpush1.msra.mxu0 0.0
    %4530 = vmatprep.subr.mxu0 0.0
    %4531 = vmatpush1.msra.mxu0 0.0
    %4532 = vmatprep.subr.mxu0 0.0
    %4533 = vmatpush1.msra.mxu0 0.0
    %4534 = vmatprep.subr.mxu0 0.0
    %4535 = vmatpush1.msra.mxu0 0.0
    %4536 = vmatprep.mubr.f32.mxu0 0.0
    %4537 = vmatmul.mubr.f32.gmra.mrb[0].mxu0 %v4470
    %v4538 = vpop.f32.mrb[0].mxu0
    %v4539 = vadd.f32 %v72, %v4538
    %v4540 = vpop.f32.mrb[0].mxu0
    %4541 = vdwg.mxu0
    %s4542 = sld [smem:[#allocation2 + $0x1]]
    %v4543 = vsel %vm2374, %v4539, 0.0
    %v4544 = vstv %s4542
    %v4545 = vsel %vm2376, %v4544, %v4543
    %4546 = vst [vmem:[%s10 + $0x2] sm:$0x1] %v4545
    %v4547 = vld [vmem:[%s10] sm:$0xff]
    %4548 = vmatprep.subr.mxu0 0.0
    %4549 = vmatpush1.msra.mxu0 %v51
    %4550 = vmatprep.subr.mxu0 0.0
    %4551 = vmatpush1.msra.mxu0 %v52
    %4552 = vmatprep.subr.mxu0 0.0
    %4553 = vmatpush1.msra.mxu0 %v53
    %4554 = vmatprep.subr.mxu0 0.0
    %4555 = vmatpush1.msra.mxu0 %v54
    %4556 = vmatprep.subr.mxu0 0.0
    %4557 = vmatpush1.msra.mxu0 %v55
    %4558 = vmatprep.subr.mxu0 0.0
    %4559 = vmatpush1.msra.mxu0 %v56
    %4560 = vmatprep.subr.mxu0 0.0
    %4561 = vmatpush1.msra.mxu0 %v57
    %4562 = vmatprep.subr.mxu0 0.0
    %4563 = vmatpush1.msra.mxu0 %v58
    %4564 = vmatprep.subr.mxu0 0.0
    %4565 = vmatpush1.msra.mxu0 %v59
    %4566 = vmatprep.subr.mxu0 0.0
    %4567 = vmatpush1.msra.mxu0 %v60
    %4568 = vmatprep.subr.mxu0 0.0
    %4569 = vmatpush1.msra.mxu0 %v61
    %4570 = vmatprep.subr.mxu0 0.0
    %4571 = vmatpush1.msra.mxu0 %v62
    %4572 = vmatprep.subr.mxu0 0.0
    %4573 = vmatpush1.msra.mxu0 %v63
    %4574 = vmatprep.subr.mxu0 0.0
    %4575 = vmatpush1.msra.mxu0 %v64
    %4576 = vmatprep.subr.mxu0 0.0
    %4577 = vmatpush1.msra.mxu0 %v65
    %4578 = vmatprep.subr.mxu0 0.0
    %4579 = vmatpush1.msra.mxu0 %v66
    %4580 = vmatprep.subr.mxu0 0.0
    %4581 = vmatpush1.msra.mxu0 0.0
    %4582 = vmatprep.subr.mxu0 0.0
    %4583 = vmatpush1.msra.mxu0 0.0
    %4584 = vmatprep.subr.mxu0 0.0
    %4585 = vmatpush1.msra.mxu0 0.0
    %4586 = vmatprep.subr.mxu0 0.0
    %4587 = vmatpush1.msra.mxu0 0.0
    %4588 = vmatprep.subr.mxu0 0.0
    %4589 = vmatpush1.msra.mxu0 0.0
    %4590 = vmatprep.subr.mxu0 0.0
    %4591 = vmatpush1.msra.mxu0 0.0
    %4592 = vmatprep.subr.mxu0 0.0
    %4593 = vmatpush1.msra.mxu0 0.0
    %4594 = vmatprep.subr.mxu0 0.0
    %4595 = vmatpush1.msra.mxu0 0.0
    %4596 = vmatprep.subr.mxu0 0.0
    %4597 = vmatpush1.msra.mxu0 0.0
    %4598 = vmatprep.subr.mxu0 0.0
    %4599 = vmatpush1.msra.mxu0 0.0
    %4600 = vmatprep.subr.mxu0 0.0
    %4601 = vmatpush1.msra.mxu0 0.0
    %4602 = vmatprep.subr.mxu0 0.0
    %4603 = vmatpush1.msra.mxu0 0.0
    %4604 = vmatprep.subr.mxu0 0.0
    %4605 = vmatpush1.msra.mxu0 0.0
    %4606 = vmatprep.subr.mxu0 0.0
    %4607 = vmatpush1.msra.mxu0 0.0
    %4608 = vmatprep.subr.mxu0 0.0
    %4609 = vmatpush1.msra.mxu0 0.0
    %4610 = vmatprep.subr.mxu0 0.0
    %4611 = vmatpush1.msra.mxu0 0.0
    %4612 = vmatprep.mubr.f32.mxu0 0.0
    %4613 = vmatmul.mubr.f32.gmra.mrb[0].mxu0 %v4547
    %v4614 = vpop.f32.mrb[0].mxu0
    %v4615 = vadd.f32 %v141, %v4614
    %v4616 = vpop.f32.mrb[0].mxu0
    %4617 = vdwg.mxu0
    %v4618 = vadd.f32 %v4615, %v50
    %vm4619 = vcmp.le.s32.totalorder %v134, 2
    %v4620 = vsel %vm4619, 0.0, -1e+30
    %v4622 = vsel %vm219, %v4618, 0
    %4624 = vmatprep.subr.mxu0 0.0
    %4625 = vmatpush1.msra.mxu0 %v73
    %4626 = vmatprep.subr.mxu0 0.0
    %4627 = vmatpush1.msra.mxu0 %v74
    %4628 = vmatprep.subr.mxu0 0.0
    %4629 = vmatpush1.msra.mxu0 %v75
    %4630 = vmatprep.subr.mxu0 0.0
    %4631 = vmatpush1.msra.mxu0 %v76
    %4632 = vmatprep.subr.mxu0 0.0
    %4633 = vmatpush1.msra.mxu0 0.0
    %4634 = vmatprep.subr.mxu0 0.0
    %4635 = vmatpush1.msra.mxu0 0.0
    %4636 = vmatprep.subr.mxu0 0.0
    %4637 = vmatpush1.msra.mxu0 0.0
    %4638 = vmatprep.subr.mxu0 0.0
    %4639 = vmatpush1.msra.mxu0 0.0
    %4640 = vmatprep.subr.mxu0 0.0
    %4641 = vmatpush1.msra.mxu0 0.0
    %4642 = vmatprep.subr.mxu0 0.0
    %4643 = vmatpush1.msra.mxu0 0.0
    %4644 = vmatprep.subr.mxu0 0.0
    %4645 = vmatpush1.msra.mxu0 0.0
    %4646 = vmatprep.subr.mxu0 0.0
    %4647 = vmatpush1.msra.mxu0 0.0
    %4648 = vmatprep.subr.mxu0 0.0
    %4649 = vmatpush1.msra.mxu0 0.0
    %4650 = vmatprep.subr.mxu0 0.0
    %4651 = vmatpush1.msra.mxu0 0.0
    %4652 = vmatprep.subr.mxu0 0.0
    %4653 = vmatpush1.msra.mxu0 0.0
    %4654 = vmatprep.subr.mxu0 0.0
    %4655 = vmatpush1.msra.mxu0 0.0
    %4656 = vmatprep.subr.mxu0 0.0
    %4657 = vmatpush1.msra.mxu0 0.0
    %4658 = vmatprep.subr.mxu0 0.0
    %4659 = vmatpush1.msra.mxu0 0.0
    %4660 = vmatprep.subr.mxu0 0.0
    %4661 = vmatpush1.msra.mxu0 0.0
    %4662 = vmatprep.subr.mxu0 0.0
    %4663 = vmatpush1.msra.mxu0 0.0
    %4664 = vmatprep.subr.mxu0 0.0
    %4665 = vmatpush1.msra.mxu0 0.0
    %4666 = vmatprep.subr.mxu0 0.0
    %4667 = vmatpush1.msra.mxu0 0.0
    %4668 = vmatprep.subr.mxu0 0.0
    %4669 = vmatpush1.msra.mxu0 0.0
    %4670 = vmatprep.subr.mxu0 0.0
    %4671 = vmatpush1.msra.mxu0 0.0
    %4672 = vmatprep.subr.mxu0 0.0
    %4673 = vmatpush1.msra.mxu0 0.0
    %4674 = vmatprep.subr.mxu0 0.0
    %4675 = vmatpush1.msra.mxu0 0.0
    %4676 = vmatprep.subr.mxu0 0.0
    %4677 = vmatpush1.msra.mxu0 0.0
    %4678 = vmatprep.subr.mxu0 0.0
    %4679 = vmatpush1.msra.mxu0 0.0
    %4680 = vmatprep.subr.mxu0 0.0
    %4681 = vmatpush1.msra.mxu0 0.0
    %4682 = vmatprep.subr.mxu0 0.0
    %4683 = vmatpush1.msra.mxu0 0.0
    %4684 = vmatprep.subr.mxu0 0.0
    %4685 = vmatpush1.msra.mxu0 0.0
    %4686 = vmatprep.subr.mxu0 0.0
    %4687 = vmatpush1.msra.mxu0 0.0
    %4688 = vmatprep.mubr.f32.mxu0 0.0
    %4689 = vmatmul.mubr.f32.gmra.mrb[0].mxu0 %v4622
    %v4690 = vpop.f32.mrb[0].mxu0
    %v4691 = vadd.f32 %v218, %v4690
    %v4692 = vpop.f32.mrb[0].mxu0
    %4693 = vdwg.mxu0
    %4695 = vrot.lane.b32.xlu0 %v4691, 96
    %v4696 = vpop.permute.xlu0 %4695
    %v4697 = vsel %vm296, %v4691, 0
    %v4699 = vsel %vm296, %v4696, 0
    %4701 = vmatprep.subr.mxu0 0.0
    %4702 = vmatpush1.xpose.msra.mxu0 %v4699
    %4703 = vmatprep.subr.mxu0 0.0
    %4704 = vmatpush1.xpose.msra.mxu0 0.0
    %4705 = vmatprep.subr.mxu0 0.0
    %4706 = vmatpush1.xpose.msra.mxu0 0.0
    %4707 = vmatprep.subr.mxu0 0.0
    %4708 = vmatpush1.xpose.msra.mxu0 0.0
    %4709 = vmatprep.subr.mxu0 0.0
    %4710 = vmatpush1.xpose.msra.mxu0 0.0
    %4711 = vmatprep.subr.mxu0 0.0
    %4712 = vmatpush1.xpose.msra.mxu0 0.0
    %4713 = vmatprep.subr.mxu0 0.0
    %4714 = vmatpush1.xpose.msra.mxu0 0.0
    %4715 = vmatprep.subr.mxu0 0.0
    %4716 = vmatpush1.xpose.msra.mxu0 0.0
    %4717 = vmatprep.subr.mxu0 0.0
    %4718 = vmatpush1.xpose.msra.mxu0 0.0
    %4719 = vmatprep.subr.mxu0 0.0
    %4720 = vmatpush1.xpose.msra.mxu0 0.0
    %4721 = vmatprep.subr.mxu0 0.0
    %4722 = vmatpush1.xpose.msra.mxu0 0.0
    %4723 = vmatprep.subr.mxu0 0.0
    %4724 = vmatpush1.xpose.msra.mxu0 0.0
    %4725 = vmatprep.subr.mxu0 0.0
    %4726 = vmatpush1.xpose.msra.mxu0 0.0
    %4727 = vmatprep.subr.mxu0 0.0
    %4728 = vmatpush1.xpose.msra.mxu0 0.0
    %4729 = vmatprep.subr.mxu0 0.0
    %4730 = vmatpush1.xpose.msra.mxu0 0.0
    %4731 = vmatprep.subr.mxu0 0.0
    %4732 = vmatpush1.xpose.msra.mxu0 0.0
    %4733 = vmatprep.subr.mxu0 0.0
    %4734 = vmatpush1.xpose.msra.mxu0 0.0
    %4735 = vmatprep.subr.mxu0 0.0
    %4736 = vmatpush1.xpose.msra.mxu0 0.0
    %4737 = vmatprep.subr.mxu0 0.0
    %4738 = vmatpush1.xpose.msra.mxu0 0.0
    %4739 = vmatprep.subr.mxu0 0.0
    %4740 = vmatpush1.xpose.msra.mxu0 0.0
    %4741 = vmatprep.subr.mxu0 0.0
    %4742 = vmatpush1.xpose.msra.mxu0 0.0
    %4743 = vmatprep.subr.mxu0 0.0
    %4744 = vmatpush1.xpose.msra.mxu0 0.0
    %4745 = vmatprep.subr.mxu0 0.0
    %4746 = vmatpush1.xpose.msra.mxu0 0.0
    %4747 = vmatprep.subr.mxu0 0.0
    %4748 = vmatpush1.xpose.msra.mxu0 0.0
    %4749 = vmatprep.subr.mxu0 0.0
    %4750 = vmatpush1.xpose.msra.mxu0 0.0
    %4751 = vmatprep.subr.mxu0 0.0
    %4752 = vmatpush1.xpose.msra.mxu0 0.0
    %4753 = vmatprep.subr.mxu0 0.0
    %4754 = vmatpush1.xpose.msra.mxu0 0.0
    %4755 = vmatprep.subr.mxu0 0.0
    %4756 = vmatpush1.xpose.msra.mxu0 0.0
    %4757 = vmatprep.subr.mxu0 0.0
    %4758 = vmatpush1.xpose.msra.mxu0 0.0
    %4759 = vmatprep.subr.mxu0 0.0
    %4760 = vmatpush1.xpose.msra.mxu0 0.0
    %4761 = vmatprep.subr.mxu0 0.0
    %4762 = vmatpush1.xpose.msra.mxu0 0.0
    %4763 = vmatprep.subr.mxu0 0.0
    %4764 = vmatpush1.xpose.msra.mxu0 0.0
    %4765 = vmatprep.mubr.f32.mxu0 0.0
    %4766 = vmatmul.mubr.f32.gmra.mrb[0].mxu0 %v4697
    %v4767 = vpop.f32.mrb[0].mxu0
    %v4768 = vadd.f32 %v4620, %v4767
    %v4769 = vpop.f32.mrb[0].mxu0
    %4770 = vdwg.mxu0
    %v4771 = vsel %vm296, %v4768, -inf
    %4772 = vmax.xlane.f32.xlu0 %v4771
    %v4773 = vpop.xlane.xlu0 %4772
    %v4774 = vsub.f32 %v4768, %v4773
    %v4775 = vmul.f32 %v4774, 1.442695
    %v4776 = vpow.pop %v4775
    %v4777 = vsel %vm296, %v4776, 0.0
    %4778 = vadd.xlane.f32.xlu0 %v4777
    %v4779 = vpop.xlane.xlu0 %4778
    %v4780 = vrcp.pop %v4779
    %v4781 = vmul.f32 %v4776, %v4780
    %4782 = vrot.lane.b32.xlu0 %v4691, 64
    %v4783 = vpop.permute.xlu0 %4782
    %v4786 = vsel %vm296, %v4781, 0
    %4788 = vmatprep.subr.mxu0 0.0
    %4789 = vmatpush1.msra.mxu0 %v4783
    %4790 = vmatprep.subr.mxu0 0.0
    %4791 = vmatpush1.msra.mxu0 0.0
    %4792 = vmatprep.subr.mxu0 0.0
    %4793 = vmatpush1.msra.mxu0 0.0
    %4794 = vmatprep.subr.mxu0 0.0
    %4795 = vmatpush1.msra.mxu0 0.0
    %4796 = vmatprep.subr.mxu0 0.0
    %4797 = vmatpush1.msra.mxu0 0.0
    %4798 = vmatprep.subr.mxu0 0.0
    %4799 = vmatpush1.msra.mxu0 0.0
    %4800 = vmatprep.subr.mxu0 0.0
    %4801 = vmatpush1.msra.mxu0 0.0
    %4802 = vmatprep.subr.mxu0 0.0
    %4803 = vmatpush1.msra.mxu0 0.0
    %4804 = vmatprep.subr.mxu0 0.0
    %4805 = vmatpush1.msra.mxu0 0.0
    %4806 = vmatprep.subr.mxu0 0.0
    %4807 = vmatpush1.msra.mxu0 0.0
    %4808 = vmatprep.subr.mxu0 0.0
    %4809 = vmatpush1.msra.mxu0 0.0
    %4810 = vmatprep.subr.mxu0 0.0
    %4811 = vmatpush1.msra.mxu0 0.0
    %4812 = vmatprep.subr.mxu0 0.0
    %4813 = vmatpush1.msra.mxu0 0.0
    %4814 = vmatprep.subr.mxu0 0.0
    %4815 = vmatpush1.msra.mxu0 0.0
    %4816 = vmatprep.subr.mxu0 0.0
    %4817 = vmatpush1.msra.mxu0 0.0
    %4818 = vmatprep.subr.mxu0 0.0
    %4819 = vmatpush1.msra.mxu0 0.0
    %4820 = vmatprep.subr.mxu0 0.0
    %4821 = vmatpush1.msra.mxu0 0.0
    %4822 = vmatprep.subr.mxu0 0.0
    %4823 = vmatpush1.msra.mxu0 0.0
    %4824 = vmatprep.subr.mxu0 0.0
    %4825 = vmatpush1.msra.mxu0 0.0
    %4826 = vmatprep.subr.mxu0 0.0
    %4827 = vmatpush1.msra.mxu0 0.0
    %4828 = vmatprep.subr.mxu0 0.0
    %4829 = vmatpush1.msra.mxu0 0.0
    %4830 = vmatprep.subr.mxu0 0.0
    %4831 = vmatpush1.msra.mxu0 0.0
    %4832 = vmatprep.subr.mxu0 0.0
    %4833 = vmatpush1.msra.mxu0 0.0
    %4834 = vmatprep.subr.mxu0 0.0
    %4835 = vmatpush1.msra.mxu0 0.0
    %4836 = vmatprep.subr.mxu0 0.0
    %4837 = vmatpush1.msra.mxu0 0.0
    %4838 = vmatprep.subr.mxu0 0.0
    %4839 = vmatpush1.msra.mxu0 0.0
    %4840 = vmatprep.subr.mxu0 0.0
    %4841 = vmatpush1.msra.mxu0 0.0
    %4842 = vmatprep.subr.mxu0 0.0
    %4843 = vmatpush1.msra.mxu0 0.0
    %4844 = vmatprep.subr.mxu0 0.0
    %4845 = vmatpush1.msra.mxu0 0.0
    %4846 = vmatprep.subr.mxu0 0.0
    %4847 = vmatpush1.msra.mxu0 0.0
    %4848 = vmatprep.subr.mxu0 0.0
    %4849 = vmatpush1.msra.mxu0 0.0
    %4850 = vmatprep.subr.mxu0 0.0
    %4851 = vmatpush1.msra.mxu0 0.0
    %4852 = vmatprep.mubr.f32.mxu0 0.0
    %4853 = vmatmul.mubr.f32.gmra.mrb[0].mxu0 %v4786
    %v4854 = vpop.f32.mrb[0].mxu0
    %v4855 = vadd.f32 0.0, %v4854
    %v4856 = vpop.f32.mrb[0].mxu0
    %4857 = vdwg.mxu0
    %4858 = vrot.lane.b32.xlu0 %v4691, 120
    %v4859 = vpop.permute.xlu0 %4858
    %4860 = vrot.lane.b32.xlu0 %v4691, 88
    %v4861 = vpop.permute.xlu0 %4860
    %v4862 = vsel %vm296, %v4859, 0
    %v4864 = vsel %vm296, %v4861, 0
    %4866 = vmatprep.subr.mxu0 0.0
    %4867 = vmatpush1.xpose.msra.mxu0 %v4864
    %4868 = vmatprep.subr.mxu0 0.0
    %4869 = vmatpush1.xpose.msra.mxu0 0.0
    %4870 = vmatprep.subr.mxu0 0.0
    %4871 = vmatpush1.xpose.msra.mxu0 0.0
    %4872 = vmatprep.subr.mxu0 0.0
    %4873 = vmatpush1.xpose.msra.mxu0 0.0
    %4874 = vmatprep.subr.mxu0 0.0
    %4875 = vmatpush1.xpose.msra.mxu0 0.0
    %4876 = vmatprep.subr.mxu0 0.0
    %4877 = vmatpush1.xpose.msra.mxu0 0.0
    %4878 = vmatprep.subr.mxu0 0.0
    %4879 = vmatpush1.xpose.msra.mxu0 0.0
    %4880 = vmatprep.subr.mxu0 0.0
    %4881 = vmatpush1.xpose.msra.mxu0 0.0
    %4882 = vmatprep.subr.mxu0 0.0
    %4883 = vmatpush1.xpose.msra.mxu0 0.0
    %4884 = vmatprep.subr.mxu0 0.0
    %4885 = vmatpush1.xpose.msra.mxu0 0.0
    %4886 = vmatprep.subr.mxu0 0.0
    %4887 = vmatpush1.xpose.msra.mxu0 0.0
    %4888 = vmatprep.subr.mxu0 0.0
    %4889 = vmatpush1.xpose.msra.mxu0 0.0
    %4890 = vmatprep.subr.mxu0 0.0
    %4891 = vmatpush1.xpose.msra.mxu0 0.0
    %4892 = vmatprep.subr.mxu0 0.0
    %4893 = vmatpush1.xpose.msra.mxu0 0.0
    %4894 = vmatprep.subr.mxu0 0.0
    %4895 = vmatpush1.xpose.msra.mxu0 0.0
    %4896 = vmatprep.subr.mxu0 0.0
    %4897 = vmatpush1.xpose.msra.mxu0 0.0
    %4898 = vmatprep.subr.mxu0 0.0
    %4899 = vmatpush1.xpose.msra.mxu0 0.0
    %4900 = vmatprep.subr.mxu0 0.0
    %4901 = vmatpush1.xpose.msra.mxu0 0.0
    %4902 = vmatprep.subr.mxu0 0.0
    %4903 = vmatpush1.xpose.msra.mxu0 0.0
    %4904 = vmatprep.subr.mxu0 0.0
    %4905 = vmatpush1.xpose.msra.mxu0 0.0
    %4906 = vmatprep.subr.mxu0 0.0
    %4907 = vmatpush1.xpose.msra.mxu0 0.0
    %4908 = vmatprep.subr.mxu0 0.0
    %4909 = vmatpush1.xpose.msra.mxu0 0.0
    %4910 = vmatprep.subr.mxu0 0.0
    %4911 = vmatpush1.xpose.msra.mxu0 0.0
    %4912 = vmatprep.subr.mxu0 0.0
    %4913 = vmatpush1.xpose.msra.mxu0 0.0
    %4914 = vmatprep.subr.mxu0 0.0
    %4915 = vmatpush1.xpose.msra.mxu0 0.0
    %4916 = vmatprep.subr.mxu0 0.0
    %4917 = vmatpush1.xpose.msra.mxu0 0.0
    %4918 = vmatprep.subr.mxu0 0.0
    %4919 = vmatpush1.xpose.msra.mxu0 0.0
    %4920 = vmatprep.subr.mxu0 0.0
    %4921 = vmatpush1.xpose.msra.mxu0 0.0
    %4922 = vmatprep.subr.mxu0 0.0
    %4923 = vmatpush1.xpose.msra.mxu0 0.0
    %4924 = vmatprep.subr.mxu0 0.0
    %4925 = vmatpush1.xpose.msra.mxu0 0.0
    %4926 = vmatprep.subr.mxu0 0.0
    %4927 = vmatpush1.xpose.msra.mxu0 0.0
    %4928 = vmatprep.subr.mxu0 0.0
    %4929 = vmatpush1.xpose.msra.mxu0 0.0
    %4930 = vmatprep.mubr.f32.mxu0 0.0
    %4931 = vmatmul.mubr.f32.gmra.mrb[0].mxu0 %v4862
    %v4932 = vpop.f32.mrb[0].mxu0
    %v4933 = vadd.f32 %v4620, %v4932
    %v4934 = vpop.f32.mrb[0].mxu0
    %4935 = vdwg.mxu0
    %v4936 = vsel %vm296, %v4933, -inf
    %4937 = vmax.xlane.f32.xlu0 %v4936
    %v4938 = vpop.xlane.xlu0 %4937
    %v4939 = vsub.f32 %v4933, %v4938
    %v4940 = vmul.f32 %v4939, 1.442695
    %v4941 = vpow.pop %v4940
    %v4942 = vsel %vm296, %v4941, 0.0
    %4943 = vadd.xlane.f32.xlu0 %v4942
    %v4944 = vpop.xlane.xlu0 %4943
    %v4945 = vrcp.pop %v4944
    %v4946 = vmul.f32 %v4941, %v4945
    %4947 = vrot.lane.b32.xlu0 %v4691, 56
    %v4948 = vpop.permute.xlu0 %4947
    %v4951 = vsel %vm296, %v4946, 0
    %4953 = vmatprep.subr.mxu0 0.0
    %4954 = vmatpush1.msra.mxu0 %v4948
    %4955 = vmatprep.subr.mxu0 0.0
    %4956 = vmatpush1.msra.mxu0 0.0
    %4957 = vmatprep.subr.mxu0 0.0
    %4958 = vmatpush1.msra.mxu0 0.0
    %4959 = vmatprep.subr.mxu0 0.0
    %4960 = vmatpush1.msra.mxu0 0.0
    %4961 = vmatprep.subr.mxu0 0.0
    %4962 = vmatpush1.msra.mxu0 0.0
    %4963 = vmatprep.subr.mxu0 0.0
    %4964 = vmatpush1.msra.mxu0 0.0
    %4965 = vmatprep.subr.mxu0 0.0
    %4966 = vmatpush1.msra.mxu0 0.0
    %4967 = vmatprep.subr.mxu0 0.0
    %4968 = vmatpush1.msra.mxu0 0.0
    %4969 = vmatprep.subr.mxu0 0.0
    %4970 = vmatpush1.msra.mxu0 0.0
    %4971 = vmatprep.subr.mxu0 0.0
    %4972 = vmatpush1.msra.mxu0 0.0
    %4973 = vmatprep.subr.mxu0 0.0
    %4974 = vmatpush1.msra.mxu0 0.0
    %4975 = vmatprep.subr.mxu0 0.0
    %4976 = vmatpush1.msra.mxu0 0.0
    %4977 = vmatprep.subr.mxu0 0.0
    %4978 = vmatpush1.msra.mxu0 0.0
    %4979 = vmatprep.subr.mxu0 0.0
    %4980 = vmatpush1.msra.mxu0 0.0
    %4981 = vmatprep.subr.mxu0 0.0
    %4982 = vmatpush1.msra.mxu0 0.0
    %4983 = vmatprep.subr.mxu0 0.0
    %4984 = vmatpush1.msra.mxu0 0.0
    %4985 = vmatprep.subr.mxu0 0.0
    %4986 = vmatpush1.msra.mxu0 0.0
    %4987 = vmatprep.subr.mxu0 0.0
    %4988 = vmatpush1.msra.mxu0 0.0
    %4989 = vmatprep.subr.mxu0 0.0
    %4990 = vmatpush1.msra.mxu0 0.0
    %4991 = vmatprep.subr.mxu0 0.0
    %4992 = vmatpush1.msra.mxu0 0.0
    %4993 = vmatprep.subr.mxu0 0.0
    %4994 = vmatpush1.msra.mxu0 0.0
    %4995 = vmatprep.subr.mxu0 0.0
    %4996 = vmatpush1.msra.mxu0 0.0
    %4997 = vmatprep.subr.mxu0 0.0
    %4998 = vmatpush1.msra.mxu0 0.0
    %4999 = vmatprep.subr.mxu0 0.0
    %5000 = vmatpush1.msra.mxu0 0.0
    %5001 = vmatprep.subr.mxu0 0.0
    %5002 = vmatpush1.msra.mxu0 0.0
    %5003 = vmatprep.subr.mxu0 0.0
    %5004 = vmatpush1.msra.mxu0 0.0
    %5005 = vmatprep.subr.mxu0 0.0
    %5006 = vmatpush1.msra.mxu0 0.0
    %5007 = vmatprep.subr.mxu0 0.0
    %5008 = vmatpush1.msra.mxu0 0.0
    %5009 = vmatprep.subr.mxu0 0.0
    %5010 = vmatpush1.msra.mxu0 0.0
    %5011 = vmatprep.subr.mxu0 0.0
    %5012 = vmatpush1.msra.mxu0 0.0
    %5013 = vmatprep.subr.mxu0 0.0
    %5014 = vmatpush1.msra.mxu0 0.0
    %5015 = vmatprep.subr.mxu0 0.0
    %5016 = vmatpush1.msra.mxu0 0.0
    %5017 = vmatprep.mubr.f32.mxu0 0.0
    %5018 = vmatmul.mubr.f32.gmra.mrb[0].mxu0 %v4951
    %v5019 = vpop.f32.mrb[0].mxu0
    %v5020 = vadd.f32 0.0, %v5019
    %v5021 = vpop.f32.mrb[0].mxu0
    %5022 = vdwg.mxu0
    %5023 = vrot.lane.b32.xlu0 %v4691, 112
    %v5024 = vpop.permute.xlu0 %5023
    %5025 = vrot.lane.b32.xlu0 %v4691, 80
    %v5026 = vpop.permute.xlu0 %5025
    %v5027 = vsel %vm296, %v5024, 0
    %v5029 = vsel %vm296, %v5026, 0
    %5031 = vmatprep.subr.mxu0 0.0
    %5032 = vmatpush1.xpose.msra.mxu0 %v5029
    %5033 = vmatprep.subr.mxu0 0.0
    %5034 = vmatpush1.xpose.msra.mxu0 0.0
    %5035 = vmatprep.subr.mxu0 0.0
    %5036 = vmatpush1.xpose.msra.mxu0 0.0
    %5037 = vmatprep.subr.mxu0 0.0
    %5038 = vmatpush1.xpose.msra.mxu0 0.0
    %5039 = vmatprep.subr.mxu0 0.0
    %5040 = vmatpush1.xpose.msra.mxu0 0.0
    %5041 = vmatprep.subr.mxu0 0.0
    %5042 = vmatpush1.xpose.msra.mxu0 0.0
    %5043 = vmatprep.subr.mxu0 0.0
    %5044 = vmatpush1.xpose.msra.mxu0 0.0
    %5045 = vmatprep.subr.mxu0 0.0
    %5046 = vmatpush1.xpose.msra.mxu0 0.0
    %5047 = vmatprep.subr.mxu0 0.0
    %5048 = vmatpush1.xpose.msra.mxu0 0.0
    %5049 = vmatprep.subr.mxu0 0.0
    %5050 = vmatpush1.xpose.msra.mxu0 0.0
    %5051 = vmatprep.subr.mxu0 0.0
    %5052 = vmatpush1.xpose.msra.mxu0 0.0
    %5053 = vmatprep.subr.mxu0 0.0
    %5054 = vmatpush1.xpose.msra.mxu0 0.0
    %5055 = vmatprep.subr.mxu0 0.0
    %5056 = vmatpush1.xpose.msra.mxu0 0.0
    %5057 = vmatprep.subr.mxu0 0.0
    %5058 = vmatpush1.xpose.msra.mxu0 0.0
    %5059 = vmatprep.subr.mxu0 0.0
    %5060 = vmatpush1.xpose.msra.mxu0 0.0
    %5061 = vmatprep.subr.mxu0 0.0
    %5062 = vmatpush1.xpose.msra.mxu0 0.0
    %5063 = vmatprep.subr.mxu0 0.0
    %5064 = vmatpush1.xpose.msra.mxu0 0.0
    %5065 = vmatprep.subr.mxu0 0.0
    %5066 = vmatpush1.xpose.msra.mxu0 0.0
    %5067 = vmatprep.subr.mxu0 0.0
    %5068 = vmatpush1.xpose.msra.mxu0 0.0
    %5069 = vmatprep.subr.mxu0 0.0
    %5070 = vmatpush1.xpose.msra.mxu0 0.0
    %5071 = vmatprep.subr.mxu0 0.0
    %5072 = vmatpush1.xpose.msra.mxu0 0.0
    %5073 = vmatprep.subr.mxu0 0.0
    %5074 = vmatpush1.xpose.msra.mxu0 0.0
    %5075 = vmatprep.subr.mxu0 0.0
    %5076 = vmatpush1.xpose.msra.mxu0 0.0
    %5077 = vmatprep.subr.mxu0 0.0
    %5078 = vmatpush1.xpose.msra.mxu0 0.0
    %5079 = vmatprep.subr.mxu0 0.0
    %5080 = vmatpush1.xpose.msra.mxu0 0.0
    %5081 = vmatprep.subr.mxu0 0.0
    %5082 = vmatpush1.xpose.msra.mxu0 0.0
    %5083 = vmatprep.subr.mxu0 0.0
    %5084 = vmatpush1.xpose.msra.mxu0 0.0
    %5085 = vmatprep.subr.mxu0 0.0
    %5086 = vmatpush1.xpose.msra.mxu0 0.0
    %5087 = vmatprep.subr.mxu0 0.0
    %5088 = vmatpush1.xpose.msra.mxu0 0.0
    %5089 = vmatprep.subr.mxu0 0.0
    %5090 = vmatpush1.xpose.msra.mxu0 0.0
    %5091 = vmatprep.subr.mxu0 0.0
    %5092 = vmatpush1.xpose.msra.mxu0 0.0
    %5093 = vmatprep.subr.mxu0 0.0
    %5094 = vmatpush1.xpose.msra.mxu0 0.0
    %5095 = vmatprep.mubr.f32.mxu0 0.0
    %5096 = vmatmul.mubr.f32.gmra.mrb[0].mxu0 %v5027
    %v5097 = vpop.f32.mrb[0].mxu0
    %v5098 = vadd.f32 %v4620, %v5097
    %v5099 = vpop.f32.mrb[0].mxu0
    %5100 = vdwg.mxu0
    %v5101 = vsel %vm296, %v5098, -inf
    %5102 = vmax.xlane.f32.xlu0 %v5101
    %v5103 = vpop.xlane.xlu0 %5102
    %v5104 = vsub.f32 %v5098, %v5103
    %v5105 = vmul.f32 %v5104, 1.442695
    %v5106 = vpow.pop %v5105
    %v5107 = vsel %vm296, %v5106, 0.0
    %5108 = vadd.xlane.f32.xlu0 %v5107
    %v5109 = vpop.xlane.xlu0 %5108
    %v5110 = vrcp.pop %v5109
    %v5111 = vmul.f32 %v5106, %v5110
    %5112 = vrot.lane.b32.xlu0 %v4691, 48
    %v5113 = vpop.permute.xlu0 %5112
    %v5116 = vsel %vm296, %v5111, 0
    %5118 = vmatprep.subr.mxu0 0.0
    %5119 = vmatpush1.msra.mxu0 %v5113
    %5120 = vmatprep.subr.mxu0 0.0
    %5121 = vmatpush1.msra.mxu0 0.0
    %5122 = vmatprep.subr.mxu0 0.0
    %5123 = vmatpush1.msra.mxu0 0.0
    %5124 = vmatprep.subr.mxu0 0.0
    %5125 = vmatpush1.msra.mxu0 0.0
    %5126 = vmatprep.subr.mxu0 0.0
    %5127 = vmatpush1.msra.mxu0 0.0
    %5128 = vmatprep.subr.mxu0 0.0
    %5129 = vmatpush1.msra.mxu0 0.0
    %5130 = vmatprep.subr.mxu0 0.0
    %5131 = vmatpush1.msra.mxu0 0.0
    %5132 = vmatprep.subr.mxu0 0.0
    %5133 = vmatpush1.msra.mxu0 0.0
    %5134 = vmatprep.subr.mxu0 0.0
    %5135 = vmatpush1.msra.mxu0 0.0
    %5136 = vmatprep.subr.mxu0 0.0
    %5137 = vmatpush1.msra.mxu0 0.0
    %5138 = vmatprep.subr.mxu0 0.0
    %5139 = vmatpush1.msra.mxu0 0.0
    %5140 = vmatprep.subr.mxu0 0.0
    %5141 = vmatpush1.msra.mxu0 0.0
    %5142 = vmatprep.subr.mxu0 0.0
    %5143 = vmatpush1.msra.mxu0 0.0
    %5144 = vmatprep.subr.mxu0 0.0
    %5145 = vmatpush1.msra.mxu0 0.0
    %5146 = vmatprep.subr.mxu0 0.0
    %5147 = vmatpush1.msra.mxu0 0.0
    %5148 = vmatprep.subr.mxu0 0.0
    %5149 = vmatpush1.msra.mxu0 0.0
    %5150 = vmatprep.subr.mxu0 0.0
    %5151 = vmatpush1.msra.mxu0 0.0
    %5152 = vmatprep.subr.mxu0 0.0
    %5153 = vmatpush1.msra.mxu0 0.0
    %5154 = vmatprep.subr.mxu0 0.0
    %5155 = vmatpush1.msra.mxu0 0.0
    %5156 = vmatprep.subr.mxu0 0.0
    %5157 = vmatpush1.msra.mxu0 0.0
    %5158 = vmatprep.subr.mxu0 0.0
    %5159 = vmatpush1.msra.mxu0 0.0
    %5160 = vmatprep.subr.mxu0 0.0
    %5161 = vmatpush1.msra.mxu0 0.0
    %5162 = vmatprep.subr.mxu0 0.0
    %5163 = vmatpush1.msra.mxu0 0.0
    %5164 = vmatprep.subr.mxu0 0.0
    %5165 = vmatpush1.msra.mxu0 0.0
    %5166 = vmatprep.subr.mxu0 0.0
    %5167 = vmatpush1.msra.mxu0 0.0
    %5168 = vmatprep.subr.mxu0 0.0
    %5169 = vmatpush1.msra.mxu0 0.0
    %5170 = vmatprep.subr.mxu0 0.0
    %5171 = vmatpush1.msra.mxu0 0.0
    %5172 = vmatprep.subr.mxu0 0.0
    %5173 = vmatpush1.msra.mxu0 0.0
    %5174 = vmatprep.subr.mxu0 0.0
    %5175 = vmatpush1.msra.mxu0 0.0
    %5176 = vmatprep.subr.mxu0 0.0
    %5177 = vmatpush1.msra.mxu0 0.0
    %5178 = vmatprep.subr.mxu0 0.0
    %5179 = vmatpush1.msra.mxu0 0.0
    %5180 = vmatprep.subr.mxu0 0.0
    %5181 = vmatpush1.msra.mxu0 0.0
    %5182 = vmatprep.mubr.f32.mxu0 0.0
    %5183 = vmatmul.mubr.f32.gmra.mrb[0].mxu0 %v5116
    %v5184 = vpop.f32.mrb[0].mxu0
    %v5185 = vadd.f32 0.0, %v5184
    %v5186 = vpop.f32.mrb[0].mxu0
    %5187 = vdwg.mxu0
    %5188 = vrot.lane.b32.xlu0 %v4691, 104
    %v5189 = vpop.permute.xlu0 %5188
    %5190 = vrot.lane.b32.xlu0 %v4691, 72
    %v5191 = vpop.permute.xlu0 %5190
    %v5192 = vsel %vm296, %v5189, 0
    %v5194 = vsel %vm296, %v5191, 0
    %5196 = vmatprep.subr.mxu0 0.0
    %5197 = vmatpush1.xpose.msra.mxu0 %v5194
    %5198 = vmatprep.subr.mxu0 0.0
    %5199 = vmatpush1.xpose.msra.mxu0 0.0
    %5200 = vmatprep.subr.mxu0 0.0
    %5201 = vmatpush1.xpose.msra.mxu0 0.0
    %5202 = vmatprep.subr.mxu0 0.0
    %5203 = vmatpush1.xpose.msra.mxu0 0.0
    %5204 = vmatprep.subr.mxu0 0.0
    %5205 = vmatpush1.xpose.msra.mxu0 0.0
    %5206 = vmatprep.subr.mxu0 0.0
    %5207 = vmatpush1.xpose.msra.mxu0 0.0
    %5208 = vmatprep.subr.mxu0 0.0
    %5209 = vmatpush1.xpose.msra.mxu0 0.0
    %5210 = vmatprep.subr.mxu0 0.0
    %5211 = vmatpush1.xpose.msra.mxu0 0.0
    %5212 = vmatprep.subr.mxu0 0.0
    %5213 = vmatpush1.xpose.msra.mxu0 0.0
    %5214 = vmatprep.subr.mxu0 0.0
    %5215 = vmatpush1.xpose.msra.mxu0 0.0
    %5216 = vmatprep.subr.mxu0 0.0
    %5217 = vmatpush1.xpose.msra.mxu0 0.0
    %5218 = vmatprep.subr.mxu0 0.0
    %5219 = vmatpush1.xpose.msra.mxu0 0.0
    %5220 = vmatprep.subr.mxu0 0.0
    %5221 = vmatpush1.xpose.msra.mxu0 0.0
    %5222 = vmatprep.subr.mxu0 0.0
    %5223 = vmatpush1.xpose.msra.mxu0 0.0
    %5224 = vmatprep.subr.mxu0 0.0
    %5225 = vmatpush1.xpose.msra.mxu0 0.0
    %5226 = vmatprep.subr.mxu0 0.0
    %5227 = vmatpush1.xpose.msra.mxu0 0.0
    %5228 = vmatprep.subr.mxu0 0.0
    %5229 = vmatpush1.xpose.msra.mxu0 0.0
    %5230 = vmatprep.subr.mxu0 0.0
    %5231 = vmatpush1.xpose.msra.mxu0 0.0
    %5232 = vmatprep.subr.mxu0 0.0
    %5233 = vmatpush1.xpose.msra.mxu0 0.0
    %5234 = vmatprep.subr.mxu0 0.0
    %5235 = vmatpush1.xpose.msra.mxu0 0.0
    %5236 = vmatprep.subr.mxu0 0.0
    %5237 = vmatpush1.xpose.msra.mxu0 0.0
    %5238 = vmatprep.subr.mxu0 0.0
    %5239 = vmatpush1.xpose.msra.mxu0 0.0
    %5240 = vmatprep.subr.mxu0 0.0
    %5241 = vmatpush1.xpose.msra.mxu0 0.0
    %5242 = vmatprep.subr.mxu0 0.0
    %5243 = vmatpush1.xpose.msra.mxu0 0.0
    %5244 = vmatprep.subr.mxu0 0.0
    %5245 = vmatpush1.xpose.msra.mxu0 0.0
    %5246 = vmatprep.subr.mxu0 0.0
    %5247 = vmatpush1.xpose.msra.mxu0 0.0
    %5248 = vmatprep.subr.mxu0 0.0
    %5249 = vmatpush1.xpose.msra.mxu0 0.0
    %5250 = vmatprep.subr.mxu0 0.0
    %5251 = vmatpush1.xpose.msra.mxu0 0.0
    %5252 = vmatprep.subr.mxu0 0.0
    %5253 = vmatpush1.xpose.msra.mxu0 0.0
    %5254 = vmatprep.subr.mxu0 0.0
    %5255 = vmatpush1.xpose.msra.mxu0 0.0
    %5256 = vmatprep.subr.mxu0 0.0
    %5257 = vmatpush1.xpose.msra.mxu0 0.0
    %5258 = vmatprep.subr.mxu0 0.0
    %5259 = vmatpush1.xpose.msra.mxu0 0.0
    %5260 = vmatprep.mubr.f32.mxu0 0.0
    %5261 = vmatmul.mubr.f32.gmra.mrb[0].mxu0 %v5192
    %v5262 = vpop.f32.mrb[0].mxu0
    %v5263 = vadd.f32 %v4620, %v5262
    %v5264 = vpop.f32.mrb[0].mxu0
    %5265 = vdwg.mxu0
    %v5266 = vsel %vm296, %v5263, -inf
    %5267 = vmax.xlane.f32.xlu0 %v5266
    %v5268 = vpop.xlane.xlu0 %5267
    %v5269 = vsub.f32 %v5263, %v5268
    %v5270 = vmul.f32 %v5269, 1.442695
    %v5271 = vpow.pop %v5270
    %v5272 = vsel %vm296, %v5271, 0.0
    %5273 = vadd.xlane.f32.xlu0 %v5272
    %v5274 = vpop.xlane.xlu0 %5273
    %v5275 = vrcp.pop %v5274
    %v5276 = vmul.f32 %v5271, %v5275
    %5277 = vrot.lane.b32.xlu0 %v4691, 40
    %v5278 = vpop.permute.xlu0 %5277
    %v5281 = vsel %vm296, %v5276, 0
    %5283 = vmatprep.subr.mxu0 0.0
    %5284 = vmatpush1.msra.mxu0 %v5278
    %5285 = vmatprep.subr.mxu0 0.0
    %5286 = vmatpush1.msra.mxu0 0.0
    %5287 = vmatprep.subr.mxu0 0.0
    %5288 = vmatpush1.msra.mxu0 0.0
    %5289 = vmatprep.subr.mxu0 0.0
    %5290 = vmatpush1.msra.mxu0 0.0
    %5291 = vmatprep.subr.mxu0 0.0
    %5292 = vmatpush1.msra.mxu0 0.0
    %5293 = vmatprep.subr.mxu0 0.0
    %5294 = vmatpush1.msra.mxu0 0.0
    %5295 = vmatprep.subr.mxu0 0.0
    %5296 = vmatpush1.msra.mxu0 0.0
    %5297 = vmatprep.subr.mxu0 0.0
    %5298 = vmatpush1.msra.mxu0 0.0
    %5299 = vmatprep.subr.mxu0 0.0
    %5300 = vmatpush1.msra.mxu0 0.0
    %5301 = vmatprep.subr.mxu0 0.0
    %5302 = vmatpush1.msra.mxu0 0.0
    %5303 = vmatprep.subr.mxu0 0.0
    %5304 = vmatpush1.msra.mxu0 0.0
    %5305 = vmatprep.subr.mxu0 0.0
    %5306 = vmatpush1.msra.mxu0 0.0
    %5307 = vmatprep.subr.mxu0 0.0
    %5308 = vmatpush1.msra.mxu0 0.0
    %5309 = vmatprep.subr.mxu0 0.0
    %5310 = vmatpush1.msra.mxu0 0.0
    %5311 = vmatprep.subr.mxu0 0.0
    %5312 = vmatpush1.msra.mxu0 0.0
    %5313 = vmatprep.subr.mxu0 0.0
    %5314 = vmatpush1.msra.mxu0 0.0
    %5315 = vmatprep.subr.mxu0 0.0
    %5316 = vmatpush1.msra.mxu0 0.0
    %5317 = vmatprep.subr.mxu0 0.0
    %5318 = vmatpush1.msra.mxu0 0.0
    %5319 = vmatprep.subr.mxu0 0.0
    %5320 = vmatpush1.msra.mxu0 0.0
    %5321 = vmatprep.subr.mxu0 0.0
    %5322 = vmatpush1.msra.mxu0 0.0
    %5323 = vmatprep.subr.mxu0 0.0
    %5324 = vmatpush1.msra.mxu0 0.0
    %5325 = vmatprep.subr.mxu0 0.0
    %5326 = vmatpush1.msra.mxu0 0.0
    %5327 = vmatprep.subr.mxu0 0.0
    %5328 = vmatpush1.msra.mxu0 0.0
    %5329 = vmatprep.subr.mxu0 0.0
    %5330 = vmatpush1.msra.mxu0 0.0
    %5331 = vmatprep.subr.mxu0 0.0
    %5332 = vmatpush1.msra.mxu0 0.0
    %5333 = vmatprep.subr.mxu0 0.0
    %5334 = vmatpush1.msra.mxu0 0.0
    %5335 = vmatprep.subr.mxu0 0.0
    %5336 = vmatpush1.msra.mxu0 0.0
    %5337 = vmatprep.subr.mxu0 0.0
    %5338 = vmatpush1.msra.mxu0 0.0
    %5339 = vmatprep.subr.mxu0 0.0
    %5340 = vmatpush1.msra.mxu0 0.0
    %5341 = vmatprep.subr.mxu0 0.0
    %5342 = vmatpush1.msra.mxu0 0.0
    %5343 = vmatprep.subr.mxu0 0.0
    %5344 = vmatpush1.msra.mxu0 0.0
    %5345 = vmatprep.subr.mxu0 0.0
    %5346 = vmatpush1.msra.mxu0 0.0
    %5347 = vmatprep.mubr.f32.mxu0 0.0
    %5348 = vmatmul.mubr.f32.gmra.mrb[0].mxu0 %v5281
    %v5349 = vpop.f32.mrb[0].mxu0
    %v5350 = vadd.f32 0.0, %v5349
    %v5351 = vpop.f32.mrb[0].mxu0
    %5352 = vdwg.mxu0
    %5354 = vrot.lane.b32.xlu0 %v5020, 8
    %v5355 = vpop.permute.xlu0 %5354
    %5358 = vrot.lane.b32.xlu0 %v5185, 16
    %v5359 = vpop.permute.xlu0 %5358
    %5362 = vrot.lane.b32.xlu0 %v5350, 24
    %v5363 = vpop.permute.xlu0 %5362
    %v5365 = vsel %vm296, %v4855, %v5355
    %v5366 = vsel %vm966, %v5365, %v5359
    %v5367 = vsel %vm968, %v5366, %v5363
    %v5369 = vsel %vm219, %v5367, 0
    %5371 = vmatprep.subr.mxu0 0.0
    %5372 = vmatpush1.msra.mxu0 %v77
    %5373 = vmatprep.subr.mxu0 0.0
    %5374 = vmatpush1.msra.mxu0 %v78
    %5375 = vmatprep.subr.mxu0 0.0
    %5376 = vmatpush1.msra.mxu0 %v79
    %5377 = vmatprep.subr.mxu0 0.0
    %5378 = vmatpush1.msra.mxu0 %v80
    %5379 = vmatprep.subr.mxu0 0.0
    %5380 = vmatpush1.msra.mxu0 0.0
    %5381 = vmatprep.subr.mxu0 0.0
    %5382 = vmatpush1.msra.mxu0 0.0
    %5383 = vmatprep.subr.mxu0 0.0
    %5384 = vmatpush1.msra.mxu0 0.0
    %5385 = vmatprep.subr.mxu0 0.0
    %5386 = vmatpush1.msra.mxu0 0.0
    %5387 = vmatprep.subr.mxu0 0.0
    %5388 = vmatpush1.msra.mxu0 0.0
    %5389 = vmatprep.subr.mxu0 0.0
    %5390 = vmatpush1.msra.mxu0 0.0
    %5391 = vmatprep.subr.mxu0 0.0
    %5392 = vmatpush1.msra.mxu0 0.0
    %5393 = vmatprep.subr.mxu0 0.0
    %5394 = vmatpush1.msra.mxu0 0.0
    %5395 = vmatprep.subr.mxu0 0.0
    %5396 = vmatpush1.msra.mxu0 0.0
    %5397 = vmatprep.subr.mxu0 0.0
    %5398 = vmatpush1.msra.mxu0 0.0
    %5399 = vmatprep.subr.mxu0 0.0
    %5400 = vmatpush1.msra.mxu0 0.0
    %5401 = vmatprep.subr.mxu0 0.0
    %5402 = vmatpush1.msra.mxu0 0.0
    %5403 = vmatprep.subr.mxu0 0.0
    %5404 = vmatpush1.msra.mxu0 0.0
    %5405 = vmatprep.subr.mxu0 0.0
    %5406 = vmatpush1.msra.mxu0 0.0
    %5407 = vmatprep.subr.mxu0 0.0
    %5408 = vmatpush1.msra.mxu0 0.0
    %5409 = vmatprep.subr.mxu0 0.0
    %5410 = vmatpush1.msra.mxu0 0.0
    %5411 = vmatprep.subr.mxu0 0.0
    %5412 = vmatpush1.msra.mxu0 0.0
    %5413 = vmatprep.subr.mxu0 0.0
    %5414 = vmatpush1.msra.mxu0 0.0
    %5415 = vmatprep.subr.mxu0 0.0
    %5416 = vmatpush1.msra.mxu0 0.0
    %5417 = vmatprep.subr.mxu0 0.0
    %5418 = vmatpush1.msra.mxu0 0.0
    %5419 = vmatprep.subr.mxu0 0.0
    %5420 = vmatpush1.msra.mxu0 0.0
    %5421 = vmatprep.subr.mxu0 0.0
    %5422 = vmatpush1.msra.mxu0 0.0
    %5423 = vmatprep.subr.mxu0 0.0
    %5424 = vmatpush1.msra.mxu0 0.0
    %5425 = vmatprep.subr.mxu0 0.0
    %5426 = vmatpush1.msra.mxu0 0.0
    %5427 = vmatprep.subr.mxu0 0.0
    %5428 = vmatpush1.msra.mxu0 0.0
    %5429 = vmatprep.subr.mxu0 0.0
    %5430 = vmatpush1.msra.mxu0 0.0
    %5431 = vmatprep.subr.mxu0 0.0
    %5432 = vmatpush1.msra.mxu0 0.0
    %5433 = vmatprep.subr.mxu0 0.0
    %5434 = vmatpush1.msra.mxu0 0.0
    %5435 = vmatprep.mubr.f32.mxu0 0.0
    %5436 = vmatmul.mubr.f32.gmra.mrb[0].mxu0 %v5369
    %v5437 = vpop.f32.mrb[0].mxu0
    %v5438 = vadd.f32 %v973, %v5437
    %v5439 = vpop.f32.mrb[0].mxu0
    %5440 = vdwg.mxu0
    %v5441 = vadd.f32 %v4618, %v5438
    %v5442 = vsel %vm219, %v5441, 0.0
    %5443 = vadd.xlane.f32.xlu0 %v5442
    %v5444 = vpop.xlane.xlu0 %5443
    %v5445 = vmul.f32 %v5444, %v1051
    %v5446 = vmul.f32 %v5441, %v5441
    %v5447 = vsel %vm219, %v5446, 0.0
    %5448 = vadd.xlane.f32.xlu0 %v5447
    %v5449 = vpop.xlane.xlu0 %5448
    %v5450 = vmul.f32 %v5449, %v1051
    %v5451 = vmul.f32 %v5445, %v5445
    %v5452 = vsub.f32 %v5450, %v5451
    %v5453 = vsub.f32 %v5441, %v5445
    %v5454 = vadd.f32 %v5452, 1e-05
    %v5455 = vrsqrt.pop %v5454
    %v5456 = vmul.f32 %v5453, %v5455
    %v5457 = vmul.f32 %v5456, %v1067
    %v5458 = vadd.f32 %v5457, %v1072
    %v5460 = vsel %vm219, %v5458, 0
    %5462 = vmatprep.subr.mxu0 0.0
    %5463 = vmatpush1.msra.mxu0 %v81
    %5464 = vmatprep.subr.mxu0 0.0
    %5465 = vmatpush1.msra.mxu0 %v82
    %5466 = vmatprep.subr.mxu0 0.0
    %5467 = vmatpush1.msra.mxu0 %v83
    %5468 = vmatprep.subr.mxu0 0.0
    %5469 = vmatpush1.msra.mxu0 %v84
    %5470 = vmatprep.subr.mxu0 0.0
    %5471 = vmatpush1.msra.mxu0 0.0
    %5472 = vmatprep.subr.mxu0 0.0
    %5473 = vmatpush1.msra.mxu0 0.0
    %5474 = vmatprep.subr.mxu0 0.0
    %5475 = vmatpush1.msra.mxu0 0.0
    %5476 = vmatprep.subr.mxu0 0.0
    %5477 = vmatpush1.msra.mxu0 0.0
    %5478 = vmatprep.subr.mxu0 0.0
    %5479 = vmatpush1.msra.mxu0 0.0
    %5480 = vmatprep.subr.mxu0 0.0
    %5481 = vmatpush1.msra.mxu0 0.0
    %5482 = vmatprep.subr.mxu0 0.0
    %5483 = vmatpush1.msra.mxu0 0.0
    %5484 = vmatprep.subr.mxu0 0.0
    %5485 = vmatpush1.msra.mxu0 0.0
    %5486 = vmatprep.subr.mxu0 0.0
    %5487 = vmatpush1.msra.mxu0 0.0
    %5488 = vmatprep.subr.mxu0 0.0
    %5489 = vmatpush1.msra.mxu0 0.0
    %5490 = vmatprep.subr.mxu0 0.0
    %5491 = vmatpush1.msra.mxu0 0.0
    %5492 = vmatprep.subr.mxu0 0.0
    %5493 = vmatpush1.msra.mxu0 0.0
    %5494 = vmatprep.subr.mxu0 0.0
    %5495 = vmatpush1.msra.mxu0 0.0
    %5496 = vmatprep.subr.mxu0 0.0
    %5497 = vmatpush1.msra.mxu0 0.0
    %5498 = vmatprep.subr.mxu0 0.0
    %5499 = vmatpush1.msra.mxu0 0.0
    %5500 = vmatprep.subr.mxu0 0.0
    %5501 = vmatpush1.msra.mxu0 0.0
    %5502 = vmatprep.subr.mxu0 0.0
    %5503 = vmatpush1.msra.mxu0 0.0
    %5504 = vmatprep.subr.mxu0 0.0
    %5505 = vmatpush1.msra.mxu0 0.0
    %5506 = vmatprep.subr.mxu0 0.0
    %5507 = vmatpush1.msra.mxu0 0.0
    %5508 = vmatprep.subr.mxu0 0.0
    %5509 = vmatpush1.msra.mxu0 0.0
    %5510 = vmatprep.subr.mxu0 0.0
    %5511 = vmatpush1.msra.mxu0 0.0
    %5512 = vmatprep.subr.mxu0 0.0
    %5513 = vmatpush1.msra.mxu0 0.0
    %5514 = vmatprep.subr.mxu0 0.0
    %5515 = vmatpush1.msra.mxu0 0.0
    %5516 = vmatprep.subr.mxu0 0.0
    %5517 = vmatpush1.msra.mxu0 0.0
    %5518 = vmatprep.subr.mxu0 0.0
    %5519 = vmatpush1.msra.mxu0 0.0
    %5520 = vmatprep.subr.mxu0 0.0
    %5521 = vmatpush1.msra.mxu0 0.0
    %5522 = vmatprep.subr.mxu0 0.0
    %5523 = vmatpush1.msra.mxu0 0.0
    %5524 = vmatprep.subr.mxu0 0.0
    %5525 = vmatpush1.msra.mxu0 0.0
    %5526 = vmatprep.mubr.f32.mxu0 0.0
    %5527 = vmatmul.mubr.f32.gmra.mrb[0].mxu0 %v5460
    %v5528 = vpop.f32.mrb[0].mxu0
    %v5529 = vadd.f32 %v1077, %v5528
    %v5530 = vpop.f32.mrb[0].mxu0
    %5531 = vdwg.mxu0
    %v5532 = vmax.f32 %v5529, 0.0
    %v5534 = vsel %vm1156, %v5532, 0
    %5536 = vmatprep.subr.mxu0 0.0
    %5537 = vmatpush1.msra.mxu0 %v85
    %5538 = vmatprep.subr.mxu0 0.0
    %5539 = vmatpush1.msra.mxu0 %v86
    %5540 = vmatprep.subr.mxu0 0.0
    %5541 = vmatpush1.msra.mxu0 %v87
    %5542 = vmatprep.subr.mxu0 0.0
    %5543 = vmatpush1.msra.mxu0 %v88
    %5544 = vmatprep.subr.mxu0 0.0
    %5545 = vmatpush1.msra.mxu0 %v89
    %5546 = vmatprep.subr.mxu0 0.0
    %5547 = vmatpush1.msra.mxu0 %v90
    %5548 = vmatprep.subr.mxu0 0.0
    %5549 = vmatpush1.msra.mxu0 %v91
    %5550 = vmatprep.subr.mxu0 0.0
    %5551 = vmatpush1.msra.mxu0 %v92
    %5552 = vmatprep.subr.mxu0 0.0
    %5553 = vmatpush1.msra.mxu0 0.0
    %5554 = vmatprep.subr.mxu0 0.0
    %5555 = vmatpush1.msra.mxu0 0.0
    %5556 = vmatprep.subr.mxu0 0.0
    %5557 = vmatpush1.msra.mxu0 0.0
    %5558 = vmatprep.subr.mxu0 0.0
    %5559 = vmatpush1.msra.mxu0 0.0
    %5560 = vmatprep.subr.mxu0 0.0
    %5561 = vmatpush1.msra.mxu0 0.0
    %5562 = vmatprep.subr.mxu0 0.0
    %5563 = vmatpush1.msra.mxu0 0.0
    %5564 = vmatprep.subr.mxu0 0.0
    %5565 = vmatpush1.msra.mxu0 0.0
    %5566 = vmatprep.subr.mxu0 0.0
    %5567 = vmatpush1.msra.mxu0 0.0
    %5568 = vmatprep.subr.mxu0 0.0
    %5569 = vmatpush1.msra.mxu0 0.0
    %5570 = vmatprep.subr.mxu0 0.0
    %5571 = vmatpush1.msra.mxu0 0.0
    %5572 = vmatprep.subr.mxu0 0.0
    %5573 = vmatpush1.msra.mxu0 0.0
    %5574 = vmatprep.subr.mxu0 0.0
    %5575 = vmatpush1.msra.mxu0 0.0
    %5576 = vmatprep.subr.mxu0 0.0
    %5577 = vmatpush1.msra.mxu0 0.0
    %5578 = vmatprep.subr.mxu0 0.0
    %5579 = vmatpush1.msra.mxu0 0.0
    %5580 = vmatprep.subr.mxu0 0.0
    %5581 = vmatpush1.msra.mxu0 0.0
    %5582 = vmatprep.subr.mxu0 0.0
    %5583 = vmatpush1.msra.mxu0 0.0
    %5584 = vmatprep.subr.mxu0 0.0
    %5585 = vmatpush1.msra.mxu0 0.0
    %5586 = vmatprep.subr.mxu0 0.0
    %5587 = vmatpush1.msra.mxu0 0.0
    %5588 = vmatprep.subr.mxu0 0.0
    %5589 = vmatpush1.msra.mxu0 0.0
    %5590 = vmatprep.subr.mxu0 0.0
    %5591 = vmatpush1.msra.mxu0 0.0
    %5592 = vmatprep.subr.mxu0 0.0
    %5593 = vmatpush1.msra.mxu0 0.0
    %5594 = vmatprep.subr.mxu0 0.0
    %5595 = vmatpush1.msra.mxu0 0.0
    %5596 = vmatprep.subr.mxu0 0.0
    %5597 = vmatpush1.msra.mxu0 0.0
    %5598 = vmatprep.subr.mxu0 0.0
    %5599 = vmatpush1.msra.mxu0 0.0
    %5600 = vmatprep.mubr.f32.mxu0 0.0
    %5601 = vmatmul.mubr.f32.gmra.mrb[0].mxu0 %v5534
    %v5602 = vpop.f32.mrb[0].mxu0
    %v5603 = vadd.f32 %v1155, %v5602
    %v5604 = vpop.f32.mrb[0].mxu0
    %5605 = vdwg.mxu0
    %v5606 = vadd.f32 %v5458, %v5603
    %v5607 = vsel %vm219, %v5606, 0.0
    %5608 = vadd.xlane.f32.xlu0 %v5607
    %v5609 = vpop.xlane.xlu0 %5608
    %v5610 = vmul.f32 %v5609, %v1051
    %v5611 = vmul.f32 %v5606, %v5606
    %v5612 = vsel %vm219, %v5611, 0.0
    %5613 = vadd.xlane.f32.xlu0 %v5612
    %v5614 = vpop.xlane.xlu0 %5613
    %v5615 = vmul.f32 %v5614, %v1051
    %v5616 = vmul.f32 %v5610, %v5610
    %v5617 = vsub.f32 %v5615, %v5616
    %v5618 = vsub.f32 %v5606, %v5610
    %v5619 = vadd.f32 %v5617, 1e-05
    %v5620 = vrsqrt.pop %v5619
    %v5621 = vmul.f32 %v5618, %v5620
    %v5622 = vmul.f32 %v5621, %v1249
    %v5623 = vadd.f32 %v5622, %v1254
    %v5625 = vsel %vm219, %v5623, 0
    %5627 = vmatprep.subr.mxu0 0.0
    %5628 = vmatpush1.msra.mxu0 %v102
    %5629 = vmatprep.subr.mxu0 0.0
    %5630 = vmatpush1.msra.mxu0 %v103
    %5631 = vmatprep.subr.mxu0 0.0
    %5632 = vmatpush1.msra.mxu0 %v104
    %5633 = vmatprep.subr.mxu0 0.0
    %5634 = vmatpush1.msra.mxu0 %v105
    %5635 = vmatprep.subr.mxu0 0.0
    %5636 = vmatpush1.msra.mxu0 0.0
    %5637 = vmatprep.subr.mxu0 0.0
    %5638 = vmatpush1.msra.mxu0 0.0
    %5639 = vmatprep.subr.mxu0 0.0
    %5640 = vmatpush1.msra.mxu0 0.0
    %5641 = vmatprep.subr.mxu0 0.0
    %5642 = vmatpush1.msra.mxu0 0.0
    %5643 = vmatprep.subr.mxu0 0.0
    %5644 = vmatpush1.msra.mxu0 0.0
    %5645 = vmatprep.subr.mxu0 0.0
    %5646 = vmatpush1.msra.mxu0 0.0
    %5647 = vmatprep.subr.mxu0 0.0
    %5648 = vmatpush1.msra.mxu0 0.0
    %5649 = vmatprep.subr.mxu0 0.0
    %5650 = vmatpush1.msra.mxu0 0.0
    %5651 = vmatprep.subr.mxu0 0.0
    %5652 = vmatpush1.msra.mxu0 0.0
    %5653 = vmatprep.subr.mxu0 0.0
    %5654 = vmatpush1.msra.mxu0 0.0
    %5655 = vmatprep.subr.mxu0 0.0
    %5656 = vmatpush1.msra.mxu0 0.0
    %5657 = vmatprep.subr.mxu0 0.0
    %5658 = vmatpush1.msra.mxu0 0.0
    %5659 = vmatprep.subr.mxu0 0.0
    %5660 = vmatpush1.msra.mxu0 0.0
    %5661 = vmatprep.subr.mxu0 0.0
    %5662 = vmatpush1.msra.mxu0 0.0
    %5663 = vmatprep.subr.mxu0 0.0
    %5664 = vmatpush1.msra.mxu0 0.0
    %5665 = vmatprep.subr.mxu0 0.0
    %5666 = vmatpush1.msra.mxu0 0.0
    %5667 = vmatprep.subr.mxu0 0.0
    %5668 = vmatpush1.msra.mxu0 0.0
    %5669 = vmatprep.subr.mxu0 0.0
    %5670 = vmatpush1.msra.mxu0 0.0
    %5671 = vmatprep.subr.mxu0 0.0
    %5672 = vmatpush1.msra.mxu0 0.0
    %5673 = vmatprep.subr.mxu0 0.0
    %5674 = vmatpush1.msra.mxu0 0.0
    %5675 = vmatprep.subr.mxu0 0.0
    %5676 = vmatpush1.msra.mxu0 0.0
    %5677 = vmatprep.subr.mxu0 0.0
    %5678 = vmatpush1.msra.mxu0 0.0
    %5679 = vmatprep.subr.mxu0 0.0
    %5680 = vmatpush1.msra.mxu0 0.0
    %5681 = vmatprep.subr.mxu0 0.0
    %5682 = vmatpush1.msra.mxu0 0.0
    %5683 = vmatprep.subr.mxu0 0.0
    %5684 = vmatpush1.msra.mxu0 0.0
    %5685 = vmatprep.subr.mxu0 0.0
    %5686 = vmatpush1.msra.mxu0 0.0
    %5687 = vmatprep.subr.mxu0 0.0
    %5688 = vmatpush1.msra.mxu0 0.0
    %5689 = vmatprep.subr.mxu0 0.0
    %5690 = vmatpush1.msra.mxu0 0.0
    %5691 = vmatprep.mubr.f32.mxu0 0.0
    %5692 = vmatmul.mubr.f32.gmra.mrb[0].mxu0 %v5625
    %v5693 = vpop.f32.mrb[0].mxu0
    %v5694 = vadd.f32 %v1259, %v5693
    %v5695 = vpop.f32.mrb[0].mxu0
    %5696 = vdwg.mxu0
    %5698 = vrot.lane.b32.xlu0 %v5694, 96
    %v5699 = vpop.permute.xlu0 %5698
    %v5700 = vsel %vm296, %v5694, 0
    %v5702 = vsel %vm296, %v5699, 0
    %5704 = vmatprep.subr.mxu0 0.0
    %5705 = vmatpush1.xpose.msra.mxu0 %v5702
    %5706 = vmatprep.subr.mxu0 0.0
    %5707 = vmatpush1.xpose.msra.mxu0 0.0
    %5708 = vmatprep.subr.mxu0 0.0
    %5709 = vmatpush1.xpose.msra.mxu0 0.0
    %5710 = vmatprep.subr.mxu0 0.0
    %5711 = vmatpush1.xpose.msra.mxu0 0.0
    %5712 = vmatprep.subr.mxu0 0.0
    %5713 = vmatpush1.xpose.msra.mxu0 0.0
    %5714 = vmatprep.subr.mxu0 0.0
    %5715 = vmatpush1.xpose.msra.mxu0 0.0
    %5716 = vmatprep.subr.mxu0 0.0
    %5717 = vmatpush1.xpose.msra.mxu0 0.0
    %5718 = vmatprep.subr.mxu0 0.0
    %5719 = vmatpush1.xpose.msra.mxu0 0.0
    %5720 = vmatprep.subr.mxu0 0.0
    %5721 = vmatpush1.xpose.msra.mxu0 0.0
    %5722 = vmatprep.subr.mxu0 0.0
    %5723 = vmatpush1.xpose.msra.mxu0 0.0
    %5724 = vmatprep.subr.mxu0 0.0
    %5725 = vmatpush1.xpose.msra.mxu0 0.0
    %5726 = vmatprep.subr.mxu0 0.0
    %5727 = vmatpush1.xpose.msra.mxu0 0.0
    %5728 = vmatprep.subr.mxu0 0.0
    %5729 = vmatpush1.xpose.msra.mxu0 0.0
    %5730 = vmatprep.subr.mxu0 0.0
    %5731 = vmatpush1.xpose.msra.mxu0 0.0
    %5732 = vmatprep.subr.mxu0 0.0
    %5733 = vmatpush1.xpose.msra.mxu0 0.0
    %5734 = vmatprep.subr.mxu0 0.0
    %5735 = vmatpush1.xpose.msra.mxu0 0.0
    %5736 = vmatprep.subr.mxu0 0.0
    %5737 = vmatpush1.xpose.msra.mxu0 0.0
    %5738 = vmatprep.subr.mxu0 0.0
    %5739 = vmatpush1.xpose.msra.mxu0 0.0
    %5740 = vmatprep.subr.mxu0 0.0
    %5741 = vmatpush1.xpose.msra.mxu0 0.0
    %5742 = vmatprep.subr.mxu0 0.0
    %5743 = vmatpush1.xpose.msra.mxu0 0.0
    %5744 = vmatprep.subr.mxu0 0.0
    %5745 = vmatpush1.xpose.msra.mxu0 0.0
    %5746 = vmatprep.subr.mxu0 0.0
    %5747 = vmatpush1.xpose.msra.mxu0 0.0
    %5748 = vmatprep.subr.mxu0 0.0
    %5749 = vmatpush1.xpose.msra.mxu0 0.0
    %5750 = vmatprep.subr.mxu0 0.0
    %5751 = vmatpush1.xpose.msra.mxu0 0.0
    %5752 = vmatprep.subr.mxu0 0.0
    %5753 = vmatpush1.xpose.msra.mxu0 0.0
    %5754 = vmatprep.subr.mxu0 0.0
    %5755 = vmatpush1.xpose.msra.mxu0 0.0
    %5756 = vmatprep.subr.mxu0 0.0
    %5757 = vmatpush1.xpose.msra.mxu0 0.0
    %5758 = vmatprep.subr.mxu0 0.0
    %5759 = vmatpush1.xpose.msra.mxu0 0.0
    %5760 = vmatprep.subr.mxu0 0.0
    %5761 = vmatpush1.xpose.msra.mxu0 0.0
    %5762 = vmatprep.subr.mxu0 0.0
    %5763 = vmatpush1.xpose.msra.mxu0 0.0
    %5764 = vmatprep.subr.mxu0 0.0
    %5765 = vmatpush1.xpose.msra.mxu0 0.0
    %5766 = vmatprep.subr.mxu0 0.0
    %5767 = vmatpush1.xpose.msra.mxu0 0.0
    %5768 = vmatprep.mubr.f32.mxu0 0.0
    %5769 = vmatmul.mubr.f32.gmra.mrb[0].mxu0 %v5700
    %v5770 = vpop.f32.mrb[0].mxu0
    %v5771 = vadd.f32 %v4620, %v5770
    %v5772 = vpop.f32.mrb[0].mxu0
    %5773 = vdwg.mxu0
    %v5774 = vsel %vm296, %v5771, -inf
    %5775 = vmax.xlane.f32.xlu0 %v5774
    %v5776 = vpop.xlane.xlu0 %5775
    %v5777 = vsub.f32 %v5771, %v5776
    %v5778 = vmul.f32 %v5777, 1.442695
    %v5779 = vpow.pop %v5778
    %v5780 = vsel %vm296, %v5779, 0.0
    %5781 = vadd.xlane.f32.xlu0 %v5780
    %v5782 = vpop.xlane.xlu0 %5781
    %v5783 = vrcp.pop %v5782
    %v5784 = vmul.f32 %v5779, %v5783
    %5785 = vrot.lane.b32.xlu0 %v5694, 64
    %v5786 = vpop.permute.xlu0 %5785
    %v5789 = vsel %vm296, %v5784, 0
    %5791 = vmatprep.subr.mxu0 0.0
    %5792 = vmatpush1.msra.mxu0 %v5786
    %5793 = vmatprep.subr.mxu0 0.0
    %5794 = vmatpush1.msra.mxu0 0.0
    %5795 = vmatprep.subr.mxu0 0.0
    %5796 = vmatpush1.msra.mxu0 0.0
    %5797 = vmatprep.subr.mxu0 0.0
    %5798 = vmatpush1.msra.mxu0 0.0
    %5799 = vmatprep.subr.mxu0 0.0
    %5800 = vmatpush1.msra.mxu0 0.0
    %5801 = vmatprep.subr.mxu0 0.0
    %5802 = vmatpush1.msra.mxu0 0.0
    %5803 = vmatprep.subr.mxu0 0.0
    %5804 = vmatpush1.msra.mxu0 0.0
    %5805 = vmatprep.subr.mxu0 0.0
    %5806 = vmatpush1.msra.mxu0 0.0
    %5807 = vmatprep.subr.mxu0 0.0
    %5808 = vmatpush1.msra.mxu0 0.0
    %5809 = vmatprep.subr.mxu0 0.0
    %5810 = vmatpush1.msra.mxu0 0.0
    %5811 = vmatprep.subr.mxu0 0.0
    %5812 = vmatpush1.msra.mxu0 0.0
    %5813 = vmatprep.subr.mxu0 0.0
    %5814 = vmatpush1.msra.mxu0 0.0
    %5815 = vmatprep.subr.mxu0 0.0
    %5816 = vmatpush1.msra.mxu0 0.0
    %5817 = vmatprep.subr.mxu0 0.0
    %5818 = vmatpush1.msra.mxu0 0.0
    %5819 = vmatprep.subr.mxu0 0.0
    %5820 = vmatpush1.msra.mxu0 0.0
    %5821 = vmatprep.subr.mxu0 0.0
    %5822 = vmatpush1.msra.mxu0 0.0
    %5823 = vmatprep.subr.mxu0 0.0
    %5824 = vmatpush1.msra.mxu0 0.0
    %5825 = vmatprep.subr.mxu0 0.0
    %5826 = vmatpush1.msra.mxu0 0.0
    %5827 = vmatprep.subr.mxu0 0.0
    %5828 = vmatpush1.msra.mxu0 0.0
    %5829 = vmatprep.subr.mxu0 0.0
    %5830 = vmatpush1.msra.mxu0 0.0
    %5831 = vmatprep.subr.mxu0 0.0
    %5832 = vmatpush1.msra.mxu0 0.0
    %5833 = vmatprep.subr.mxu0 0.0
    %5834 = vmatpush1.msra.mxu0 0.0
    %5835 = vmatprep.subr.mxu0 0.0
    %5836 = vmatpush1.msra.mxu0 0.0
    %5837 = vmatprep.subr.mxu0 0.0
    %5838 = vmatpush1.msra.mxu0 0.0
    %5839 = vmatprep.subr.mxu0 0.0
    %5840 = vmatpush1.msra.mxu0 0.0
    %5841 = vmatprep.subr.mxu0 0.0
    %5842 = vmatpush1.msra.mxu0 0.0
    %5843 = vmatprep.subr.mxu0 0.0
    %5844 = vmatpush1.msra.mxu0 0.0
    %5845 = vmatprep.subr.mxu0 0.0
    %5846 = vmatpush1.msra.mxu0 0.0
    %5847 = vmatprep.subr.mxu0 0.0
    %5848 = vmatpush1.msra.mxu0 0.0
    %5849 = vmatprep.subr.mxu0 0.0
    %5850 = vmatpush1.msra.mxu0 0.0
    %5851 = vmatprep.subr.mxu0 0.0
    %5852 = vmatpush1.msra.mxu0 0.0
    %5853 = vmatprep.subr.mxu0 0.0
    %5854 = vmatpush1.msra.mxu0 0.0
    %5855 = vmatprep.mubr.f32.mxu0 0.0
    %5856 = vmatmul.mubr.f32.gmra.mrb[0].mxu0 %v5789
    %v5857 = vpop.f32.mrb[0].mxu0
    %v5858 = vadd.f32 0.0, %v5857
    %v5859 = vpop.f32.mrb[0].mxu0
    %5860 = vdwg.mxu0
    %5861 = vrot.lane.b32.xlu0 %v5694, 120
    %v5862 = vpop.permute.xlu0 %5861
    %5863 = vrot.lane.b32.xlu0 %v5694, 88
    %v5864 = vpop.permute.xlu0 %5863
    %v5865 = vsel %vm296, %v5862, 0
    %v5867 = vsel %vm296, %v5864, 0
    %5869 = vmatprep.subr.mxu0 0.0
    %5870 = vmatpush1.xpose.msra.mxu0 %v5867
    %5871 = vmatprep.subr.mxu0 0.0
    %5872 = vmatpush1.xpose.msra.mxu0 0.0
    %5873 = vmatprep.subr.mxu0 0.0
    %5874 = vmatpush1.xpose.msra.mxu0 0.0
    %5875 = vmatprep.subr.mxu0 0.0
    %5876 = vmatpush1.xpose.msra.mxu0 0.0
    %5877 = vmatprep.subr.mxu0 0.0
    %5878 = vmatpush1.xpose.msra.mxu0 0.0
    %5879 = vmatprep.subr.mxu0 0.0
    %5880 = vmatpush1.xpose.msra.mxu0 0.0
    %5881 = vmatprep.subr.mxu0 0.0
    %5882 = vmatpush1.xpose.msra.mxu0 0.0
    %5883 = vmatprep.subr.mxu0 0.0
    %5884 = vmatpush1.xpose.msra.mxu0 0.0
    %5885 = vmatprep.subr.mxu0 0.0
    %5886 = vmatpush1.xpose.msra.mxu0 0.0
    %5887 = vmatprep.subr.mxu0 0.0
    %5888 = vmatpush1.xpose.msra.mxu0 0.0
    %5889 = vmatprep.subr.mxu0 0.0
    %5890 = vmatpush1.xpose.msra.mxu0 0.0
    %5891 = vmatprep.subr.mxu0 0.0
    %5892 = vmatpush1.xpose.msra.mxu0 0.0
    %5893 = vmatprep.subr.mxu0 0.0
    %5894 = vmatpush1.xpose.msra.mxu0 0.0
    %5895 = vmatprep.subr.mxu0 0.0
    %5896 = vmatpush1.xpose.msra.mxu0 0.0
    %5897 = vmatprep.subr.mxu0 0.0
    %5898 = vmatpush1.xpose.msra.mxu0 0.0
    %5899 = vmatprep.subr.mxu0 0.0
    %5900 = vmatpush1.xpose.msra.mxu0 0.0
    %5901 = vmatprep.subr.mxu0 0.0
    %5902 = vmatpush1.xpose.msra.mxu0 0.0
    %5903 = vmatprep.subr.mxu0 0.0
    %5904 = vmatpush1.xpose.msra.mxu0 0.0
    %5905 = vmatprep.subr.mxu0 0.0
    %5906 = vmatpush1.xpose.msra.mxu0 0.0
    %5907 = vmatprep.subr.mxu0 0.0
    %5908 = vmatpush1.xpose.msra.mxu0 0.0
    %5909 = vmatprep.subr.mxu0 0.0
    %5910 = vmatpush1.xpose.msra.mxu0 0.0
    %5911 = vmatprep.subr.mxu0 0.0
    %5912 = vmatpush1.xpose.msra.mxu0 0.0
    %5913 = vmatprep.subr.mxu0 0.0
    %5914 = vmatpush1.xpose.msra.mxu0 0.0
    %5915 = vmatprep.subr.mxu0 0.0
    %5916 = vmatpush1.xpose.msra.mxu0 0.0
    %5917 = vmatprep.subr.mxu0 0.0
    %5918 = vmatpush1.xpose.msra.mxu0 0.0
    %5919 = vmatprep.subr.mxu0 0.0
    %5920 = vmatpush1.xpose.msra.mxu0 0.0
    %5921 = vmatprep.subr.mxu0 0.0
    %5922 = vmatpush1.xpose.msra.mxu0 0.0
    %5923 = vmatprep.subr.mxu0 0.0
    %5924 = vmatpush1.xpose.msra.mxu0 0.0
    %5925 = vmatprep.subr.mxu0 0.0
    %5926 = vmatpush1.xpose.msra.mxu0 0.0
    %5927 = vmatprep.subr.mxu0 0.0
    %5928 = vmatpush1.xpose.msra.mxu0 0.0
    %5929 = vmatprep.subr.mxu0 0.0
    %5930 = vmatpush1.xpose.msra.mxu0 0.0
    %5931 = vmatprep.subr.mxu0 0.0
    %5932 = vmatpush1.xpose.msra.mxu0 0.0
    %5933 = vmatprep.mubr.f32.mxu0 0.0
    %5934 = vmatmul.mubr.f32.gmra.mrb[0].mxu0 %v5865
    %v5935 = vpop.f32.mrb[0].mxu0
    %v5936 = vadd.f32 %v4620, %v5935
    %v5937 = vpop.f32.mrb[0].mxu0
    %5938 = vdwg.mxu0
    %v5939 = vsel %vm296, %v5936, -inf
    %5940 = vmax.xlane.f32.xlu0 %v5939
    %v5941 = vpop.xlane.xlu0 %5940
    %v5942 = vsub.f32 %v5936, %v5941
    %v5943 = vmul.f32 %v5942, 1.442695
    %v5944 = vpow.pop %v5943
    %v5945 = vsel %vm296, %v5944, 0.0
    %5946 = vadd.xlane.f32.xlu0 %v5945
    %v5947 = vpop.xlane.xlu0 %5946
    %v5948 = vrcp.pop %v5947
    %v5949 = vmul.f32 %v5944, %v5948
    %5950 = vrot.lane.b32.xlu0 %v5694, 56
    %v5951 = vpop.permute.xlu0 %5950
    %v5954 = vsel %vm296, %v5949, 0
    %5956 = vmatprep.subr.mxu0 0.0
    %5957 = vmatpush1.msra.mxu0 %v5951
    %5958 = vmatprep.subr.mxu0 0.0
    %5959 = vmatpush1.msra.mxu0 0.0
    %5960 = vmatprep.subr.mxu0 0.0
    %5961 = vmatpush1.msra.mxu0 0.0
    %5962 = vmatprep.subr.mxu0 0.0
    %5963 = vmatpush1.msra.mxu0 0.0
    %5964 = vmatprep.subr.mxu0 0.0
    %5965 = vmatpush1.msra.mxu0 0.0
    %5966 = vmatprep.subr.mxu0 0.0
    %5967 = vmatpush1.msra.mxu0 0.0
    %5968 = vmatprep.subr.mxu0 0.0
    %5969 = vmatpush1.msra.mxu0 0.0
    %5970 = vmatprep.subr.mxu0 0.0
    %5971 = vmatpush1.msra.mxu0 0.0
    %5972 = vmatprep.subr.mxu0 0.0
    %5973 = vmatpush1.msra.mxu0 0.0
    %5974 = vmatprep.subr.mxu0 0.0
    %5975 = vmatpush1.msra.mxu0 0.0
    %5976 = vmatprep.subr.mxu0 0.0
    %5977 = vmatpush1.msra.mxu0 0.0
    %5978 = vmatprep.subr.mxu0 0.0
    %5979 = vmatpush1.msra.mxu0 0.0
    %5980 = vmatprep.subr.mxu0 0.0
    %5981 = vmatpush1.msra.mxu0 0.0
    %5982 = vmatprep.subr.mxu0 0.0
    %5983 = vmatpush1.msra.mxu0 0.0
    %5984 = vmatprep.subr.mxu0 0.0
    %5985 = vmatpush1.msra.mxu0 0.0
    %5986 = vmatprep.subr.mxu0 0.0
    %5987 = vmatpush1.msra.mxu0 0.0
    %5988 = vmatprep.subr.mxu0 0.0
    %5989 = vmatpush1.msra.mxu0 0.0
    %5990 = vmatprep.subr.mxu0 0.0
    %5991 = vmatpush1.msra.mxu0 0.0
    %5992 = vmatprep.subr.mxu0 0.0
    %5993 = vmatpush1.msra.mxu0 0.0
    %5994 = vmatprep.subr.mxu0 0.0
    %5995 = vmatpush1.msra.mxu0 0.0
    %5996 = vmatprep.subr.mxu0 0.0
    %5997 = vmatpush1.msra.mxu0 0.0
    %5998 = vmatprep.subr.mxu0 0.0
    %5999 = vmatpush1.msra.mxu0 0.0
    %6000 = vmatprep.subr.mxu0 0.0
    %6001 = vmatpush1.msra.mxu0 0.0
    %6002 = vmatprep.subr.mxu0 0.0
    %6003 = vmatpush1.msra.mxu0 0.0
    %6004 = vmatprep.subr.mxu0 0.0
    %6005 = vmatpush1.msra.mxu0 0.0
    %6006 = vmatprep.subr.mxu0 0.0
    %6007 = vmatpush1.msra.mxu0 0.0
    %6008 = vmatprep.subr.mxu0 0.0
    %6009 = vmatpush1.msra.mxu0 0.0
    %6010 = vmatprep.subr.mxu0 0.0
    %6011 = vmatpush1.msra.mxu0 0.0
    %6012 = vmatprep.subr.mxu0 0.0
    %6013 = vmatpush1.msra.mxu0 0.0
    %6014 = vmatprep.subr.mxu0 0.0
    %6015 = vmatpush1.msra.mxu0 0.0
    %6016 = vmatprep.subr.mxu0 0.0
    %6017 = vmatpush1.msra.mxu0 0.0
    %6018 = vmatprep.subr.mxu0 0.0
    %6019 = vmatpush1.msra.mxu0 0.0
    %6020 = vmatprep.mubr.f32.mxu0 0.0
    %6021 = vmatmul.mubr.f32.gmra.mrb[0].mxu0 %v5954
    %v6022 = vpop.f32.mrb[0].mxu0
    %v6023 = vadd.f32 0.0, %v6022
    %v6024 = vpop.f32.mrb[0].mxu0
    %6025 = vdwg.mxu0
    %6026 = vrot.lane.b32.xlu0 %v5694, 112
    %v6027 = vpop.permute.xlu0 %6026
    %6028 = vrot.lane.b32.xlu0 %v5694, 80
    %v6029 = vpop.permute.xlu0 %6028
    %v6030 = vsel %vm296, %v6027, 0
    %v6032 = vsel %vm296, %v6029, 0
    %6034 = vmatprep.subr.mxu0 0.0
    %6035 = vmatpush1.xpose.msra.mxu0 %v6032
    %6036 = vmatprep.subr.mxu0 0.0
    %6037 = vmatpush1.xpose.msra.mxu0 0.0
    %6038 = vmatprep.subr.mxu0 0.0
    %6039 = vmatpush1.xpose.msra.mxu0 0.0
    %6040 = vmatprep.subr.mxu0 0.0
    %6041 = vmatpush1.xpose.msra.mxu0 0.0
    %6042 = vmatprep.subr.mxu0 0.0
    %6043 = vmatpush1.xpose.msra.mxu0 0.0
    %6044 = vmatprep.subr.mxu0 0.0
    %6045 = vmatpush1.xpose.msra.mxu0 0.0
    %6046 = vmatprep.subr.mxu0 0.0
    %6047 = vmatpush1.xpose.msra.mxu0 0.0
    %6048 = vmatprep.subr.mxu0 0.0
    %6049 = vmatpush1.xpose.msra.mxu0 0.0
    %6050 = vmatprep.subr.mxu0 0.0
    %6051 = vmatpush1.xpose.msra.mxu0 0.0
    %6052 = vmatprep.subr.mxu0 0.0
    %6053 = vmatpush1.xpose.msra.mxu0 0.0
    %6054 = vmatprep.subr.mxu0 0.0
    %6055 = vmatpush1.xpose.msra.mxu0 0.0
    %6056 = vmatprep.subr.mxu0 0.0
    %6057 = vmatpush1.xpose.msra.mxu0 0.0
    %6058 = vmatprep.subr.mxu0 0.0
    %6059 = vmatpush1.xpose.msra.mxu0 0.0
    %6060 = vmatprep.subr.mxu0 0.0
    %6061 = vmatpush1.xpose.msra.mxu0 0.0
    %6062 = vmatprep.subr.mxu0 0.0
    %6063 = vmatpush1.xpose.msra.mxu0 0.0
    %6064 = vmatprep.subr.mxu0 0.0
    %6065 = vmatpush1.xpose.msra.mxu0 0.0
    %6066 = vmatprep.subr.mxu0 0.0
    %6067 = vmatpush1.xpose.msra.mxu0 0.0
    %6068 = vmatprep.subr.mxu0 0.0
    %6069 = vmatpush1.xpose.msra.mxu0 0.0
    %6070 = vmatprep.subr.mxu0 0.0
    %6071 = vmatpush1.xpose.msra.mxu0 0.0
    %6072 = vmatprep.subr.mxu0 0.0
    %6073 = vmatpush1.xpose.msra.mxu0 0.0
    %6074 = vmatprep.subr.mxu0 0.0
    %6075 = vmatpush1.xpose.msra.mxu0 0.0
    %6076 = vmatprep.subr.mxu0 0.0
    %6077 = vmatpush1.xpose.msra.mxu0 0.0
    %6078 = vmatprep.subr.mxu0 0.0
    %6079 = vmatpush1.xpose.msra.mxu0 0.0
    %6080 = vmatprep.subr.mxu0 0.0
    %6081 = vmatpush1.xpose.msra.mxu0 0.0
    %6082 = vmatprep.subr.mxu0 0.0
    %6083 = vmatpush1.xpose.msra.mxu0 0.0
    %6084 = vmatprep.subr.mxu0 0.0
    %6085 = vmatpush1.xpose.msra.mxu0 0.0
    %6086 = vmatprep.subr.mxu0 0.0
    %6087 = vmatpush1.xpose.msra.mxu0 0.0
    %6088 = vmatprep.subr.mxu0 0.0
    %6089 = vmatpush1.xpose.msra.mxu0 0.0
    %6090 = vmatprep.subr.mxu0 0.0
    %6091 = vmatpush1.xpose.msra.mxu0 0.0
    %6092 = vmatprep.subr.mxu0 0.0
    %6093 = vmatpush1.xpose.msra.mxu0 0.0
    %6094 = vmatprep.subr.mxu0 0.0
    %6095 = vmatpush1.xpose.msra.mxu0 0.0
    %6096 = vmatprep.subr.mxu0 0.0
    %6097 = vmatpush1.xpose.msra.mxu0 0.0
    %6098 = vmatprep.mubr.f32.mxu0 0.0
    %6099 = vmatmul.mubr.f32.gmra.mrb[0].mxu0 %v6030
    %v6100 = vpop.f32.mrb[0].mxu0
    %v6101 = vadd.f32 %v4620, %v6100
    %v6102 = vpop.f32.mrb[0].mxu0
    %6103 = vdwg.mxu0
    %v6104 = vsel %vm296, %v6101, -inf
    %6105 = vmax.xlane.f32.xlu0 %v6104
    %v6106 = vpop.xlane.xlu0 %6105
    %v6107 = vsub.f32 %v6101, %v6106
    %v6108 = vmul.f32 %v6107, 1.442695
    %v6109 = vpow.pop %v6108
    %v6110 = vsel %vm296, %v6109, 0.0
    %6111 = vadd.xlane.f32.xlu0 %v6110
    %v6112 = vpop.xlane.xlu0 %6111
    %v6113 = vrcp.pop %v6112
    %v6114 = vmul.f32 %v6109, %v6113
    %6115 = vrot.lane.b32.xlu0 %v5694, 48
    %v6116 = vpop.permute.xlu0 %6115
    %v6119 = vsel %vm296, %v6114, 0
    %6121 = vmatprep.subr.mxu0 0.0
    %6122 = vmatpush1.msra.mxu0 %v6116
    %6123 = vmatprep.subr.mxu0 0.0
    %6124 = vmatpush1.msra.mxu0 0.0
    %6125 = vmatprep.subr.mxu0 0.0
    %6126 = vmatpush1.msra.mxu0 0.0
    %6127 = vmatprep.subr.mxu0 0.0
    %6128 = vmatpush1.msra.mxu0 0.0
    %6129 = vmatprep.subr.mxu0 0.0
    %6130 = vmatpush1.msra.mxu0 0.0
    %6131 = vmatprep.subr.mxu0 0.0
    %6132 = vmatpush1.msra.mxu0 0.0
    %6133 = vmatprep.subr.mxu0 0.0
    %6134 = vmatpush1.msra.mxu0 0.0
    %6135 = vmatprep.subr.mxu0 0.0
    %6136 = vmatpush1.msra.mxu0 0.0
    %6137 = vmatprep.subr.mxu0 0.0
    %6138 = vmatpush1.msra.mxu0 0.0
    %6139 = vmatprep.subr.mxu0 0.0
    %6140 = vmatpush1.msra.mxu0 0.0
    %6141 = vmatprep.subr.mxu0 0.0
    %6142 = vmatpush1.msra.mxu0 0.0
    %6143 = vmatprep.subr.mxu0 0.0
    %6144 = vmatpush1.msra.mxu0 0.0
    %6145 = vmatprep.subr.mxu0 0.0
    %6146 = vmatpush1.msra.mxu0 0.0
    %6147 = vmatprep.subr.mxu0 0.0
    %6148 = vmatpush1.msra.mxu0 0.0
    %6149 = vmatprep.subr.mxu0 0.0
    %6150 = vmatpush1.msra.mxu0 0.0
    %6151 = vmatprep.subr.mxu0 0.0
    %6152 = vmatpush1.msra.mxu0 0.0
    %6153 = vmatprep.subr.mxu0 0.0
    %6154 = vmatpush1.msra.mxu0 0.0
    %6155 = vmatprep.subr.mxu0 0.0
    %6156 = vmatpush1.msra.mxu0 0.0
    %6157 = vmatprep.subr.mxu0 0.0
    %6158 = vmatpush1.msra.mxu0 0.0
    %6159 = vmatprep.subr.mxu0 0.0
    %6160 = vmatpush1.msra.mxu0 0.0
    %6161 = vmatprep.subr.mxu0 0.0
    %6162 = vmatpush1.msra.mxu0 0.0
    %6163 = vmatprep.subr.mxu0 0.0
    %6164 = vmatpush1.msra.mxu0 0.0
    %6165 = vmatprep.subr.mxu0 0.0
    %6166 = vmatpush1.msra.mxu0 0.0
    %6167 = vmatprep.subr.mxu0 0.0
    %6168 = vmatpush1.msra.mxu0 0.0
    %6169 = vmatprep.subr.mxu0 0.0
    %6170 = vmatpush1.msra.mxu0 0.0
    %6171 = vmatprep.subr.mxu0 0.0
    %6172 = vmatpush1.msra.mxu0 0.0
    %6173 = vmatprep.subr.mxu0 0.0
    %6174 = vmatpush1.msra.mxu0 0.0
    %6175 = vmatprep.subr.mxu0 0.0
    %6176 = vmatpush1.msra.mxu0 0.0
    %6177 = vmatprep.subr.mxu0 0.0
    %6178 = vmatpush1.msra.mxu0 0.0
    %6179 = vmatprep.subr.mxu0 0.0
    %6180 = vmatpush1.msra.mxu0 0.0
    %6181 = vmatprep.subr.mxu0 0.0
    %6182 = vmatpush1.msra.mxu0 0.0
    %6183 = vmatprep.subr.mxu0 0.0
    %6184 = vmatpush1.msra.mxu0 0.0
    %6185 = vmatprep.mubr.f32.mxu0 0.0
    %6186 = vmatmul.mubr.f32.gmra.mrb[0].mxu0 %v6119
    %v6187 = vpop.f32.mrb[0].mxu0
    %v6188 = vadd.f32 0.0, %v6187
    %v6189 = vpop.f32.mrb[0].mxu0
    %6190 = vdwg.mxu0
    %6191 = vrot.lane.b32.xlu0 %v5694, 104
    %v6192 = vpop.permute.xlu0 %6191
    %6193 = vrot.lane.b32.xlu0 %v5694, 72
    %v6194 = vpop.permute.xlu0 %6193
    %v6195 = vsel %vm296, %v6192, 0
    %v6197 = vsel %vm296, %v6194, 0
    %6199 = vmatprep.subr.mxu0 0.0
    %6200 = vmatpush1.xpose.msra.mxu0 %v6197
    %6201 = vmatprep.subr.mxu0 0.0
    %6202 = vmatpush1.xpose.msra.mxu0 0.0
    %6203 = vmatprep.subr.mxu0 0.0
    %6204 = vmatpush1.xpose.msra.mxu0 0.0
    %6205 = vmatprep.subr.mxu0 0.0
    %6206 = vmatpush1.xpose.msra.mxu0 0.0
    %6207 = vmatprep.subr.mxu0 0.0
    %6208 = vmatpush1.xpose.msra.mxu0 0.0
    %6209 = vmatprep.subr.mxu0 0.0
    %6210 = vmatpush1.xpose.msra.mxu0 0.0
    %6211 = vmatprep.subr.mxu0 0.0
    %6212 = vmatpush1.xpose.msra.mxu0 0.0
    %6213 = vmatprep.subr.mxu0 0.0
    %6214 = vmatpush1.xpose.msra.mxu0 0.0
    %6215 = vmatprep.subr.mxu0 0.0
    %6216 = vmatpush1.xpose.msra.mxu0 0.0
    %6217 = vmatprep.subr.mxu0 0.0
    %6218 = vmatpush1.xpose.msra.mxu0 0.0
    %6219 = vmatprep.subr.mxu0 0.0
    %6220 = vmatpush1.xpose.msra.mxu0 0.0
    %6221 = vmatprep.subr.mxu0 0.0
    %6222 = vmatpush1.xpose.msra.mxu0 0.0
    %6223 = vmatprep.subr.mxu0 0.0
    %6224 = vmatpush1.xpose.msra.mxu0 0.0
    %6225 = vmatprep.subr.mxu0 0.0
    %6226 = vmatpush1.xpose.msra.mxu0 0.0
    %6227 = vmatprep.subr.mxu0 0.0
    %6228 = vmatpush1.xpose.msra.mxu0 0.0
    %6229 = vmatprep.subr.mxu0 0.0
    %6230 = vmatpush1.xpose.msra.mxu0 0.0
    %6231 = vmatprep.subr.mxu0 0.0
    %6232 = vmatpush1.xpose.msra.mxu0 0.0
    %6233 = vmatprep.subr.mxu0 0.0
    %6234 = vmatpush1.xpose.msra.mxu0 0.0
    %6235 = vmatprep.subr.mxu0 0.0
    %6236 = vmatpush1.xpose.msra.mxu0 0.0
    %6237 = vmatprep.subr.mxu0 0.0
    %6238 = vmatpush1.xpose.msra.mxu0 0.0
    %6239 = vmatprep.subr.mxu0 0.0
    %6240 = vmatpush1.xpose.msra.mxu0 0.0
    %6241 = vmatprep.subr.mxu0 0.0
    %6242 = vmatpush1.xpose.msra.mxu0 0.0
    %6243 = vmatprep.subr.mxu0 0.0
    %6244 = vmatpush1.xpose.msra.mxu0 0.0
    %6245 = vmatprep.subr.mxu0 0.0
    %6246 = vmatpush1.xpose.msra.mxu0 0.0
    %6247 = vmatprep.subr.mxu0 0.0
    %6248 = vmatpush1.xpose.msra.mxu0 0.0
    %6249 = vmatprep.subr.mxu0 0.0
    %6250 = vmatpush1.xpose.msra.mxu0 0.0
    %6251 = vmatprep.subr.mxu0 0.0
    %6252 = vmatpush1.xpose.msra.mxu0 0.0
    %6253 = vmatprep.subr.mxu0 0.0
    %6254 = vmatpush1.xpose.msra.mxu0 0.0
    %6255 = vmatprep.subr.mxu0 0.0
    %6256 = vmatpush1.xpose.msra.mxu0 0.0
    %6257 = vmatprep.subr.mxu0 0.0
    %6258 = vmatpush1.xpose.msra.mxu0 0.0
    %6259 = vmatprep.subr.mxu0 0.0
    %6260 = vmatpush1.xpose.msra.mxu0 0.0
    %6261 = vmatprep.subr.mxu0 0.0
    %6262 = vmatpush1.xpose.msra.mxu0 0.0
    %6263 = vmatprep.mubr.f32.mxu0 0.0
    %6264 = vmatmul.mubr.f32.gmra.mrb[0].mxu0 %v6195
    %v6265 = vpop.f32.mrb[0].mxu0
    %v6266 = vadd.f32 %v4620, %v6265
    %v6267 = vpop.f32.mrb[0].mxu0
    %6268 = vdwg.mxu0
    %v6269 = vsel %vm296, %v6266, -inf
    %6270 = vmax.xlane.f32.xlu0 %v6269
    %v6271 = vpop.xlane.xlu0 %6270
    %v6272 = vsub.f32 %v6266, %v6271
    %v6273 = vmul.f32 %v6272, 1.442695
    %v6274 = vpow.pop %v6273
    %v6275 = vsel %vm296, %v6274, 0.0
    %6276 = vadd.xlane.f32.xlu0 %v6275
    %v6277 = vpop.xlane.xlu0 %6276
    %v6278 = vrcp.pop %v6277
    %v6279 = vmul.f32 %v6274, %v6278
    %6280 = vrot.lane.b32.xlu0 %v5694, 40
    %v6281 = vpop.permute.xlu0 %6280
    %v6284 = vsel %vm296, %v6279, 0
    %6286 = vmatprep.subr.mxu0 0.0
    %6287 = vmatpush1.msra.mxu0 %v6281
    %6288 = vmatprep.subr.mxu0 0.0
    %6289 = vmatpush1.msra.mxu0 0.0
    %6290 = vmatprep.subr.mxu0 0.0
    %6291 = vmatpush1.msra.mxu0 0.0
    %6292 = vmatprep.subr.mxu0 0.0
    %6293 = vmatpush1.msra.mxu0 0.0
    %6294 = vmatprep.subr.mxu0 0.0
    %6295 = vmatpush1.msra.mxu0 0.0
    %6296 = vmatprep.subr.mxu0 0.0
    %6297 = vmatpush1.msra.mxu0 0.0
    %6298 = vmatprep.subr.mxu0 0.0
    %6299 = vmatpush1.msra.mxu0 0.0
    %6300 = vmatprep.subr.mxu0 0.0
    %6301 = vmatpush1.msra.mxu0 0.0
    %6302 = vmatprep.subr.mxu0 0.0
    %6303 = vmatpush1.msra.mxu0 0.0
    %6304 = vmatprep.subr.mxu0 0.0
    %6305 = vmatpush1.msra.mxu0 0.0
    %6306 = vmatprep.subr.mxu0 0.0
    %6307 = vmatpush1.msra.mxu0 0.0
    %6308 = vmatprep.subr.mxu0 0.0
    %6309 = vmatpush1.msra.mxu0 0.0
    %6310 = vmatprep.subr.mxu0 0.0
    %6311 = vmatpush1.msra.mxu0 0.0
    %6312 = vmatprep.subr.mxu0 0.0
    %6313 = vmatpush1.msra.mxu0 0.0
    %6314 = vmatprep.subr.mxu0 0.0
    %6315 = vmatpush1.msra.mxu0 0.0
    %6316 = vmatprep.subr.mxu0 0.0
    %6317 = vmatpush1.msra.mxu0 0.0
    %6318 = vmatprep.subr.mxu0 0.0
    %6319 = vmatpush1.msra.mxu0 0.0
    %6320 = vmatprep.subr.mxu0 0.0
    %6321 = vmatpush1.msra.mxu0 0.0
    %6322 = vmatprep.subr.mxu0 0.0
    %6323 = vmatpush1.msra.mxu0 0.0
    %6324 = vmatprep.subr.mxu0 0.0
    %6325 = vmatpush1.msra.mxu0 0.0
    %6326 = vmatprep.subr.mxu0 0.0
    %6327 = vmatpush1.msra.mxu0 0.0
    %6328 = vmatprep.subr.mxu0 0.0
    %6329 = vmatpush1.msra.mxu0 0.0
    %6330 = vmatprep.subr.mxu0 0.0
    %6331 = vmatpush1.msra.mxu0 0.0
    %6332 = vmatprep.subr.mxu0 0.0
    %6333 = vmatpush1.msra.mxu0 0.0
    %6334 = vmatprep.subr.mxu0 0.0
    %6335 = vmatpush1.msra.mxu0 0.0
    %6336 = vmatprep.subr.mxu0 0.0
    %6337 = vmatpush1.msra.mxu0 0.0
    %6338 = vmatprep.subr.mxu0 0.0
    %6339 = vmatpush1.msra.mxu0 0.0
    %6340 = vmatprep.subr.mxu0 0.0
    %6341 = vmatpush1.msra.mxu0 0.0
    %6342 = vmatprep.subr.mxu0 0.0
    %6343 = vmatpush1.msra.mxu0 0.0
    %6344 = vmatprep.subr.mxu0 0.0
    %6345 = vmatpush1.msra.mxu0 0.0
    %6346 = vmatprep.subr.mxu0 0.0
    %6347 = vmatpush1.msra.mxu0 0.0
    %6348 = vmatprep.subr.mxu0 0.0
    %6349 = vmatpush1.msra.mxu0 0.0
    %6350 = vmatprep.mubr.f32.mxu0 0.0
    %6351 = vmatmul.mubr.f32.gmra.mrb[0].mxu0 %v6284
    %v6352 = vpop.f32.mrb[0].mxu0
    %v6353 = vadd.f32 0.0, %v6352
    %v6354 = vpop.f32.mrb[0].mxu0
    %6355 = vdwg.mxu0
    %6357 = vrot.lane.b32.xlu0 %v6023, 8
    %v6358 = vpop.permute.xlu0 %6357
    %6361 = vrot.lane.b32.xlu0 %v6188, 16
    %v6362 = vpop.permute.xlu0 %6361
    %6365 = vrot.lane.b32.xlu0 %v6353, 24
    %v6366 = vpop.permute.xlu0 %6365
    %v6368 = vsel %vm296, %v5858, %v6358
    %v6369 = vsel %vm966, %v6368, %v6362
    %v6370 = vsel %vm968, %v6369, %v6366
    %v6372 = vsel %vm219, %v6370, 0
    %6374 = vmatprep.subr.mxu0 0.0
    %6375 = vmatpush1.msra.mxu0 %v107
    %6376 = vmatprep.subr.mxu0 0.0
    %6377 = vmatpush1.msra.mxu0 %v108
    %6378 = vmatprep.subr.mxu0 0.0
    %6379 = vmatpush1.msra.mxu0 %v109
    %6380 = vmatprep.subr.mxu0 0.0
    %6381 = vmatpush1.msra.mxu0 %v110
    %6382 = vmatprep.subr.mxu0 0.0
    %6383 = vmatpush1.msra.mxu0 0.0
    %6384 = vmatprep.subr.mxu0 0.0
    %6385 = vmatpush1.msra.mxu0 0.0
    %6386 = vmatprep.subr.mxu0 0.0
    %6387 = vmatpush1.msra.mxu0 0.0
    %6388 = vmatprep.subr.mxu0 0.0
    %6389 = vmatpush1.msra.mxu0 0.0
    %6390 = vmatprep.subr.mxu0 0.0
    %6391 = vmatpush1.msra.mxu0 0.0
    %6392 = vmatprep.subr.mxu0 0.0
    %6393 = vmatpush1.msra.mxu0 0.0
    %6394 = vmatprep.subr.mxu0 0.0
    %6395 = vmatpush1.msra.mxu0 0.0
    %6396 = vmatprep.subr.mxu0 0.0
    %6397 = vmatpush1.msra.mxu0 0.0
    %6398 = vmatprep.subr.mxu0 0.0
    %6399 = vmatpush1.msra.mxu0 0.0
    %6400 = vmatprep.subr.mxu0 0.0
    %6401 = vmatpush1.msra.mxu0 0.0
    %6402 = vmatprep.subr.mxu0 0.0
    %6403 = vmatpush1.msra.mxu0 0.0
    %6404 = vmatprep.subr.mxu0 0.0
    %6405 = vmatpush1.msra.mxu0 0.0
    %6406 = vmatprep.subr.mxu0 0.0
    %6407 = vmatpush1.msra.mxu0 0.0
    %6408 = vmatprep.subr.mxu0 0.0
    %6409 = vmatpush1.msra.mxu0 0.0
    %6410 = vmatprep.subr.mxu0 0.0
    %6411 = vmatpush1.msra.mxu0 0.0
    %6412 = vmatprep.subr.mxu0 0.0
    %6413 = vmatpush1.msra.mxu0 0.0
    %6414 = vmatprep.subr.mxu0 0.0
    %6415 = vmatpush1.msra.mxu0 0.0
    %6416 = vmatprep.subr.mxu0 0.0
    %6417 = vmatpush1.msra.mxu0 0.0
    %6418 = vmatprep.subr.mxu0 0.0
    %6419 = vmatpush1.msra.mxu0 0.0
    %6420 = vmatprep.subr.mxu0 0.0
    %6421 = vmatpush1.msra.mxu0 0.0
    %6422 = vmatprep.subr.mxu0 0.0
    %6423 = vmatpush1.msra.mxu0 0.0
    %6424 = vmatprep.subr.mxu0 0.0
    %6425 = vmatpush1.msra.mxu0 0.0
    %6426 = vmatprep.subr.mxu0 0.0
    %6427 = vmatpush1.msra.mxu0 0.0
    %6428 = vmatprep.subr.mxu0 0.0
    %6429 = vmatpush1.msra.mxu0 0.0
    %6430 = vmatprep.subr.mxu0 0.0
    %6431 = vmatpush1.msra.mxu0 0.0
    %6432 = vmatprep.subr.mxu0 0.0
    %6433 = vmatpush1.msra.mxu0 0.0
    %6434 = vmatprep.subr.mxu0 0.0
    %6435 = vmatpush1.msra.mxu0 0.0
    %6436 = vmatprep.subr.mxu0 0.0
    %6437 = vmatpush1.msra.mxu0 0.0
    %6438 = vmatprep.mubr.f32.mxu0 0.0
    %6439 = vmatmul.mubr.f32.gmra.mrb[0].mxu0 %v6372
    %v6440 = vpop.f32.mrb[0].mxu0
    %v6441 = vadd.f32 %v2010, %v6440
    %v6442 = vpop.f32.mrb[0].mxu0
    %6443 = vdwg.mxu0
    %v6444 = vadd.f32 %v5623, %v6441
    %v6445 = vsel %vm219, %v6444, 0.0
    %6446 = vadd.xlane.f32.xlu0 %v6445
    %v6447 = vpop.xlane.xlu0 %6446
    %v6448 = vmul.f32 %v6447, %v1051
    %v6449 = vmul.f32 %v6444, %v6444
    %v6450 = vsel %vm219, %v6449, 0.0
    %6451 = vadd.xlane.f32.xlu0 %v6450
    %v6452 = vpop.xlane.xlu0 %6451
    %v6453 = vmul.f32 %v6452, %v1051
    %v6454 = vmul.f32 %v6448, %v6448
    %v6455 = vsub.f32 %v6453, %v6454
    %v6456 = vsub.f32 %v6444, %v6448
    %v6457 = vadd.f32 %v6455, 1e-05
    %v6458 = vrsqrt.pop %v6457
    %v6459 = vmul.f32 %v6456, %v6458
    %v6460 = vmul.f32 %v6459, %v2103
    %v6461 = vadd.f32 %v6460, %v2108
    %v6463 = vsel %vm219, %v6461, 0
    %6465 = vmatprep.subr.mxu0 0.0
    %6466 = vmatpush1.msra.mxu0 %v112
    %6467 = vmatprep.subr.mxu0 0.0
    %6468 = vmatpush1.msra.mxu0 %v113
    %6469 = vmatprep.subr.mxu0 0.0
    %6470 = vmatpush1.msra.mxu0 %v114
    %6471 = vmatprep.subr.mxu0 0.0
    %6472 = vmatpush1.msra.mxu0 %v115
    %6473 = vmatprep.subr.mxu0 0.0
    %6474 = vmatpush1.msra.mxu0 0.0
    %6475 = vmatprep.subr.mxu0 0.0
    %6476 = vmatpush1.msra.mxu0 0.0
    %6477 = vmatprep.subr.mxu0 0.0
    %6478 = vmatpush1.msra.mxu0 0.0
    %6479 = vmatprep.subr.mxu0 0.0
    %6480 = vmatpush1.msra.mxu0 0.0
    %6481 = vmatprep.subr.mxu0 0.0
    %6482 = vmatpush1.msra.mxu0 0.0
    %6483 = vmatprep.subr.mxu0 0.0
    %6484 = vmatpush1.msra.mxu0 0.0
    %6485 = vmatprep.subr.mxu0 0.0
    %6486 = vmatpush1.msra.mxu0 0.0
    %6487 = vmatprep.subr.mxu0 0.0
    %6488 = vmatpush1.msra.mxu0 0.0
    %6489 = vmatprep.subr.mxu0 0.0
    %6490 = vmatpush1.msra.mxu0 0.0
    %6491 = vmatprep.subr.mxu0 0.0
    %6492 = vmatpush1.msra.mxu0 0.0
    %6493 = vmatprep.subr.mxu0 0.0
    %6494 = vmatpush1.msra.mxu0 0.0
    %6495 = vmatprep.subr.mxu0 0.0
    %6496 = vmatpush1.msra.mxu0 0.0
    %6497 = vmatprep.subr.mxu0 0.0
    %6498 = vmatpush1.msra.mxu0 0.0
    %6499 = vmatprep.subr.mxu0 0.0
    %6500 = vmatpush1.msra.mxu0 0.0
    %6501 = vmatprep.subr.mxu0 0.0
    %6502 = vmatpush1.msra.mxu0 0.0
    %6503 = vmatprep.subr.mxu0 0.0
    %6504 = vmatpush1.msra.mxu0 0.0
    %6505 = vmatprep.subr.mxu0 0.0
    %6506 = vmatpush1.msra.mxu0 0.0
    %6507 = vmatprep.subr.mxu0 0.0
    %6508 = vmatpush1.msra.mxu0 0.0
    %6509 = vmatprep.subr.mxu0 0.0
    %6510 = vmatpush1.msra.mxu0 0.0
    %6511 = vmatprep.subr.mxu0 0.0
    %6512 = vmatpush1.msra.mxu0 0.0
    %6513 = vmatprep.subr.mxu0 0.0
    %6514 = vmatpush1.msra.mxu0 0.0
    %6515 = vmatprep.subr.mxu0 0.0
    %6516 = vmatpush1.msra.mxu0 0.0
    %6517 = vmatprep.subr.mxu0 0.0
    %6518 = vmatpush1.msra.mxu0 0.0
    %6519 = vmatprep.subr.mxu0 0.0
    %6520 = vmatpush1.msra.mxu0 0.0
    %6521 = vmatprep.subr.mxu0 0.0
    %6522 = vmatpush1.msra.mxu0 0.0
    %6523 = vmatprep.subr.mxu0 0.0
    %6524 = vmatpush1.msra.mxu0 0.0
    %6525 = vmatprep.subr.mxu0 0.0
    %6526 = vmatpush1.msra.mxu0 0.0
    %6527 = vmatprep.subr.mxu0 0.0
    %6528 = vmatpush1.msra.mxu0 0.0
    %6529 = vmatprep.mubr.f32.mxu0 0.0
    %6530 = vmatmul.mubr.f32.gmra.mrb[0].mxu0 %v6463
    %v6531 = vpop.f32.mrb[0].mxu0
    %v6532 = vadd.f32 %v2113, %v6531
    %v6533 = vpop.f32.mrb[0].mxu0
    %6534 = vdwg.mxu0
    %v6535 = vmax.f32 %v6532, 0.0
    %v6537 = vsel %vm1156, %v6535, 0
    %6539 = vmatprep.subr.mxu0 0.0
    %6540 = vmatpush1.msra.mxu0 %v117
    %6541 = vmatprep.subr.mxu0 0.0
    %6542 = vmatpush1.msra.mxu0 %v118
    %6543 = vmatprep.subr.mxu0 0.0
    %6544 = vmatpush1.msra.mxu0 %v119
    %6545 = vmatprep.subr.mxu0 0.0
    %6546 = vmatpush1.msra.mxu0 %v120
    %6547 = vmatprep.subr.mxu0 0.0
    %6548 = vmatpush1.msra.mxu0 %v121
    %6549 = vmatprep.subr.mxu0 0.0
    %6550 = vmatpush1.msra.mxu0 %v122
    %6551 = vmatprep.subr.mxu0 0.0
    %6552 = vmatpush1.msra.mxu0 %v123
    %6553 = vmatprep.subr.mxu0 0.0
    %6554 = vmatpush1.msra.mxu0 %v124
    %6555 = vmatprep.subr.mxu0 0.0
    %6556 = vmatpush1.msra.mxu0 0.0
    %6557 = vmatprep.subr.mxu0 0.0
    %6558 = vmatpush1.msra.mxu0 0.0
    %6559 = vmatprep.subr.mxu0 0.0
    %6560 = vmatpush1.msra.mxu0 0.0
    %6561 = vmatprep.subr.mxu0 0.0
    %6562 = vmatpush1.msra.mxu0 0.0
    %6563 = vmatprep.subr.mxu0 0.0
    %6564 = vmatpush1.msra.mxu0 0.0
    %6565 = vmatprep.subr.mxu0 0.0
    %6566 = vmatpush1.msra.mxu0 0.0
    %6567 = vmatprep.subr.mxu0 0.0
    %6568 = vmatpush1.msra.mxu0 0.0
    %6569 = vmatprep.subr.mxu0 0.0
    %6570 = vmatpush1.msra.mxu0 0.0
    %6571 = vmatprep.subr.mxu0 0.0
    %6572 = vmatpush1.msra.mxu0 0.0
    %6573 = vmatprep.subr.mxu0 0.0
    %6574 = vmatpush1.msra.mxu0 0.0
    %6575 = vmatprep.subr.mxu0 0.0
    %6576 = vmatpush1.msra.mxu0 0.0
    %6577 = vmatprep.subr.mxu0 0.0
    %6578 = vmatpush1.msra.mxu0 0.0
    %6579 = vmatprep.subr.mxu0 0.0
    %6580 = vmatpush1.msra.mxu0 0.0
    %6581 = vmatprep.subr.mxu0 0.0
    %6582 = vmatpush1.msra.mxu0 0.0
    %6583 = vmatprep.subr.mxu0 0.0
    %6584 = vmatpush1.msra.mxu0 0.0
    %6585 = vmatprep.subr.mxu0 0.0
    %6586 = vmatpush1.msra.mxu0 0.0
    %6587 = vmatprep.subr.mxu0 0.0
    %6588 = vmatpush1.msra.mxu0 0.0
    %6589 = vmatprep.subr.mxu0 0.0
    %6590 = vmatpush1.msra.mxu0 0.0
    %6591 = vmatprep.subr.mxu0 0.0
    %6592 = vmatpush1.msra.mxu0 0.0
    %6593 = vmatprep.subr.mxu0 0.0
    %6594 = vmatpush1.msra.mxu0 0.0
    %6595 = vmatprep.subr.mxu0 0.0
    %6596 = vmatpush1.msra.mxu0 0.0
    %6597 = vmatprep.subr.mxu0 0.0
    %6598 = vmatpush1.msra.mxu0 0.0
    %6599 = vmatprep.subr.mxu0 0.0
    %6600 = vmatpush1.msra.mxu0 0.0
    %6601 = vmatprep.subr.mxu0 0.0
    %6602 = vmatpush1.msra.mxu0 0.0
    %6603 = vmatprep.mubr.f32.mxu0 0.0
    %6604 = vmatmul.mubr.f32.gmra.mrb[0].mxu0 %v6537
    %v6605 = vpop.f32.mrb[0].mxu0
    %v6606 = vadd.f32 %v2191, %v6605
    %v6607 = vpop.f32.mrb[0].mxu0
    %6608 = vdwg.mxu0
    %v6609 = vadd.f32 %v6461, %v6606
    %v6610 = vsel %vm219, %v6609, 0.0
    %6611 = vadd.xlane.f32.xlu0 %v6610
    %v6612 = vpop.xlane.xlu0 %6611
    %v6613 = vmul.f32 %v6612, %v1051
    %v6614 = vmul.f32 %v6609, %v6609
    %v6615 = vsel %vm219, %v6614, 0.0
    %6616 = vadd.xlane.f32.xlu0 %v6615
    %v6617 = vpop.xlane.xlu0 %6616
    %v6618 = vmul.f32 %v6617, %v1051
    %v6619 = vmul.f32 %v6613, %v6613
    %v6620 = vsub.f32 %v6618, %v6619
    %v6621 = vsub.f32 %v6609, %v6613
    %v6622 = vadd.f32 %v6620, 1e-05
    %v6623 = vrsqrt.pop %v6622
    %v6624 = vmul.f32 %v6621, %v6623
    %v6625 = vmul.f32 %v6624, %v2284
    %v6626 = vadd.f32 %v6625, %v2289
    %vm6627 = vcmp.eq.s32.totalorder %v136, 2
    %v6628 = vsel %vm6627, %v6626, 0.0
    %v6629 = vsel %vm219, %v6628, 0.0
    %v6630 = vrot.slane %v6629, 4
    %v6631 = vadd.f32 %v6629, %v6630
    %v6632 = vrot.slane %v6631, 2
    %v6633 = vadd.f32 %v6631, %v6632
    %v6634 = vrot.slane %v6633, 1
    %v6635 = vadd.f32 %v6633, %v6634
    %v6637 = vsel %vm219, %v6635, 0
    %6639 = vmatprep.subr.mxu0 0.0
    %6640 = vmatpush1.msra.mxu0 %v67
    %6641 = vmatprep.subr.mxu0 0.0
    %6642 = vmatpush1.msra.mxu0 %v68
    %6643 = vmatprep.subr.mxu0 0.0
    %6644 = vmatpush1.msra.mxu0 %v69
    %6645 = vmatprep.subr.mxu0 0.0
    %6646 = vmatpush1.msra.mxu0 %v70
    %6647 = vmatprep.subr.mxu0 0.0
    %6648 = vmatpush1.msra.mxu0 0.0
    %6649 = vmatprep.subr.mxu0 0.0
    %6650 = vmatpush1.msra.mxu0 0.0
    %6651 = vmatprep.subr.mxu0 0.0
    %6652 = vmatpush1.msra.mxu0 0.0
    %6653 = vmatprep.subr.mxu0 0.0
    %6654 = vmatpush1.msra.mxu0 0.0
    %6655 = vmatprep.subr.mxu0 0.0
    %6656 = vmatpush1.msra.mxu0 0.0
    %6657 = vmatprep.subr.mxu0 0.0
    %6658 = vmatpush1.msra.mxu0 0.0
    %6659 = vmatprep.subr.mxu0 0.0
    %6660 = vmatpush1.msra.mxu0 0.0
    %6661 = vmatprep.subr.mxu0 0.0
    %6662 = vmatpush1.msra.mxu0 0.0
    %6663 = vmatprep.subr.mxu0 0.0
    %6664 = vmatpush1.msra.mxu0 0.0
    %6665 = vmatprep.subr.mxu0 0.0
    %6666 = vmatpush1.msra.mxu0 0.0
    %6667 = vmatprep.subr.mxu0 0.0
    %6668 = vmatpush1.msra.mxu0 0.0
    %6669 = vmatprep.subr.mxu0 0.0
    %6670 = vmatpush1.msra.mxu0 0.0
    %6671 = vmatprep.subr.mxu0 0.0
    %6672 = vmatpush1.msra.mxu0 0.0
    %6673 = vmatprep.subr.mxu0 0.0
    %6674 = vmatpush1.msra.mxu0 0.0
    %6675 = vmatprep.subr.mxu0 0.0
    %6676 = vmatpush1.msra.mxu0 0.0
    %6677 = vmatprep.subr.mxu0 0.0
    %6678 = vmatpush1.msra.mxu0 0.0
    %6679 = vmatprep.subr.mxu0 0.0
    %6680 = vmatpush1.msra.mxu0 0.0
    %6681 = vmatprep.subr.mxu0 0.0
    %6682 = vmatpush1.msra.mxu0 0.0
    %6683 = vmatprep.subr.mxu0 0.0
    %6684 = vmatpush1.msra.mxu0 0.0
    %6685 = vmatprep.subr.mxu0 0.0
    %6686 = vmatpush1.msra.mxu0 0.0
    %6687 = vmatprep.subr.mxu0 0.0
    %6688 = vmatpush1.msra.mxu0 0.0
    %6689 = vmatprep.subr.mxu0 0.0
    %6690 = vmatpush1.msra.mxu0 0.0
    %6691 = vmatprep.subr.mxu0 0.0
    %6692 = vmatpush1.msra.mxu0 0.0
    %6693 = vmatprep.subr.mxu0 0.0
    %6694 = vmatpush1.msra.mxu0 0.0
    %6695 = vmatprep.subr.mxu0 0.0
    %6696 = vmatpush1.msra.mxu0 0.0
    %6697 = vmatprep.subr.mxu0 0.0
    %6698 = vmatpush1.msra.mxu0 0.0
    %6699 = vmatprep.subr.mxu0 0.0
    %6700 = vmatpush1.msra.mxu0 0.0
    %6701 = vmatprep.subr.mxu0 0.0
    %6702 = vmatpush1.msra.mxu0 0.0
    %6703 = vmatprep.mubr.f32.mxu0 0.0
    %6704 = vmatmul.mubr.f32.gmra.mrb[0].mxu0 %v6637
    %v6705 = vpop.f32.mrb[0].mxu0
    %v6706 = vadd.f32 %v72, %v6705
    %v6707 = vpop.f32.mrb[0].mxu0
    %6708 = vdwg.mxu0
    %s6709 = sld [smem:[#allocation2 + $0x2]]
    %v6710 = vsel %vm2374, %v6706, 0.0
    %v6711 = vstv %s6709
    %v6712 = vsel %vm2376, %v6711, %v6710
    %6713 = vst [vmem:[%s10 + $0x3] sm:$0x1] %v6712
    %v6714 = vld [vmem:[%s10] sm:$0xff]
    %6715 = vmatprep.subr.mxu0 0.0
    %6716 = vmatpush1.msra.mxu0 %v51
    %6717 = vmatprep.subr.mxu0 0.0
    %6718 = vmatpush1.msra.mxu0 %v52
    %6719 = vmatprep.subr.mxu0 0.0
    %6720 = vmatpush1.msra.mxu0 %v53
    %6721 = vmatprep.subr.mxu0 0.0
    %6722 = vmatpush1.msra.mxu0 %v54
    %6723 = vmatprep.subr.mxu0 0.0
    %6724 = vmatpush1.msra.mxu0 %v55
    %6725 = vmatprep.subr.mxu0 0.0
    %6726 = vmatpush1.msra.mxu0 %v56
    %6727 = vmatprep.subr.mxu0 0.0
    %6728 = vmatpush1.msra.mxu0 %v57
    %6729 = vmatprep.subr.mxu0 0.0
    %6730 = vmatpush1.msra.mxu0 %v58
    %6731 = vmatprep.subr.mxu0 0.0
    %6732 = vmatpush1.msra.mxu0 %v59
    %6733 = vmatprep.subr.mxu0 0.0
    %6734 = vmatpush1.msra.mxu0 %v60
    %6735 = vmatprep.subr.mxu0 0.0
    %6736 = vmatpush1.msra.mxu0 %v61
    %6737 = vmatprep.subr.mxu0 0.0
    %6738 = vmatpush1.msra.mxu0 %v62
    %6739 = vmatprep.subr.mxu0 0.0
    %6740 = vmatpush1.msra.mxu0 %v63
    %6741 = vmatprep.subr.mxu0 0.0
    %6742 = vmatpush1.msra.mxu0 %v64
    %6743 = vmatprep.subr.mxu0 0.0
    %6744 = vmatpush1.msra.mxu0 %v65
    %6745 = vmatprep.subr.mxu0 0.0
    %6746 = vmatpush1.msra.mxu0 %v66
    %6747 = vmatprep.subr.mxu0 0.0
    %6748 = vmatpush1.msra.mxu0 0.0
    %6749 = vmatprep.subr.mxu0 0.0
    %6750 = vmatpush1.msra.mxu0 0.0
    %6751 = vmatprep.subr.mxu0 0.0
    %6752 = vmatpush1.msra.mxu0 0.0
    %6753 = vmatprep.subr.mxu0 0.0
    %6754 = vmatpush1.msra.mxu0 0.0
    %6755 = vmatprep.subr.mxu0 0.0
    %6756 = vmatpush1.msra.mxu0 0.0
    %6757 = vmatprep.subr.mxu0 0.0
    %6758 = vmatpush1.msra.mxu0 0.0
    %6759 = vmatprep.subr.mxu0 0.0
    %6760 = vmatpush1.msra.mxu0 0.0
    %6761 = vmatprep.subr.mxu0 0.0
    %6762 = vmatpush1.msra.mxu0 0.0
    %6763 = vmatprep.subr.mxu0 0.0
    %6764 = vmatpush1.msra.mxu0 0.0
    %6765 = vmatprep.subr.mxu0 0.0
    %6766 = vmatpush1.msra.mxu0 0.0
    %6767 = vmatprep.subr.mxu0 0.0
    %6768 = vmatpush1.msra.mxu0 0.0
    %6769 = vmatprep.subr.mxu0 0.0
    %6770 = vmatpush1.msra.mxu0 0.0
    %6771 = vmatprep.subr.mxu0 0.0
    %6772 = vmatpush1.msra.mxu0 0.0
    %6773 = vmatprep.subr.mxu0 0.0
    %6774 = vmatpush1.msra.mxu0 0.0
    %6775 = vmatprep.subr.mxu0 0.0
    %6776 = vmatpush1.msra.mxu0 0.0
    %6777 = vmatprep.subr.mxu0 0.0
    %6778 = vmatpush1.msra.mxu0 0.0
    %6779 = vmatprep.mubr.f32.mxu0 0.0
    %6780 = vmatmul.mubr.f32.gmra.mrb[0].mxu0 %v6714
    %v6781 = vpop.f32.mrb[0].mxu0
    %v6782 = vadd.f32 %v141, %v6781
    %v6783 = vpop.f32.mrb[0].mxu0
    %6784 = vdwg.mxu0
    %v6785 = vadd.f32 %v6782, %v50
    %vm6786 = vcmp.le.s32.totalorder %v134, 3
    %v6787 = vsel %vm6786, 0.0, -1e+30
    %v6789 = vsel %vm219, %v6785, 0
    %6791 = vmatprep.subr.mxu0 0.0
    %6792 = vmatpush1.msra.mxu0 %v73
    %6793 = vmatprep.subr.mxu0 0.0
    %6794 = vmatpush1.msra.mxu0 %v74
    %6795 = vmatprep.subr.mxu0 0.0
    %6796 = vmatpush1.msra.mxu0 %v75
    %6797 = vmatprep.subr.mxu0 0.0
    %6798 = vmatpush1.msra.mxu0 %v76
    %6799 = vmatprep.subr.mxu0 0.0
    %6800 = vmatpush1.msra.mxu0 0.0
    %6801 = vmatprep.subr.mxu0 0.0
    %6802 = vmatpush1.msra.mxu0 0.0
    %6803 = vmatprep.subr.mxu0 0.0
    %6804 = vmatpush1.msra.mxu0 0.0
    %6805 = vmatprep.subr.mxu0 0.0
    %6806 = vmatpush1.msra.mxu0 0.0
    %6807 = vmatprep.subr.mxu0 0.0
    %6808 = vmatpush1.msra.mxu0 0.0
    %6809 = vmatprep.subr.mxu0 0.0
    %6810 = vmatpush1.msra.mxu0 0.0
    %6811 = vmatprep.subr.mxu0 0.0
    %6812 = vmatpush1.msra.mxu0 0.0
    %6813 = vmatprep.subr.mxu0 0.0
    %6814 = vmatpush1.msra.mxu0 0.0
    %6815 = vmatprep.subr.mxu0 0.0
    %6816 = vmatpush1.msra.mxu0 0.0
    %6817 = vmatprep.subr.mxu0 0.0
    %6818 = vmatpush1.msra.mxu0 0.0
    %6819 = vmatprep.subr.mxu0 0.0
    %6820 = vmatpush1.msra.mxu0 0.0
    %6821 = vmatprep.subr.mxu0 0.0
    %6822 = vmatpush1.msra.mxu0 0.0
    %6823 = vmatprep.subr.mxu0 0.0
    %6824 = vmatpush1.msra.mxu0 0.0
    %6825 = vmatprep.subr.mxu0 0.0
    %6826 = vmatpush1.msra.mxu0 0.0
    %6827 = vmatprep.subr.mxu0 0.0
    %6828 = vmatpush1.msra.mxu0 0.0
    %6829 = vmatprep.subr.mxu0 0.0
    %6830 = vmatpush1.msra.mxu0 0.0
    %6831 = vmatprep.subr.mxu0 0.0
    %6832 = vmatpush1.msra.mxu0 0.0
    %6833 = vmatprep.subr.mxu0 0.0
    %6834 = vmatpush1.msra.mxu0 0.0
    %6835 = vmatprep.subr.mxu0 0.0
    %6836 = vmatpush1.msra.mxu0 0.0
    %6837 = vmatprep.subr.mxu0 0.0
    %6838 = vmatpush1.msra.mxu0 0.0
    %6839 = vmatprep.subr.mxu0 0.0
    %6840 = vmatpush1.msra.mxu0 0.0
    %6841 = vmatprep.subr.mxu0 0.0
    %6842 = vmatpush1.msra.mxu0 0.0
    %6843 = vmatprep.subr.mxu0 0.0
    %6844 = vmatpush1.msra.mxu0 0.0
    %6845 = vmatprep.subr.mxu0 0.0
    %6846 = vmatpush1.msra.mxu0 0.0
    %6847 = vmatprep.subr.mxu0 0.0
    %6848 = vmatpush1.msra.mxu0 0.0
    %6849 = vmatprep.subr.mxu0 0.0
    %6850 = vmatpush1.msra.mxu0 0.0
    %6851 = vmatprep.subr.mxu0 0.0
    %6852 = vmatpush1.msra.mxu0 0.0
    %6853 = vmatprep.subr.mxu0 0.0
    %6854 = vmatpush1.msra.mxu0 0.0
    %6855 = vmatprep.mubr.f32.mxu0 0.0
    %6856 = vmatmul.mubr.f32.gmra.mrb[0].mxu0 %v6789
    %v6857 = vpop.f32.mrb[0].mxu0
    %v6858 = vadd.f32 %v218, %v6857
    %v6859 = vpop.f32.mrb[0].mxu0
    %6860 = vdwg.mxu0
    %6862 = vrot.lane.b32.xlu0 %v6858, 96
    %v6863 = vpop.permute.xlu0 %6862
    %v6864 = vsel %vm296, %v6858, 0
    %v6866 = vsel %vm296, %v6863, 0
    %6868 = vmatprep.subr.mxu0 0.0
    %6869 = vmatpush1.xpose.msra.mxu0 %v6866
    %6870 = vmatprep.subr.mxu0 0.0
    %6871 = vmatpush1.xpose.msra.mxu0 0.0
    %6872 = vmatprep.subr.mxu0 0.0
    %6873 = vmatpush1.xpose.msra.mxu0 0.0
    %6874 = vmatprep.subr.mxu0 0.0
    %6875 = vmatpush1.xpose.msra.mxu0 0.0
    %6876 = vmatprep.subr.mxu0 0.0
    %6877 = vmatpush1.xpose.msra.mxu0 0.0
    %6878 = vmatprep.subr.mxu0 0.0
    %6879 = vmatpush1.xpose.msra.mxu0 0.0
    %6880 = vmatprep.subr.mxu0 0.0
    %6881 = vmatpush1.xpose.msra.mxu0 0.0
    %6882 = vmatprep.subr.mxu0 0.0
    %6883 = vmatpush1.xpose.msra.mxu0 0.0
    %6884 = vmatprep.subr.mxu0 0.0
    %6885 = vmatpush1.xpose.msra.mxu0 0.0
    %6886 = vmatprep.subr.mxu0 0.0
    %6887 = vmatpush1.xpose.msra.mxu0 0.0
    %6888 = vmatprep.subr.mxu0 0.0
    %6889 = vmatpush1.xpose.msra.mxu0 0.0
    %6890 = vmatprep.subr.mxu0 0.0
    %6891 = vmatpush1.xpose.msra.mxu0 0.0
    %6892 = vmatprep.subr.mxu0 0.0
    %6893 = vmatpush1.xpose.msra.mxu0 0.0
    %6894 = vmatprep.subr.mxu0 0.0
    %6895 = vmatpush1.xpose.msra.mxu0 0.0
    %6896 = vmatprep.subr.mxu0 0.0
    %6897 = vmatpush1.xpose.msra.mxu0 0.0
    %6898 = vmatprep.subr.mxu0 0.0
    %6899 = vmatpush1.xpose.msra.mxu0 0.0
    %6900 = vmatprep.subr.mxu0 0.0
    %6901 = vmatpush1.xpose.msra.mxu0 0.0
    %6902 = vmatprep.subr.mxu0 0.0
    %6903 = vmatpush1.xpose.msra.mxu0 0.0
    %6904 = vmatprep.subr.mxu0 0.0
    %6905 = vmatpush1.xpose.msra.mxu0 0.0
    %6906 = vmatprep.subr.mxu0 0.0
    %6907 = vmatpush1.xpose.msra.mxu0 0.0
    %6908 = vmatprep.subr.mxu0 0.0
    %6909 = vmatpush1.xpose.msra.mxu0 0.0
    %6910 = vmatprep.subr.mxu0 0.0
    %6911 = vmatpush1.xpose.msra.mxu0 0.0
    %6912 = vmatprep.subr.mxu0 0.0
    %6913 = vmatpush1.xpose.msra.mxu0 0.0
    %6914 = vmatprep.subr.mxu0 0.0
    %6915 = vmatpush1.xpose.msra.mxu0 0.0
    %6916 = vmatprep.subr.mxu0 0.0
    %6917 = vmatpush1.xpose.msra.mxu0 0.0
    %6918 = vmatprep.subr.mxu0 0.0
    %6919 = vmatpush1.xpose.msra.mxu0 0.0
    %6920 = vmatprep.subr.mxu0 0.0
    %6921 = vmatpush1.xpose.msra.mxu0 0.0
    %6922 = vmatprep.subr.mxu0 0.0
    %6923 = vmatpush1.xpose.msra.mxu0 0.0
    %6924 = vmatprep.subr.mxu0 0.0
    %6925 = vmatpush1.xpose.msra.mxu0 0.0
    %6926 = vmatprep.subr.mxu0 0.0
    %6927 = vmatpush1.xpose.msra.mxu0 0.0
    %6928 = vmatprep.subr.mxu0 0.0
    %6929 = vmatpush1.xpose.msra.mxu0 0.0
    %6930 = vmatprep.subr.mxu0 0.0
    %6931 = vmatpush1.xpose.msra.mxu0 0.0
    %6932 = vmatprep.mubr.f32.mxu0 0.0
    %6933 = vmatmul.mubr.f32.gmra.mrb[0].mxu0 %v6864
    %v6934 = vpop.f32.mrb[0].mxu0
    %v6935 = vadd.f32 %v6787, %v6934
    %v6936 = vpop.f32.mrb[0].mxu0
    %6937 = vdwg.mxu0
    %v6938 = vsel %vm296, %v6935, -inf
    %6939 = vmax.xlane.f32.xlu0 %v6938
    %v6940 = vpop.xlane.xlu0 %6939
    %v6941 = vsub.f32 %v6935, %v6940
    %v6942 = vmul.f32 %v6941, 1.442695
    %v6943 = vpow.pop %v6942
    %v6944 = vsel %vm296, %v6943, 0.0
    %6945 = vadd.xlane.f32.xlu0 %v6944
    %v6946 = vpop.xlane.xlu0 %6945
    %v6947 = vrcp.pop %v6946
    %v6948 = vmul.f32 %v6943, %v6947
    %6949 = vrot.lane.b32.xlu0 %v6858, 64
    %v6950 = vpop.permute.xlu0 %6949
    %v6953 = vsel %vm296, %v6948, 0
    %6955 = vmatprep.subr.mxu0 0.0
    %6956 = vmatpush1.msra.mxu0 %v6950
    %6957 = vmatprep.subr.mxu0 0.0
    %6958 = vmatpush1.msra.mxu0 0.0
    %6959 = vmatprep.subr.mxu0 0.0
    %6960 = vmatpush1.msra.mxu0 0.0
    %6961 = vmatprep.subr.mxu0 0.0
    %6962 = vmatpush1.msra.mxu0 0.0
    %6963 = vmatprep.subr.mxu0 0.0
    %6964 = vmatpush1.msra.mxu0 0.0
    %6965 = vmatprep.subr.mxu0 0.0
    %6966 = vmatpush1.msra.mxu0 0.0
    %6967 = vmatprep.subr.mxu0 0.0
    %6968 = vmatpush1.msra.mxu0 0.0
    %6969 = vmatprep.subr.mxu0 0.0
    %6970 = vmatpush1.msra.mxu0 0.0
    %6971 = vmatprep.subr.mxu0 0.0
    %6972 = vmatpush1.msra.mxu0 0.0
    %6973 = vmatprep.subr.mxu0 0.0
    %6974 = vmatpush1.msra.mxu0 0.0
    %6975 = vmatprep.subr.mxu0 0.0
    %6976 = vmatpush1.msra.mxu0 0.0
    %6977 = vmatprep.subr.mxu0 0.0
    %6978 = vmatpush1.msra.mxu0 0.0
    %6979 = vmatprep.subr.mxu0 0.0
    %6980 = vmatpush1.msra.mxu0 0.0
    %6981 = vmatprep.subr.mxu0 0.0
    %6982 = vmatpush1.msra.mxu0 0.0
    %6983 = vmatprep.subr.mxu0 0.0
    %6984 = vmatpush1.msra.mxu0 0.0
    %6985 = vmatprep.subr.mxu0 0.0
    %6986 = vmatpush1.msra.mxu0 0.0
    %6987 = vmatprep.subr.mxu0 0.0
    %6988 = vmatpush1.msra.mxu0 0.0
    %6989 = vmatprep.subr.mxu0 0.0
    %6990 = vmatpush1.msra.mxu0 0.0
    %6991 = vmatprep.subr.mxu0 0.0
    %6992 = vmatpush1.msra.mxu0 0.0
    %6993 = vmatprep.subr.mxu0 0.0
    %6994 = vmatpush1.msra.mxu0 0.0
    %6995 = vmatprep.subr.mxu0 0.0
    %6996 = vmatpush1.msra.mxu0 0.0
    %6997 = vmatprep.subr.mxu0 0.0
    %6998 = vmatpush1.msra.mxu0 0.0
    %6999 = vmatprep.subr.mxu0 0.0
    %7000 = vmatpush1.msra.mxu0 0.0
    %7001 = vmatprep.subr.mxu0 0.0
    %7002 = vmatpush1.msra.mxu0 0.0
    %7003 = vmatprep.subr.mxu0 0.0
    %7004 = vmatpush1.msra.mxu0 0.0
    %7005 = vmatprep.subr.mxu0 0.0
    %7006 = vmatpush1.msra.mxu0 0.0
    %7007 = vmatprep.subr.mxu0 0.0
    %7008 = vmatpush1.msra.mxu0 0.0
    %7009 = vmatprep.subr.mxu0 0.0
    %7010 = vmatpush1.msra.mxu0 0.0
    %7011 = vmatprep.subr.mxu0 0.0
    %7012 = vmatpush1.msra.mxu0 0.0
    %7013 = vmatprep.subr.mxu0 0.0
    %7014 = vmatpush1.msra.mxu0 0.0
    %7015 = vmatprep.subr.mxu0 0.0
    %7016 = vmatpush1.msra.mxu0 0.0
    %7017 = vmatprep.subr.mxu0 0.0
    %7018 = vmatpush1.msra.mxu0 0.0
    %7019 = vmatprep.mubr.f32.mxu0 0.0
    %7020 = vmatmul.mubr.f32.gmra.mrb[0].mxu0 %v6953
    %v7021 = vpop.f32.mrb[0].mxu0
    %v7022 = vadd.f32 0.0, %v7021
    %v7023 = vpop.f32.mrb[0].mxu0
    %7024 = vdwg.mxu0
    %7025 = vrot.lane.b32.xlu0 %v6858, 120
    %v7026 = vpop.permute.xlu0 %7025
    %7027 = vrot.lane.b32.xlu0 %v6858, 88
    %v7028 = vpop.permute.xlu0 %7027
    %v7029 = vsel %vm296, %v7026, 0
    %v7031 = vsel %vm296, %v7028, 0
    %7033 = vmatprep.subr.mxu0 0.0
    %7034 = vmatpush1.xpose.msra.mxu0 %v7031
    %7035 = vmatprep.subr.mxu0 0.0
    %7036 = vmatpush1.xpose.msra.mxu0 0.0
    %7037 = vmatprep.subr.mxu0 0.0
    %7038 = vmatpush1.xpose.msra.mxu0 0.0
    %7039 = vmatprep.subr.mxu0 0.0
    %7040 = vmatpush1.xpose.msra.mxu0 0.0
    %7041 = vmatprep.subr.mxu0 0.0
    %7042 = vmatpush1.xpose.msra.mxu0 0.0
    %7043 = vmatprep.subr.mxu0 0.0
    %7044 = vmatpush1.xpose.msra.mxu0 0.0
    %7045 = vmatprep.subr.mxu0 0.0
    %7046 = vmatpush1.xpose.msra.mxu0 0.0
    %7047 = vmatprep.subr.mxu0 0.0
    %7048 = vmatpush1.xpose.msra.mxu0 0.0
    %7049 = vmatprep.subr.mxu0 0.0
    %7050 = vmatpush1.xpose.msra.mxu0 0.0
    %7051 = vmatprep.subr.mxu0 0.0
    %7052 = vmatpush1.xpose.msra.mxu0 0.0
    %7053 = vmatprep.subr.mxu0 0.0
    %7054 = vmatpush1.xpose.msra.mxu0 0.0
    %7055 = vmatprep.subr.mxu0 0.0
    %7056 = vmatpush1.xpose.msra.mxu0 0.0
    %7057 = vmatprep.subr.mxu0 0.0
    %7058 = vmatpush1.xpose.msra.mxu0 0.0
    %7059 = vmatprep.subr.mxu0 0.0
    %7060 = vmatpush1.xpose.msra.mxu0 0.0
    %7061 = vmatprep.subr.mxu0 0.0
    %7062 = vmatpush1.xpose.msra.mxu0 0.0
    %7063 = vmatprep.subr.mxu0 0.0
    %7064 = vmatpush1.xpose.msra.mxu0 0.0
    %7065 = vmatprep.subr.mxu0 0.0
    %7066 = vmatpush1.xpose.msra.mxu0 0.0
    %7067 = vmatprep.subr.mxu0 0.0
    %7068 = vmatpush1.xpose.msra.mxu0 0.0
    %7069 = vmatprep.subr.mxu0 0.0
    %7070 = vmatpush1.xpose.msra.mxu0 0.0
    %7071 = vmatprep.subr.mxu0 0.0
    %7072 = vmatpush1.xpose.msra.mxu0 0.0
    %7073 = vmatprep.subr.mxu0 0.0
    %7074 = vmatpush1.xpose.msra.mxu0 0.0
    %7075 = vmatprep.subr.mxu0 0.0
    %7076 = vmatpush1.xpose.msra.mxu0 0.0
    %7077 = vmatprep.subr.mxu0 0.0
    %7078 = vmatpush1.xpose.msra.mxu0 0.0
    %7079 = vmatprep.subr.mxu0 0.0
    %7080 = vmatpush1.xpose.msra.mxu0 0.0
    %7081 = vmatprep.subr.mxu0 0.0
    %7082 = vmatpush1.xpose.msra.mxu0 0.0
    %7083 = vmatprep.subr.mxu0 0.0
    %7084 = vmatpush1.xpose.msra.mxu0 0.0
    %7085 = vmatprep.subr.mxu0 0.0
    %7086 = vmatpush1.xpose.msra.mxu0 0.0
    %7087 = vmatprep.subr.mxu0 0.0
    %7088 = vmatpush1.xpose.msra.mxu0 0.0
    %7089 = vmatprep.subr.mxu0 0.0
    %7090 = vmatpush1.xpose.msra.mxu0 0.0
    %7091 = vmatprep.subr.mxu0 0.0
    %7092 = vmatpush1.xpose.msra.mxu0 0.0
    %7093 = vmatprep.subr.mxu0 0.0
    %7094 = vmatpush1.xpose.msra.mxu0 0.0
    %7095 = vmatprep.subr.mxu0 0.0
    %7096 = vmatpush1.xpose.msra.mxu0 0.0
    %7097 = vmatprep.mubr.f32.mxu0 0.0
    %7098 = vmatmul.mubr.f32.gmra.mrb[0].mxu0 %v7029
    %v7099 = vpop.f32.mrb[0].mxu0
    %v7100 = vadd.f32 %v6787, %v7099
    %v7101 = vpop.f32.mrb[0].mxu0
    %7102 = vdwg.mxu0
    %v7103 = vsel %vm296, %v7100, -inf
    %7104 = vmax.xlane.f32.xlu0 %v7103
    %v7105 = vpop.xlane.xlu0 %7104
    %v7106 = vsub.f32 %v7100, %v7105
    %v7107 = vmul.f32 %v7106, 1.442695
    %v7108 = vpow.pop %v7107
    %v7109 = vsel %vm296, %v7108, 0.0
    %7110 = vadd.xlane.f32.xlu0 %v7109
    %v7111 = vpop.xlane.xlu0 %7110
    %v7112 = vrcp.pop %v7111
    %v7113 = vmul.f32 %v7108, %v7112
    %7114 = vrot.lane.b32.xlu0 %v6858, 56
    %v7115 = vpop.permute.xlu0 %7114
    %v7118 = vsel %vm296, %v7113, 0
    %7120 = vmatprep.subr.mxu0 0.0
    %7121 = vmatpush1.msra.mxu0 %v7115
    %7122 = vmatprep.subr.mxu0 0.0
    %7123 = vmatpush1.msra.mxu0 0.0
    %7124 = vmatprep.subr.mxu0 0.0
    %7125 = vmatpush1.msra.mxu0 0.0
    %7126 = vmatprep.subr.mxu0 0.0
    %7127 = vmatpush1.msra.mxu0 0.0
    %7128 = vmatprep.subr.mxu0 0.0
    %7129 = vmatpush1.msra.mxu0 0.0
    %7130 = vmatprep.subr.mxu0 0.0
    %7131 = vmatpush1.msra.mxu0 0.0
    %7132 = vmatprep.subr.mxu0 0.0
    %7133 = vmatpush1.msra.mxu0 0.0
    %7134 = vmatprep.subr.mxu0 0.0
    %7135 = vmatpush1.msra.mxu0 0.0
    %7136 = vmatprep.subr.mxu0 0.0
    %7137 = vmatpush1.msra.mxu0 0.0
    %7138 = vmatprep.subr.mxu0 0.0
    %7139 = vmatpush1.msra.mxu0 0.0
    %7140 = vmatprep.subr.mxu0 0.0
    %7141 = vmatpush1.msra.mxu0 0.0
    %7142 = vmatprep.subr.mxu0 0.0
    %7143 = vmatpush1.msra.mxu0 0.0
    %7144 = vmatprep.subr.mxu0 0.0
    %7145 = vmatpush1.msra.mxu0 0.0
    %7146 = vmatprep.subr.mxu0 0.0
    %7147 = vmatpush1.msra.mxu0 0.0
    %7148 = vmatprep.subr.mxu0 0.0
    %7149 = vmatpush1.msra.mxu0 0.0
    %7150 = vmatprep.subr.mxu0 0.0
    %7151 = vmatpush1.msra.mxu0 0.0
    %7152 = vmatprep.subr.mxu0 0.0
    %7153 = vmatpush1.msra.mxu0 0.0
    %7154 = vmatprep.subr.mxu0 0.0
    %7155 = vmatpush1.msra.mxu0 0.0
    %7156 = vmatprep.subr.mxu0 0.0
    %7157 = vmatpush1.msra.mxu0 0.0
    %7158 = vmatprep.subr.mxu0 0.0
    %7159 = vmatpush1.msra.mxu0 0.0
    %7160 = vmatprep.subr.mxu0 0.0
    %7161 = vmatpush1.msra.mxu0 0.0
    %7162 = vmatprep.subr.mxu0 0.0
    %7163 = vmatpush1.msra.mxu0 0.0
    %7164 = vmatprep.subr.mxu0 0.0
    %7165 = vmatpush1.msra.mxu0 0.0
    %7166 = vmatprep.subr.mxu0 0.0
    %7167 = vmatpush1.msra.mxu0 0.0
    %7168 = vmatprep.subr.mxu0 0.0
    %7169 = vmatpush1.msra.mxu0 0.0
    %7170 = vmatprep.subr.mxu0 0.0
    %7171 = vmatpush1.msra.mxu0 0.0
    %7172 = vmatprep.subr.mxu0 0.0
    %7173 = vmatpush1.msra.mxu0 0.0
    %7174 = vmatprep.subr.mxu0 0.0
    %7175 = vmatpush1.msra.mxu0 0.0
    %7176 = vmatprep.subr.mxu0 0.0
    %7177 = vmatpush1.msra.mxu0 0.0
    %7178 = vmatprep.subr.mxu0 0.0
    %7179 = vmatpush1.msra.mxu0 0.0
    %7180 = vmatprep.subr.mxu0 0.0
    %7181 = vmatpush1.msra.mxu0 0.0
    %7182 = vmatprep.subr.mxu0 0.0
    %7183 = vmatpush1.msra.mxu0 0.0
    %7184 = vmatprep.mubr.f32.mxu0 0.0
    %7185 = vmatmul.mubr.f32.gmra.mrb[0].mxu0 %v7118
    %v7186 = vpop.f32.mrb[0].mxu0
    %v7187 = vadd.f32 0.0, %v7186
    %v7188 = vpop.f32.mrb[0].mxu0
    %7189 = vdwg.mxu0
    %7190 = vrot.lane.b32.xlu0 %v6858, 112
    %v7191 = vpop.permute.xlu0 %7190
    %7192 = vrot.lane.b32.xlu0 %v6858, 80
    %v7193 = vpop.permute.xlu0 %7192
    %v7194 = vsel %vm296, %v7191, 0
    %v7196 = vsel %vm296, %v7193, 0
    %7198 = vmatprep.subr.mxu0 0.0
    %7199 = vmatpush1.xpose.msra.mxu0 %v7196
    %7200 = vmatprep.subr.mxu0 0.0
    %7201 = vmatpush1.xpose.msra.mxu0 0.0
    %7202 = vmatprep.subr.mxu0 0.0
    %7203 = vmatpush1.xpose.msra.mxu0 0.0
    %7204 = vmatprep.subr.mxu0 0.0
    %7205 = vmatpush1.xpose.msra.mxu0 0.0
    %7206 = vmatprep.subr.mxu0 0.0
    %7207 = vmatpush1.xpose.msra.mxu0 0.0
    %7208 = vmatprep.subr.mxu0 0.0
    %7209 = vmatpush1.xpose.msra.mxu0 0.0
    %7210 = vmatprep.subr.mxu0 0.0
    %7211 = vmatpush1.xpose.msra.mxu0 0.0
    %7212 = vmatprep.subr.mxu0 0.0
    %7213 = vmatpush1.xpose.msra.mxu0 0.0
    %7214 = vmatprep.subr.mxu0 0.0
    %7215 = vmatpush1.xpose.msra.mxu0 0.0
    %7216 = vmatprep.subr.mxu0 0.0
    %7217 = vmatpush1.xpose.msra.mxu0 0.0
    %7218 = vmatprep.subr.mxu0 0.0
    %7219 = vmatpush1.xpose.msra.mxu0 0.0
    %7220 = vmatprep.subr.mxu0 0.0
    %7221 = vmatpush1.xpose.msra.mxu0 0.0
    %7222 = vmatprep.subr.mxu0 0.0
    %7223 = vmatpush1.xpose.msra.mxu0 0.0
    %7224 = vmatprep.subr.mxu0 0.0
    %7225 = vmatpush1.xpose.msra.mxu0 0.0
    %7226 = vmatprep.subr.mxu0 0.0
    %7227 = vmatpush1.xpose.msra.mxu0 0.0
    %7228 = vmatprep.subr.mxu0 0.0
    %7229 = vmatpush1.xpose.msra.mxu0 0.0
    %7230 = vmatprep.subr.mxu0 0.0
    %7231 = vmatpush1.xpose.msra.mxu0 0.0
    %7232 = vmatprep.subr.mxu0 0.0
    %7233 = vmatpush1.xpose.msra.mxu0 0.0
    %7234 = vmatprep.subr.mxu0 0.0
    %7235 = vmatpush1.xpose.msra.mxu0 0.0
    %7236 = vmatprep.subr.mxu0 0.0
    %7237 = vmatpush1.xpose.msra.mxu0 0.0
    %7238 = vmatprep.subr.mxu0 0.0
    %7239 = vmatpush1.xpose.msra.mxu0 0.0
    %7240 = vmatprep.subr.mxu0 0.0
    %7241 = vmatpush1.xpose.msra.mxu0 0.0
    %7242 = vmatprep.subr.mxu0 0.0
    %7243 = vmatpush1.xpose.msra.mxu0 0.0
    %7244 = vmatprep.subr.mxu0 0.0
    %7245 = vmatpush1.xpose.msra.mxu0 0.0
    %7246 = vmatprep.subr.mxu0 0.0
    %7247 = vmatpush1.xpose.msra.mxu0 0.0
    %7248 = vmatprep.subr.mxu0 0.0
    %7249 = vmatpush1.xpose.msra.mxu0 0.0
    %7250 = vmatprep.subr.mxu0 0.0
    %7251 = vmatpush1.xpose.msra.mxu0 0.0
    %7252 = vmatprep.subr.mxu0 0.0
    %7253 = vmatpush1.xpose.msra.mxu0 0.0
    %7254 = vmatprep.subr.mxu0 0.0
    %7255 = vmatpush1.xpose.msra.mxu0 0.0
    %7256 = vmatprep.subr.mxu0 0.0
    %7257 = vmatpush1.xpose.msra.mxu0 0.0
    %7258 = vmatprep.subr.mxu0 0.0
    %7259 = vmatpush1.xpose.msra.mxu0 0.0
    %7260 = vmatprep.subr.mxu0 0.0
    %7261 = vmatpush1.xpose.msra.mxu0 0.0
    %7262 = vmatprep.mubr.f32.mxu0 0.0
    %7263 = vmatmul.mubr.f32.gmra.mrb[0].mxu0 %v7194
    %v7264 = vpop.f32.mrb[0].mxu0
    %v7265 = vadd.f32 %v6787, %v7264
    %v7266 = vpop.f32.mrb[0].mxu0
    %7267 = vdwg.mxu0
    %v7268 = vsel %vm296, %v7265, -inf
    %7269 = vmax.xlane.f32.xlu0 %v7268
    %v7270 = vpop.xlane.xlu0 %7269
    %v7271 = vsub.f32 %v7265, %v7270
    %v7272 = vmul.f32 %v7271, 1.442695
    %v7273 = vpow.pop %v7272
    %v7274 = vsel %vm296, %v7273, 0.0
    %7275 = vadd.xlane.f32.xlu0 %v7274
    %v7276 = vpop.xlane.xlu0 %7275
    %v7277 = vrcp.pop %v7276
    %v7278 = vmul.f32 %v7273, %v7277
    %7279 = vrot.lane.b32.xlu0 %v6858, 48
    %v7280 = vpop.permute.xlu0 %7279
    %v7283 = vsel %vm296, %v7278, 0
    %7285 = vmatprep.subr.mxu0 0.0
    %7286 = vmatpush1.msra.mxu0 %v7280
    %7287 = vmatprep.subr.mxu0 0.0
    %7288 = vmatpush1.msra.mxu0 0.0
    %7289 = vmatprep.subr.mxu0 0.0
    %7290 = vmatpush1.msra.mxu0 0.0
    %7291 = vmatprep.subr.mxu0 0.0
    %7292 = vmatpush1.msra.mxu0 0.0
    %7293 = vmatprep.subr.mxu0 0.0
    %7294 = vmatpush1.msra.mxu0 0.0
    %7295 = vmatprep.subr.mxu0 0.0
    %7296 = vmatpush1.msra.mxu0 0.0
    %7297 = vmatprep.subr.mxu0 0.0
    %7298 = vmatpush1.msra.mxu0 0.0
    %7299 = vmatprep.subr.mxu0 0.0
    %7300 = vmatpush1.msra.mxu0 0.0
    %7301 = vmatprep.subr.mxu0 0.0
    %7302 = vmatpush1.msra.mxu0 0.0
    %7303 = vmatprep.subr.mxu0 0.0
    %7304 = vmatpush1.msra.mxu0 0.0
    %7305 = vmatprep.subr.mxu0 0.0
    %7306 = vmatpush1.msra.mxu0 0.0
    %7307 = vmatprep.subr.mxu0 0.0
    %7308 = vmatpush1.msra.mxu0 0.0
    %7309 = vmatprep.subr.mxu0 0.0
    %7310 = vmatpush1.msra.mxu0 0.0
    %7311 = vmatprep.subr.mxu0 0.0
    %7312 = vmatpush1.msra.mxu0 0.0
    %7313 = vmatprep.subr.mxu0 0.0
    %7314 = vmatpush1.msra.mxu0 0.0
    %7315 = vmatprep.subr.mxu0 0.0
    %7316 = vmatpush1.msra.mxu0 0.0
    %7317 = vmatprep.subr.mxu0 0.0
    %7318 = vmatpush1.msra.mxu0 0.0
    %7319 = vmatprep.subr.mxu0 0.0
    %7320 = vmatpush1.msra.mxu0 0.0
    %7321 = vmatprep.subr.mxu0 0.0
    %7322 = vmatpush1.msra.mxu0 0.0
    %7323 = vmatprep.subr.mxu0 0.0
    %7324 = vmatpush1.msra.mxu0 0.0
    %7325 = vmatprep.subr.mxu0 0.0
    %7326 = vmatpush1.msra.mxu0 0.0
    %7327 = vmatprep.subr.mxu0 0.0
    %7328 = vmatpush1.msra.mxu0 0.0
    %7329 = vmatprep.subr.mxu0 0.0
    %7330 = vmatpush1.msra.mxu0 0.0
    %7331 = vmatprep.subr.mxu0 0.0
    %7332 = vmatpush1.msra.mxu0 0.0
    %7333 = vmatprep.subr.mxu0 0.0
    %7334 = vmatpush1.msra.mxu0 0.0
    %7335 = vmatprep.subr.mxu0 0.0
    %7336 = vmatpush1.msra.mxu0 0.0
    %7337 = vmatprep.subr.mxu0 0.0
    %7338 = vmatpush1.msra.mxu0 0.0
    %7339 = vmatprep.subr.mxu0 0.0
    %7340 = vmatpush1.msra.mxu0 0.0
    %7341 = vmatprep.subr.mxu0 0.0
    %7342 = vmatpush1.msra.mxu0 0.0
    %7343 = vmatprep.subr.mxu0 0.0
    %7344 = vmatpush1.msra.mxu0 0.0
    %7345 = vmatprep.subr.mxu0 0.0
    %7346 = vmatpush1.msra.mxu0 0.0
    %7347 = vmatprep.subr.mxu0 0.0
    %7348 = vmatpush1.msra.mxu0 0.0
    %7349 = vmatprep.mubr.f32.mxu0 0.0
    %7350 = vmatmul.mubr.f32.gmra.mrb[0].mxu0 %v7283
    %v7351 = vpop.f32.mrb[0].mxu0
    %v7352 = vadd.f32 0.0, %v7351
    %v7353 = vpop.f32.mrb[0].mxu0
    %7354 = vdwg.mxu0
    %7355 = vrot.lane.b32.xlu0 %v6858, 104
    %v7356 = vpop.permute.xlu0 %7355
    %7357 = vrot.lane.b32.xlu0 %v6858, 72
    %v7358 = vpop.permute.xlu0 %7357
    %v7359 = vsel %vm296, %v7356, 0
    %v7361 = vsel %vm296, %v7358, 0
    %7363 = vmatprep.subr.mxu0 0.0
    %7364 = vmatpush1.xpose.msra.mxu0 %v7361
    %7365 = vmatprep.subr.mxu0 0.0
    %7366 = vmatpush1.xpose.msra.mxu0 0.0
    %7367 = vmatprep.subr.mxu0 0.0
    %7368 = vmatpush1.xpose.msra.mxu0 0.0
    %7369 = vmatprep.subr.mxu0 0.0
    %7370 = vmatpush1.xpose.msra.mxu0 0.0
    %7371 = vmatprep.subr.mxu0 0.0
    %7372 = vmatpush1.xpose.msra.mxu0 0.0
    %7373 = vmatprep.subr.mxu0 0.0
    %7374 = vmatpush1.xpose.msra.mxu0 0.0
    %7375 = vmatprep.subr.mxu0 0.0
    %7376 = vmatpush1.xpose.msra.mxu0 0.0
    %7377 = vmatprep.subr.mxu0 0.0
    %7378 = vmatpush1.xpose.msra.mxu0 0.0
    %7379 = vmatprep.subr.mxu0 0.0
    %7380 = vmatpush1.xpose.msra.mxu0 0.0
    %7381 = vmatprep.subr.mxu0 0.0
    %7382 = vmatpush1.xpose.msra.mxu0 0.0
    %7383 = vmatprep.subr.mxu0 0.0
    %7384 = vmatpush1.xpose.msra.mxu0 0.0
    %7385 = vmatprep.subr.mxu0 0.0
    %7386 = vmatpush1.xpose.msra.mxu0 0.0
    %7387 = vmatprep.subr.mxu0 0.0
    %7388 = vmatpush1.xpose.msra.mxu0 0.0
    %7389 = vmatprep.subr.mxu0 0.0
    %7390 = vmatpush1.xpose.msra.mxu0 0.0
    %7391 = vmatprep.subr.mxu0 0.0
    %7392 = vmatpush1.xpose.msra.mxu0 0.0
    %7393 = vmatprep.subr.mxu0 0.0
    %7394 = vmatpush1.xpose.msra.mxu0 0.0
    %7395 = vmatprep.subr.mxu0 0.0
    %7396 = vmatpush1.xpose.msra.mxu0 0.0
    %7397 = vmatprep.subr.mxu0 0.0
    %7398 = vmatpush1.xpose.msra.mxu0 0.0
    %7399 = vmatprep.subr.mxu0 0.0
    %7400 = vmatpush1.xpose.msra.mxu0 0.0
    %7401 = vmatprep.subr.mxu0 0.0
    %7402 = vmatpush1.xpose.msra.mxu0 0.0
    %7403 = vmatprep.subr.mxu0 0.0
    %7404 = vmatpush1.xpose.msra.mxu0 0.0
    %7405 = vmatprep.subr.mxu0 0.0
    %7406 = vmatpush1.xpose.msra.mxu0 0.0
    %7407 = vmatprep.subr.mxu0 0.0
    %7408 = vmatpush1.xpose.msra.mxu0 0.0
    %7409 = vmatprep.subr.mxu0 0.0
    %7410 = vmatpush1.xpose.msra.mxu0 0.0
    %7411 = vmatprep.subr.mxu0 0.0
    %7412 = vmatpush1.xpose.msra.mxu0 0.0
    %7413 = vmatprep.subr.mxu0 0.0
    %7414 = vmatpush1.xpose.msra.mxu0 0.0
    %7415 = vmatprep.subr.mxu0 0.0
    %7416 = vmatpush1.xpose.msra.mxu0 0.0
    %7417 = vmatprep.subr.mxu0 0.0
    %7418 = vmatpush1.xpose.msra.mxu0 0.0
    %7419 = vmatprep.subr.mxu0 0.0
    %7420 = vmatpush1.xpose.msra.mxu0 0.0
    %7421 = vmatprep.subr.mxu0 0.0
    %7422 = vmatpush1.xpose.msra.mxu0 0.0
    %7423 = vmatprep.subr.mxu0 0.0
    %7424 = vmatpush1.xpose.msra.mxu0 0.0
    %7425 = vmatprep.subr.mxu0 0.0
    %7426 = vmatpush1.xpose.msra.mxu0 0.0
    %7427 = vmatprep.mubr.f32.mxu0 0.0
    %7428 = vmatmul.mubr.f32.gmra.mrb[0].mxu0 %v7359
    %v7429 = vpop.f32.mrb[0].mxu0
    %v7430 = vadd.f32 %v6787, %v7429
    %v7431 = vpop.f32.mrb[0].mxu0
    %7432 = vdwg.mxu0
    %v7433 = vsel %vm296, %v7430, -inf
    %7434 = vmax.xlane.f32.xlu0 %v7433
    %v7435 = vpop.xlane.xlu0 %7434
    %v7436 = vsub.f32 %v7430, %v7435
    %v7437 = vmul.f32 %v7436, 1.442695
    %v7438 = vpow.pop %v7437
    %v7439 = vsel %vm296, %v7438, 0.0
    %7440 = vadd.xlane.f32.xlu0 %v7439
    %v7441 = vpop.xlane.xlu0 %7440
    %v7442 = vrcp.pop %v7441
    %v7443 = vmul.f32 %v7438, %v7442
    %7444 = vrot.lane.b32.xlu0 %v6858, 40
    %v7445 = vpop.permute.xlu0 %7444
    %v7448 = vsel %vm296, %v7443, 0
    %7450 = vmatprep.subr.mxu0 0.0
    %7451 = vmatpush1.msra.mxu0 %v7445
    %7452 = vmatprep.subr.mxu0 0.0
    %7453 = vmatpush1.msra.mxu0 0.0
    %7454 = vmatprep.subr.mxu0 0.0
    %7455 = vmatpush1.msra.mxu0 0.0
    %7456 = vmatprep.subr.mxu0 0.0
    %7457 = vmatpush1.msra.mxu0 0.0
    %7458 = vmatprep.subr.mxu0 0.0
    %7459 = vmatpush1.msra.mxu0 0.0
    %7460 = vmatprep.subr.mxu0 0.0
    %7461 = vmatpush1.msra.mxu0 0.0
    %7462 = vmatprep.subr.mxu0 0.0
    %7463 = vmatpush1.msra.mxu0 0.0
    %7464 = vmatprep.subr.mxu0 0.0
    %7465 = vmatpush1.msra.mxu0 0.0
    %7466 = vmatprep.subr.mxu0 0.0
    %7467 = vmatpush1.msra.mxu0 0.0
    %7468 = vmatprep.subr.mxu0 0.0
    %7469 = vmatpush1.msra.mxu0 0.0
    %7470 = vmatprep.subr.mxu0 0.0
    %7471 = vmatpush1.msra.mxu0 0.0
    %7472 = vmatprep.subr.mxu0 0.0
    %7473 = vmatpush1.msra.mxu0 0.0
    %7474 = vmatprep.subr.mxu0 0.0
    %7475 = vmatpush1.msra.mxu0 0.0
    %7476 = vmatprep.subr.mxu0 0.0
    %7477 = vmatpush1.msra.mxu0 0.0
    %7478 = vmatprep.subr.mxu0 0.0
    %7479 = vmatpush1.msra.mxu0 0.0
    %7480 = vmatprep.subr.mxu0 0.0
    %7481 = vmatpush1.msra.mxu0 0.0
    %7482 = vmatprep.subr.mxu0 0.0
    %7483 = vmatpush1.msra.mxu0 0.0
    %7484 = vmatprep.subr.mxu0 0.0
    %7485 = vmatpush1.msra.mxu0 0.0
    %7486 = vmatprep.subr.mxu0 0.0
    %7487 = vmatpush1.msra.mxu0 0.0
    %7488 = vmatprep.subr.mxu0 0.0
    %7489 = vmatpush1.msra.mxu0 0.0
    %7490 = vmatprep.subr.mxu0 0.0
    %7491 = vmatpush1.msra.mxu0 0.0
    %7492 = vmatprep.subr.mxu0 0.0
    %7493 = vmatpush1.msra.mxu0 0.0
    %7494 = vmatprep.subr.mxu0 0.0
    %7495 = vmatpush1.msra.mxu0 0.0
    %7496 = vmatprep.subr.mxu0 0.0
    %7497 = vmatpush1.msra.mxu0 0.0
    %7498 = vmatprep.subr.mxu0 0.0
    %7499 = vmatpush1.msra.mxu0 0.0
    %7500 = vmatprep.subr.mxu0 0.0
    %7501 = vmatpush1.msra.mxu0 0.0
    %7502 = vmatprep.subr.mxu0 0.0
    %7503 = vmatpush1.msra.mxu0 0.0
    %7504 = vmatprep.subr.mxu0 0.0
    %7505 = vmatpush1.msra.mxu0 0.0
    %7506 = vmatprep.subr.mxu0 0.0
    %7507 = vmatpush1.msra.mxu0 0.0
    %7508 = vmatprep.subr.mxu0 0.0
    %7509 = vmatpush1.msra.mxu0 0.0
    %7510 = vmatprep.subr.mxu0 0.0
    %7511 = vmatpush1.msra.mxu0 0.0
    %7512 = vmatprep.subr.mxu0 0.0
    %7513 = vmatpush1.msra.mxu0 0.0
    %7514 = vmatprep.mubr.f32.mxu0 0.0
    %7515 = vmatmul.mubr.f32.gmra.mrb[0].mxu0 %v7448
    %v7516 = vpop.f32.mrb[0].mxu0
    %v7517 = vadd.f32 0.0, %v7516
    %v7518 = vpop.f32.mrb[0].mxu0
    %7519 = vdwg.mxu0
    %7521 = vrot.lane.b32.xlu0 %v7187, 8
    %v7522 = vpop.permute.xlu0 %7521
    %7525 = vrot.lane.b32.xlu0 %v7352, 16
    %v7526 = vpop.permute.xlu0 %7525
    %7529 = vrot.lane.b32.xlu0 %v7517, 24
    %v7530 = vpop.permute.xlu0 %7529
    %v7532 = vsel %vm296, %v7022, %v7522
    %v7533 = vsel %vm966, %v7532, %v7526
    %v7534 = vsel %vm968, %v7533, %v7530
    %v7536 = vsel %vm219, %v7534, 0
    %7538 = vmatprep.subr.mxu0 0.0
    %7539 = vmatpush1.msra.mxu0 %v77
    %7540 = vmatprep.subr.mxu0 0.0
    %7541 = vmatpush1.msra.mxu0 %v78
    %7542 = vmatprep.subr.mxu0 0.0
    %7543 = vmatpush1.msra.mxu0 %v79
    %7544 = vmatprep.subr.mxu0 0.0
    %7545 = vmatpush1.msra.mxu0 %v80
    %7546 = vmatprep.subr.mxu0 0.0
    %7547 = vmatpush1.msra.mxu0 0.0
    %7548 = vmatprep.subr.mxu0 0.0
    %7549 = vmatpush1.msra.mxu0 0.0
    %7550 = vmatprep.subr.mxu0 0.0
    %7551 = vmatpush1.msra.mxu0 0.0
    %7552 = vmatprep.subr.mxu0 0.0
    %7553 = vmatpush1.msra.mxu0 0.0
    %7554 = vmatprep.subr.mxu0 0.0
    %7555 = vmatpush1.msra.mxu0 0.0
    %7556 = vmatprep.subr.mxu0 0.0
    %7557 = vmatpush1.msra.mxu0 0.0
    %7558 = vmatprep.subr.mxu0 0.0
    %7559 = vmatpush1.msra.mxu0 0.0
    %7560 = vmatprep.subr.mxu0 0.0
    %7561 = vmatpush1.msra.mxu0 0.0
    %7562 = vmatprep.subr.mxu0 0.0
    %7563 = vmatpush1.msra.mxu0 0.0
    %7564 = vmatprep.subr.mxu0 0.0
    %7565 = vmatpush1.msra.mxu0 0.0
    %7566 = vmatprep.subr.mxu0 0.0
    %7567 = vmatpush1.msra.mxu0 0.0
    %7568 = vmatprep.subr.mxu0 0.0
    %7569 = vmatpush1.msra.mxu0 0.0
    %7570 = vmatprep.subr.mxu0 0.0
    %7571 = vmatpush1.msra.mxu0 0.0
    %7572 = vmatprep.subr.mxu0 0.0
    %7573 = vmatpush1.msra.mxu0 0.0
    %7574 = vmatprep.subr.mxu0 0.0
    %7575 = vmatpush1.msra.mxu0 0.0
    %7576 = vmatprep.subr.mxu0 0.0
    %7577 = vmatpush1.msra.mxu0 0.0
    %7578 = vmatprep.subr.mxu0 0.0
    %7579 = vmatpush1.msra.mxu0 0.0
    %7580 = vmatprep.subr.mxu0 0.0
    %7581 = vmatpush1.msra.mxu0 0.0
    %7582 = vmatprep.subr.mxu0 0.0
    %7583 = vmatpush1.msra.mxu0 0.0
    %7584 = vmatprep.subr.mxu0 0.0
    %7585 = vmatpush1.msra.mxu0 0.0
    %7586 = vmatprep.subr.mxu0 0.0
    %7587 = vmatpush1.msra.mxu0 0.0
    %7588 = vmatprep.subr.mxu0 0.0
    %7589 = vmatpush1.msra.mxu0 0.0
    %7590 = vmatprep.subr.mxu0 0.0
    %7591 = vmatpush1.msra.mxu0 0.0
    %7592 = vmatprep.subr.mxu0 0.0
    %7593 = vmatpush1.msra.mxu0 0.0
    %7594 = vmatprep.subr.mxu0 0.0
    %7595 = vmatpush1.msra.mxu0 0.0
    %7596 = vmatprep.subr.mxu0 0.0
    %7597 = vmatpush1.msra.mxu0 0.0
    %7598 = vmatprep.subr.mxu0 0.0
    %7599 = vmatpush1.msra.mxu0 0.0
    %7600 = vmatprep.subr.mxu0 0.0
    %7601 = vmatpush1.msra.mxu0 0.0
    %7602 = vmatprep.mubr.f32.mxu0 0.0
    %7603 = vmatmul.mubr.f32.gmra.mrb[0].mxu0 %v7536
    %v7604 = vpop.f32.mrb[0].mxu0
    %v7605 = vadd.f32 %v973, %v7604
    %v7606 = vpop.f32.mrb[0].mxu0
    %7607 = vdwg.mxu0
    %v7608 = vadd.f32 %v6785, %v7605
    %v7609 = vsel %vm219, %v7608, 0.0
    %7610 = vadd.xlane.f32.xlu0 %v7609
    %v7611 = vpop.xlane.xlu0 %7610
    %v7612 = vmul.f32 %v7611, %v1051
    %v7613 = vmul.f32 %v7608, %v7608
    %v7614 = vsel %vm219, %v7613, 0.0
    %7615 = vadd.xlane.f32.xlu0 %v7614
    %v7616 = vpop.xlane.xlu0 %7615
    %v7617 = vmul.f32 %v7616, %v1051
    %v7618 = vmul.f32 %v7612, %v7612
    %v7619 = vsub.f32 %v7617, %v7618
    %v7620 = vsub.f32 %v7608, %v7612
    %v7621 = vadd.f32 %v7619, 1e-05
    %v7622 = vrsqrt.pop %v7621
    %v7623 = vmul.f32 %v7620, %v7622
    %v7624 = vmul.f32 %v7623, %v1067
    %v7625 = vadd.f32 %v7624, %v1072
    %v7627 = vsel %vm219, %v7625, 0
    %7629 = vmatprep.subr.mxu0 0.0
    %7630 = vmatpush1.msra.mxu0 %v81
    %7631 = vmatprep.subr.mxu0 0.0
    %7632 = vmatpush1.msra.mxu0 %v82
    %7633 = vmatprep.subr.mxu0 0.0
    %7634 = vmatpush1.msra.mxu0 %v83
    %7635 = vmatprep.subr.mxu0 0.0
    %7636 = vmatpush1.msra.mxu0 %v84
    %7637 = vmatprep.subr.mxu0 0.0
    %7638 = vmatpush1.msra.mxu0 0.0
    %7639 = vmatprep.subr.mxu0 0.0
    %7640 = vmatpush1.msra.mxu0 0.0
    %7641 = vmatprep.subr.mxu0 0.0
    %7642 = vmatpush1.msra.mxu0 0.0
    %7643 = vmatprep.subr.mxu0 0.0
    %7644 = vmatpush1.msra.mxu0 0.0
    %7645 = vmatprep.subr.mxu0 0.0
    %7646 = vmatpush1.msra.mxu0 0.0
    %7647 = vmatprep.subr.mxu0 0.0
    %7648 = vmatpush1.msra.mxu0 0.0
    %7649 = vmatprep.subr.mxu0 0.0
    %7650 = vmatpush1.msra.mxu0 0.0
    %7651 = vmatprep.subr.mxu0 0.0
    %7652 = vmatpush1.msra.mxu0 0.0
    %7653 = vmatprep.subr.mxu0 0.0
    %7654 = vmatpush1.msra.mxu0 0.0
    %7655 = vmatprep.subr.mxu0 0.0
    %7656 = vmatpush1.msra.mxu0 0.0
    %7657 = vmatprep.subr.mxu0 0.0
    %7658 = vmatpush1.msra.mxu0 0.0
    %7659 = vmatprep.subr.mxu0 0.0
    %7660 = vmatpush1.msra.mxu0 0.0
    %7661 = vmatprep.subr.mxu0 0.0
    %7662 = vmatpush1.msra.mxu0 0.0
    %7663 = vmatprep.subr.mxu0 0.0
    %7664 = vmatpush1.msra.mxu0 0.0
    %7665 = vmatprep.subr.mxu0 0.0
    %7666 = vmatpush1.msra.mxu0 0.0
    %7667 = vmatprep.subr.mxu0 0.0
    %7668 = vmatpush1.msra.mxu0 0.0
    %7669 = vmatprep.subr.mxu0 0.0
    %7670 = vmatpush1.msra.mxu0 0.0
    %7671 = vmatprep.subr.mxu0 0.0
    %7672 = vmatpush1.msra.mxu0 0.0
    %7673 = vmatprep.subr.mxu0 0.0
    %7674 = vmatpush1.msra.mxu0 0.0
    %7675 = vmatprep.subr.mxu0 0.0
    %7676 = vmatpush1.msra.mxu0 0.0
    %7677 = vmatprep.subr.mxu0 0.0
    %7678 = vmatpush1.msra.mxu0 0.0
    %7679 = vmatprep.subr.mxu0 0.0
    %7680 = vmatpush1.msra.mxu0 0.0
    %7681 = vmatprep.subr.mxu0 0.0
    %7682 = vmatpush1.msra.mxu0 0.0
    %7683 = vmatprep.subr.mxu0 0.0
    %7684 = vmatpush1.msra.mxu0 0.0
    %7685 = vmatprep.subr.mxu0 0.0
    %7686 = vmatpush1.msra.mxu0 0.0
    %7687 = vmatprep.subr.mxu0 0.0
    %7688 = vmatpush1.msra.mxu0 0.0
    %7689 = vmatprep.subr.mxu0 0.0
    %7690 = vmatpush1.msra.mxu0 0.0
    %7691 = vmatprep.subr.mxu0 0.0
    %7692 = vmatpush1.msra.mxu0 0.0
    %7693 = vmatprep.mubr.f32.mxu0 0.0
    %7694 = vmatmul.mubr.f32.gmra.mrb[0].mxu0 %v7627
    %v7695 = vpop.f32.mrb[0].mxu0
    %v7696 = vadd.f32 %v1077, %v7695
    %v7697 = vpop.f32.mrb[0].mxu0
    %7698 = vdwg.mxu0
    %v7699 = vmax.f32 %v7696, 0.0
    %v7701 = vsel %vm1156, %v7699, 0
    %7703 = vmatprep.subr.mxu0 0.0
    %7704 = vmatpush1.msra.mxu0 %v85
    %7705 = vmatprep.subr.mxu0 0.0
    %7706 = vmatpush1.msra.mxu0 %v86
    %7707 = vmatprep.subr.mxu0 0.0
    %7708 = vmatpush1.msra.mxu0 %v87
    %7709 = vmatprep.subr.mxu0 0.0
    %7710 = vmatpush1.msra.mxu0 %v88
    %7711 = vmatprep.subr.mxu0 0.0
    %7712 = vmatpush1.msra.mxu0 %v89
    %7713 = vmatprep.subr.mxu0 0.0
    %7714 = vmatpush1.msra.mxu0 %v90
    %7715 = vmatprep.subr.mxu0 0.0
    %7716 = vmatpush1.msra.mxu0 %v91
    %7717 = vmatprep.subr.mxu0 0.0
    %7718 = vmatpush1.msra.mxu0 %v92
    %7719 = vmatprep.subr.mxu0 0.0
    %7720 = vmatpush1.msra.mxu0 0.0
    %7721 = vmatprep.subr.mxu0 0.0
    %7722 = vmatpush1.msra.mxu0 0.0
    %7723 = vmatprep.subr.mxu0 0.0
    %7724 = vmatpush1.msra.mxu0 0.0
    %7725 = vmatprep.subr.mxu0 0.0
    %7726 = vmatpush1.msra.mxu0 0.0
    %7727 = vmatprep.subr.mxu0 0.0
    %7728 = vmatpush1.msra.mxu0 0.0
    %7729 = vmatprep.subr.mxu0 0.0
    %7730 = vmatpush1.msra.mxu0 0.0
    %7731 = vmatprep.subr.mxu0 0.0
    %7732 = vmatpush1.msra.mxu0 0.0
    %7733 = vmatprep.subr.mxu0 0.0
    %7734 = vmatpush1.msra.mxu0 0.0
    %7735 = vmatprep.subr.mxu0 0.0
    %7736 = vmatpush1.msra.mxu0 0.0
    %7737 = vmatprep.subr.mxu0 0.0
    %7738 = vmatpush1.msra.mxu0 0.0
    %7739 = vmatprep.subr.mxu0 0.0
    %7740 = vmatpush1.msra.mxu0 0.0
    %7741 = vmatprep.subr.mxu0 0.0
    %7742 = vmatpush1.msra.mxu0 0.0
    %7743 = vmatprep.subr.mxu0 0.0
    %7744 = vmatpush1.msra.mxu0 0.0
    %7745 = vmatprep.subr.mxu0 0.0
    %7746 = vmatpush1.msra.mxu0 0.0
    %7747 = vmatprep.subr.mxu0 0.0
    %7748 = vmatpush1.msra.mxu0 0.0
    %7749 = vmatprep.subr.mxu0 0.0
    %7750 = vmatpush1.msra.mxu0 0.0
    %7751 = vmatprep.subr.mxu0 0.0
    %7752 = vmatpush1.msra.mxu0 0.0
    %7753 = vmatprep.subr.mxu0 0.0
    %7754 = vmatpush1.msra.mxu0 0.0
    %7755 = vmatprep.subr.mxu0 0.0
    %7756 = vmatpush1.msra.mxu0 0.0
    %7757 = vmatprep.subr.mxu0 0.0
    %7758 = vmatpush1.msra.mxu0 0.0
    %7759 = vmatprep.subr.mxu0 0.0
    %7760 = vmatpush1.msra.mxu0 0.0
    %7761 = vmatprep.subr.mxu0 0.0
    %7762 = vmatpush1.msra.mxu0 0.0
    %7763 = vmatprep.subr.mxu0 0.0
    %7764 = vmatpush1.msra.mxu0 0.0
    %7765 = vmatprep.subr.mxu0 0.0
    %7766 = vmatpush1.msra.mxu0 0.0
    %7767 = vmatprep.mubr.f32.mxu0 0.0
    %7768 = vmatmul.mubr.f32.gmra.mrb[0].mxu0 %v7701
    %v7769 = vpop.f32.mrb[0].mxu0
    %v7770 = vadd.f32 %v1155, %v7769
    %v7771 = vpop.f32.mrb[0].mxu0
    %7772 = vdwg.mxu0
    %v7773 = vadd.f32 %v7625, %v7770
    %v7774 = vsel %vm219, %v7773, 0.0
    %7775 = vadd.xlane.f32.xlu0 %v7774
    %v7776 = vpop.xlane.xlu0 %7775
    %v7777 = vmul.f32 %v7776, %v1051
    %v7778 = vmul.f32 %v7773, %v7773
    %v7779 = vsel %vm219, %v7778, 0.0
    %7780 = vadd.xlane.f32.xlu0 %v7779
    %v7781 = vpop.xlane.xlu0 %7780
    %v7782 = vmul.f32 %v7781, %v1051
    %v7783 = vmul.f32 %v7777, %v7777
    %v7784 = vsub.f32 %v7782, %v7783
    %v7785 = vsub.f32 %v7773, %v7777
    %v7786 = vadd.f32 %v7784, 1e-05
    %v7787 = vrsqrt.pop %v7786
    %v7788 = vmul.f32 %v7785, %v7787
    %v7789 = vmul.f32 %v7788, %v1249
    %v7790 = vadd.f32 %v7789, %v1254
    %v7792 = vsel %vm219, %v7790, 0
    %7794 = vmatprep.subr.mxu0 0.0
    %7795 = vmatpush1.msra.mxu0 %v102
    %7796 = vmatprep.subr.mxu0 0.0
    %7797 = vmatpush1.msra.mxu0 %v103
    %7798 = vmatprep.subr.mxu0 0.0
    %7799 = vmatpush1.msra.mxu0 %v104
    %7800 = vmatprep.subr.mxu0 0.0
    %7801 = vmatpush1.msra.mxu0 %v105
    %7802 = vmatprep.subr.mxu0 0.0
    %7803 = vmatpush1.msra.mxu0 0.0
    %7804 = vmatprep.subr.mxu0 0.0
    %7805 = vmatpush1.msra.mxu0 0.0
    %7806 = vmatprep.subr.mxu0 0.0
    %7807 = vmatpush1.msra.mxu0 0.0
    %7808 = vmatprep.subr.mxu0 0.0
    %7809 = vmatpush1.msra.mxu0 0.0
    %7810 = vmatprep.subr.mxu0 0.0
    %7811 = vmatpush1.msra.mxu0 0.0
    %7812 = vmatprep.subr.mxu0 0.0
    %7813 = vmatpush1.msra.mxu0 0.0
    %7814 = vmatprep.subr.mxu0 0.0
    %7815 = vmatpush1.msra.mxu0 0.0
    %7816 = vmatprep.subr.mxu0 0.0
    %7817 = vmatpush1.msra.mxu0 0.0
    %7818 = vmatprep.subr.mxu0 0.0
    %7819 = vmatpush1.msra.mxu0 0.0
    %7820 = vmatprep.subr.mxu0 0.0
    %7821 = vmatpush1.msra.mxu0 0.0
    %7822 = vmatprep.subr.mxu0 0.0
    %7823 = vmatpush1.msra.mxu0 0.0
    %7824 = vmatprep.subr.mxu0 0.0
    %7825 = vmatpush1.msra.mxu0 0.0
    %7826 = vmatprep.subr.mxu0 0.0
    %7827 = vmatpush1.msra.mxu0 0.0
    %7828 = vmatprep.subr.mxu0 0.0
    %7829 = vmatpush1.msra.mxu0 0.0
    %7830 = vmatprep.subr.mxu0 0.0
    %7831 = vmatpush1.msra.mxu0 0.0
    %7832 = vmatprep.subr.mxu0 0.0
    %7833 = vmatpush1.msra.mxu0 0.0
    %7834 = vmatprep.subr.mxu0 0.0
    %7835 = vmatpush1.msra.mxu0 0.0
    %7836 = vmatprep.subr.mxu0 0.0
    %7837 = vmatpush1.msra.mxu0 0.0
    %7838 = vmatprep.subr.mxu0 0.0
    %7839 = vmatpush1.msra.mxu0 0.0
    %7840 = vmatprep.subr.mxu0 0.0
    %7841 = vmatpush1.msra.mxu0 0.0
    %7842 = vmatprep.subr.mxu0 0.0
    %7843 = vmatpush1.msra.mxu0 0.0
    %7844 = vmatprep.subr.mxu0 0.0
    %7845 = vmatpush1.msra.mxu0 0.0
    %7846 = vmatprep.subr.mxu0 0.0
    %7847 = vmatpush1.msra.mxu0 0.0
    %7848 = vmatprep.subr.mxu0 0.0
    %7849 = vmatpush1.msra.mxu0 0.0
    %7850 = vmatprep.subr.mxu0 0.0
    %7851 = vmatpush1.msra.mxu0 0.0
    %7852 = vmatprep.subr.mxu0 0.0
    %7853 = vmatpush1.msra.mxu0 0.0
    %7854 = vmatprep.subr.mxu0 0.0
    %7855 = vmatpush1.msra.mxu0 0.0
    %7856 = vmatprep.subr.mxu0 0.0
    %7857 = vmatpush1.msra.mxu0 0.0
    %7858 = vmatprep.mubr.f32.mxu0 0.0
    %7859 = vmatmul.mubr.f32.gmra.mrb[0].mxu0 %v7792
    %v7860 = vpop.f32.mrb[0].mxu0
    %v7861 = vadd.f32 %v1259, %v7860
    %v7862 = vpop.f32.mrb[0].mxu0
    %7863 = vdwg.mxu0
    %7865 = vrot.lane.b32.xlu0 %v7861, 96
    %v7866 = vpop.permute.xlu0 %7865
    %v7867 = vsel %vm296, %v7861, 0
    %v7869 = vsel %vm296, %v7866, 0
    %7871 = vmatprep.subr.mxu0 0.0
    %7872 = vmatpush1.xpose.msra.mxu0 %v7869
    %7873 = vmatprep.subr.mxu0 0.0
    %7874 = vmatpush1.xpose.msra.mxu0 0.0
    %7875 = vmatprep.subr.mxu0 0.0
    %7876 = vmatpush1.xpose.msra.mxu0 0.0
    %7877 = vmatprep.subr.mxu0 0.0
    %7878 = vmatpush1.xpose.msra.mxu0 0.0
    %7879 = vmatprep.subr.mxu0 0.0
    %7880 = vmatpush1.xpose.msra.mxu0 0.0
    %7881 = vmatprep.subr.mxu0 0.0
    %7882 = vmatpush1.xpose.msra.mxu0 0.0
    %7883 = vmatprep.subr.mxu0 0.0
    %7884 = vmatpush1.xpose.msra.mxu0 0.0
    %7885 = vmatprep.subr.mxu0 0.0
    %7886 = vmatpush1.xpose.msra.mxu0 0.0
    %7887 = vmatprep.subr.mxu0 0.0
    %7888 = vmatpush1.xpose.msra.mxu0 0.0
    %7889 = vmatprep.subr.mxu0 0.0
    %7890 = vmatpush1.xpose.msra.mxu0 0.0
    %7891 = vmatprep.subr.mxu0 0.0
    %7892 = vmatpush1.xpose.msra.mxu0 0.0
    %7893 = vmatprep.subr.mxu0 0.0
    %7894 = vmatpush1.xpose.msra.mxu0 0.0
    %7895 = vmatprep.subr.mxu0 0.0
    %7896 = vmatpush1.xpose.msra.mxu0 0.0
    %7897 = vmatprep.subr.mxu0 0.0
    %7898 = vmatpush1.xpose.msra.mxu0 0.0
    %7899 = vmatprep.subr.mxu0 0.0
    %7900 = vmatpush1.xpose.msra.mxu0 0.0
    %7901 = vmatprep.subr.mxu0 0.0
    %7902 = vmatpush1.xpose.msra.mxu0 0.0
    %7903 = vmatprep.subr.mxu0 0.0
    %7904 = vmatpush1.xpose.msra.mxu0 0.0
    %7905 = vmatprep.subr.mxu0 0.0
    %7906 = vmatpush1.xpose.msra.mxu0 0.0
    %7907 = vmatprep.subr.mxu0 0.0
    %7908 = vmatpush1.xpose.msra.mxu0 0.0
    %7909 = vmatprep.subr.mxu0 0.0
    %7910 = vmatpush1.xpose.msra.mxu0 0.0
    %7911 = vmatprep.subr.mxu0 0.0
    %7912 = vmatpush1.xpose.msra.mxu0 0.0
    %7913 = vmatprep.subr.mxu0 0.0
    %7914 = vmatpush1.xpose.msra.mxu0 0.0
    %7915 = vmatprep.subr.mxu0 0.0
    %7916 = vmatpush1.xpose.msra.mxu0 0.0
    %7917 = vmatprep.subr.mxu0 0.0
    %7918 = vmatpush1.xpose.msra.mxu0 0.0
    %7919 = vmatprep.subr.mxu0 0.0
    %7920 = vmatpush1.xpose.msra.mxu0 0.0
    %7921 = vmatprep.subr.mxu0 0.0
    %7922 = vmatpush1.xpose.msra.mxu0 0.0
    %7923 = vmatprep.subr.mxu0 0.0
    %7924 = vmatpush1.xpose.msra.mxu0 0.0
    %7925 = vmatprep.subr.mxu0 0.0
    %7926 = vmatpush1.xpose.msra.mxu0 0.0
    %7927 = vmatprep.subr.mxu0 0.0
    %7928 = vmatpush1.xpose.msra.mxu0 0.0
    %7929 = vmatprep.subr.mxu0 0.0
    %7930 = vmatpush1.xpose.msra.mxu0 0.0
    %7931 = vmatprep.subr.mxu0 0.0
    %7932 = vmatpush1.xpose.msra.mxu0 0.0
    %7933 = vmatprep.subr.mxu0 0.0
    %7934 = vmatpush1.xpose.msra.mxu0 0.0
    %7935 = vmatprep.mubr.f32.mxu0 0.0
    %7936 = vmatmul.mubr.f32.gmra.mrb[0].mxu0 %v7867
    %v7937 = vpop.f32.mrb[0].mxu0
    %v7938 = vadd.f32 %v6787, %v7937
    %v7939 = vpop.f32.mrb[0].mxu0
    %7940 = vdwg.mxu0
    %v7941 = vsel %vm296, %v7938, -inf
    %7942 = vmax.xlane.f32.xlu0 %v7941
    %v7943 = vpop.xlane.xlu0 %7942
    %v7944 = vsub.f32 %v7938, %v7943
    %v7945 = vmul.f32 %v7944, 1.442695
    %v7946 = vpow.pop %v7945
    %v7947 = vsel %vm296, %v7946, 0.0
    %7948 = vadd.xlane.f32.xlu0 %v7947
    %v7949 = vpop.xlane.xlu0 %7948
    %v7950 = vrcp.pop %v7949
    %v7951 = vmul.f32 %v7946, %v7950
    %7952 = vrot.lane.b32.xlu0 %v7861, 64
    %v7953 = vpop.permute.xlu0 %7952
    %v7956 = vsel %vm296, %v7951, 0
    %7958 = vmatprep.subr.mxu0 0.0
    %7959 = vmatpush1.msra.mxu0 %v7953
    %7960 = vmatprep.subr.mxu0 0.0
    %7961 = vmatpush1.msra.mxu0 0.0
    %7962 = vmatprep.subr.mxu0 0.0
    %7963 = vmatpush1.msra.mxu0 0.0
    %7964 = vmatprep.subr.mxu0 0.0
    %7965 = vmatpush1.msra.mxu0 0.0
    %7966 = vmatprep.subr.mxu0 0.0
    %7967 = vmatpush1.msra.mxu0 0.0
    %7968 = vmatprep.subr.mxu0 0.0
    %7969 = vmatpush1.msra.mxu0 0.0
    %7970 = vmatprep.subr.mxu0 0.0
    %7971 = vmatpush1.msra.mxu0 0.0
    %7972 = vmatprep.subr.mxu0 0.0
    %7973 = vmatpush1.msra.mxu0 0.0
    %7974 = vmatprep.subr.mxu0 0.0
    %7975 = vmatpush1.msra.mxu0 0.0
    %7976 = vmatprep.subr.mxu0 0.0
    %7977 = vmatpush1.msra.mxu0 0.0
    %7978 = vmatprep.subr.mxu0 0.0
    %7979 = vmatpush1.msra.mxu0 0.0
    %7980 = vmatprep.subr.mxu0 0.0
    %7981 = vmatpush1.msra.mxu0 0.0
    %7982 = vmatprep.subr.mxu0 0.0
    %7983 = vmatpush1.msra.mxu0 0.0
    %7984 = vmatprep.subr.mxu0 0.0
    %7985 = vmatpush1.msra.mxu0 0.0
    %7986 = vmatprep.subr.mxu0 0.0
    %7987 = vmatpush1.msra.mxu0 0.0
    %7988 = vmatprep.subr.mxu0 0.0
    %7989 = vmatpush1.msra.mxu0 0.0
    %7990 = vmatprep.subr.mxu0 0.0
    %7991 = vmatpush1.msra.mxu0 0.0
    %7992 = vmatprep.subr.mxu0 0.0
    %7993 = vmatpush1.msra.mxu0 0.0
    %7994 = vmatprep.subr.mxu0 0.0
    %7995 = vmatpush1.msra.mxu0 0.0
    %7996 = vmatprep.subr.mxu0 0.0
    %7997 = vmatpush1.msra.mxu0 0.0
    %7998 = vmatprep.subr.mxu0 0.0
    %7999 = vmatpush1.msra.mxu0 0.0
    %8000 = vmatprep.subr.mxu0 0.0
    %8001 = vmatpush1.msra.mxu0 0.0
    %8002 = vmatprep.subr.mxu0 0.0
    %8003 = vmatpush1.msra.mxu0 0.0
    %8004 = vmatprep.subr.mxu0 0.0
    %8005 = vmatpush1.msra.mxu0 0.0
    %8006 = vmatprep.subr.mxu0 0.0
    %8007 = vmatpush1.msra.mxu0 0.0
    %8008 = vmatprep.subr.mxu0 0.0
    %8009 = vmatpush1.msra.mxu0 0.0
    %8010 = vmatprep.subr.mxu0 0.0
    %8011 = vmatpush1.msra.mxu0 0.0
    %8012 = vmatprep.subr.mxu0 0.0
    %8013 = vmatpush1.msra.mxu0 0.0
    %8014 = vmatprep.subr.mxu0 0.0
    %8015 = vmatpush1.msra.mxu0 0.0
    %8016 = vmatprep.subr.mxu0 0.0
    %8017 = vmatpush1.msra.mxu0 0.0
    %8018 = vmatprep.subr.mxu0 0.0
    %8019 = vmatpush1.msra.mxu0 0.0
    %8020 = vmatprep.subr.mxu0 0.0
    %8021 = vmatpush1.msra.mxu0 0.0
    %8022 = vmatprep.mubr.f32.mxu0 0.0
    %8023 = vmatmul.mubr.f32.gmra.mrb[0].mxu0 %v7956
    %v8024 = vpop.f32.mrb[0].mxu0
    %v8025 = vadd.f32 0.0, %v8024
    %v8026 = vpop.f32.mrb[0].mxu0
    %8027 = vdwg.mxu0
    %8028 = vrot.lane.b32.xlu0 %v7861, 120
    %v8029 = vpop.permute.xlu0 %8028
    %8030 = vrot.lane.b32.xlu0 %v7861, 88
    %v8031 = vpop.permute.xlu0 %8030
    %v8032 = vsel %vm296, %v8029, 0
    %v8034 = vsel %vm296, %v8031, 0
    %8036 = vmatprep.subr.mxu0 0.0
    %8037 = vmatpush1.xpose.msra.mxu0 %v8034
    %8038 = vmatprep.subr.mxu0 0.0
    %8039 = vmatpush1.xpose.msra.mxu0 0.0
    %8040 = vmatprep.subr.mxu0 0.0
    %8041 = vmatpush1.xpose.msra.mxu0 0.0
    %8042 = vmatprep.subr.mxu0 0.0
    %8043 = vmatpush1.xpose.msra.mxu0 0.0
    %8044 = vmatprep.subr.mxu0 0.0
    %8045 = vmatpush1.xpose.msra.mxu0 0.0
    %8046 = vmatprep.subr.mxu0 0.0
    %8047 = vmatpush1.xpose.msra.mxu0 0.0
    %8048 = vmatprep.subr.mxu0 0.0
    %8049 = vmatpush1.xpose.msra.mxu0 0.0
    %8050 = vmatprep.subr.mxu0 0.0
    %8051 = vmatpush1.xpose.msra.mxu0 0.0
    %8052 = vmatprep.subr.mxu0 0.0
    %8053 = vmatpush1.xpose.msra.mxu0 0.0
    %8054 = vmatprep.subr.mxu0 0.0
    %8055 = vmatpush1.xpose.msra.mxu0 0.0
    %8056 = vmatprep.subr.mxu0 0.0
    %8057 = vmatpush1.xpose.msra.mxu0 0.0
    %8058 = vmatprep.subr.mxu0 0.0
    %8059 = vmatpush1.xpose.msra.mxu0 0.0
    %8060 = vmatprep.subr.mxu0 0.0
    %8061 = vmatpush1.xpose.msra.mxu0 0.0
    %8062 = vmatprep.subr.mxu0 0.0
    %8063 = vmatpush1.xpose.msra.mxu0 0.0
    %8064 = vmatprep.subr.mxu0 0.0
    %8065 = vmatpush1.xpose.msra.mxu0 0.0
    %8066 = vmatprep.subr.mxu0 0.0
    %8067 = vmatpush1.xpose.msra.mxu0 0.0
    %8068 = vmatprep.subr.mxu0 0.0
    %8069 = vmatpush1.xpose.msra.mxu0 0.0
    %8070 = vmatprep.subr.mxu0 0.0
    %8071 = vmatpush1.xpose.msra.mxu0 0.0
    %8072 = vmatprep.subr.mxu0 0.0
    %8073 = vmatpush1.xpose.msra.mxu0 0.0
    %8074 = vmatprep.subr.mxu0 0.0
    %8075 = vmatpush1.xpose.msra.mxu0 0.0
    %8076 = vmatprep.subr.mxu0 0.0
    %8077 = vmatpush1.xpose.msra.mxu0 0.0
    %8078 = vmatprep.subr.mxu0 0.0
    %8079 = vmatpush1.xpose.msra.mxu0 0.0
    %8080 = vmatprep.subr.mxu0 0.0
    %8081 = vmatpush1.xpose.msra.mxu0 0.0
    %8082 = vmatprep.subr.mxu0 0.0
    %8083 = vmatpush1.xpose.msra.mxu0 0.0
    %8084 = vmatprep.subr.mxu0 0.0
    %8085 = vmatpush1.xpose.msra.mxu0 0.0
    %8086 = vmatprep.subr.mxu0 0.0
    %8087 = vmatpush1.xpose.msra.mxu0 0.0
    %8088 = vmatprep.subr.mxu0 0.0
    %8089 = vmatpush1.xpose.msra.mxu0 0.0
    %8090 = vmatprep.subr.mxu0 0.0
    %8091 = vmatpush1.xpose.msra.mxu0 0.0
    %8092 = vmatprep.subr.mxu0 0.0
    %8093 = vmatpush1.xpose.msra.mxu0 0.0
    %8094 = vmatprep.subr.mxu0 0.0
    %8095 = vmatpush1.xpose.msra.mxu0 0.0
    %8096 = vmatprep.subr.mxu0 0.0
    %8097 = vmatpush1.xpose.msra.mxu0 0.0
    %8098 = vmatprep.subr.mxu0 0.0
    %8099 = vmatpush1.xpose.msra.mxu0 0.0
    %8100 = vmatprep.mubr.f32.mxu0 0.0
    %8101 = vmatmul.mubr.f32.gmra.mrb[0].mxu0 %v8032
    %v8102 = vpop.f32.mrb[0].mxu0
    %v8103 = vadd.f32 %v6787, %v8102
    %v8104 = vpop.f32.mrb[0].mxu0
    %8105 = vdwg.mxu0
    %v8106 = vsel %vm296, %v8103, -inf
    %8107 = vmax.xlane.f32.xlu0 %v8106
    %v8108 = vpop.xlane.xlu0 %8107
    %v8109 = vsub.f32 %v8103, %v8108
    %v8110 = vmul.f32 %v8109, 1.442695
    %v8111 = vpow.pop %v8110
    %v8112 = vsel %vm296, %v8111, 0.0
    %8113 = vadd.xlane.f32.xlu0 %v8112
    %v8114 = vpop.xlane.xlu0 %8113
    %v8115 = vrcp.pop %v8114
    %v8116 = vmul.f32 %v8111, %v8115
    %8117 = vrot.lane.b32.xlu0 %v7861, 56
    %v8118 = vpop.permute.xlu0 %8117
    %v8121 = vsel %vm296, %v8116, 0
    %8123 = vmatprep.subr.mxu0 0.0
    %8124 = vmatpush1.msra.mxu0 %v8118
    %8125 = vmatprep.subr.mxu0 0.0
    %8126 = vmatpush1.msra.mxu0 0.0
    %8127 = vmatprep.subr.mxu0 0.0
    %8128 = vmatpush1.msra.mxu0 0.0
    %8129 = vmatprep.subr.mxu0 0.0
    %8130 = vmatpush1.msra.mxu0 0.0
    %8131 = vmatprep.subr.mxu0 0.0
    %8132 = vmatpush1.msra.mxu0 0.0
    %8133 = vmatprep.subr.mxu0 0.0
    %8134 = vmatpush1.msra.mxu0 0.0
    %8135 = vmatprep.subr.mxu0 0.0
    %8136 = vmatpush1.msra.mxu0 0.0
    %8137 = vmatprep.subr.mxu0 0.0
    %8138 = vmatpush1.msra.mxu0 0.0
    %8139 = vmatprep.subr.mxu0 0.0
    %8140 = vmatpush1.msra.mxu0 0.0
    %8141 = vmatprep.subr.mxu0 0.0
    %8142 = vmatpush1.msra.mxu0 0.0
    %8143 = vmatprep.subr.mxu0 0.0
    %8144 = vmatpush1.msra.mxu0 0.0
    %8145 = vmatprep.subr.mxu0 0.0
    %8146 = vmatpush1.msra.mxu0 0.0
    %8147 = vmatprep.subr.mxu0 0.0
    %8148 = vmatpush1.msra.mxu0 0.0
    %8149 = vmatprep.subr.mxu0 0.0
    %8150 = vmatpush1.msra.mxu0 0.0
    %8151 = vmatprep.subr.mxu0 0.0
    %8152 = vmatpush1.msra.mxu0 0.0
    %8153 = vmatprep.subr.mxu0 0.0
    %8154 = vmatpush1.msra.mxu0 0.0
    %8155 = vmatprep.subr.mxu0 0.0
    %8156 = vmatpush1.msra.mxu0 0.0
    %8157 = vmatprep.subr.mxu0 0.0
    %8158 = vmatpush1.msra.mxu0 0.0
    %8159 = vmatprep.subr.mxu0 0.0
    %8160 = vmatpush1.msra.mxu0 0.0
    %8161 = vmatprep.subr.mxu0 0.0
    %8162 = vmatpush1.msra.mxu0 0.0
    %8163 = vmatprep.subr.mxu0 0.0
    %8164 = vmatpush1.msra.mxu0 0.0
    %8165 = vmatprep.subr.mxu0 0.0
    %8166 = vmatpush1.msra.mxu0 0.0
    %8167 = vmatprep.subr.mxu0 0.0
    %8168 = vmatpush1.msra.mxu0 0.0
    %8169 = vmatprep.subr.mxu0 0.0
    %8170 = vmatpush1.msra.mxu0 0.0
    %8171 = vmatprep.subr.mxu0 0.0
    %8172 = vmatpush1.msra.mxu0 0.0
    %8173 = vmatprep.subr.mxu0 0.0
    %8174 = vmatpush1.msra.mxu0 0.0
    %8175 = vmatprep.subr.mxu0 0.0
    %8176 = vmatpush1.msra.mxu0 0.0
    %8177 = vmatprep.subr.mxu0 0.0
    %8178 = vmatpush1.msra.mxu0 0.0
    %8179 = vmatprep.subr.mxu0 0.0
    %8180 = vmatpush1.msra.mxu0 0.0
    %8181 = vmatprep.subr.mxu0 0.0
    %8182 = vmatpush1.msra.mxu0 0.0
    %8183 = vmatprep.subr.mxu0 0.0
    %8184 = vmatpush1.msra.mxu0 0.0
    %8185 = vmatprep.subr.mxu0 0.0
    %8186 = vmatpush1.msra.mxu0 0.0
    %8187 = vmatprep.mubr.f32.mxu0 0.0
    %8188 = vmatmul.mubr.f32.gmra.mrb[0].mxu0 %v8121
    %v8189 = vpop.f32.mrb[0].mxu0
    %v8190 = vadd.f32 0.0, %v8189
    %v8191 = vpop.f32.mrb[0].mxu0
    %8192 = vdwg.mxu0
    %8193 = vrot.lane.b32.xlu0 %v7861, 112
    %v8194 = vpop.permute.xlu0 %8193
    %8195 = vrot.lane.b32.xlu0 %v7861, 80
    %v8196 = vpop.permute.xlu0 %8195
    %v8197 = vsel %vm296, %v8194, 0
    %v8199 = vsel %vm296, %v8196, 0
    %8201 = vmatprep.subr.mxu0 0.0
    %8202 = vmatpush1.xpose.msra.mxu0 %v8199
    %8203 = vmatprep.subr.mxu0 0.0
    %8204 = vmatpush1.xpose.msra.mxu0 0.0
    %8205 = vmatprep.subr.mxu0 0.0
    %8206 = vmatpush1.xpose.msra.mxu0 0.0
    %8207 = vmatprep.subr.mxu0 0.0
    %8208 = vmatpush1.xpose.msra.mxu0 0.0
    %8209 = vmatprep.subr.mxu0 0.0
    %8210 = vmatpush1.xpose.msra.mxu0 0.0
    %8211 = vmatprep.subr.mxu0 0.0
    %8212 = vmatpush1.xpose.msra.mxu0 0.0
    %8213 = vmatprep.subr.mxu0 0.0
    %8214 = vmatpush1.xpose.msra.mxu0 0.0
    %8215 = vmatprep.subr.mxu0 0.0
    %8216 = vmatpush1.xpose.msra.mxu0 0.0
    %8217 = vmatprep.subr.mxu0 0.0
    %8218 = vmatpush1.xpose.msra.mxu0 0.0
    %8219 = vmatprep.subr.mxu0 0.0
    %8220 = vmatpush1.xpose.msra.mxu0 0.0
    %8221 = vmatprep.subr.mxu0 0.0
    %8222 = vmatpush1.xpose.msra.mxu0 0.0
    %8223 = vmatprep.subr.mxu0 0.0
    %8224 = vmatpush1.xpose.msra.mxu0 0.0
    %8225 = vmatprep.subr.mxu0 0.0
    %8226 = vmatpush1.xpose.msra.mxu0 0.0
    %8227 = vmatprep.subr.mxu0 0.0
    %8228 = vmatpush1.xpose.msra.mxu0 0.0
    %8229 = vmatprep.subr.mxu0 0.0
    %8230 = vmatpush1.xpose.msra.mxu0 0.0
    %8231 = vmatprep.subr.mxu0 0.0
    %8232 = vmatpush1.xpose.msra.mxu0 0.0
    %8233 = vmatprep.subr.mxu0 0.0
    %8234 = vmatpush1.xpose.msra.mxu0 0.0
    %8235 = vmatprep.subr.mxu0 0.0
    %8236 = vmatpush1.xpose.msra.mxu0 0.0
    %8237 = vmatprep.subr.mxu0 0.0
    %8238 = vmatpush1.xpose.msra.mxu0 0.0
    %8239 = vmatprep.subr.mxu0 0.0
    %8240 = vmatpush1.xpose.msra.mxu0 0.0
    %8241 = vmatprep.subr.mxu0 0.0
    %8242 = vmatpush1.xpose.msra.mxu0 0.0
    %8243 = vmatprep.subr.mxu0 0.0
    %8244 = vmatpush1.xpose.msra.mxu0 0.0
    %8245 = vmatprep.subr.mxu0 0.0
    %8246 = vmatpush1.xpose.msra.mxu0 0.0
    %8247 = vmatprep.subr.mxu0 0.0
    %8248 = vmatpush1.xpose.msra.mxu0 0.0
    %8249 = vmatprep.subr.mxu0 0.0
    %8250 = vmatpush1.xpose.msra.mxu0 0.0
    %8251 = vmatprep.subr.mxu0 0.0
    %8252 = vmatpush1.xpose.msra.mxu0 0.0
    %8253 = vmatprep.subr.mxu0 0.0
    %8254 = vmatpush1.xpose.msra.mxu0 0.0
    %8255 = vmatprep.subr.mxu0 0.0
    %8256 = vmatpush1.xpose.msra.mxu0 0.0
    %8257 = vmatprep.subr.mxu0 0.0
    %8258 = vmatpush1.xpose.msra.mxu0 0.0
    %8259 = vmatprep.subr.mxu0 0.0
    %8260 = vmatpush1.xpose.msra.mxu0 0.0
    %8261 = vmatprep.subr.mxu0 0.0
    %8262 = vmatpush1.xpose.msra.mxu0 0.0
    %8263 = vmatprep.subr.mxu0 0.0
    %8264 = vmatpush1.xpose.msra.mxu0 0.0
    %8265 = vmatprep.mubr.f32.mxu0 0.0
    %8266 = vmatmul.mubr.f32.gmra.mrb[0].mxu0 %v8197
    %v8267 = vpop.f32.mrb[0].mxu0
    %v8268 = vadd.f32 %v6787, %v8267
    %v8269 = vpop.f32.mrb[0].mxu0
    %8270 = vdwg.mxu0
    %v8271 = vsel %vm296, %v8268, -inf
    %8272 = vmax.xlane.f32.xlu0 %v8271
    %v8273 = vpop.xlane.xlu0 %8272
    %v8274 = vsub.f32 %v8268, %v8273
    %v8275 = vmul.f32 %v8274, 1.442695
    %v8276 = vpow.pop %v8275
    %v8277 = vsel %vm296, %v8276, 0.0
    %8278 = vadd.xlane.f32.xlu0 %v8277
    %v8279 = vpop.xlane.xlu0 %8278
    %v8280 = vrcp.pop %v8279
    %v8281 = vmul.f32 %v8276, %v8280
    %8282 = vrot.lane.b32.xlu0 %v7861, 48
    %v8283 = vpop.permute.xlu0 %8282
    %v8286 = vsel %vm296, %v8281, 0
    %8288 = vmatprep.subr.mxu0 0.0
    %8289 = vmatpush1.msra.mxu0 %v8283
    %8290 = vmatprep.subr.mxu0 0.0
    %8291 = vmatpush1.msra.mxu0 0.0
    %8292 = vmatprep.subr.mxu0 0.0
    %8293 = vmatpush1.msra.mxu0 0.0
    %8294 = vmatprep.subr.mxu0 0.0
    %8295 = vmatpush1.msra.mxu0 0.0
    %8296 = vmatprep.subr.mxu0 0.0
    %8297 = vmatpush1.msra.mxu0 0.0
    %8298 = vmatprep.subr.mxu0 0.0
    %8299 = vmatpush1.msra.mxu0 0.0
    %8300 = vmatprep.subr.mxu0 0.0
    %8301 = vmatpush1.msra.mxu0 0.0
    %8302 = vmatprep.subr.mxu0 0.0
    %8303 = vmatpush1.msra.mxu0 0.0
    %8304 = vmatprep.subr.mxu0 0.0
    %8305 = vmatpush1.msra.mxu0 0.0
    %8306 = vmatprep.subr.mxu0 0.0
    %8307 = vmatpush1.msra.mxu0 0.0
    %8308 = vmatprep.subr.mxu0 0.0
    %8309 = vmatpush1.msra.mxu0 0.0
    %8310 = vmatprep.subr.mxu0 0.0
    %8311 = vmatpush1.msra.mxu0 0.0
    %8312 = vmatprep.subr.mxu0 0.0
    %8313 = vmatpush1.msra.mxu0 0.0
    %8314 = vmatprep.subr.mxu0 0.0
    %8315 = vmatpush1.msra.mxu0 0.0
    %8316 = vmatprep.subr.mxu0 0.0
    %8317 = vmatpush1.msra.mxu0 0.0
    %8318 = vmatprep.subr.mxu0 0.0
    %8319 = vmatpush1.msra.mxu0 0.0
    %8320 = vmatprep.subr.mxu0 0.0
    %8321 = vmatpush1.msra.mxu0 0.0
    %8322 = vmatprep.subr.mxu0 0.0
    %8323 = vmatpush1.msra.mxu0 0.0
    %8324 = vmatprep.subr.mxu0 0.0
    %8325 = vmatpush1.msra.mxu0 0.0
    %8326 = vmatprep.subr.mxu0 0.0
    %8327 = vmatpush1.msra.mxu0 0.0
    %8328 = vmatprep.subr.mxu0 0.0
    %8329 = vmatpush1.msra.mxu0 0.0
    %8330 = vmatprep.subr.mxu0 0.0
    %8331 = vmatpush1.msra.mxu0 0.0
    %8332 = vmatprep.subr.mxu0 0.0
    %8333 = vmatpush1.msra.mxu0 0.0
    %8334 = vmatprep.subr.mxu0 0.0
    %8335 = vmatpush1.msra.mxu0 0.0
    %8336 = vmatprep.subr.mxu0 0.0
    %8337 = vmatpush1.msra.mxu0 0.0
    %8338 = vmatprep.subr.mxu0 0.0
    %8339 = vmatpush1.msra.mxu0 0.0
    %8340 = vmatprep.subr.mxu0 0.0
    %8341 = vmatpush1.msra.mxu0 0.0
    %8342 = vmatprep.subr.mxu0 0.0
    %8343 = vmatpush1.msra.mxu0 0.0
    %8344 = vmatprep.subr.mxu0 0.0
    %8345 = vmatpush1.msra.mxu0 0.0
    %8346 = vmatprep.subr.mxu0 0.0
    %8347 = vmatpush1.msra.mxu0 0.0
    %8348 = vmatprep.subr.mxu0 0.0
    %8349 = vmatpush1.msra.mxu0 0.0
    %8350 = vmatprep.subr.mxu0 0.0
    %8351 = vmatpush1.msra.mxu0 0.0
    %8352 = vmatprep.mubr.f32.mxu0 0.0
    %8353 = vmatmul.mubr.f32.gmra.mrb[0].mxu0 %v8286
    %v8354 = vpop.f32.mrb[0].mxu0
    %v8355 = vadd.f32 0.0, %v8354
    %v8356 = vpop.f32.mrb[0].mxu0
    %8357 = vdwg.mxu0
    %8358 = vrot.lane.b32.xlu0 %v7861, 104
    %v8359 = vpop.permute.xlu0 %8358
    %8360 = vrot.lane.b32.xlu0 %v7861, 72
    %v8361 = vpop.permute.xlu0 %8360
    %v8362 = vsel %vm296, %v8359, 0
    %v8364 = vsel %vm296, %v8361, 0
    %8366 = vmatprep.subr.mxu0 0.0
    %8367 = vmatpush1.xpose.msra.mxu0 %v8364
    %8368 = vmatprep.subr.mxu0 0.0
    %8369 = vmatpush1.xpose.msra.mxu0 0.0
    %8370 = vmatprep.subr.mxu0 0.0
    %8371 = vmatpush1.xpose.msra.mxu0 0.0
    %8372 = vmatprep.subr.mxu0 0.0
    %8373 = vmatpush1.xpose.msra.mxu0 0.0
    %8374 = vmatprep.subr.mxu0 0.0
    %8375 = vmatpush1.xpose.msra.mxu0 0.0
    %8376 = vmatprep.subr.mxu0 0.0
    %8377 = vmatpush1.xpose.msra.mxu0 0.0
    %8378 = vmatprep.subr.mxu0 0.0
    %8379 = vmatpush1.xpose.msra.mxu0 0.0
    %8380 = vmatprep.subr.mxu0 0.0
    %8381 = vmatpush1.xpose.msra.mxu0 0.0
    %8382 = vmatprep.subr.mxu0 0.0
    %8383 = vmatpush1.xpose.msra.mxu0 0.0
    %8384 = vmatprep.subr.mxu0 0.0
    %8385 = vmatpush1.xpose.msra.mxu0 0.0
    %8386 = vmatprep.subr.mxu0 0.0
    %8387 = vmatpush1.xpose.msra.mxu0 0.0
    %8388 = vmatprep.subr.mxu0 0.0
    %8389 = vmatpush1.xpose.msra.mxu0 0.0
    %8390 = vmatprep.subr.mxu0 0.0
    %8391 = vmatpush1.xpose.msra.mxu0 0.0
    %8392 = vmatprep.subr.mxu0 0.0
    %8393 = vmatpush1.xpose.msra.mxu0 0.0
    %8394 = vmatprep.subr.mxu0 0.0
    %8395 = vmatpush1.xpose.msra.mxu0 0.0
    %8396 = vmatprep.subr.mxu0 0.0
    %8397 = vmatpush1.xpose.msra.mxu0 0.0
    %8398 = vmatprep.subr.mxu0 0.0
    %8399 = vmatpush1.xpose.msra.mxu0 0.0
    %8400 = vmatprep.subr.mxu0 0.0
    %8401 = vmatpush1.xpose.msra.mxu0 0.0
    %8402 = vmatprep.subr.mxu0 0.0
    %8403 = vmatpush1.xpose.msra.mxu0 0.0
    %8404 = vmatprep.subr.mxu0 0.0
    %8405 = vmatpush1.xpose.msra.mxu0 0.0
    %8406 = vmatprep.subr.mxu0 0.0
    %8407 = vmatpush1.xpose.msra.mxu0 0.0
    %8408 = vmatprep.subr.mxu0 0.0
    %8409 = vmatpush1.xpose.msra.mxu0 0.0
    %8410 = vmatprep.subr.mxu0 0.0
    %8411 = vmatpush1.xpose.msra.mxu0 0.0
    %8412 = vmatprep.subr.mxu0 0.0
    %8413 = vmatpush1.xpose.msra.mxu0 0.0
    %8414 = vmatprep.subr.mxu0 0.0
    %8415 = vmatpush1.xpose.msra.mxu0 0.0
    %8416 = vmatprep.subr.mxu0 0.0
    %8417 = vmatpush1.xpose.msra.mxu0 0.0
    %8418 = vmatprep.subr.mxu0 0.0
    %8419 = vmatpush1.xpose.msra.mxu0 0.0
    %8420 = vmatprep.subr.mxu0 0.0
    %8421 = vmatpush1.xpose.msra.mxu0 0.0
    %8422 = vmatprep.subr.mxu0 0.0
    %8423 = vmatpush1.xpose.msra.mxu0 0.0
    %8424 = vmatprep.subr.mxu0 0.0
    %8425 = vmatpush1.xpose.msra.mxu0 0.0
    %8426 = vmatprep.subr.mxu0 0.0
    %8427 = vmatpush1.xpose.msra.mxu0 0.0
    %8428 = vmatprep.subr.mxu0 0.0
    %8429 = vmatpush1.xpose.msra.mxu0 0.0
    %8430 = vmatprep.mubr.f32.mxu0 0.0
    %8431 = vmatmul.mubr.f32.gmra.mrb[0].mxu0 %v8362
    %v8432 = vpop.f32.mrb[0].mxu0
    %v8433 = vadd.f32 %v6787, %v8432
    %v8434 = vpop.f32.mrb[0].mxu0
    %8435 = vdwg.mxu0
    %v8436 = vsel %vm296, %v8433, -inf
    %8437 = vmax.xlane.f32.xlu0 %v8436
    %v8438 = vpop.xlane.xlu0 %8437
    %v8439 = vsub.f32 %v8433, %v8438
    %v8440 = vmul.f32 %v8439, 1.442695
    %v8441 = vpow.pop %v8440
    %v8442 = vsel %vm296, %v8441, 0.0
    %8443 = vadd.xlane.f32.xlu0 %v8442
    %v8444 = vpop.xlane.xlu0 %8443
    %v8445 = vrcp.pop %v8444
    %v8446 = vmul.f32 %v8441, %v8445
    %8447 = vrot.lane.b32.xlu0 %v7861, 40
    %v8448 = vpop.permute.xlu0 %8447
    %v8451 = vsel %vm296, %v8446, 0
    %8453 = vmatprep.subr.mxu0 0.0
    %8454 = vmatpush1.msra.mxu0 %v8448
    %8455 = vmatprep.subr.mxu0 0.0
    %8456 = vmatpush1.msra.mxu0 0.0
    %8457 = vmatprep.subr.mxu0 0.0
    %8458 = vmatpush1.msra.mxu0 0.0
    %8459 = vmatprep.subr.mxu0 0.0
    %8460 = vmatpush1.msra.mxu0 0.0
    %8461 = vmatprep.subr.mxu0 0.0
    %8462 = vmatpush1.msra.mxu0 0.0
    %8463 = vmatprep.subr.mxu0 0.0
    %8464 = vmatpush1.msra.mxu0 0.0
    %8465 = vmatprep.subr.mxu0 0.0
    %8466 = vmatpush1.msra.mxu0 0.0
    %8467 = vmatprep.subr.mxu0 0.0
    %8468 = vmatpush1.msra.mxu0 0.0
    %8469 = vmatprep.subr.mxu0 0.0
    %8470 = vmatpush1.msra.mxu0 0.0
    %8471 = vmatprep.subr.mxu0 0.0
    %8472 = vmatpush1.msra.mxu0 0.0
    %8473 = vmatprep.subr.mxu0 0.0
    %8474 = vmatpush1.msra.mxu0 0.0
    %8475 = vmatprep.subr.mxu0 0.0
    %8476 = vmatpush1.msra.mxu0 0.0
    %8477 = vmatprep.subr.mxu0 0.0
    %8478 = vmatpush1.msra.mxu0 0.0
    %8479 = vmatprep.subr.mxu0 0.0
    %8480 = vmatpush1.msra.mxu0 0.0
    %8481 = vmatprep.subr.mxu0 0.0
    %8482 = vmatpush1.msra.mxu0 0.0
    %8483 = vmatprep.subr.mxu0 0.0
    %8484 = vmatpush1.msra.mxu0 0.0
    %8485 = vmatprep.subr.mxu0 0.0
    %8486 = vmatpush1.msra.mxu0 0.0
    %8487 = vmatprep.subr.mxu0 0.0
    %8488 = vmatpush1.msra.mxu0 0.0
    %8489 = vmatprep.subr.mxu0 0.0
    %8490 = vmatpush1.msra.mxu0 0.0
    %8491 = vmatprep.subr.mxu0 0.0
    %8492 = vmatpush1.msra.mxu0 0.0
    %8493 = vmatprep.subr.mxu0 0.0
    %8494 = vmatpush1.msra.mxu0 0.0
    %8495 = vmatprep.subr.mxu0 0.0
    %8496 = vmatpush1.msra.mxu0 0.0
    %8497 = vmatprep.subr.mxu0 0.0
    %8498 = vmatpush1.msra.mxu0 0.0
    %8499 = vmatprep.subr.mxu0 0.0
    %8500 = vmatpush1.msra.mxu0 0.0
    %8501 = vmatprep.subr.mxu0 0.0
    %8502 = vmatpush1.msra.mxu0 0.0
    %8503 = vmatprep.subr.mxu0 0.0
    %8504 = vmatpush1.msra.mxu0 0.0
    %8505 = vmatprep.subr.mxu0 0.0
    %8506 = vmatpush1.msra.mxu0 0.0
    %8507 = vmatprep.subr.mxu0 0.0
    %8508 = vmatpush1.msra.mxu0 0.0
    %8509 = vmatprep.subr.mxu0 0.0
    %8510 = vmatpush1.msra.mxu0 0.0
    %8511 = vmatprep.subr.mxu0 0.0
    %8512 = vmatpush1.msra.mxu0 0.0
    %8513 = vmatprep.subr.mxu0 0.0
    %8514 = vmatpush1.msra.mxu0 0.0
    %8515 = vmatprep.subr.mxu0 0.0
    %8516 = vmatpush1.msra.mxu0 0.0
    %8517 = vmatprep.mubr.f32.mxu0 0.0
    %8518 = vmatmul.mubr.f32.gmra.mrb[0].mxu0 %v8451
    %v8519 = vpop.f32.mrb[0].mxu0
    %v8520 = vadd.f32 0.0, %v8519
    %v8521 = vpop.f32.mrb[0].mxu0
    %8522 = vdwg.mxu0
    %8524 = vrot.lane.b32.xlu0 %v8190, 8
    %v8525 = vpop.permute.xlu0 %8524
    %8528 = vrot.lane.b32.xlu0 %v8355, 16
    %v8529 = vpop.permute.xlu0 %8528
    %8532 = vrot.lane.b32.xlu0 %v8520, 24
    %v8533 = vpop.permute.xlu0 %8532
    %v8535 = vsel %vm296, %v8025, %v8525
    %v8536 = vsel %vm966, %v8535, %v8529
    %v8537 = vsel %vm968, %v8536, %v8533
    %v8539 = vsel %vm219, %v8537, 0
    %8541 = vmatprep.subr.mxu0 0.0
    %8542 = vmatpush1.msra.mxu0 %v107
    %8543 = vmatprep.subr.mxu0 0.0
    %8544 = vmatpush1.msra.mxu0 %v108
    %8545 = vmatprep.subr.mxu0 0.0
    %8546 = vmatpush1.msra.mxu0 %v109
    %8547 = vmatprep.subr.mxu0 0.0
    %8548 = vmatpush1.msra.mxu0 %v110
    %8549 = vmatprep.subr.mxu0 0.0
    %8550 = vmatpush1.msra.mxu0 0.0
    %8551 = vmatprep.subr.mxu0 0.0
    %8552 = vmatpush1.msra.mxu0 0.0
    %8553 = vmatprep.subr.mxu0 0.0
    %8554 = vmatpush1.msra.mxu0 0.0
    %8555 = vmatprep.subr.mxu0 0.0
    %8556 = vmatpush1.msra.mxu0 0.0
    %8557 = vmatprep.subr.mxu0 0.0
    %8558 = vmatpush1.msra.mxu0 0.0
    %8559 = vmatprep.subr.mxu0 0.0
    %8560 = vmatpush1.msra.mxu0 0.0
    %8561 = vmatprep.subr.mxu0 0.0
    %8562 = vmatpush1.msra.mxu0 0.0
    %8563 = vmatprep.subr.mxu0 0.0
    %8564 = vmatpush1.msra.mxu0 0.0
    %8565 = vmatprep.subr.mxu0 0.0
    %8566 = vmatpush1.msra.mxu0 0.0
    %8567 = vmatprep.subr.mxu0 0.0
    %8568 = vmatpush1.msra.mxu0 0.0
    %8569 = vmatprep.subr.mxu0 0.0
    %8570 = vmatpush1.msra.mxu0 0.0
    %8571 = vmatprep.subr.mxu0 0.0
    %8572 = vmatpush1.msra.mxu0 0.0
    %8573 = vmatprep.subr.mxu0 0.0
    %8574 = vmatpush1.msra.mxu0 0.0
    %8575 = vmatprep.subr.mxu0 0.0
    %8576 = vmatpush1.msra.mxu0 0.0
    %8577 = vmatprep.subr.mxu0 0.0
    %8578 = vmatpush1.msra.mxu0 0.0
    %8579 = vmatprep.subr.mxu0 0.0
    %8580 = vmatpush1.msra.mxu0 0.0
    %8581 = vmatprep.subr.mxu0 0.0
    %8582 = vmatpush1.msra.mxu0 0.0
    %8583 = vmatprep.subr.mxu0 0.0
    %8584 = vmatpush1.msra.mxu0 0.0
    %8585 = vmatprep.subr.mxu0 0.0
    %8586 = vmatpush1.msra.mxu0 0.0
    %8587 = vmatprep.subr.mxu0 0.0
    %8588 = vmatpush1.msra.mxu0 0.0
    %8589 = vmatprep.subr.mxu0 0.0
    %8590 = vmatpush1.msra.mxu0 0.0
    %8591 = vmatprep.subr.mxu0 0.0
    %8592 = vmatpush1.msra.mxu0 0.0
    %8593 = vmatprep.subr.mxu0 0.0
    %8594 = vmatpush1.msra.mxu0 0.0
    %8595 = vmatprep.subr.mxu0 0.0
    %8596 = vmatpush1.msra.mxu0 0.0
    %8597 = vmatprep.subr.mxu0 0.0
    %8598 = vmatpush1.msra.mxu0 0.0
    %8599 = vmatprep.subr.mxu0 0.0
    %8600 = vmatpush1.msra.mxu0 0.0
    %8601 = vmatprep.subr.mxu0 0.0
    %8602 = vmatpush1.msra.mxu0 0.0
    %8603 = vmatprep.subr.mxu0 0.0
    %8604 = vmatpush1.msra.mxu0 0.0
    %8605 = vmatprep.mubr.f32.mxu0 0.0
    %8606 = vmatmul.mubr.f32.gmra.mrb[0].mxu0 %v8539
    %v8607 = vpop.f32.mrb[0].mxu0
    %v8608 = vadd.f32 %v2010, %v8607
    %v8609 = vpop.f32.mrb[0].mxu0
    %8610 = vdwg.mxu0
    %v8611 = vadd.f32 %v7790, %v8608
    %v8612 = vsel %vm219, %v8611, 0.0
    %8613 = vadd.xlane.f32.xlu0 %v8612
    %v8614 = vpop.xlane.xlu0 %8613
    %v8615 = vmul.f32 %v8614, %v1051
    %v8616 = vmul.f32 %v8611, %v8611
    %v8617 = vsel %vm219, %v8616, 0.0
    %8618 = vadd.xlane.f32.xlu0 %v8617
    %v8619 = vpop.xlane.xlu0 %8618
    %v8620 = vmul.f32 %v8619, %v1051
    %v8621 = vmul.f32 %v8615, %v8615
    %v8622 = vsub.f32 %v8620, %v8621
    %v8623 = vsub.f32 %v8611, %v8615
    %v8624 = vadd.f32 %v8622, 1e-05
    %v8625 = vrsqrt.pop %v8624
    %v8626 = vmul.f32 %v8623, %v8625
    %v8627 = vmul.f32 %v8626, %v2103
    %v8628 = vadd.f32 %v8627, %v2108
    %v8630 = vsel %vm219, %v8628, 0
    %8632 = vmatprep.subr.mxu0 0.0
    %8633 = vmatpush1.msra.mxu0 %v112
    %8634 = vmatprep.subr.mxu0 0.0
    %8635 = vmatpush1.msra.mxu0 %v113
    %8636 = vmatprep.subr.mxu0 0.0
    %8637 = vmatpush1.msra.mxu0 %v114
    %8638 = vmatprep.subr.mxu0 0.0
    %8639 = vmatpush1.msra.mxu0 %v115
    %8640 = vmatprep.subr.mxu0 0.0
    %8641 = vmatpush1.msra.mxu0 0.0
    %8642 = vmatprep.subr.mxu0 0.0
    %8643 = vmatpush1.msra.mxu0 0.0
    %8644 = vmatprep.subr.mxu0 0.0
    %8645 = vmatpush1.msra.mxu0 0.0
    %8646 = vmatprep.subr.mxu0 0.0
    %8647 = vmatpush1.msra.mxu0 0.0
    %8648 = vmatprep.subr.mxu0 0.0
    %8649 = vmatpush1.msra.mxu0 0.0
    %8650 = vmatprep.subr.mxu0 0.0
    %8651 = vmatpush1.msra.mxu0 0.0
    %8652 = vmatprep.subr.mxu0 0.0
    %8653 = vmatpush1.msra.mxu0 0.0
    %8654 = vmatprep.subr.mxu0 0.0
    %8655 = vmatpush1.msra.mxu0 0.0
    %8656 = vmatprep.subr.mxu0 0.0
    %8657 = vmatpush1.msra.mxu0 0.0
    %8658 = vmatprep.subr.mxu0 0.0
    %8659 = vmatpush1.msra.mxu0 0.0
    %8660 = vmatprep.subr.mxu0 0.0
    %8661 = vmatpush1.msra.mxu0 0.0
    %8662 = vmatprep.subr.mxu0 0.0
    %8663 = vmatpush1.msra.mxu0 0.0
    %8664 = vmatprep.subr.mxu0 0.0
    %8665 = vmatpush1.msra.mxu0 0.0
    %8666 = vmatprep.subr.mxu0 0.0
    %8667 = vmatpush1.msra.mxu0 0.0
    %8668 = vmatprep.subr.mxu0 0.0
    %8669 = vmatpush1.msra.mxu0 0.0
    %8670 = vmatprep.subr.mxu0 0.0
    %8671 = vmatpush1.msra.mxu0 0.0
    %8672 = vmatprep.subr.mxu0 0.0
    %8673 = vmatpush1.msra.mxu0 0.0
    %8674 = vmatprep.subr.mxu0 0.0
    %8675 = vmatpush1.msra.mxu0 0.0
    %8676 = vmatprep.subr.mxu0 0.0
    %8677 = vmatpush1.msra.mxu0 0.0
    %8678 = vmatprep.subr.mxu0 0.0
    %8679 = vmatpush1.msra.mxu0 0.0
    %8680 = vmatprep.subr.mxu0 0.0
    %8681 = vmatpush1.msra.mxu0 0.0
    %8682 = vmatprep.subr.mxu0 0.0
    %8683 = vmatpush1.msra.mxu0 0.0
    %8684 = vmatprep.subr.mxu0 0.0
    %8685 = vmatpush1.msra.mxu0 0.0
    %8686 = vmatprep.subr.mxu0 0.0
    %8687 = vmatpush1.msra.mxu0 0.0
    %8688 = vmatprep.subr.mxu0 0.0
    %8689 = vmatpush1.msra.mxu0 0.0
    %8690 = vmatprep.subr.mxu0 0.0
    %8691 = vmatpush1.msra.mxu0 0.0
    %8692 = vmatprep.subr.mxu0 0.0
    %8693 = vmatpush1.msra.mxu0 0.0
    %8694 = vmatprep.subr.mxu0 0.0
    %8695 = vmatpush1.msra.mxu0 0.0
    %8696 = vmatprep.mubr.f32.mxu0 0.0
    %8697 = vmatmul.mubr.f32.gmra.mrb[0].mxu0 %v8630
    %v8698 = vpop.f32.mrb[0].mxu0
    %v8699 = vadd.f32 %v2113, %v8698
    %v8700 = vpop.f32.mrb[0].mxu0
    %8701 = vdwg.mxu0
    %v8702 = vmax.f32 %v8699, 0.0
    %v8704 = vsel %vm1156, %v8702, 0
    %8706 = vmatprep.subr.mxu0 0.0
    %8707 = vmatpush1.msra.mxu0 %v117
    %8708 = vmatprep.subr.mxu0 0.0
    %8709 = vmatpush1.msra.mxu0 %v118
    %8710 = vmatprep.subr.mxu0 0.0
    %8711 = vmatpush1.msra.mxu0 %v119
    %8712 = vmatprep.subr.mxu0 0.0
    %8713 = vmatpush1.msra.mxu0 %v120
    %8714 = vmatprep.subr.mxu0 0.0
    %8715 = vmatpush1.msra.mxu0 %v121
    %8716 = vmatprep.subr.mxu0 0.0
    %8717 = vmatpush1.msra.mxu0 %v122
    %8718 = vmatprep.subr.mxu0 0.0
    %8719 = vmatpush1.msra.mxu0 %v123
    %8720 = vmatprep.subr.mxu0 0.0
    %8721 = vmatpush1.msra.mxu0 %v124
    %8722 = vmatprep.subr.mxu0 0.0
    %8723 = vmatpush1.msra.mxu0 0.0
    %8724 = vmatprep.subr.mxu0 0.0
    %8725 = vmatpush1.msra.mxu0 0.0
    %8726 = vmatprep.subr.mxu0 0.0
    %8727 = vmatpush1.msra.mxu0 0.0
    %8728 = vmatprep.subr.mxu0 0.0
    %8729 = vmatpush1.msra.mxu0 0.0
    %8730 = vmatprep.subr.mxu0 0.0
    %8731 = vmatpush1.msra.mxu0 0.0
    %8732 = vmatprep.subr.mxu0 0.0
    %8733 = vmatpush1.msra.mxu0 0.0
    %8734 = vmatprep.subr.mxu0 0.0
    %8735 = vmatpush1.msra.mxu0 0.0
    %8736 = vmatprep.subr.mxu0 0.0
    %8737 = vmatpush1.msra.mxu0 0.0
    %8738 = vmatprep.subr.mxu0 0.0
    %8739 = vmatpush1.msra.mxu0 0.0
    %8740 = vmatprep.subr.mxu0 0.0
    %8741 = vmatpush1.msra.mxu0 0.0
    %8742 = vmatprep.subr.mxu0 0.0
    %8743 = vmatpush1.msra.mxu0 0.0
    %8744 = vmatprep.subr.mxu0 0.0
    %8745 = vmatpush1.msra.mxu0 0.0
    %8746 = vmatprep.subr.mxu0 0.0
    %8747 = vmatpush1.msra.mxu0 0.0
    %8748 = vmatprep.subr.mxu0 0.0
    %8749 = vmatpush1.msra.mxu0 0.0
    %8750 = vmatprep.subr.mxu0 0.0
    %8751 = vmatpush1.msra.mxu0 0.0
    %8752 = vmatprep.subr.mxu0 0.0
    %8753 = vmatpush1.msra.mxu0 0.0
    %8754 = vmatprep.subr.mxu0 0.0
    %8755 = vmatpush1.msra.mxu0 0.0
    %8756 = vmatprep.subr.mxu0 0.0
    %8757 = vmatpush1.msra.mxu0 0.0
    %8758 = vmatprep.subr.mxu0 0.0
    %8759 = vmatpush1.msra.mxu0 0.0
    %8760 = vmatprep.subr.mxu0 0.0
    %8761 = vmatpush1.msra.mxu0 0.0
    %8762 = vmatprep.subr.mxu0 0.0
    %8763 = vmatpush1.msra.mxu0 0.0
    %8764 = vmatprep.subr.mxu0 0.0
    %8765 = vmatpush1.msra.mxu0 0.0
    %8766 = vmatprep.subr.mxu0 0.0
    %8767 = vmatpush1.msra.mxu0 0.0
    %8768 = vmatprep.subr.mxu0 0.0
    %8769 = vmatpush1.msra.mxu0 0.0
    %8770 = vmatprep.mubr.f32.mxu0 0.0
    %8771 = vmatmul.mubr.f32.gmra.mrb[0].mxu0 %v8704
    %v8772 = vpop.f32.mrb[0].mxu0
    %v8773 = vadd.f32 %v2191, %v8772
    %v8774 = vpop.f32.mrb[0].mxu0
    %8775 = vdwg.mxu0
    %v8776 = vadd.f32 %v8628, %v8773
    %v8777 = vsel %vm219, %v8776, 0.0
    %8778 = vadd.xlane.f32.xlu0 %v8777
    %v8779 = vpop.xlane.xlu0 %8778
    %v8780 = vmul.f32 %v8779, %v1051
    %v8781 = vmul.f32 %v8776, %v8776
    %v8782 = vsel %vm219, %v8781, 0.0
    %8783 = vadd.xlane.f32.xlu0 %v8782
    %v8784 = vpop.xlane.xlu0 %8783
    %v8785 = vmul.f32 %v8784, %v1051
    %v8786 = vmul.f32 %v8780, %v8780
    %v8787 = vsub.f32 %v8785, %v8786
    %v8788 = vsub.f32 %v8776, %v8780
    %v8789 = vadd.f32 %v8787, 1e-05
    %v8790 = vrsqrt.pop %v8789
    %v8791 = vmul.f32 %v8788, %v8790
    %v8792 = vmul.f32 %v8791, %v2284
    %v8793 = vadd.f32 %v8792, %v2289
    %vm8794 = vcmp.eq.s32.totalorder %v136, 3
    %v8795 = vsel %vm8794, %v8793, 0.0
    %v8796 = vsel %vm219, %v8795, 0.0
    %v8797 = vrot.slane %v8796, 4
    %v8798 = vadd.f32 %v8796, %v8797
    %v8799 = vrot.slane %v8798, 2
    %v8800 = vadd.f32 %v8798, %v8799
    %v8801 = vrot.slane %v8800, 1
    %v8802 = vadd.f32 %v8800, %v8801
    %v8804 = vsel %vm219, %v8802, 0
    %8806 = vmatprep.subr.mxu0 0.0
    %8807 = vmatpush1.msra.mxu0 %v67
    %8808 = vmatprep.subr.mxu0 0.0
    %8809 = vmatpush1.msra.mxu0 %v68
    %8810 = vmatprep.subr.mxu0 0.0
    %8811 = vmatpush1.msra.mxu0 %v69
    %8812 = vmatprep.subr.mxu0 0.0
    %8813 = vmatpush1.msra.mxu0 %v70
    %8814 = vmatprep.subr.mxu0 0.0
    %8815 = vmatpush1.msra.mxu0 0.0
    %8816 = vmatprep.subr.mxu0 0.0
    %8817 = vmatpush1.msra.mxu0 0.0
    %8818 = vmatprep.subr.mxu0 0.0
    %8819 = vmatpush1.msra.mxu0 0.0
    %8820 = vmatprep.subr.mxu0 0.0
    %8821 = vmatpush1.msra.mxu0 0.0
    %8822 = vmatprep.subr.mxu0 0.0
    %8823 = vmatpush1.msra.mxu0 0.0
    %8824 = vmatprep.subr.mxu0 0.0
    %8825 = vmatpush1.msra.mxu0 0.0
    %8826 = vmatprep.subr.mxu0 0.0
    %8827 = vmatpush1.msra.mxu0 0.0
    %8828 = vmatprep.subr.mxu0 0.0
    %8829 = vmatpush1.msra.mxu0 0.0
    %8830 = vmatprep.subr.mxu0 0.0
    %8831 = vmatpush1.msra.mxu0 0.0
    %8832 = vmatprep.subr.mxu0 0.0
    %8833 = vmatpush1.msra.mxu0 0.0
    %8834 = vmatprep.subr.mxu0 0.0
    %8835 = vmatpush1.msra.mxu0 0.0
    %8836 = vmatprep.subr.mxu0 0.0
    %8837 = vmatpush1.msra.mxu0 0.0
    %8838 = vmatprep.subr.mxu0 0.0
    %8839 = vmatpush1.msra.mxu0 0.0
    %8840 = vmatprep.subr.mxu0 0.0
    %8841 = vmatpush1.msra.mxu0 0.0
    %8842 = vmatprep.subr.mxu0 0.0
    %8843 = vmatpush1.msra.mxu0 0.0
    %8844 = vmatprep.subr.mxu0 0.0
    %8845 = vmatpush1.msra.mxu0 0.0
    %8846 = vmatprep.subr.mxu0 0.0
    %8847 = vmatpush1.msra.mxu0 0.0
    %8848 = vmatprep.subr.mxu0 0.0
    %8849 = vmatpush1.msra.mxu0 0.0
    %8850 = vmatprep.subr.mxu0 0.0
    %8851 = vmatpush1.msra.mxu0 0.0
    %8852 = vmatprep.subr.mxu0 0.0
    %8853 = vmatpush1.msra.mxu0 0.0
    %8854 = vmatprep.subr.mxu0 0.0
    %8855 = vmatpush1.msra.mxu0 0.0
    %8856 = vmatprep.subr.mxu0 0.0
    %8857 = vmatpush1.msra.mxu0 0.0
    %8858 = vmatprep.subr.mxu0 0.0
    %8859 = vmatpush1.msra.mxu0 0.0
    %8860 = vmatprep.subr.mxu0 0.0
    %8861 = vmatpush1.msra.mxu0 0.0
    %8862 = vmatprep.subr.mxu0 0.0
    %8863 = vmatpush1.msra.mxu0 0.0
    %8864 = vmatprep.subr.mxu0 0.0
    %8865 = vmatpush1.msra.mxu0 0.0
    %8866 = vmatprep.subr.mxu0 0.0
    %8867 = vmatpush1.msra.mxu0 0.0
    %8868 = vmatprep.subr.mxu0 0.0
    %8869 = vmatpush1.msra.mxu0 0.0
    %8870 = vmatprep.mubr.f32.mxu0 0.0
    %8871 = vmatmul.mubr.f32.gmra.mrb[0].mxu0 %v8804
    %v8872 = vpop.f32.mrb[0].mxu0
    %v8873 = vadd.f32 %v72, %v8872
    %v8874 = vpop.f32.mrb[0].mxu0
    %8875 = vdwg.mxu0
    %s8876 = sld [smem:[#allocation2 + $0x3]]
    %v8877 = vsel %vm2374, %v8873, 0.0
    %v8878 = vstv %s8876
    %v8879 = vsel %vm2376, %v8878, %v8877
    %8880 = vst [vmem:[%s10 + $0x4] sm:$0x1] %v8879
    // Predicated region
    $region46: #{transformer_forward.1} parent=1 // pred_check
      _
    $region47: #{transformer_forward.1} parent=1 // pred_check_branch
      %8882 = sbr.rel (0) target = $region49
    $region48: #{transformer_forward.1} parent=1 // pred_region
      _
    $region49: #{transformer_forward.1} parent=1 // pred_fallthru
      _
    // Predicated region
    $region50: #{transformer_forward.1} parent=1 // pred_check
      _
    $region51: #{transformer_forward.1} parent=1 // pred_check_branch
      %8884 = sbr.rel (0) target = $region53
    $region52: #{transformer_forward.1} parent=1 // pred_region
      _
    $region53: #{transformer_forward.1} parent=1 // pred_fallthru
      _
    %8885 = vsyncpa [#allocation3], 1

</llo_original>
